<compile_context>
chip_gen: v6e
topology: v6e:2x2x1
jax: 0.10.0
libtpu: 0.0.40
codegen_flags: <defaults>
</compile_context>

<pallas_src>
import jax
import jax.numpy as jnp
from jax import lax
from jax.experimental import pallas as pl
from jax.experimental.pallas import tpu as pltpu

HIDDEN_SIZE = 256     # the module's hidden_size (lane-dense: 2 x 128)
INPUT_SIZE = 64       # location vocabulary size (small test size)
ATTR_DIM = 20         # weekdayEmb(10) + deltadayEmb(10), fixed by the module
NUM_WEEKDAYS = 7
NUM_DELTADAYS = 14
SEQ_LEN = 8           # number of fused encoder steps in the demo


def encoder_seq_kernel(tok_ref, wk_ref, dd_ref,                  # scalar prefetch (SMEM)
                       emb_ref, attr_ref,                        # embedding tables (VMEM-resident)
                       wihx_ref, wiha_ref, whh_ref, b_ref,       # LSTM weights (VMEM-resident)
                       h0_ref, c0_ref,                           # initial state
                       embcat_ref, out_ref, hfin_ref, cfin_ref,  # outputs (full resident blocks)
                       x_sc, a_sc, xg_sc):                       # VMEM scratch
    T, H = out_ref.shape

    # ---- Prologue: gather all T location / attribute embedding rows. ------
    # (off the recurrence critical path; tables indexed along their untiled
    #  leading axis, ids come from SMEM scalar-prefetch refs)
    for t in range(T):
        tok = tok_ref[t]
        aidx = wk_ref[t] * NUM_DELTADAYS + dd_ref[t]
        x_sc[pl.ds(t, 1), :] = emb_ref[tok]        # (1, H)   location embedding
        a_sc[pl.ds(t, 1), :] = attr_ref[aidx]      # (1, 20)  [weekday | deltaday]

    # embedded_combine = cat(embedding, weekday_emb, deltaday_emb) -> one
    # dense (T, H+20) writeback (lane offsets 0 and 256 are aligned).
    embcat_ref[:, 0:H] = x_sc[...]
    embcat_ref[:, H:H + ATTR_DIM] = a_sc[...]

    # ---- Input-path matmul hoisted out of the recurrence ------------------
    # x_gates = X @ W_ih_x + A @ W_ih_attr + (b_ih + b_hh)   shape (T, 4H)
    xg_sc[...] = (
        jnp.dot(x_sc[...], wihx_ref[...], preferred_element_type=jnp.float32)
        + jnp.dot(a_sc[...], wiha_ref[...], preferred_element_type=jnp.float32)
        + b_ref[...])

    # ---- Serial recurrence: only h @ W_hh + elementwise cell per step ------
    def step(t, carry):
        h, c = carry
        gates = xg_sc[pl.ds(t, 1), :] + jnp.dot(
            h, whh_ref[...], preferred_element_type=jnp.float32)   # (1, 4H)
        i = jax.nn.sigmoid(gates[:, 0:H])
        f = jax.nn.sigmoid(gates[:, H:2 * H])
        g = jnp.tanh(gates[:, 2 * H:3 * H])
        o = jax.nn.sigmoid(gates[:, 3 * H:4 * H])
        c_new = f * c + i * g
        h_new = o * jnp.tanh(c_new)
        out_ref[pl.ds(t, 1), :] = h_new            # row write into resident block
        return h_new, c_new

    h_fin, c_fin = lax.fori_loop(
        0, T, step, (h0_ref[...], c0_ref[...]), unroll=True)

    # Final hidden / cell written exactly once.
    hfin_ref[...] = h_fin
    cfin_ref[...] = c_fin


@jax.jit
def encoder_rnn_sequence(tokens, weekdays, deltadays, hidden, cell, params):
    """Runs EncoderRNN.forward over a T-step sequence in one pallas_call.

    tokens/weekdays/deltadays : int32 (T,)
    hidden, cell              : float32 (num_layers=1, 1, H)
    returns (embedded_combine (T, H+20), output (T, H),
             (hidden (1,1,H), cell (1,1,H)))
    """
    H = HIDDEN_SIZE
    T = tokens.shape[0]

    # One-time exact reorganisation of the two attribute tables into a
    # weekday x deltaday cross table: attr_table[w*14 + d] = [wkEmb[w] | ddEmb[d]].
    attr_table = jnp.concatenate(
        [jnp.repeat(params["weekday_emb"], NUM_DELTADAYS, axis=0),
         jnp.tile(params["deltaday_emb"], (NUM_WEEKDAYS, 1))], axis=1)

    emb3 = params["embedding"][:, None, :]        # (V, 1, H)
    attr3 = attr_table[:, None, :]                # (98, 1, 20)
    b_comb = params["b_ih"] + params["b_hh"]      # (1, 4H)
    wih_x = params["w_ih"][:H, :]                 # (H, 4H)     location-emb part
    wih_a = params["w_ih"][H:, :]                 # (20, 4H)    attribute part

    h0 = hidden.reshape(1, H).astype(jnp.float32)
    c0 = cell.reshape(1, H).astype(jnp.float32)

    kernel = pl.pallas_call(
        encoder_seq_kernel,
        out_shape=(
            jax.ShapeDtypeStruct((T, H + ATTR_DIM), jnp.float32),  # embedded_combine
            jax.ShapeDtypeStruct((T, H), jnp.float32),             # output sequence
            jax.ShapeDtypeStruct((1, H), jnp.float32),             # final hidden
            jax.ShapeDtypeStruct((1, H), jnp.float32),             # final cell
        ),
        grid_spec=pltpu.PrefetchScalarGridSpec(
            num_scalar_prefetch=3,
            grid=(1,),
            in_specs=[
                pl.BlockSpec(emb3.shape, lambda i, *_: (0, 0, 0)),          # embedding table
                pl.BlockSpec(attr3.shape, lambda i, *_: (0, 0, 0)),         # attr cross table
                pl.BlockSpec((H, 4 * H), lambda i, *_: (0, 0)),             # W_ih[:H]^T
                pl.BlockSpec((ATTR_DIM, 4 * H), lambda i, *_: (0, 0)),      # W_ih[H:]^T
                pl.BlockSpec((H, 4 * H), lambda i, *_: (0, 0)),             # W_hh^T
                pl.BlockSpec((1, 4 * H), lambda i, *_: (0, 0)),             # b_ih + b_hh
                pl.BlockSpec((1, H), lambda i, *_: (0, 0)),                 # h0
                pl.BlockSpec((1, H), lambda i, *_: (0, 0)),                 # c0
            ],
            out_specs=[
                pl.BlockSpec((T, H + ATTR_DIM), lambda i, *_: (0, 0)),
                pl.BlockSpec((T, H), lambda i, *_: (0, 0)),
                pl.BlockSpec((1, H), lambda i, *_: (0, 0)),
                pl.BlockSpec((1, H), lambda i, *_: (0, 0)),
            ],
            scratch_shapes=[
                pltpu.VMEM((T, H), jnp.float32),          # gathered location embeddings
                pltpu.VMEM((T, ATTR_DIM), jnp.float32),   # gathered attr embeddings
                pltpu.VMEM((T, 4 * H), jnp.float32),      # precomputed input gates
            ],
        ),
        compiler_params=pltpu.CompilerParams(
            dimension_semantics=("arbitrary",)),
    )

    embcat, outputs, h_fin, c_fin = kernel(
        tokens.astype(jnp.int32), weekdays.astype(jnp.int32),
        deltadays.astype(jnp.int32),
        emb3, attr3, wih_x, wih_a, params["w_hh"], b_comb, h0, c0)

    return embcat, outputs, (h_fin.reshape(1, 1, H), c_fin.reshape(1, 1, H))


def encoder_rnn_forward(token, attr, hidden, cell, params):
    """Mirrors EncoderRNN.forward(input, attr, hidden, cell) for one step."""
    tokens = jnp.reshape(token, (1,)).astype(jnp.int32)
    weekdays = jnp.reshape(attr[0], (1,)).astype(jnp.int32)
    deltadays = jnp.reshape(attr[1], (1,)).astype(jnp.int32)
    embcat, outputs, (h, c) = encoder_rnn_sequence(
        tokens, weekdays, deltadays, hidden, cell, params)
    return (embcat.reshape(1, 1, HIDDEN_SIZE + ATTR_DIM),
            outputs.reshape(1, 1, HIDDEN_SIZE),
            (h, c))


def init_params(key, input_size=INPUT_SIZE, hidden_size=HIDDEN_SIZE):
    H = hidden_size
    ks = jax.random.split(key, 7)
    s = 1.0 / jnp.sqrt(H)
    return {
        "embedding": jax.random.normal(ks[0], (input_size, H), jnp.float32),
        "weekday_emb": jax.random.normal(ks[1], (NUM_WEEKDAYS, 10), jnp.float32),
        "deltaday_emb": jax.random.normal(ks[2], (NUM_DELTADAYS, 10), jnp.float32),
        # LSTM weights stored transposed: (in_features, 4H), gate order [i|f|g|o]
        "w_ih": jax.random.uniform(ks[3], (H + ATTR_DIM, 4 * H), jnp.float32, -s, s),
        "w_hh": jax.random.uniform(ks[4], (H, 4 * H), jnp.float32, -s, s),
        "b_ih": jax.random.uniform(ks[5], (1, 4 * H), jnp.float32, -s, s),
        "b_hh": jax.random.uniform(ks[6], (1, 4 * H), jnp.float32, -s, s),
    }


def reference_sequence(tokens, weekdays, deltadays, hidden, cell, params):
    """Pure-JAX reference: per-step PyTorch-style EncoderRNN forward in a loop."""
    H = HIDDEN_SIZE
    h = hidden.reshape(1, H)
    c = cell.reshape(1, H)
    embs, outs = [], []
    for t in range(tokens.shape[0]):
        x = params["embedding"][tokens[t]].reshape(1, H)
        we = params["weekday_emb"][weekdays[t]].reshape(1, 10)
        de = params["deltaday_emb"][deltadays[t]].reshape(1, 10)
        xc = jnp.concatenate([x, we, de], axis=1)
        gates = (xc @ params["w_ih"] + h @ params["w_hh"]
                 + params["b_ih"] + params["b_hh"])
        i = jax.nn.sigmoid(gates[:, 0:H])
        f = jax.nn.sigmoid(gates[:, H:2 * H])
        g = jnp.tanh(gates[:, 2 * H:3 * H])
        o = jax.nn.sigmoid(gates[:, 3 * H:4 * H])
        c = f * c + i * g
        h = o * jnp.tanh(c)
        embs.append(xc)
        outs.append(h)
    return (jnp.concatenate(embs, 0), jnp.concatenate(outs, 0),
            (h.reshape(1, 1, H), c.reshape(1, 1, H)))


if __name__ == "__main__":
    key = jax.random.PRNGKey(0)
    pkey, dkey = jax.random.split(key)
    params = init_params(pkey)

    dks = jax.random.split(dkey, 3)
    tokens = jax.random.randint(dks[0], (SEQ_LEN,), 0, INPUT_SIZE, jnp.int32)
    weekdays = jax.random.randint(dks[1], (SEQ_LEN,), 0, NUM_WEEKDAYS, jnp.int32)
    deltadays = jax.random.randint(dks[2], (SEQ_LEN,), 0, NUM_DELTADAYS, jnp.int32)

    # initHidden(): zeros of shape (num_layers=1, 1, H)
    h0 = jnp.zeros((1, 1, HIDDEN_SIZE), jnp.float32)
    c0 = jnp.zeros((1, 1, HIDDEN_SIZE), jnp.float32)

    # Fused T-step encode in one pallas_call.
    embcat, outputs, (h_fin, c_fin) = encoder_rnn_sequence(
        tokens, weekdays, deltadays, h0, c0, params)
    jax.block_until_ready((embcat, outputs, h_fin, c_fin))

    ref_emb, ref_out, (ref_h, ref_c) = reference_sequence(
        tokens, weekdays, deltadays, h0, c0, params)

    assert embcat.shape == (SEQ_LEN, HIDDEN_SIZE + ATTR_DIM)
    assert outputs.shape == (SEQ_LEN, HIDDEN_SIZE)
    assert h_fin.shape == (1, 1, HIDDEN_SIZE)
    assert c_fin.shape == (1, 1, HIDDEN_SIZE)
    assert jnp.allclose(embcat, ref_emb, atol=1e-4, rtol=1e-4)
    assert jnp.allclose(outputs, ref_out, atol=1e-4, rtol=1e-4)
    assert jnp.allclose(h_fin, ref_h, atol=1e-4, rtol=1e-4)
    assert jnp.allclose(c_fin, ref_c, atol=1e-4, rtol=1e-4)

    # Single-step call matching the module's forward(input, attr, hidden, cell).
    token = jnp.array([[3]], dtype=jnp.int32)
    attr = jnp.array([2, 5], dtype=jnp.int32)
    e1, o1, (h1, c1) = encoder_rnn_forward(token, attr, h0, c0, params)
    jax.block_until_ready((e1, o1, h1, c1))
    assert e1.shape == (1, 1, HIDDEN_SIZE + ATTR_DIM)
    assert o1.shape == (1, 1, HIDDEN_SIZE)
    assert h1.shape == (1, 1, HIDDEN_SIZE) and c1.shape == (1, 1, HIDDEN_SIZE)

    print("KERNEL_OK")
</pallas_src>

<mosaic_0001>
module attributes {stable_mosaic.version = 11 : i64} {
  func.func @encoder_seq_kernel(%arg0: i32, %arg1: memref<8xi32, #tpu.memory_space<smem>>, %arg2: memref<8xi32, #tpu.memory_space<smem>>, %arg3: memref<8xi32, #tpu.memory_space<smem>>, %arg4: memref<64x1x256xf32, #tpu.memory_space<vmem>>, %arg5: memref<98x1x20xf32, #tpu.memory_space<vmem>>, %arg6: memref<256x1024xf32, #tpu.memory_space<vmem>>, %arg7: memref<20x1024xf32, #tpu.memory_space<vmem>>, %arg8: memref<256x1024xf32, #tpu.memory_space<vmem>>, %arg9: memref<1x1024xf32, #tpu.memory_space<vmem>>, %arg10: memref<1x256xf32, #tpu.memory_space<vmem>>, %arg11: memref<1x256xf32, #tpu.memory_space<vmem>>, %arg12: memref<8x276xf32, #tpu.memory_space<vmem>>, %arg13: memref<8x256xf32, #tpu.memory_space<vmem>>, %arg14: memref<1x256xf32, #tpu.memory_space<vmem>>, %arg15: memref<1x256xf32, #tpu.memory_space<vmem>>, %arg16: memref<8x256xf32, #tpu.memory_space<vmem>>, %arg17: memref<8x20xf32, #tpu.memory_space<vmem>>, %arg18: memref<8x1024xf32, #tpu.memory_space<vmem>>) attributes {dimension_semantics = [#tpu.dimension_semantics<arbitrary>], iteration_bounds = array<i64: 1>, scalar_prefetch = 3 : i64, scratch_operands = 3 : i64, tpu.core_type = #tpu.core_type<tc>, window_params = [{pipeline_mode = #tpu.pipeline_mode<synchronous>, transform_indices = @transform_0, window_bounds = array<i64: 64, 1, 256>}, {pipeline_mode = #tpu.pipeline_mode<synchronous>, transform_indices = @transform_1, window_bounds = array<i64: 98, 1, 20>}, {pipeline_mode = #tpu.pipeline_mode<synchronous>, transform_indices = @transform_2, window_bounds = array<i64: 256, 1024>}, {pipeline_mode = #tpu.pipeline_mode<synchronous>, transform_indices = @transform_3, window_bounds = array<i64: 20, 1024>}, {pipeline_mode = #tpu.pipeline_mode<synchronous>, transform_indices = @transform_4, window_bounds = array<i64: 256, 1024>}, {pipeline_mode = #tpu.pipeline_mode<synchronous>, transform_indices = @transform_5, window_bounds = array<i64: 1, 1024>}, {pipeline_mode = #tpu.pipeline_mode<synchronous>, transform_indices = @transform_6, window_bounds = array<i64: 1, 256>}, {pipeline_mode = #tpu.pipeline_mode<synchronous>, transform_indices = @transform_7, window_bounds = array<i64: 1, 256>}, {pipeline_mode = #tpu.pipeline_mode<synchronous>, transform_indices = @transform_8, window_bounds = array<i64: 8, 276>}, {pipeline_mode = #tpu.pipeline_mode<synchronous>, transform_indices = @transform_9, window_bounds = array<i64: 8, 256>}, {pipeline_mode = #tpu.pipeline_mode<synchronous>, transform_indices = @transform_10, window_bounds = array<i64: 1, 256>}, {pipeline_mode = #tpu.pipeline_mode<synchronous>, transform_indices = @transform_11, window_bounds = array<i64: 1, 256>}]} {
    %c0 = arith.constant 0 : index
    %0 = memref.load %arg1[%c0] : memref<8xi32, #tpu.memory_space<smem>>
    %c0_0 = arith.constant 0 : index
    %1 = memref.load %arg2[%c0_0] : memref<8xi32, #tpu.memory_space<smem>>
    %c14_i32 = arith.constant 14 : i32
    %2 = arith.muli %1, %c14_i32 : i32
    %c0_1 = arith.constant 0 : index
    %3 = memref.load %arg3[%c0_1] : memref<8xi32, #tpu.memory_space<smem>>
    %4 = arith.addi %2, %3 : i32
    %5 = arith.index_cast %0 : i32 to index
    %c0_2 = arith.constant 0 : index
    %c0_3 = arith.constant 0 : index
    %6 = vector.load %arg4[%5, %c0_2, %c0_3] : memref<64x1x256xf32, #tpu.memory_space<vmem>>, vector<1x1x256xf32>
    %7 = vector.shape_cast %6 : vector<1x1x256xf32> to vector<1x256xf32>
    %c0_4 = arith.constant 0 : index
    %c0_5 = arith.constant 0 : index
    %8 = vector.load %arg16[%c0_4, %c0_5] : memref<8x256xf32, #tpu.memory_space<vmem>>, vector<1x256xf32>
    tpu.vector_store %arg16[%c0_4, %c0_5], %7 {strides = array<i32>} : memref<8x256xf32, #tpu.memory_space<vmem>>, vector<1x256xf32>,
    %9 = arith.index_cast %4 : i32 to index
    %c0_6 = arith.constant 0 : index
    %c0_7 = arith.constant 0 : index
    %10 = vector.load %arg5[%9, %c0_6, %c0_7] : memref<98x1x20xf32, #tpu.memory_space<vmem>>, vector<1x1x20xf32>
    %11 = vector.shape_cast %10 : vector<1x1x20xf32> to vector<1x20xf32>
    %c0_8 = arith.constant 0 : index
    %c0_9 = arith.constant 0 : index
    %12 = vector.load %arg17[%c0_8, %c0_9] : memref<8x20xf32, #tpu.memory_space<vmem>>, vector<1x20xf32>
    tpu.vector_store %arg17[%c0_8, %c0_9], %11 {strides = array<i32>} : memref<8x20xf32, #tpu.memory_space<vmem>>, vector<1x20xf32>,
    %c1 = arith.constant 1 : index
    %13 = memref.load %arg1[%c1] : memref<8xi32, #tpu.memory_space<smem>>
    %c1_10 = arith.constant 1 : index
    %14 = memref.load %arg2[%c1_10] : memref<8xi32, #tpu.memory_space<smem>>
    %c14_i32_11 = arith.constant 14 : i32
    %15 = arith.muli %14, %c14_i32_11 : i32
    %c1_12 = arith.constant 1 : index
    %16 = memref.load %arg3[%c1_12] : memref<8xi32, #tpu.memory_space<smem>>
    %17 = arith.addi %15, %16 : i32
    %18 = arith.index_cast %13 : i32 to index
    %c0_13 = arith.constant 0 : index
    %c0_14 = arith.constant 0 : index
    %19 = vector.load %arg4[%18, %c0_13, %c0_14] : memref<64x1x256xf32, #tpu.memory_space<vmem>>, vector<1x1x256xf32>
    %20 = vector.shape_cast %19 : vector<1x1x256xf32> to vector<1x256xf32>
    %c1_15 = arith.constant 1 : index
    %c0_16 = arith.constant 0 : index
    %21 = vector.load %arg16[%c1_15, %c0_16] : memref<8x256xf32, #tpu.memory_space<vmem>>, vector<1x256xf32>
    tpu.vector_store %arg16[%c1_15, %c0_16], %20 {strides = array<i32>} : memref<8x256xf32, #tpu.memory_space<vmem>>, vector<1x256xf32>,
    %22 = arith.index_cast %17 : i32 to index
    %c0_17 = arith.constant 0 : index
    %c0_18 = arith.constant 0 : index
    %23 = vector.load %arg5[%22, %c0_17, %c0_18] : memref<98x1x20xf32, #tpu.memory_space<vmem>>, vector<1x1x20xf32>
    %24 = vector.shape_cast %23 : vector<1x1x20xf32> to vector<1x20xf32>
    %c1_19 = arith.constant 1 : index
    %c0_20 = arith.constant 0 : index
    %25 = vector.load %arg17[%c1_19, %c0_20] : memref<8x20xf32, #tpu.memory_space<vmem>>, vector<1x20xf32>
    tpu.vector_store %arg17[%c1_19, %c0_20], %24 {strides = array<i32>} : memref<8x20xf32, #tpu.memory_space<vmem>>, vector<1x20xf32>,
    %c2 = arith.constant 2 : index
    %26 = memref.load %arg1[%c2] : memref<8xi32, #tpu.memory_space<smem>>
    %c2_21 = arith.constant 2 : index
    %27 = memref.load %arg2[%c2_21] : memref<8xi32, #tpu.memory_space<smem>>
    %c14_i32_22 = arith.constant 14 : i32
    %28 = arith.muli %27, %c14_i32_22 : i32
    %c2_23 = arith.constant 2 : index
    %29 = memref.load %arg3[%c2_23] : memref<8xi32, #tpu.memory_space<smem>>
    %30 = arith.addi %28, %29 : i32
    %31 = arith.index_cast %26 : i32 to index
    %c0_24 = arith.constant 0 : index
    %c0_25 = arith.constant 0 : index
    %32 = vector.load %arg4[%31, %c0_24, %c0_25] : memref<64x1x256xf32, #tpu.memory_space<vmem>>, vector<1x1x256xf32>
    %33 = vector.shape_cast %32 : vector<1x1x256xf32> to vector<1x256xf32>
    %c2_26 = arith.constant 2 : index
    %c0_27 = arith.constant 0 : index
    %34 = vector.load %arg16[%c2_26, %c0_27] : memref<8x256xf32, #tpu.memory_space<vmem>>, vector<1x256xf32>
    tpu.vector_store %arg16[%c2_26, %c0_27], %33 {strides = array<i32>} : memref<8x256xf32, #tpu.memory_space<vmem>>, vector<1x256xf32>,
    %35 = arith.index_cast %30 : i32 to index
    %c0_28 = arith.constant 0 : index
    %c0_29 = arith.constant 0 : index
    %36 = vector.load %arg5[%35, %c0_28, %c0_29] : memref<98x1x20xf32, #tpu.memory_space<vmem>>, vector<1x1x20xf32>
    %37 = vector.shape_cast %36 : vector<1x1x20xf32> to vector<1x20xf32>
    %c2_30 = arith.constant 2 : index
    %c0_31 = arith.constant 0 : index
    %38 = vector.load %arg17[%c2_30, %c0_31] : memref<8x20xf32, #tpu.memory_space<vmem>>, vector<1x20xf32>
    tpu.vector_store %arg17[%c2_30, %c0_31], %37 {strides = array<i32>} : memref<8x20xf32, #tpu.memory_space<vmem>>, vector<1x20xf32>,
    %c3 = arith.constant 3 : index
    %39 = memref.load %arg1[%c3] : memref<8xi32, #tpu.memory_space<smem>>
    %c3_32 = arith.constant 3 : index
    %40 = memref.load %arg2[%c3_32] : memref<8xi32, #tpu.memory_space<smem>>
    %c14_i32_33 = arith.constant 14 : i32
    %41 = arith.muli %40, %c14_i32_33 : i32
    %c3_34 = arith.constant 3 : index
    %42 = memref.load %arg3[%c3_34] : memref<8xi32, #tpu.memory_space<smem>>
    %43 = arith.addi %41, %42 : i32
    %44 = arith.index_cast %39 : i32 to index
    %c0_35 = arith.constant 0 : index
    %c0_36 = arith.constant 0 : index
    %45 = vector.load %arg4[%44, %c0_35, %c0_36] : memref<64x1x256xf32, #tpu.memory_space<vmem>>, vector<1x1x256xf32>
    %46 = vector.shape_cast %45 : vector<1x1x256xf32> to vector<1x256xf32>
    %c3_37 = arith.constant 3 : index
    %c0_38 = arith.constant 0 : index
    %47 = vector.load %arg16[%c3_37, %c0_38] : memref<8x256xf32, #tpu.memory_space<vmem>>, vector<1x256xf32>
    tpu.vector_store %arg16[%c3_37, %c0_38], %46 {strides = array<i32>} : memref<8x256xf32, #tpu.memory_space<vmem>>, vector<1x256xf32>,
    %48 = arith.index_cast %43 : i32 to index
    %c0_39 = arith.constant 0 : index
    %c0_40 = arith.constant 0 : index
    %49 = vector.load %arg5[%48, %c0_39, %c0_40] : memref<98x1x20xf32, #tpu.memory_space<vmem>>, vector<1x1x20xf32>
    %50 = vector.shape_cast %49 : vector<1x1x20xf32> to vector<1x20xf32>
    %c3_41 = arith.constant 3 : index
    %c0_42 = arith.constant 0 : index
    %51 = vector.load %arg17[%c3_41, %c0_42] : memref<8x20xf32, #tpu.memory_space<vmem>>, vector<1x20xf32>
    tpu.vector_store %arg17[%c3_41, %c0_42], %50 {strides = array<i32>} : memref<8x20xf32, #tpu.memory_space<vmem>>, vector<1x20xf32>,
    %c4 = arith.constant 4 : index
    %52 = memref.load %arg1[%c4] : memref<8xi32, #tpu.memory_space<smem>>
    %c4_43 = arith.constant 4 : index
    %53 = memref.load %arg2[%c4_43] : memref<8xi32, #tpu.memory_space<smem>>
    %c14_i32_44 = arith.constant 14 : i32
    %54 = arith.muli %53, %c14_i32_44 : i32
    %c4_45 = arith.constant 4 : index
    %55 = memref.load %arg3[%c4_45] : memref<8xi32, #tpu.memory_space<smem>>
    %56 = arith.addi %54, %55 : i32
    %57 = arith.index_cast %52 : i32 to index
    %c0_46 = arith.constant 0 : index
    %c0_47 = arith.constant 0 : index
    %58 = vector.load %arg4[%57, %c0_46, %c0_47] : memref<64x1x256xf32, #tpu.memory_space<vmem>>, vector<1x1x256xf32>
    %59 = vector.shape_cast %58 : vector<1x1x256xf32> to vector<1x256xf32>
    %c4_48 = arith.constant 4 : index
    %c0_49 = arith.constant 0 : index
    %60 = vector.load %arg16[%c4_48, %c0_49] : memref<8x256xf32, #tpu.memory_space<vmem>>, vector<1x256xf32>
    tpu.vector_store %arg16[%c4_48, %c0_49], %59 {strides = array<i32>} : memref<8x256xf32, #tpu.memory_space<vmem>>, vector<1x256xf32>,
    %61 = arith.index_cast %56 : i32 to index
    %c0_50 = arith.constant 0 : index
    %c0_51 = arith.constant 0 : index
    %62 = vector.load %arg5[%61, %c0_50, %c0_51] : memref<98x1x20xf32, #tpu.memory_space<vmem>>, vector<1x1x20xf32>
    %63 = vector.shape_cast %62 : vector<1x1x20xf32> to vector<1x20xf32>
    %c4_52 = arith.constant 4 : index
    %c0_53 = arith.constant 0 : index
    %64 = vector.load %arg17[%c4_52, %c0_53] : memref<8x20xf32, #tpu.memory_space<vmem>>, vector<1x20xf32>
    tpu.vector_store %arg17[%c4_52, %c0_53], %63 {strides = array<i32>} : memref<8x20xf32, #tpu.memory_space<vmem>>, vector<1x20xf32>,
    %c5 = arith.constant 5 : index
    %65 = memref.load %arg1[%c5] : memref<8xi32, #tpu.memory_space<smem>>
    %c5_54 = arith.constant 5 : index
    %66 = memref.load %arg2[%c5_54] : memref<8xi32, #tpu.memory_space<smem>>
    %c14_i32_55 = arith.constant 14 : i32
    %67 = arith.muli %66, %c14_i32_55 : i32
    %c5_56 = arith.constant 5 : index
    %68 = memref.load %arg3[%c5_56] : memref<8xi32, #tpu.memory_space<smem>>
    %69 = arith.addi %67, %68 : i32
    %70 = arith.index_cast %65 : i32 to index
    %c0_57 = arith.constant 0 : index
    %c0_58 = arith.constant 0 : index
    %71 = vector.load %arg4[%70, %c0_57, %c0_58] : memref<64x1x256xf32, #tpu.memory_space<vmem>>, vector<1x1x256xf32>
    %72 = vector.shape_cast %71 : vector<1x1x256xf32> to vector<1x256xf32>
    %c5_59 = arith.constant 5 : index
    %c0_60 = arith.constant 0 : index
    %73 = vector.load %arg16[%c5_59, %c0_60] : memref<8x256xf32, #tpu.memory_space<vmem>>, vector<1x256xf32>
    tpu.vector_store %arg16[%c5_59, %c0_60], %72 {strides = array<i32>} : memref<8x256xf32, #tpu.memory_space<vmem>>, vector<1x256xf32>,
    %74 = arith.index_cast %69 : i32 to index
    %c0_61 = arith.constant 0 : index
    %c0_62 = arith.constant 0 : index
    %75 = vector.load %arg5[%74, %c0_61, %c0_62] : memref<98x1x20xf32, #tpu.memory_space<vmem>>, vector<1x1x20xf32>
    %76 = vector.shape_cast %75 : vector<1x1x20xf32> to vector<1x20xf32>
    %c5_63 = arith.constant 5 : index
    %c0_64 = arith.constant 0 : index
    %77 = vector.load %arg17[%c5_63, %c0_64] : memref<8x20xf32, #tpu.memory_space<vmem>>, vector<1x20xf32>
    tpu.vector_store %arg17[%c5_63, %c0_64], %76 {strides = array<i32>} : memref<8x20xf32, #tpu.memory_space<vmem>>, vector<1x20xf32>,
    %c6 = arith.constant 6 : index
    %78 = memref.load %arg1[%c6] : memref<8xi32, #tpu.memory_space<smem>>
    %c6_65 = arith.constant 6 : index
    %79 = memref.load %arg2[%c6_65] : memref<8xi32, #tpu.memory_space<smem>>
    %c14_i32_66 = arith.constant 14 : i32
    %80 = arith.muli %79, %c14_i32_66 : i32
    %c6_67 = arith.constant 6 : index
    %81 = memref.load %arg3[%c6_67] : memref<8xi32, #tpu.memory_space<smem>>
    %82 = arith.addi %80, %81 : i32
    %83 = arith.index_cast %78 : i32 to index
    %c0_68 = arith.constant 0 : index
    %c0_69 = arith.constant 0 : index
    %84 = vector.load %arg4[%83, %c0_68, %c0_69] : memref<64x1x256xf32, #tpu.memory_space<vmem>>, vector<1x1x256xf32>
    %85 = vector.shape_cast %84 : vector<1x1x256xf32> to vector<1x256xf32>
    %c6_70 = arith.constant 6 : index
    %c0_71 = arith.constant 0 : index
    %86 = vector.load %arg16[%c6_70, %c0_71] : memref<8x256xf32, #tpu.memory_space<vmem>>, vector<1x256xf32>
    tpu.vector_store %arg16[%c6_70, %c0_71], %85 {strides = array<i32>} : memref<8x256xf32, #tpu.memory_space<vmem>>, vector<1x256xf32>,
    %87 = arith.index_cast %82 : i32 to index
    %c0_72 = arith.constant 0 : index
    %c0_73 = arith.constant 0 : index
    %88 = vector.load %arg5[%87, %c0_72, %c0_73] : memref<98x1x20xf32, #tpu.memory_space<vmem>>, vector<1x1x20xf32>
    %89 = vector.shape_cast %88 : vector<1x1x20xf32> to vector<1x20xf32>
    %c6_74 = arith.constant 6 : index
    %c0_75 = arith.constant 0 : index
    %90 = vector.load %arg17[%c6_74, %c0_75] : memref<8x20xf32, #tpu.memory_space<vmem>>, vector<1x20xf32>
    tpu.vector_store %arg17[%c6_74, %c0_75], %89 {strides = array<i32>} : memref<8x20xf32, #tpu.memory_space<vmem>>, vector<1x20xf32>,
    %c7 = arith.constant 7 : index
    %91 = memref.load %arg1[%c7] : memref<8xi32, #tpu.memory_space<smem>>
    %c7_76 = arith.constant 7 : index
    %92 = memref.load %arg2[%c7_76] : memref<8xi32, #tpu.memory_space<smem>>
    %c14_i32_77 = arith.constant 14 : i32
    %93 = arith.muli %92, %c14_i32_77 : i32
    %c7_78 = arith.constant 7 : index
    %94 = memref.load %arg3[%c7_78] : memref<8xi32, #tpu.memory_space<smem>>
    %95 = arith.addi %93, %94 : i32
    %96 = arith.index_cast %91 : i32 to index
    %c0_79 = arith.constant 0 : index
    %c0_80 = arith.constant 0 : index
    %97 = vector.load %arg4[%96, %c0_79, %c0_80] : memref<64x1x256xf32, #tpu.memory_space<vmem>>, vector<1x1x256xf32>
    %98 = vector.shape_cast %97 : vector<1x1x256xf32> to vector<1x256xf32>
    %c7_81 = arith.constant 7 : index
    %c0_82 = arith.constant 0 : index
    %99 = vector.load %arg16[%c7_81, %c0_82] : memref<8x256xf32, #tpu.memory_space<vmem>>, vector<1x256xf32>
    tpu.vector_store %arg16[%c7_81, %c0_82], %98 {strides = array<i32>} : memref<8x256xf32, #tpu.memory_space<vmem>>, vector<1x256xf32>,
    %100 = arith.index_cast %95 : i32 to index
    %c0_83 = arith.constant 0 : index
    %c0_84 = arith.constant 0 : index
    %101 = vector.load %arg5[%100, %c0_83, %c0_84] : memref<98x1x20xf32, #tpu.memory_space<vmem>>, vector<1x1x20xf32>
    %102 = vector.shape_cast %101 : vector<1x1x20xf32> to vector<1x20xf32>
    %c7_85 = arith.constant 7 : index
    %c0_86 = arith.constant 0 : index
    %103 = vector.load %arg17[%c7_85, %c0_86] : memref<8x20xf32, #tpu.memory_space<vmem>>, vector<1x20xf32>
    tpu.vector_store %arg17[%c7_85, %c0_86], %102 {strides = array<i32>} : memref<8x20xf32, #tpu.memory_space<vmem>>, vector<1x20xf32>,
    %c0_87 = arith.constant 0 : index
    %c0_88 = arith.constant 0 : index
    %104 = vector.load %arg16[%c0_87, %c0_88] : memref<8x256xf32, #tpu.memory_space<vmem>>, vector<8x256xf32>
    %c0_89 = arith.constant 0 : index
    %c0_90 = arith.constant 0 : index
    %105 = vector.load %arg12[%c0_89, %c0_90] : memref<8x276xf32, #tpu.memory_space<vmem>>, vector<8x256xf32>
    tpu.vector_store %arg12[%c0_89, %c0_90], %104 {strides = array<i32>} : memref<8x276xf32, #tpu.memory_space<vmem>>, vector<8x256xf32>,
    %c0_91 = arith.constant 0 : index
    %c0_92 = arith.constant 0 : index
    %106 = vector.load %arg17[%c0_91, %c0_92] : memref<8x20xf32, #tpu.memory_space<vmem>>, vector<8x20xf32>
    %c0_93 = arith.constant 0 : index
    %c256 = arith.constant 256 : index
    %107 = vector.load %arg12[%c0_93, %c256] : memref<8x276xf32, #tpu.memory_space<vmem>>, vector<8x20xf32>
    tpu.vector_store %arg12[%c0_93, %c256], %106 {strides = array<i32>} : memref<8x276xf32, #tpu.memory_space<vmem>>, vector<8x20xf32>,
    %c0_94 = arith.constant 0 : index
    %c0_95 = arith.constant 0 : index
    %108 = vector.load %arg16[%c0_94, %c0_95] : memref<8x256xf32, #tpu.memory_space<vmem>>, vector<8x256xf32>
    %c0_96 = arith.constant 0 : index
    %c0_97 = arith.constant 0 : index
    %109 = vector.load %arg6[%c0_96, %c0_97] : memref<256x1024xf32, #tpu.memory_space<vmem>>, vector<256x1024xf32>
    %cst = arith.constant dense<0.000000e+00> : vector<8x1024xf32>
    %110 = tpu.matmul %108, %109, %cst {dimension_numbers = #tpu.dot_dimension_numbers<[1], [0], [0], [1], [0, 0, 1, 1], [], []>} : vector<8x256xf32>, vector<256x1024xf32>, vector<8x1024xf32> -> vector<8x1024xf32>
    %c0_98 = arith.constant 0 : index
    %c0_99 = arith.constant 0 : index
    %111 = vector.load %arg17[%c0_98, %c0_99] : memref<8x20xf32, #tpu.memory_space<vmem>>, vector<8x20xf32>
    %c0_100 = arith.constant 0 : index
    %c0_101 = arith.constant 0 : index
    %112 = vector.load %arg7[%c0_100, %c0_101] : memref<20x1024xf32, #tpu.memory_space<vmem>>, vector<20x1024xf32>
    %cst_102 = arith.constant dense<0.000000e+00> : vector<8x1024xf32>
    %113 = tpu.matmul %111, %112, %cst_102 {dimension_numbers = #tpu.dot_dimension_numbers<[1], [0], [0], [1], [0, 0, 1, 1], [], []>} : vector<8x20xf32>, vector<20x1024xf32>, vector<8x1024xf32> -> vector<8x1024xf32>
    %114 = arith.addf %110, %113 : vector<8x1024xf32>
    %c0_103 = arith.constant 0 : index
    %c0_104 = arith.constant 0 : index
    %115 = vector.load %arg9[%c0_103, %c0_104] : memref<1x1024xf32, #tpu.memory_space<vmem>>, vector<1x1024xf32>
    %116 = vector.broadcast %115 : vector<1x1024xf32> to vector<8x1024xf32>
    %117 = arith.addf %114, %116 : vector<8x1024xf32>
    %c0_105 = arith.constant 0 : index
    %c0_106 = arith.constant 0 : index
    %118 = vector.load %arg18[%c0_105, %c0_106] : memref<8x1024xf32, #tpu.memory_space<vmem>>, vector<8x1024xf32>
    tpu.vector_store %arg18[%c0_105, %c0_106], %117 {strides = array<i32>} : memref<8x1024xf32, #tpu.memory_space<vmem>>, vector<8x1024xf32>,
    %c0_107 = arith.constant 0 : index
    %c0_108 = arith.constant 0 : index
    %119 = vector.load %arg10[%c0_107, %c0_108] : memref<1x256xf32, #tpu.memory_space<vmem>>, vector<1x256xf32>
    %c0_109 = arith.constant 0 : index
    %c0_110 = arith.constant 0 : index
    %120 = vector.load %arg11[%c0_109, %c0_110] : memref<1x256xf32, #tpu.memory_space<vmem>>, vector<1x256xf32>
    %c0_i32 = arith.constant 0 : i32
    %121 = arith.index_cast %c0_i32 : i32 to index
    %c0_111 = arith.constant 0 : index
    %122 = vector.load %arg18[%121, %c0_111] : memref<8x1024xf32, #tpu.memory_space<vmem>>, vector<1x1024xf32>
    %c0_112 = arith.constant 0 : index
    %c0_113 = arith.constant 0 : index
    %123 = vector.load %arg8[%c0_112, %c0_113] : memref<256x1024xf32, #tpu.memory_space<vmem>>, vector<256x1024xf32>
    %cst_114 = arith.constant dense<0.000000e+00> : vector<1x1024xf32>
    %124 = tpu.matmul %119, %123, %cst_114 {dimension_numbers = #tpu.dot_dimension_numbers<[1], [0], [0], [1], [0, 0, 1, 1], [], []>} : vector<1x256xf32>, vector<256x1024xf32>, vector<1x1024xf32> -> vector<1x1024xf32>
    %125 = arith.addf %122, %124 : vector<1x1024xf32>
    %126 = vector.extract_strided_slice %125 {offsets = [0, 0], sizes = [1, 256], strides = [1, 1]} : vector<1x1024xf32> to vector<1x256xf32>
    %127 = arith.negf %126 : vector<1x256xf32>
    %128 = math.exp %127 : vector<1x256xf32>
    %cst_115 = arith.constant 1.000000e+00 : f32
    %129 = vector.broadcast %cst_115 : f32 to vector<1x256xf32>
    %130 = arith.addf %129, %128 : vector<1x256xf32>
    %131 = arith.divf %129, %130 : vector<1x256xf32>
    %132 = vector.extract_strided_slice %125 {offsets = [0, 256], sizes = [1, 256], strides = [1, 1]} : vector<1x1024xf32> to vector<1x256xf32>
    %133 = arith.negf %132 : vector<1x256xf32>
    %134 = math.exp %133 : vector<1x256xf32>
    %cst_116 = arith.constant 1.000000e+00 : f32
    %135 = vector.broadcast %cst_116 : f32 to vector<1x256xf32>
    %136 = arith.addf %135, %134 : vector<1x256xf32>
    %137 = arith.divf %135, %136 : vector<1x256xf32>
    %138 = vector.extract_strided_slice %125 {offsets = [0, 512], sizes = [1, 256], strides = [1, 1]} : vector<1x1024xf32> to vector<1x256xf32>
    %139 = math.tanh %138 : vector<1x256xf32>
    %140 = vector.extract_strided_slice %125 {offsets = [0, 768], sizes = [1, 256], strides = [1, 1]} : vector<1x1024xf32> to vector<1x256xf32>
    %141 = arith.negf %140 : vector<1x256xf32>
    %142 = math.exp %141 : vector<1x256xf32>
    %cst_117 = arith.constant 1.000000e+00 : f32
    %143 = vector.broadcast %cst_117 : f32 to vector<1x256xf32>
    %144 = arith.addf %143, %142 : vector<1x256xf32>
    %145 = arith.divf %143, %144 : vector<1x256xf32>
    %146 = arith.mulf %137, %120 : vector<1x256xf32>
    %147 = arith.mulf %131, %139 : vector<1x256xf32>
    %148 = arith.addf %146, %147 : vector<1x256xf32>
    %149 = math.tanh %148 : vector<1x256xf32>
    %150 = arith.mulf %145, %149 : vector<1x256xf32>
    %151 = arith.index_cast %c0_i32 : i32 to index
    %c0_118 = arith.constant 0 : index
    %152 = vector.load %arg13[%151, %c0_118] : memref<8x256xf32, #tpu.memory_space<vmem>>, vector<1x256xf32>
    tpu.vector_store %arg13[%151, %c0_118], %150 {strides = array<i32>} : memref<8x256xf32, #tpu.memory_space<vmem>>, vector<1x256xf32>,
    %c1_i32 = arith.constant 1 : i32
    %153 = arith.index_cast %c1_i32 : i32 to index
    %c0_119 = arith.constant 0 : index
    %154 = vector.load %arg18[%153, %c0_119] : memref<8x1024xf32, #tpu.memory_space<vmem>>, vector<1x1024xf32>
    %c0_120 = arith.constant 0 : index
    %c0_121 = arith.constant 0 : index
    %155 = vector.load %arg8[%c0_120, %c0_121] : memref<256x1024xf32, #tpu.memory_space<vmem>>, vector<256x1024xf32>
    %cst_122 = arith.constant dense<0.000000e+00> : vector<1x1024xf32>
    %156 = tpu.matmul %150, %155, %cst_122 {dimension_numbers = #tpu.dot_dimension_numbers<[1], [0], [0], [1], [0, 0, 1, 1], [], []>} : vector<1x256xf32>, vector<256x1024xf32>, vector<1x1024xf32> -> vector<1x1024xf32>
    %157 = arith.addf %154, %156 : vector<1x1024xf32>
    %158 = vector.extract_strided_slice %157 {offsets = [0, 0], sizes = [1, 256], strides = [1, 1]} : vector<1x1024xf32> to vector<1x256xf32>
    %159 = arith.negf %158 : vector<1x256xf32>
    %160 = math.exp %159 : vector<1x256xf32>
    %cst_123 = arith.constant 1.000000e+00 : f32
    %161 = vector.broadcast %cst_123 : f32 to vector<1x256xf32>
    %162 = arith.addf %161, %160 : vector<1x256xf32>
    %163 = arith.divf %161, %162 : vector<1x256xf32>
    %164 = vector.extract_strided_slice %157 {offsets = [0, 256], sizes = [1, 256], strides = [1, 1]} : vector<1x1024xf32> to vector<1x256xf32>
    %165 = arith.negf %164 : vector<1x256xf32>
    %166 = math.exp %165 : vector<1x256xf32>
    %cst_124 = arith.constant 1.000000e+00 : f32
    %167 = vector.broadcast %cst_124 : f32 to vector<1x256xf32>
    %168 = arith.addf %167, %166 : vector<1x256xf32>
    %169 = arith.divf %167, %168 : vector<1x256xf32>
    %170 = vector.extract_strided_slice %157 {offsets = [0, 512], sizes = [1, 256], strides = [1, 1]} : vector<1x1024xf32> to vector<1x256xf32>
    %171 = math.tanh %170 : vector<1x256xf32>
    %172 = vector.extract_strided_slice %157 {offsets = [0, 768], sizes = [1, 256], strides = [1, 1]} : vector<1x1024xf32> to vector<1x256xf32>
    %173 = arith.negf %172 : vector<1x256xf32>
    %174 = math.exp %173 : vector<1x256xf32>
    %cst_125 = arith.constant 1.000000e+00 : f32
    %175 = vector.broadcast %cst_125 : f32 to vector<1x256xf32>
    %176 = arith.addf %175, %174 : vector<1x256xf32>
    %177 = arith.divf %175, %176 : vector<1x256xf32>
    %178 = arith.mulf %169, %148 : vector<1x256xf32>
    %179 = arith.mulf %163, %171 : vector<1x256xf32>
    %180 = arith.addf %178, %179 : vector<1x256xf32>
    %181 = math.tanh %180 : vector<1x256xf32>
    %182 = arith.mulf %177, %181 : vector<1x256xf32>
    %183 = arith.index_cast %c1_i32 : i32 to index
    %c0_126 = arith.constant 0 : index
    %184 = vector.load %arg13[%183, %c0_126] : memref<8x256xf32, #tpu.memory_space<vmem>>, vector<1x256xf32>
    tpu.vector_store %arg13[%183, %c0_126], %182 {strides = array<i32>} : memref<8x256xf32, #tpu.memory_space<vmem>>, vector<1x256xf32>,
    %c2_i32 = arith.constant 2 : i32
    %185 = arith.index_cast %c2_i32 : i32 to index
    %c0_127 = arith.constant 0 : index
    %186 = vector.load %arg18[%185, %c0_127] : memref<8x1024xf32, #tpu.memory_space<vmem>>, vector<1x1024xf32>
    %c0_128 = arith.constant 0 : index
    %c0_129 = arith.constant 0 : index
    %187 = vector.load %arg8[%c0_128, %c0_129] : memref<256x1024xf32, #tpu.memory_space<vmem>>, vector<256x1024xf32>
    %cst_130 = arith.constant dense<0.000000e+00> : vector<1x1024xf32>
    %188 = tpu.matmul %182, %187, %cst_130 {dimension_numbers = #tpu.dot_dimension_numbers<[1], [0], [0], [1], [0, 0, 1, 1], [], []>} : vector<1x256xf32>, vector<256x1024xf32>, vector<1x1024xf32> -> vector<1x1024xf32>
    %189 = arith.addf %186, %188 : vector<1x1024xf32>
    %190 = vector.extract_strided_slice %189 {offsets = [0, 0], sizes = [1, 256], strides = [1, 1]} : vector<1x1024xf32> to vector<1x256xf32>
    %191 = arith.negf %190 : vector<1x256xf32>
    %192 = math.exp %191 : vector<1x256xf32>
    %cst_131 = arith.constant 1.000000e+00 : f32
    %193 = vector.broadcast %cst_131 : f32 to vector<1x256xf32>
    %194 = arith.addf %193, %192 : vector<1x256xf32>
    %195 = arith.divf %193, %194 : vector<1x256xf32>
    %196 = vector.extract_strided_slice %189 {offsets = [0, 256], sizes = [1, 256], strides = [1, 1]} : vector<1x1024xf32> to vector<1x256xf32>
    %197 = arith.negf %196 : vector<1x256xf32>
    %198 = math.exp %197 : vector<1x256xf32>
    %cst_132 = arith.constant 1.000000e+00 : f32
    %199 = vector.broadcast %cst_132 : f32 to vector<1x256xf32>
    %200 = arith.addf %199, %198 : vector<1x256xf32>
    %201 = arith.divf %199, %200 : vector<1x256xf32>
    %202 = vector.extract_strided_slice %189 {offsets = [0, 512], sizes = [1, 256], strides = [1, 1]} : vector<1x1024xf32> to vector<1x256xf32>
    %203 = math.tanh %202 : vector<1x256xf32>
    %204 = vector.extract_strided_slice %189 {offsets = [0, 768], sizes = [1, 256], strides = [1, 1]} : vector<1x1024xf32> to vector<1x256xf32>
    %205 = arith.negf %204 : vector<1x256xf32>
    %206 = math.exp %205 : vector<1x256xf32>
    %cst_133 = arith.constant 1.000000e+00 : f32
    %207 = vector.broadcast %cst_133 : f32 to vector<1x256xf32>
    %208 = arith.addf %207, %206 : vector<1x256xf32>
    %209 = arith.divf %207, %208 : vector<1x256xf32>
    %210 = arith.mulf %201, %180 : vector<1x256xf32>
    %211 = arith.mulf %195, %203 : vector<1x256xf32>
    %212 = arith.addf %210, %211 : vector<1x256xf32>
    %213 = math.tanh %212 : vector<1x256xf32>
    %214 = arith.mulf %209, %213 : vector<1x256xf32>
    %215 = arith.index_cast %c2_i32 : i32 to index
    %c0_134 = arith.constant 0 : index
    %216 = vector.load %arg13[%215, %c0_134] : memref<8x256xf32, #tpu.memory_space<vmem>>, vector<1x256xf32>
    tpu.vector_store %arg13[%215, %c0_134], %214 {strides = array<i32>} : memref<8x256xf32, #tpu.memory_space<vmem>>, vector<1x256xf32>,
    %c3_i32 = arith.constant 3 : i32
    %217 = arith.index_cast %c3_i32 : i32 to index
    %c0_135 = arith.constant 0 : index
    %218 = vector.load %arg18[%217, %c0_135] : memref<8x1024xf32, #tpu.memory_space<vmem>>, vector<1x1024xf32>
    %c0_136 = arith.constant 0 : index
    %c0_137 = arith.constant 0 : index
    %219 = vector.load %arg8[%c0_136, %c0_137] : memref<256x1024xf32, #tpu.memory_space<vmem>>, vector<256x1024xf32>
    %cst_138 = arith.constant dense<0.000000e+00> : vector<1x1024xf32>
    %220 = tpu.matmul %214, %219, %cst_138 {dimension_numbers = #tpu.dot_dimension_numbers<[1], [0], [0], [1], [0, 0, 1, 1], [], []>} : vector<1x256xf32>, vector<256x1024xf32>, vector<1x1024xf32> -> vector<1x1024xf32>
    %221 = arith.addf %218, %220 : vector<1x1024xf32>
    %222 = vector.extract_strided_slice %221 {offsets = [0, 0], sizes = [1, 256], strides = [1, 1]} : vector<1x1024xf32> to vector<1x256xf32>
    %223 = arith.negf %222 : vector<1x256xf32>
    %224 = math.exp %223 : vector<1x256xf32>
    %cst_139 = arith.constant 1.000000e+00 : f32
    %225 = vector.broadcast %cst_139 : f32 to vector<1x256xf32>
    %226 = arith.addf %225, %224 : vector<1x256xf32>
    %227 = arith.divf %225, %226 : vector<1x256xf32>
    %228 = vector.extract_strided_slice %221 {offsets = [0, 256], sizes = [1, 256], strides = [1, 1]} : vector<1x1024xf32> to vector<1x256xf32>
    %229 = arith.negf %228 : vector<1x256xf32>
    %230 = math.exp %229 : vector<1x256xf32>
    %cst_140 = arith.constant 1.000000e+00 : f32
    %231 = vector.broadcast %cst_140 : f32 to vector<1x256xf32>
    %232 = arith.addf %231, %230 : vector<1x256xf32>
    %233 = arith.divf %231, %232 : vector<1x256xf32>
    %234 = vector.extract_strided_slice %221 {offsets = [0, 512], sizes = [1, 256], strides = [1, 1]} : vector<1x1024xf32> to vector<1x256xf32>
    %235 = math.tanh %234 : vector<1x256xf32>
    %236 = vector.extract_strided_slice %221 {offsets = [0, 768], sizes = [1, 256], strides = [1, 1]} : vector<1x1024xf32> to vector<1x256xf32>
    %237 = arith.negf %236 : vector<1x256xf32>
    %238 = math.exp %237 : vector<1x256xf32>
    %cst_141 = arith.constant 1.000000e+00 : f32
    %239 = vector.broadcast %cst_141 : f32 to vector<1x256xf32>
    %240 = arith.addf %239, %238 : vector<1x256xf32>
    %241 = arith.divf %239, %240 : vector<1x256xf32>
    %242 = arith.mulf %233, %212 : vector<1x256xf32>
    %243 = arith.mulf %227, %235 : vector<1x256xf32>
    %244 = arith.addf %242, %243 : vector<1x256xf32>
    %245 = math.tanh %244 : vector<1x256xf32>
    %246 = arith.mulf %241, %245 : vector<1x256xf32>
    %247 = arith.index_cast %c3_i32 : i32 to index
    %c0_142 = arith.constant 0 : index
    %248 = vector.load %arg13[%247, %c0_142] : memref<8x256xf32, #tpu.memory_space<vmem>>, vector<1x256xf32>
    tpu.vector_store %arg13[%247, %c0_142], %246 {strides = array<i32>} : memref<8x256xf32, #tpu.memory_space<vmem>>, vector<1x256xf32>,
    %c4_i32 = arith.constant 4 : i32
    %249 = arith.index_cast %c4_i32 : i32 to index
    %c0_143 = arith.constant 0 : index
    %250 = vector.load %arg18[%249, %c0_143] : memref<8x1024xf32, #tpu.memory_space<vmem>>, vector<1x1024xf32>
    %c0_144 = arith.constant 0 : index
    %c0_145 = arith.constant 0 : index
    %251 = vector.load %arg8[%c0_144, %c0_145] : memref<256x1024xf32, #tpu.memory_space<vmem>>, vector<256x1024xf32>
    %cst_146 = arith.constant dense<0.000000e+00> : vector<1x1024xf32>
    %252 = tpu.matmul %246, %251, %cst_146 {dimension_numbers = #tpu.dot_dimension_numbers<[1], [0], [0], [1], [0, 0, 1, 1], [], []>} : vector<1x256xf32>, vector<256x1024xf32>, vector<1x1024xf32> -> vector<1x1024xf32>
    %253 = arith.addf %250, %252 : vector<1x1024xf32>
    %254 = vector.extract_strided_slice %253 {offsets = [0, 0], sizes = [1, 256], strides = [1, 1]} : vector<1x1024xf32> to vector<1x256xf32>
    %255 = arith.negf %254 : vector<1x256xf32>
    %256 = math.exp %255 : vector<1x256xf32>
    %cst_147 = arith.constant 1.000000e+00 : f32
    %257 = vector.broadcast %cst_147 : f32 to vector<1x256xf32>
    %258 = arith.addf %257, %256 : vector<1x256xf32>
    %259 = arith.divf %257, %258 : vector<1x256xf32>
    %260 = vector.extract_strided_slice %253 {offsets = [0, 256], sizes = [1, 256], strides = [1, 1]} : vector<1x1024xf32> to vector<1x256xf32>
    %261 = arith.negf %260 : vector<1x256xf32>
    %262 = math.exp %261 : vector<1x256xf32>
    %cst_148 = arith.constant 1.000000e+00 : f32
    %263 = vector.broadcast %cst_148 : f32 to vector<1x256xf32>
    %264 = arith.addf %263, %262 : vector<1x256xf32>
    %265 = arith.divf %263, %264 : vector<1x256xf32>
    %266 = vector.extract_strided_slice %253 {offsets = [0, 512], sizes = [1, 256], strides = [1, 1]} : vector<1x1024xf32> to vector<1x256xf32>
    %267 = math.tanh %266 : vector<1x256xf32>
    %268 = vector.extract_strided_slice %253 {offsets = [0, 768], sizes = [1, 256], strides = [1, 1]} : vector<1x1024xf32> to vector<1x256xf32>
    %269 = arith.negf %268 : vector<1x256xf32>
    %270 = math.exp %269 : vector<1x256xf32>
    %cst_149 = arith.constant 1.000000e+00 : f32
    %271 = vector.broadcast %cst_149 : f32 to vector<1x256xf32>
    %272 = arith.addf %271, %270 : vector<1x256xf32>
    %273 = arith.divf %271, %272 : vector<1x256xf32>
    %274 = arith.mulf %265, %244 : vector<1x256xf32>
    %275 = arith.mulf %259, %267 : vector<1x256xf32>
    %276 = arith.addf %274, %275 : vector<1x256xf32>
    %277 = math.tanh %276 : vector<1x256xf32>
    %278 = arith.mulf %273, %277 : vector<1x256xf32>
    %279 = arith.index_cast %c4_i32 : i32 to index
    %c0_150 = arith.constant 0 : index
    %280 = vector.load %arg13[%279, %c0_150] : memref<8x256xf32, #tpu.memory_space<vmem>>, vector<1x256xf32>
    tpu.vector_store %arg13[%279, %c0_150], %278 {strides = array<i32>} : memref<8x256xf32, #tpu.memory_space<vmem>>, vector<1x256xf32>,
    %c5_i32 = arith.constant 5 : i32
    %281 = arith.index_cast %c5_i32 : i32 to index
    %c0_151 = arith.constant 0 : index
    %282 = vector.load %arg18[%281, %c0_151] : memref<8x1024xf32, #tpu.memory_space<vmem>>, vector<1x1024xf32>
    %c0_152 = arith.constant 0 : index
    %c0_153 = arith.constant 0 : index
    %283 = vector.load %arg8[%c0_152, %c0_153] : memref<256x1024xf32, #tpu.memory_space<vmem>>, vector<256x1024xf32>
    %cst_154 = arith.constant dense<0.000000e+00> : vector<1x1024xf32>
    %284 = tpu.matmul %278, %283, %cst_154 {dimension_numbers = #tpu.dot_dimension_numbers<[1], [0], [0], [1], [0, 0, 1, 1], [], []>} : vector<1x256xf32>, vector<256x1024xf32>, vector<1x1024xf32> -> vector<1x1024xf32>
    %285 = arith.addf %282, %284 : vector<1x1024xf32>
    %286 = vector.extract_strided_slice %285 {offsets = [0, 0], sizes = [1, 256], strides = [1, 1]} : vector<1x1024xf32> to vector<1x256xf32>
    %287 = arith.negf %286 : vector<1x256xf32>
    %288 = math.exp %287 : vector<1x256xf32>
    %cst_155 = arith.constant 1.000000e+00 : f32
    %289 = vector.broadcast %cst_155 : f32 to vector<1x256xf32>
    %290 = arith.addf %289, %288 : vector<1x256xf32>
    %291 = arith.divf %289, %290 : vector<1x256xf32>
    %292 = vector.extract_strided_slice %285 {offsets = [0, 256], sizes = [1, 256], strides = [1, 1]} : vector<1x1024xf32> to vector<1x256xf32>
    %293 = arith.negf %292 : vector<1x256xf32>
    %294 = math.exp %293 : vector<1x256xf32>
    %cst_156 = arith.constant 1.000000e+00 : f32
    %295 = vector.broadcast %cst_156 : f32 to vector<1x256xf32>
    %296 = arith.addf %295, %294 : vector<1x256xf32>
    %297 = arith.divf %295, %296 : vector<1x256xf32>
    %298 = vector.extract_strided_slice %285 {offsets = [0, 512], sizes = [1, 256], strides = [1, 1]} : vector<1x1024xf32> to vector<1x256xf32>
    %299 = math.tanh %298 : vector<1x256xf32>
    %300 = vector.extract_strided_slice %285 {offsets = [0, 768], sizes = [1, 256], strides = [1, 1]} : vector<1x1024xf32> to vector<1x256xf32>
    %301 = arith.negf %300 : vector<1x256xf32>
    %302 = math.exp %301 : vector<1x256xf32>
    %cst_157 = arith.constant 1.000000e+00 : f32
    %303 = vector.broadcast %cst_157 : f32 to vector<1x256xf32>
    %304 = arith.addf %303, %302 : vector<1x256xf32>
    %305 = arith.divf %303, %304 : vector<1x256xf32>
    %306 = arith.mulf %297, %276 : vector<1x256xf32>
    %307 = arith.mulf %291, %299 : vector<1x256xf32>
    %308 = arith.addf %306, %307 : vector<1x256xf32>
    %309 = math.tanh %308 : vector<1x256xf32>
    %310 = arith.mulf %305, %309 : vector<1x256xf32>
    %311 = arith.index_cast %c5_i32 : i32 to index
    %c0_158 = arith.constant 0 : index
    %312 = vector.load %arg13[%311, %c0_158] : memref<8x256xf32, #tpu.memory_space<vmem>>, vector<1x256xf32>
    tpu.vector_store %arg13[%311, %c0_158], %310 {strides = array<i32>} : memref<8x256xf32, #tpu.memory_space<vmem>>, vector<1x256xf32>,
    %c6_i32 = arith.constant 6 : i32
    %313 = arith.index_cast %c6_i32 : i32 to index
    %c0_159 = arith.constant 0 : index
    %314 = vector.load %arg18[%313, %c0_159] : memref<8x1024xf32, #tpu.memory_space<vmem>>, vector<1x1024xf32>
    %c0_160 = arith.constant 0 : index
    %c0_161 = arith.constant 0 : index
    %315 = vector.load %arg8[%c0_160, %c0_161] : memref<256x1024xf32, #tpu.memory_space<vmem>>, vector<256x1024xf32>
    %cst_162 = arith.constant dense<0.000000e+00> : vector<1x1024xf32>
    %316 = tpu.matmul %310, %315, %cst_162 {dimension_numbers = #tpu.dot_dimension_numbers<[1], [0], [0], [1], [0, 0, 1, 1], [], []>} : vector<1x256xf32>, vector<256x1024xf32>, vector<1x1024xf32> -> vector<1x1024xf32>
    %317 = arith.addf %314, %316 : vector<1x1024xf32>
    %318 = vector.extract_strided_slice %317 {offsets = [0, 0], sizes = [1, 256], strides = [1, 1]} : vector<1x1024xf32> to vector<1x256xf32>
    %319 = arith.negf %318 : vector<1x256xf32>
    %320 = math.exp %319 : vector<1x256xf32>
    %cst_163 = arith.constant 1.000000e+00 : f32
    %321 = vector.broadcast %cst_163 : f32 to vector<1x256xf32>
    %322 = arith.addf %321, %320 : vector<1x256xf32>
    %323 = arith.divf %321, %322 : vector<1x256xf32>
    %324 = vector.extract_strided_slice %317 {offsets = [0, 256], sizes = [1, 256], strides = [1, 1]} : vector<1x1024xf32> to vector<1x256xf32>
    %325 = arith.negf %324 : vector<1x256xf32>
    %326 = math.exp %325 : vector<1x256xf32>
    %cst_164 = arith.constant 1.000000e+00 : f32
    %327 = vector.broadcast %cst_164 : f32 to vector<1x256xf32>
    %328 = arith.addf %327, %326 : vector<1x256xf32>
    %329 = arith.divf %327, %328 : vector<1x256xf32>
    %330 = vector.extract_strided_slice %317 {offsets = [0, 512], sizes = [1, 256], strides = [1, 1]} : vector<1x1024xf32> to vector<1x256xf32>
    %331 = math.tanh %330 : vector<1x256xf32>
    %332 = vector.extract_strided_slice %317 {offsets = [0, 768], sizes = [1, 256], strides = [1, 1]} : vector<1x1024xf32> to vector<1x256xf32>
    %333 = arith.negf %332 : vector<1x256xf32>
    %334 = math.exp %333 : vector<1x256xf32>
    %cst_165 = arith.constant 1.000000e+00 : f32
    %335 = vector.broadcast %cst_165 : f32 to vector<1x256xf32>
    %336 = arith.addf %335, %334 : vector<1x256xf32>
    %337 = arith.divf %335, %336 : vector<1x256xf32>
    %338 = arith.mulf %329, %308 : vector<1x256xf32>
    %339 = arith.mulf %323, %331 : vector<1x256xf32>
    %340 = arith.addf %338, %339 : vector<1x256xf32>
    %341 = math.tanh %340 : vector<1x256xf32>
    %342 = arith.mulf %337, %341 : vector<1x256xf32>
    %343 = arith.index_cast %c6_i32 : i32 to index
    %c0_166 = arith.constant 0 : index
    %344 = vector.load %arg13[%343, %c0_166] : memref<8x256xf32, #tpu.memory_space<vmem>>, vector<1x256xf32>
    tpu.vector_store %arg13[%343, %c0_166], %342 {strides = array<i32>} : memref<8x256xf32, #tpu.memory_space<vmem>>, vector<1x256xf32>,
    %c7_i32 = arith.constant 7 : i32
    %345 = arith.index_cast %c7_i32 : i32 to index
    %c0_167 = arith.constant 0 : index
    %346 = vector.load %arg18[%345, %c0_167] : memref<8x1024xf32, #tpu.memory_space<vmem>>, vector<1x1024xf32>
    %c0_168 = arith.constant 0 : index
    %c0_169 = arith.constant 0 : index
    %347 = vector.load %arg8[%c0_168, %c0_169] : memref<256x1024xf32, #tpu.memory_space<vmem>>, vector<256x1024xf32>
    %cst_170 = arith.constant dense<0.000000e+00> : vector<1x1024xf32>
    %348 = tpu.matmul %342, %347, %cst_170 {dimension_numbers = #tpu.dot_dimension_numbers<[1], [0], [0], [1], [0, 0, 1, 1], [], []>} : vector<1x256xf32>, vector<256x1024xf32>, vector<1x1024xf32> -> vector<1x1024xf32>
    %349 = arith.addf %346, %348 : vector<1x1024xf32>
    %350 = vector.extract_strided_slice %349 {offsets = [0, 0], sizes = [1, 256], strides = [1, 1]} : vector<1x1024xf32> to vector<1x256xf32>
    %351 = arith.negf %350 : vector<1x256xf32>
    %352 = math.exp %351 : vector<1x256xf32>
    %cst_171 = arith.constant 1.000000e+00 : f32
    %353 = vector.broadcast %cst_171 : f32 to vector<1x256xf32>
    %354 = arith.addf %353, %352 : vector<1x256xf32>
    %355 = arith.divf %353, %354 : vector<1x256xf32>
    %356 = vector.extract_strided_slice %349 {offsets = [0, 256], sizes = [1, 256], strides = [1, 1]} : vector<1x1024xf32> to vector<1x256xf32>
    %357 = arith.negf %356 : vector<1x256xf32>
    %358 = math.exp %357 : vector<1x256xf32>
    %cst_172 = arith.constant 1.000000e+00 : f32
    %359 = vector.broadcast %cst_172 : f32 to vector<1x256xf32>
    %360 = arith.addf %359, %358 : vector<1x256xf32>
    %361 = arith.divf %359, %360 : vector<1x256xf32>
    %362 = vector.extract_strided_slice %349 {offsets = [0, 512], sizes = [1, 256], strides = [1, 1]} : vector<1x1024xf32> to vector<1x256xf32>
    %363 = math.tanh %362 : vector<1x256xf32>
    %364 = vector.extract_strided_slice %349 {offsets = [0, 768], sizes = [1, 256], strides = [1, 1]} : vector<1x1024xf32> to vector<1x256xf32>
    %365 = arith.negf %364 : vector<1x256xf32>
    %366 = math.exp %365 : vector<1x256xf32>
    %cst_173 = arith.constant 1.000000e+00 : f32
    %367 = vector.broadcast %cst_173 : f32 to vector<1x256xf32>
    %368 = arith.addf %367, %366 : vector<1x256xf32>
    %369 = arith.divf %367, %368 : vector<1x256xf32>
    %370 = arith.mulf %361, %340 : vector<1x256xf32>
    %371 = arith.mulf %355, %363 : vector<1x256xf32>
    %372 = arith.addf %370, %371 : vector<1x256xf32>
    %373 = math.tanh %372 : vector<1x256xf32>
    %374 = arith.mulf %369, %373 : vector<1x256xf32>
    %375 = arith.index_cast %c7_i32 : i32 to index
    %c0_174 = arith.constant 0 : index
    %376 = vector.load %arg13[%375, %c0_174] : memref<8x256xf32, #tpu.memory_space<vmem>>, vector<1x256xf32>
    tpu.vector_store %arg13[%375, %c0_174], %374 {strides = array<i32>} : memref<8x256xf32, #tpu.memory_space<vmem>>, vector<1x256xf32>,
    %c8_i32 = arith.constant 8 : i32
    %c0_175 = arith.constant 0 : index
    %c0_176 = arith.constant 0 : index
    %377 = vector.load %arg14[%c0_175, %c0_176] : memref<1x256xf32, #tpu.memory_space<vmem>>, vector<1x256xf32>
    tpu.vector_store %arg14[%c0_175, %c0_176], %374 {strides = array<i32>} : memref<1x256xf32, #tpu.memory_space<vmem>>, vector<1x256xf32>,
    %c0_177 = arith.constant 0 : index
    %c0_178 = arith.constant 0 : index
    %378 = vector.load %arg15[%c0_177, %c0_178] : memref<1x256xf32, #tpu.memory_space<vmem>>, vector<1x256xf32>
    tpu.vector_store %arg15[%c0_177, %c0_178], %372 {strides = array<i32>} : memref<1x256xf32, #tpu.memory_space<vmem>>, vector<1x256xf32>,
    return
  }
  func.func @transform_0(%arg0: i32, %arg1: memref<8xi32, #tpu.memory_space<smem>>, %arg2: memref<8xi32, #tpu.memory_space<smem>>, %arg3: memref<8xi32, #tpu.memory_space<smem>>) -> (i32, i32, i32) {
    %c0_i32 = arith.constant 0 : i32
    %c0_i32_0 = arith.constant 0 : i32
    %c0_i32_1 = arith.constant 0 : i32
    %c0_i32_2 = arith.constant 0 : i32
    return %c0_i32, %c0_i32_0, %c0_i32_1 : i32, i32, i32
  }
  func.func @transform_1(%arg0: i32, %arg1: memref<8xi32, #tpu.memory_space<smem>>, %arg2: memref<8xi32, #tpu.memory_space<smem>>, %arg3: memref<8xi32, #tpu.memory_space<smem>>) -> (i32, i32, i32) {
    %c0_i32 = arith.constant 0 : i32
    %c0_i32_0 = arith.constant 0 : i32
    %c0_i32_1 = arith.constant 0 : i32
    %c0_i32_2 = arith.constant 0 : i32
    return %c0_i32, %c0_i32_0, %c0_i32_1 : i32, i32, i32
  }
  func.func @transform_2(%arg0: i32, %arg1: memref<8xi32, #tpu.memory_space<smem>>, %arg2: memref<8xi32, #tpu.memory_space<smem>>, %arg3: memref<8xi32, #tpu.memory_space<smem>>) -> (i32, i32) {
    %c0_i32 = arith.constant 0 : i32
    %c0_i32_0 = arith.constant 0 : i32
    %c0_i32_1 = arith.constant 0 : i32
    return %c0_i32, %c0_i32_0 : i32, i32
  }
  func.func @transform_3(%arg0: i32, %arg1: memref<8xi32, #tpu.memory_space<smem>>, %arg2: memref<8xi32, #tpu.memory_space<smem>>, %arg3: memref<8xi32, #tpu.memory_space<smem>>) -> (i32, i32) {
    %c0_i32 = arith.constant 0 : i32
    %c0_i32_0 = arith.constant 0 : i32
    %c0_i32_1 = arith.constant 0 : i32
    return %c0_i32, %c0_i32_0 : i32, i32
  }
  func.func @transform_4(%arg0: i32, %arg1: memref<8xi32, #tpu.memory_space<smem>>, %arg2: memref<8xi32, #tpu.memory_space<smem>>, %arg3: memref<8xi32, #tpu.memory_space<smem>>) -> (i32, i32) {
    %c0_i32 = arith.constant 0 : i32
    %c0_i32_0 = arith.constant 0 : i32
    %c0_i32_1 = arith.constant 0 : i32
    return %c0_i32, %c0_i32_0 : i32, i32
  }
  func.func @transform_5(%arg0: i32, %arg1: memref<8xi32, #tpu.memory_space<smem>>, %arg2: memref<8xi32, #tpu.memory_space<smem>>, %arg3: memref<8xi32, #tpu.memory_space<smem>>) -> (i32, i32) {
    %c0_i32 = arith.constant 0 : i32
    %c0_i32_0 = arith.constant 0 : i32
    %c0_i32_1 = arith.constant 0 : i32
    return %c0_i32, %c0_i32_0 : i32, i32
  }
  func.func @transform_6(%arg0: i32, %arg1: memref<8xi32, #tpu.memory_space<smem>>, %arg2: memref<8xi32, #tpu.memory_space<smem>>, %arg3: memref<8xi32, #tpu.memory_space<smem>>) -> (i32, i32) {
    %c0_i32 = arith.constant 0 : i32
    %c0_i32_0 = arith.constant 0 : i32
    %c0_i32_1 = arith.constant 0 : i32
    return %c0_i32, %c0_i32_0 : i32, i32
  }
  func.func @transform_7(%arg0: i32, %arg1: memref<8xi32, #tpu.memory_space<smem>>, %arg2: memref<8xi32, #tpu.memory_space<smem>>, %arg3: memref<8xi32, #tpu.memory_space<smem>>) -> (i32, i32) {
    %c0_i32 = arith.constant 0 : i32
    %c0_i32_0 = arith.constant 0 : i32
    %c0_i32_1 = arith.constant 0 : i32
    return %c0_i32, %c0_i32_0 : i32, i32
  }
  func.func @transform_8(%arg0: i32, %arg1: memref<8xi32, #tpu.memory_space<smem>>, %arg2: memref<8xi32, #tpu.memory_space<smem>>, %arg3: memref<8xi32, #tpu.memory_space<smem>>) -> (i32, i32) {
    %c0_i32 = arith.constant 0 : i32
    %c0_i32_0 = arith.constant 0 : i32
    %c0_i32_1 = arith.constant 0 : i32
    return %c0_i32, %c0_i32_0 : i32, i32
  }
  func.func @transform_9(%arg0: i32, %arg1: memref<8xi32, #tpu.memory_space<smem>>, %arg2: memref<8xi32, #tpu.memory_space<smem>>, %arg3: memref<8xi32, #tpu.memory_space<smem>>) -> (i32, i32) {
    %c0_i32 = arith.constant 0 : i32
    %c0_i32_0 = arith.constant 0 : i32
    %c0_i32_1 = arith.constant 0 : i32
    return %c0_i32, %c0_i32_0 : i32, i32
  }
  func.func @transform_10(%arg0: i32, %arg1: memref<8xi32, #tpu.memory_space<smem>>, %arg2: memref<8xi32, #tpu.memory_space<smem>>, %arg3: memref<8xi32, #tpu.memory_space<smem>>) -> (i32, i32) {
    %c0_i32 = arith.constant 0 : i32
    %c0_i32_0 = arith.constant 0 : i32
    %c0_i32_1 = arith.constant 0 : i32
    return %c0_i32, %c0_i32_0 : i32, i32
  }
  func.func @transform_11(%arg0: i32, %arg1: memref<8xi32, #tpu.memory_space<smem>>, %arg2: memref<8xi32, #tpu.memory_space<smem>>, %arg3: memref<8xi32, #tpu.memory_space<smem>>) -> (i32, i32) {
    %c0_i32 = arith.constant 0 : i32
    %c0_i32_0 = arith.constant 0 : i32
    %c0_i32_1 = arith.constant 0 : i32
    return %c0_i32, %c0_i32_0 : i32, i32
  }
}

</mosaic_0001>

<llo_original>
// kernel: encoder_rnn_sequence.1
$region0: #{encoder_rnn_sequence.1}
  #allocation0 [shape = 'u32[]', space=smem, size = 0x4, offset = 0x4, fixed_abs, tag = 'smem constant byte address 0x4 - core index']
  #allocation1 [shape = 'u32[144,128]{1,0:T(1,128)}', space=vmem, size = 0x12000, scoped, tag = 'internal scratch']
  #allocation2 [shape = 'f32[8,256]{1,0:T(8,128)}', space=vmem, size = 0x2000, scoped, tag = 'scratch operand']
  #allocation3 [shape = 'f32[8,20]{1,0:T(8,128)}', space=vmem, size = 0x1000, scoped, tag = 'scratch operand']
  #allocation4 [shape = 'f32[8,1024]{1,0:T(8,128)}', space=vmem, size = 0x8000, scoped, tag = 'scratch operand']
  #allocation5 [shape = 's32[1]{0}', space=sflag, size = 0x4, scoped, tag = 'scoped memory for encoder_rnn_sequence.1']
  #allocation6 [shape = 'u8[512]{0}', space=smem, size = 0x200, scoped, tag = 'prefetched SMEM operand 0']
  #allocation7 [shape = 'u8[512]{0}', space=smem, size = 0x200, scoped, tag = 'prefetched SMEM operand 1']
  #allocation8 [shape = 'u8[512]{0}', space=smem, size = 0x200, scoped, tag = 'prefetched SMEM operand 2']
  %s0 = inlined_call_operand.vmem [shape: s32[8], index: 0, kind: input, shape index: {}]
  %s1 = inlined_call_operand.vmem [shape: s32[8], index: 1, kind: input, shape index: {}]
  %s2 = inlined_call_operand.vmem [shape: s32[8], index: 2, kind: input, shape index: {}]
  %s3 = inlined_call_operand.vmem [shape: f32[64,1,256], index: 3, kind: input, shape index: {}]
  %s4 = inlined_call_operand.vmem [shape: f32[98,1,20], index: 4, kind: input, shape index: {}]
  %s5 = inlined_call_operand.vmem [shape: f32[256,1024], index: 5, kind: input, shape index: {}]
  %s6 = inlined_call_operand.vmem [shape: f32[20,1024], index: 6, kind: input, shape index: {}]
  %s7 = inlined_call_operand.vmem [shape: f32[256,1024], index: 7, kind: input, shape index: {}]
  %s8 = inlined_call_operand.vmem [shape: f32[1,1024], index: 8, kind: input, shape index: {}]
  %s9 = inlined_call_operand.vmem [shape: f32[1,256], index: 9, kind: input, shape index: {}]
  %s10 = inlined_call_operand.vmem [shape: f32[1,256], index: 10, kind: input, shape index: {}]
  %s11 = inlined_call_operand.hbm [shape: f32[8,276], index: 11, kind: output, shape index: {0}]
  %s12 = inlined_call_operand.hbm [shape: f32[8,256], index: 12, kind: output, shape index: {1}]
  %s13 = inlined_call_operand.hbm [shape: f32[1,256], index: 13, kind: output, shape index: {2}]
  %s14 = inlined_call_operand.hbm [shape: f32[1,256], index: 14, kind: output, shape index: {3}]
  %15 = xla_tuple %s11, %s12, %s13, %s14
  %s16 = sld [smem:[#allocation0]]
  $region66: #{encoder_rnn_sequence.1} parent=0
    _
  %s18 = ssub.s32 1, %s16
  %s19 = scalar_select 0, %s18, %s16
  %s20 = sshll.u32 %s0, 4
  %s21 = int_to_ptr.vmem [resolvable:$true] %s20
  %23 = dma.vmem_to_smem %s21, 16, [#allocation6], [#allocation5]
  %s24 = sshll.u32 %s1, 4
  %s25 = int_to_ptr.vmem [resolvable:$true] %s24
  %27 = dma.vmem_to_smem %s25, 16, [#allocation7], [#allocation5]
  %s28 = sshll.u32 %s2, 4
  %s29 = int_to_ptr.vmem [resolvable:$true] %s28
  %31 = dma.vmem_to_smem %s29, 16, [#allocation8], [#allocation5]
  %32 = dma.done [#allocation5], 48
  %33 = sfence
  $region1: #{encoder_rnn_sequence.1} parent=0
    #allocation9 [shape = 'u8[12288]{0}', space=vmem, size = 0x3000, scoped, tag = 'output window, operand 0, single buffered']
    #allocation10 [shape = 's32[1]{0}', space=sflag, size = 0x4, scoped, tag = 'scoped memory for encoder_rnn_sequence.1']
    #allocation11 [shape = 'u8[8192]{0}', space=vmem, size = 0x2000, scoped, tag = 'output window, operand 1, single buffered']
    #allocation12 [shape = 's32[1]{0}', space=sflag, size = 0x4, scoped, tag = 'scoped memory for encoder_rnn_sequence.1']
    #allocation13 [shape = 'u8[1024]{0}', space=vmem, size = 0x400, scoped, tag = 'output window, operand 2, single buffered']
    #allocation14 [shape = 'u8[1024]{0}', space=vmem, size = 0x400, scoped, tag = 'output window, operand 3, single buffered']
    #allocation15 [shape = 's32[1]{0}', space=sflag, size = 0x4, scoped, tag = 'scoped memory for encoder_rnn_sequence.1']
    %34 = vsyncpa [#allocation10], 0
    %35 = vsyncpa [#allocation12], 0
    %36 = vsyncpa [#allocation15], 0
    // Predicated region
    $region2: #{encoder_rnn_sequence.1} parent=1 // pred_check
      _
    $region3: #{encoder_rnn_sequence.1} parent=1 // pred_check_branch
      %38 = sbr.rel (0) target = $region5
    $region4: #{encoder_rnn_sequence.1} parent=1 // pred_region
      _
    $region5: #{encoder_rnn_sequence.1} parent=1 // pred_fallthru
      _
    // Predicated region
    $region6: #{encoder_rnn_sequence.1} parent=1 // pred_check
      _
    $region7: #{encoder_rnn_sequence.1} parent=1 // pred_check_branch
      %40 = sbr.rel (0) target = $region9
    $region8: #{encoder_rnn_sequence.1} parent=1 // pred_region
      _
    $region9: #{encoder_rnn_sequence.1} parent=1 // pred_fallthru
      _
    // Predicated region
    $region10: #{encoder_rnn_sequence.1} parent=1 // pred_check
      _
    $region11: #{encoder_rnn_sequence.1} parent=1 // pred_check_branch
      %42 = sbr.rel (0) target = $region13
    $region12: #{encoder_rnn_sequence.1} parent=1 // pred_region
      _
    $region13: #{encoder_rnn_sequence.1} parent=1 // pred_fallthru
      _
    // Predicated region
    $region14: #{encoder_rnn_sequence.1} parent=1 // pred_check
      _
    $region15: #{encoder_rnn_sequence.1} parent=1 // pred_check_branch
      %44 = sbr.rel (0) target = $region17
    $region16: #{encoder_rnn_sequence.1} parent=1 // pred_region
      _
    $region17: #{encoder_rnn_sequence.1} parent=1 // pred_fallthru
      _
    // Predicated region
    $region18: #{encoder_rnn_sequence.1} parent=1 // pred_check
      _
    $region19: #{encoder_rnn_sequence.1} parent=1 // pred_check_branch
      %46 = sbr.rel (0) target = $region21
    $region20: #{encoder_rnn_sequence.1} parent=1 // pred_region
      _
    $region21: #{encoder_rnn_sequence.1} parent=1 // pred_fallthru
      _
    // Predicated region
    $region22: #{encoder_rnn_sequence.1} parent=1 // pred_check
      _
    $region23: #{encoder_rnn_sequence.1} parent=1 // pred_check_branch
      %48 = sbr.rel (0) target = $region25
    $region24: #{encoder_rnn_sequence.1} parent=1 // pred_region
      _
    $region25: #{encoder_rnn_sequence.1} parent=1 // pred_fallthru
      _
    // Predicated region
    $region26: #{encoder_rnn_sequence.1} parent=1 // pred_check
      _
    $region27: #{encoder_rnn_sequence.1} parent=1 // pred_check_branch
      %50 = sbr.rel (0) target = $region29
    $region28: #{encoder_rnn_sequence.1} parent=1 // pred_region
      _
    $region29: #{encoder_rnn_sequence.1} parent=1 // pred_fallthru
      _
    // Predicated region
    $region30: #{encoder_rnn_sequence.1} parent=1 // pred_check
      _
    $region31: #{encoder_rnn_sequence.1} parent=1 // pred_check_branch
      %52 = sbr.rel (0) target = $region33
    $region32: #{encoder_rnn_sequence.1} parent=1 // pred_region
      _
    $region33: #{encoder_rnn_sequence.1} parent=1 // pred_fallthru
      _
    %s53 = sld [smem:[#allocation6]]
    %s54 = sld [smem:[#allocation7]]
    %s55 = smul.u32 %s54, 14
    %s56 = sld [smem:[#allocation8]]
    %s57 = sadd.s32 %s55, %s56
    %s58 = smul.u32 %s53, 2
    %s59 = scalar_lea.vmem %s3, %s58
    %v60 = vld [vmem:[%s59] sm:$0x3]
    %v61 = vlaneseq
    %vm62 = vcmp.ge.s32.totalorder %v61, 0
    %vm63 = vcmp.lt.s32.totalorder %v61, 256
    %vm64 = vmand %vm62, %vm63
    %65 = vst.msk [vmem:[#allocation2] ss:$8 sm:$0x3] %vm64, %v60
    %66 = vst.msk [vmem:[#allocation2] ss:$8 sm:$0x0] %vm64, %v60
    %s67 = scalar_lea.vmem %s4, %s57
    %v68 = vld [vmem:[%s67] sm:$0x1]
    %vm69 = vcmask 155648
    %70 = vst.msk [vmem:[#allocation3] sm:$0x1] %vm69, %v68
    %s71 = sld [smem:[#allocation6 + $0x1]]
    %s72 = sld [smem:[#allocation7 + $0x1]]
    %s73 = smul.u32 %s72, 14
    %s74 = sld [smem:[#allocation8 + $0x1]]
    %s75 = sadd.s32 %s73, %s74
    %s76 = smul.u32 %s71, 2
    %s77 = scalar_lea.vmem %s3, %s76
    %v78 = vld [vmem:[%s77] sm:$0x3]
    %s79 = scalar_lea.vmem [#allocation2], 1
    %80 = vst.msk [vmem:[%s79] ss:$8 sm:$0x3] %vm64, %v78
    %81 = vst.msk [vmem:[%s79] ss:$8 sm:$0x0] %vm64, %v78
    %s82 = scalar_lea.vmem %s4, %s75
    %v83 = vld [vmem:[%s82] sm:$0x1]
    %84 = vst.msk [vmem:[#allocation3 + $0x1] sm:$0x1] %vm69, %v83
    %s85 = sld [smem:[#allocation6 + $0x2]]
    %s86 = sld [smem:[#allocation7 + $0x2]]
    %s87 = smul.u32 %s86, 14
    %s88 = sld [smem:[#allocation8 + $0x2]]
    %s89 = sadd.s32 %s87, %s88
    %s90 = smul.u32 %s85, 2
    %s91 = scalar_lea.vmem %s3, %s90
    %v92 = vld [vmem:[%s91] sm:$0x3]
    %s93 = scalar_lea.vmem [#allocation2], 2
    %94 = vst.msk [vmem:[%s93] ss:$8 sm:$0x3] %vm64, %v92
    %95 = vst.msk [vmem:[%s93] ss:$8 sm:$0x0] %vm64, %v92
    %s96 = scalar_lea.vmem %s4, %s89
    %v97 = vld [vmem:[%s96] sm:$0x1]
    %98 = vst.msk [vmem:[#allocation3 + $0x2] sm:$0x1] %vm69, %v97
    %s99 = sld [smem:[#allocation6 + $0x3]]
    %s100 = sld [smem:[#allocation7 + $0x3]]
    %s101 = smul.u32 %s100, 14
    %s102 = sld [smem:[#allocation8 + $0x3]]
    %s103 = sadd.s32 %s101, %s102
    %s104 = smul.u32 %s99, 2
    %s105 = scalar_lea.vmem %s3, %s104
    %v106 = vld [vmem:[%s105] sm:$0x3]
    %s107 = scalar_lea.vmem [#allocation2], 3
    %108 = vst.msk [vmem:[%s107] ss:$8 sm:$0x3] %vm64, %v106
    %109 = vst.msk [vmem:[%s107] ss:$8 sm:$0x0] %vm64, %v106
    %s110 = scalar_lea.vmem %s4, %s103
    %v111 = vld [vmem:[%s110] sm:$0x1]
    %112 = vst.msk [vmem:[#allocation3 + $0x3] sm:$0x1] %vm69, %v111
    %s113 = sld [smem:[#allocation6 + $0x4]]
    %s114 = sld [smem:[#allocation7 + $0x4]]
    %s115 = smul.u32 %s114, 14
    %s116 = sld [smem:[#allocation8 + $0x4]]
    %s117 = sadd.s32 %s115, %s116
    %s118 = smul.u32 %s113, 2
    %s119 = scalar_lea.vmem %s3, %s118
    %v120 = vld [vmem:[%s119] sm:$0x3]
    %s121 = scalar_lea.vmem [#allocation2], 4
    %122 = vst.msk [vmem:[%s121] ss:$8 sm:$0x3] %vm64, %v120
    %123 = vst.msk [vmem:[%s121] ss:$8 sm:$0x0] %vm64, %v120
    %s124 = scalar_lea.vmem %s4, %s117
    %v125 = vld [vmem:[%s124] sm:$0x1]
    %126 = vst.msk [vmem:[#allocation3 + $0x4] sm:$0x1] %vm69, %v125
    %s127 = sld [smem:[#allocation6 + $0x5]]
    %s128 = sld [smem:[#allocation7 + $0x5]]
    %s129 = smul.u32 %s128, 14
    %s130 = sld [smem:[#allocation8 + $0x5]]
    %s131 = sadd.s32 %s129, %s130
    %s132 = smul.u32 %s127, 2
    %s133 = scalar_lea.vmem %s3, %s132
    %v134 = vld [vmem:[%s133] sm:$0x3]
    %s135 = scalar_lea.vmem [#allocation2], 5
    %136 = vst.msk [vmem:[%s135] ss:$8 sm:$0x3] %vm64, %v134
    %137 = vst.msk [vmem:[%s135] ss:$8 sm:$0x0] %vm64, %v134
    %s138 = scalar_lea.vmem %s4, %s131
    %v139 = vld [vmem:[%s138] sm:$0x1]
    %140 = vst.msk [vmem:[#allocation3 + $0x5] sm:$0x1] %vm69, %v139
    %s141 = sld [smem:[#allocation6 + $0x6]]
    %s142 = sld [smem:[#allocation7 + $0x6]]
    %s143 = smul.u32 %s142, 14
    %s144 = sld [smem:[#allocation8 + $0x6]]
    %s145 = sadd.s32 %s143, %s144
    %s146 = smul.u32 %s141, 2
    %s147 = scalar_lea.vmem %s3, %s146
    %v148 = vld [vmem:[%s147] sm:$0x3]
    %s149 = scalar_lea.vmem [#allocation2], 6
    %150 = vst.msk [vmem:[%s149] ss:$8 sm:$0x3] %vm64, %v148
    %151 = vst.msk [vmem:[%s149] ss:$8 sm:$0x0] %vm64, %v148
    %s152 = scalar_lea.vmem %s4, %s145
    %v153 = vld [vmem:[%s152] sm:$0x1]
    %154 = vst.msk [vmem:[#allocation3 + $0x6] sm:$0x1] %vm69, %v153
    %s155 = sld [smem:[#allocation6 + $0x7]]
    %s156 = sld [smem:[#allocation7 + $0x7]]
    %s157 = smul.u32 %s156, 14
    %s158 = sld [smem:[#allocation8 + $0x7]]
    %s159 = sadd.s32 %s157, %s158
    %s160 = smul.u32 %s155, 2
    %s161 = scalar_lea.vmem %s3, %s160
    %v162 = vld [vmem:[%s161] sm:$0x3]
    %s163 = scalar_lea.vmem [#allocation2], 7
    %164 = vst.msk [vmem:[%s163] ss:$8 sm:$0x3] %vm64, %v162
    %165 = vst.msk [vmem:[%s163] ss:$8 sm:$0x0] %vm64, %v162
    %s166 = scalar_lea.vmem %s4, %s159
    %v167 = vld [vmem:[%s166] sm:$0x1]
    %168 = vst.msk [vmem:[#allocation3 + $0x7] sm:$0x1] %vm69, %v167
    %v169 = vld [vmem:[#allocation2] sm:$0xff]
    %v170 = vld [vmem:[#allocation2 + $0x8] sm:$0xff]
    %171 = vst [vmem:[#allocation9] sm:$0xff] %v169
    %172 = vst [vmem:[#allocation9 + $0x8] sm:$0xff] %v170
    %v173 = vld [vmem:[#allocation3] sm:$0xff]
    %vm174 = vcmask 162816
    %175 = vst.msk [vmem:[#allocation9 + $0x10] sm:$0xff] %vm174, %v173
    %v176 = vld [vmem:[#allocation2] sm:$0xff]
    %v177 = vld [vmem:[#allocation2 + $0x8] sm:$0xff]
    %v178 = vld [vmem:[%s5] sm:$0xff]
    %v179 = vld [vmem:[%s5 + $0x8] sm:$0xff]
    %v180 = vld [vmem:[%s5 + $0x10] sm:$0xff]
    %v181 = vld [vmem:[%s5 + $0x18] sm:$0xff]
    %v182 = vld [vmem:[%s5 + $0x20] sm:$0xff]
    %v183 = vld [vmem:[%s5 + $0x28] sm:$0xff]
    %v184 = vld [vmem:[%s5 + $0x30] sm:$0xff]
    %v185 = vld [vmem:[%s5 + $0x38] sm:$0xff]
    %v186 = vld [vmem:[%s5 + $0x40] sm:$0xff]
    %v187 = vld [vmem:[%s5 + $0x48] sm:$0xff]
    %v188 = vld [vmem:[%s5 + $0x50] sm:$0xff]
    %v189 = vld [vmem:[%s5 + $0x58] sm:$0xff]
    %v190 = vld [vmem:[%s5 + $0x60] sm:$0xff]
    %v191 = vld [vmem:[%s5 + $0x68] sm:$0xff]
    %v192 = vld [vmem:[%s5 + $0x70] sm:$0xff]
    %v193 = vld [vmem:[%s5 + $0x78] sm:$0xff]
    %v194 = vld [vmem:[%s5 + $0x80] sm:$0xff]
    %v195 = vld [vmem:[%s5 + $0x88] sm:$0xff]
    %v196 = vld [vmem:[%s5 + $0x90] sm:$0xff]
    %v197 = vld [vmem:[%s5 + $0x98] sm:$0xff]
    %v198 = vld [vmem:[%s5 + $0xa0] sm:$0xff]
    %v199 = vld [vmem:[%s5 + $0xa8] sm:$0xff]
    %v200 = vld [vmem:[%s5 + $0xb0] sm:$0xff]
    %v201 = vld [vmem:[%s5 + $0xb8] sm:$0xff]
    %v202 = vld [vmem:[%s5 + $0xc0] sm:$0xff]
    %v203 = vld [vmem:[%s5 + $0xc8] sm:$0xff]
    %v204 = vld [vmem:[%s5 + $0xd0] sm:$0xff]
    %v205 = vld [vmem:[%s5 + $0xd8] sm:$0xff]
    %v206 = vld [vmem:[%s5 + $0xe0] sm:$0xff]
    %v207 = vld [vmem:[%s5 + $0xe8] sm:$0xff]
    %v208 = vld [vmem:[%s5 + $0xf0] sm:$0xff]
    %v209 = vld [vmem:[%s5 + $0xf8] sm:$0xff]
    %v210 = vld [vmem:[%s5 + $0x100] sm:$0xff]
    %v211 = vld [vmem:[%s5 + $0x108] sm:$0xff]
    %v212 = vld [vmem:[%s5 + $0x110] sm:$0xff]
    %v213 = vld [vmem:[%s5 + $0x118] sm:$0xff]
    %v214 = vld [vmem:[%s5 + $0x120] sm:$0xff]
    %v215 = vld [vmem:[%s5 + $0x128] sm:$0xff]
    %v216 = vld [vmem:[%s5 + $0x130] sm:$0xff]
    %v217 = vld [vmem:[%s5 + $0x138] sm:$0xff]
    %v218 = vld [vmem:[%s5 + $0x140] sm:$0xff]
    %v219 = vld [vmem:[%s5 + $0x148] sm:$0xff]
    %v220 = vld [vmem:[%s5 + $0x150] sm:$0xff]
    %v221 = vld [vmem:[%s5 + $0x158] sm:$0xff]
    %v222 = vld [vmem:[%s5 + $0x160] sm:$0xff]
    %v223 = vld [vmem:[%s5 + $0x168] sm:$0xff]
    %v224 = vld [vmem:[%s5 + $0x170] sm:$0xff]
    %v225 = vld [vmem:[%s5 + $0x178] sm:$0xff]
    %v226 = vld [vmem:[%s5 + $0x180] sm:$0xff]
    %v227 = vld [vmem:[%s5 + $0x188] sm:$0xff]
    %v228 = vld [vmem:[%s5 + $0x190] sm:$0xff]
    %v229 = vld [vmem:[%s5 + $0x198] sm:$0xff]
    %v230 = vld [vmem:[%s5 + $0x1a0] sm:$0xff]
    %v231 = vld [vmem:[%s5 + $0x1a8] sm:$0xff]
    %v232 = vld [vmem:[%s5 + $0x1b0] sm:$0xff]
    %v233 = vld [vmem:[%s5 + $0x1b8] sm:$0xff]
    %v234 = vld [vmem:[%s5 + $0x1c0] sm:$0xff]
    %v235 = vld [vmem:[%s5 + $0x1c8] sm:$0xff]
    %v236 = vld [vmem:[%s5 + $0x1d0] sm:$0xff]
    %v237 = vld [vmem:[%s5 + $0x1d8] sm:$0xff]
    %v238 = vld [vmem:[%s5 + $0x1e0] sm:$0xff]
    %v239 = vld [vmem:[%s5 + $0x1e8] sm:$0xff]
    %v240 = vld [vmem:[%s5 + $0x1f0] sm:$0xff]
    %v241 = vld [vmem:[%s5 + $0x1f8] sm:$0xff]
    %v242 = vld [vmem:[%s5 + $0x200] sm:$0xff]
    %v243 = vld [vmem:[%s5 + $0x208] sm:$0xff]
    %v244 = vld [vmem:[%s5 + $0x210] sm:$0xff]
    %v245 = vld [vmem:[%s5 + $0x218] sm:$0xff]
    %v246 = vld [vmem:[%s5 + $0x220] sm:$0xff]
    %v247 = vld [vmem:[%s5 + $0x228] sm:$0xff]
    %v248 = vld [vmem:[%s5 + $0x230] sm:$0xff]
    %v249 = vld [vmem:[%s5 + $0x238] sm:$0xff]
    %v250 = vld [vmem:[%s5 + $0x240] sm:$0xff]
    %v251 = vld [vmem:[%s5 + $0x248] sm:$0xff]
    %v252 = vld [vmem:[%s5 + $0x250] sm:$0xff]
    %v253 = vld [vmem:[%s5 + $0x258] sm:$0xff]
    %v254 = vld [vmem:[%s5 + $0x260] sm:$0xff]
    %v255 = vld [vmem:[%s5 + $0x268] sm:$0xff]
    %v256 = vld [vmem:[%s5 + $0x270] sm:$0xff]
    %v257 = vld [vmem:[%s5 + $0x278] sm:$0xff]
    %v258 = vld [vmem:[%s5 + $0x280] sm:$0xff]
    %v259 = vld [vmem:[%s5 + $0x288] sm:$0xff]
    %v260 = vld [vmem:[%s5 + $0x290] sm:$0xff]
    %v261 = vld [vmem:[%s5 + $0x298] sm:$0xff]
    %v262 = vld [vmem:[%s5 + $0x2a0] sm:$0xff]
    %v263 = vld [vmem:[%s5 + $0x2a8] sm:$0xff]
    %v264 = vld [vmem:[%s5 + $0x2b0] sm:$0xff]
    %v265 = vld [vmem:[%s5 + $0x2b8] sm:$0xff]
    %v266 = vld [vmem:[%s5 + $0x2c0] sm:$0xff]
    %v267 = vld [vmem:[%s5 + $0x2c8] sm:$0xff]
    %v268 = vld [vmem:[%s5 + $0x2d0] sm:$0xff]
    %v269 = vld [vmem:[%s5 + $0x2d8] sm:$0xff]
    %v270 = vld [vmem:[%s5 + $0x2e0] sm:$0xff]
    %v271 = vld [vmem:[%s5 + $0x2e8] sm:$0xff]
    %v272 = vld [vmem:[%s5 + $0x2f0] sm:$0xff]
    %v273 = vld [vmem:[%s5 + $0x2f8] sm:$0xff]
    %v274 = vld [vmem:[%s5 + $0x300] sm:$0xff]
    %v275 = vld [vmem:[%s5 + $0x308] sm:$0xff]
    %v276 = vld [vmem:[%s5 + $0x310] sm:$0xff]
    %v277 = vld [vmem:[%s5 + $0x318] sm:$0xff]
    %v278 = vld [vmem:[%s5 + $0x320] sm:$0xff]
    %v279 = vld [vmem:[%s5 + $0x328] sm:$0xff]
    %v280 = vld [vmem:[%s5 + $0x330] sm:$0xff]
    %v281 = vld [vmem:[%s5 + $0x338] sm:$0xff]
    %v282 = vld [vmem:[%s5 + $0x340] sm:$0xff]
    %v283 = vld [vmem:[%s5 + $0x348] sm:$0xff]
    %v284 = vld [vmem:[%s5 + $0x350] sm:$0xff]
    %v285 = vld [vmem:[%s5 + $0x358] sm:$0xff]
    %v286 = vld [vmem:[%s5 + $0x360] sm:$0xff]
    %v287 = vld [vmem:[%s5 + $0x368] sm:$0xff]
    %v288 = vld [vmem:[%s5 + $0x370] sm:$0xff]
    %v289 = vld [vmem:[%s5 + $0x378] sm:$0xff]
    %v290 = vld [vmem:[%s5 + $0x380] sm:$0xff]
    %v291 = vld [vmem:[%s5 + $0x388] sm:$0xff]
    %v292 = vld [vmem:[%s5 + $0x390] sm:$0xff]
    %v293 = vld [vmem:[%s5 + $0x398] sm:$0xff]
    %v294 = vld [vmem:[%s5 + $0x3a0] sm:$0xff]
    %v295 = vld [vmem:[%s5 + $0x3a8] sm:$0xff]
    %v296 = vld [vmem:[%s5 + $0x3b0] sm:$0xff]
    %v297 = vld [vmem:[%s5 + $0x3b8] sm:$0xff]
    %v298 = vld [vmem:[%s5 + $0x3c0] sm:$0xff]
    %v299 = vld [vmem:[%s5 + $0x3c8] sm:$0xff]
    %v300 = vld [vmem:[%s5 + $0x3d0] sm:$0xff]
    %v301 = vld [vmem:[%s5 + $0x3d8] sm:$0xff]
    %v302 = vld [vmem:[%s5 + $0x3e0] sm:$0xff]
    %v303 = vld [vmem:[%s5 + $0x3e8] sm:$0xff]
    %v304 = vld [vmem:[%s5 + $0x3f0] sm:$0xff]
    %v305 = vld [vmem:[%s5 + $0x3f8] sm:$0xff]
    %v306 = vld [vmem:[%s5 + $0x400] sm:$0xff]
    %v307 = vld [vmem:[%s5 + $0x408] sm:$0xff]
    %v308 = vld [vmem:[%s5 + $0x410] sm:$0xff]
    %v309 = vld [vmem:[%s5 + $0x418] sm:$0xff]
    %v310 = vld [vmem:[%s5 + $0x420] sm:$0xff]
    %v311 = vld [vmem:[%s5 + $0x428] sm:$0xff]
    %v312 = vld [vmem:[%s5 + $0x430] sm:$0xff]
    %v313 = vld [vmem:[%s5 + $0x438] sm:$0xff]
    %v314 = vld [vmem:[%s5 + $0x440] sm:$0xff]
    %v315 = vld [vmem:[%s5 + $0x448] sm:$0xff]
    %v316 = vld [vmem:[%s5 + $0x450] sm:$0xff]
    %v317 = vld [vmem:[%s5 + $0x458] sm:$0xff]
    %v318 = vld [vmem:[%s5 + $0x460] sm:$0xff]
    %v319 = vld [vmem:[%s5 + $0x468] sm:$0xff]
    %v320 = vld [vmem:[%s5 + $0x470] sm:$0xff]
    %v321 = vld [vmem:[%s5 + $0x478] sm:$0xff]
    %v322 = vld [vmem:[%s5 + $0x480] sm:$0xff]
    %v323 = vld [vmem:[%s5 + $0x488] sm:$0xff]
    %v324 = vld [vmem:[%s5 + $0x490] sm:$0xff]
    %v325 = vld [vmem:[%s5 + $0x498] sm:$0xff]
    %v326 = vld [vmem:[%s5 + $0x4a0] sm:$0xff]
    %v327 = vld [vmem:[%s5 + $0x4a8] sm:$0xff]
    %v328 = vld [vmem:[%s5 + $0x4b0] sm:$0xff]
    %v329 = vld [vmem:[%s5 + $0x4b8] sm:$0xff]
    %v330 = vld [vmem:[%s5 + $0x4c0] sm:$0xff]
    %v331 = vld [vmem:[%s5 + $0x4c8] sm:$0xff]
    %v332 = vld [vmem:[%s5 + $0x4d0] sm:$0xff]
    %v333 = vld [vmem:[%s5 + $0x4d8] sm:$0xff]
    %v334 = vld [vmem:[%s5 + $0x4e0] sm:$0xff]
    %v335 = vld [vmem:[%s5 + $0x4e8] sm:$0xff]
    %v336 = vld [vmem:[%s5 + $0x4f0] sm:$0xff]
    %v337 = vld [vmem:[%s5 + $0x4f8] sm:$0xff]
    %v338 = vld [vmem:[%s5 + $0x500] sm:$0xff]
    %v339 = vld [vmem:[%s5 + $0x508] sm:$0xff]
    %v340 = vld [vmem:[%s5 + $0x510] sm:$0xff]
    %v341 = vld [vmem:[%s5 + $0x518] sm:$0xff]
    %v342 = vld [vmem:[%s5 + $0x520] sm:$0xff]
    %v343 = vld [vmem:[%s5 + $0x528] sm:$0xff]
    %v344 = vld [vmem:[%s5 + $0x530] sm:$0xff]
    %v345 = vld [vmem:[%s5 + $0x538] sm:$0xff]
    %v346 = vld [vmem:[%s5 + $0x540] sm:$0xff]
    %v347 = vld [vmem:[%s5 + $0x548] sm:$0xff]
    %v348 = vld [vmem:[%s5 + $0x550] sm:$0xff]
    %v349 = vld [vmem:[%s5 + $0x558] sm:$0xff]
    %v350 = vld [vmem:[%s5 + $0x560] sm:$0xff]
    %v351 = vld [vmem:[%s5 + $0x568] sm:$0xff]
    %v352 = vld [vmem:[%s5 + $0x570] sm:$0xff]
    %v353 = vld [vmem:[%s5 + $0x578] sm:$0xff]
    %v354 = vld [vmem:[%s5 + $0x580] sm:$0xff]
    %v355 = vld [vmem:[%s5 + $0x588] sm:$0xff]
    %v356 = vld [vmem:[%s5 + $0x590] sm:$0xff]
    %v357 = vld [vmem:[%s5 + $0x598] sm:$0xff]
    %v358 = vld [vmem:[%s5 + $0x5a0] sm:$0xff]
    %v359 = vld [vmem:[%s5 + $0x5a8] sm:$0xff]
    %v360 = vld [vmem:[%s5 + $0x5b0] sm:$0xff]
    %v361 = vld [vmem:[%s5 + $0x5b8] sm:$0xff]
    %v362 = vld [vmem:[%s5 + $0x5c0] sm:$0xff]
    %v363 = vld [vmem:[%s5 + $0x5c8] sm:$0xff]
    %v364 = vld [vmem:[%s5 + $0x5d0] sm:$0xff]
    %v365 = vld [vmem:[%s5 + $0x5d8] sm:$0xff]
    %v366 = vld [vmem:[%s5 + $0x5e0] sm:$0xff]
    %v367 = vld [vmem:[%s5 + $0x5e8] sm:$0xff]
    %v368 = vld [vmem:[%s5 + $0x5f0] sm:$0xff]
    %v369 = vld [vmem:[%s5 + $0x5f8] sm:$0xff]
    %v370 = vld [vmem:[%s5 + $0x600] sm:$0xff]
    %v371 = vld [vmem:[%s5 + $0x608] sm:$0xff]
    %v372 = vld [vmem:[%s5 + $0x610] sm:$0xff]
    %v373 = vld [vmem:[%s5 + $0x618] sm:$0xff]
    %v374 = vld [vmem:[%s5 + $0x620] sm:$0xff]
    %v375 = vld [vmem:[%s5 + $0x628] sm:$0xff]
    %v376 = vld [vmem:[%s5 + $0x630] sm:$0xff]
    %v377 = vld [vmem:[%s5 + $0x638] sm:$0xff]
    %v378 = vld [vmem:[%s5 + $0x640] sm:$0xff]
    %v379 = vld [vmem:[%s5 + $0x648] sm:$0xff]
    %v380 = vld [vmem:[%s5 + $0x650] sm:$0xff]
    %v381 = vld [vmem:[%s5 + $0x658] sm:$0xff]
    %v382 = vld [vmem:[%s5 + $0x660] sm:$0xff]
    %v383 = vld [vmem:[%s5 + $0x668] sm:$0xff]
    %v384 = vld [vmem:[%s5 + $0x670] sm:$0xff]
    %v385 = vld [vmem:[%s5 + $0x678] sm:$0xff]
    %v386 = vld [vmem:[%s5 + $0x680] sm:$0xff]
    %v387 = vld [vmem:[%s5 + $0x688] sm:$0xff]
    %v388 = vld [vmem:[%s5 + $0x690] sm:$0xff]
    %v389 = vld [vmem:[%s5 + $0x698] sm:$0xff]
    %v390 = vld [vmem:[%s5 + $0x6a0] sm:$0xff]
    %v391 = vld [vmem:[%s5 + $0x6a8] sm:$0xff]
    %v392 = vld [vmem:[%s5 + $0x6b0] sm:$0xff]
    %v393 = vld [vmem:[%s5 + $0x6b8] sm:$0xff]
    %v394 = vld [vmem:[%s5 + $0x6c0] sm:$0xff]
    %v395 = vld [vmem:[%s5 + $0x6c8] sm:$0xff]
    %v396 = vld [vmem:[%s5 + $0x6d0] sm:$0xff]
    %v397 = vld [vmem:[%s5 + $0x6d8] sm:$0xff]
    %v398 = vld [vmem:[%s5 + $0x6e0] sm:$0xff]
    %v399 = vld [vmem:[%s5 + $0x6e8] sm:$0xff]
    %v400 = vld [vmem:[%s5 + $0x6f0] sm:$0xff]
    %v401 = vld [vmem:[%s5 + $0x6f8] sm:$0xff]
    %v402 = vld [vmem:[%s5 + $0x700] sm:$0xff]
    %v403 = vld [vmem:[%s5 + $0x708] sm:$0xff]
    %v404 = vld [vmem:[%s5 + $0x710] sm:$0xff]
    %v405 = vld [vmem:[%s5 + $0x718] sm:$0xff]
    %v406 = vld [vmem:[%s5 + $0x720] sm:$0xff]
    %v407 = vld [vmem:[%s5 + $0x728] sm:$0xff]
    %v408 = vld [vmem:[%s5 + $0x730] sm:$0xff]
    %v409 = vld [vmem:[%s5 + $0x738] sm:$0xff]
    %v410 = vld [vmem:[%s5 + $0x740] sm:$0xff]
    %v411 = vld [vmem:[%s5 + $0x748] sm:$0xff]
    %v412 = vld [vmem:[%s5 + $0x750] sm:$0xff]
    %v413 = vld [vmem:[%s5 + $0x758] sm:$0xff]
    %v414 = vld [vmem:[%s5 + $0x760] sm:$0xff]
    %v415 = vld [vmem:[%s5 + $0x768] sm:$0xff]
    %v416 = vld [vmem:[%s5 + $0x770] sm:$0xff]
    %v417 = vld [vmem:[%s5 + $0x778] sm:$0xff]
    %v418 = vld [vmem:[%s5 + $0x780] sm:$0xff]
    %v419 = vld [vmem:[%s5 + $0x788] sm:$0xff]
    %v420 = vld [vmem:[%s5 + $0x790] sm:$0xff]
    %v421 = vld [vmem:[%s5 + $0x798] sm:$0xff]
    %v422 = vld [vmem:[%s5 + $0x7a0] sm:$0xff]
    %v423 = vld [vmem:[%s5 + $0x7a8] sm:$0xff]
    %v424 = vld [vmem:[%s5 + $0x7b0] sm:$0xff]
    %v425 = vld [vmem:[%s5 + $0x7b8] sm:$0xff]
    %v426 = vld [vmem:[%s5 + $0x7c0] sm:$0xff]
    %v427 = vld [vmem:[%s5 + $0x7c8] sm:$0xff]
    %v428 = vld [vmem:[%s5 + $0x7d0] sm:$0xff]
    %v429 = vld [vmem:[%s5 + $0x7d8] sm:$0xff]
    %v430 = vld [vmem:[%s5 + $0x7e0] sm:$0xff]
    %v431 = vld [vmem:[%s5 + $0x7e8] sm:$0xff]
    %v432 = vld [vmem:[%s5 + $0x7f0] sm:$0xff]
    %v433 = vld [vmem:[%s5 + $0x7f8] sm:$0xff]
    %v434 = vld [vmem:[#allocation3] sm:$0xff]
    %v435 = vld [vmem:[%s6] sm:$0xff]
    %v436 = vld [vmem:[%s6 + $0x8] sm:$0xff]
    %v437 = vld [vmem:[%s6 + $0x10] sm:$0xff]
    %v438 = vld [vmem:[%s6 + $0x18] sm:$0xff]
    %v439 = vld [vmem:[%s6 + $0x20] sm:$0xff]
    %v440 = vld [vmem:[%s6 + $0x28] sm:$0xff]
    %v441 = vld [vmem:[%s6 + $0x30] sm:$0xff]
    %v442 = vld [vmem:[%s6 + $0x38] sm:$0xff]
    %v443 = vld [vmem:[%s6 + $0x40] sm:$0xff]
    %v444 = vld [vmem:[%s6 + $0x48] sm:$0xff]
    %v445 = vld [vmem:[%s6 + $0x50] sm:$0xff]
    %v446 = vld [vmem:[%s6 + $0x58] sm:$0xff]
    %v447 = vld [vmem:[%s6 + $0x60] sm:$0xff]
    %v448 = vld [vmem:[%s6 + $0x68] sm:$0xff]
    %v449 = vld [vmem:[%s6 + $0x70] sm:$0xff]
    %v450 = vld [vmem:[%s6 + $0x78] sm:$0xff]
    %v451 = vld [vmem:[%s6 + $0x80] sm:$0xf]
    %v452 = vld [vmem:[%s6 + $0x88] sm:$0xf]
    %v453 = vld [vmem:[%s6 + $0x90] sm:$0xf]
    %v454 = vld [vmem:[%s6 + $0x98] sm:$0xf]
    %v455 = vld [vmem:[%s6 + $0xa0] sm:$0xf]
    %v456 = vld [vmem:[%s6 + $0xa8] sm:$0xf]
    %v457 = vld [vmem:[%s6 + $0xb0] sm:$0xf]
    %v458 = vld [vmem:[%s6 + $0xb8] sm:$0xf]
    %v460 = vsel %vm174, %v434, 0
    %vm462 = vcmask 1043456
    %v464 = vsel %vm462, %v451, 0
    %v467 = vsel %vm462, %v452, 0
    %v470 = vsel %vm462, %v453, 0
    %v473 = vsel %vm462, %v454, 0
    %v476 = vsel %vm462, %v455, 0
    %v479 = vsel %vm462, %v456, 0
    %v482 = vsel %vm462, %v457, 0
    %v485 = vsel %vm462, %v458, 0
    %487 = vmatprep.subr.mxu0 0.0
    %488 = vmatpush1.msra.mxu0 0.0
    %489 = vmatprep.subr.mxu0 0.0
    %490 = vmatpush1.msra.mxu0 0.0
    %491 = vmatprep.subr.mxu0 0.0
    %492 = vmatpush1.msra.mxu0 0.0
    %493 = vmatprep.subr.mxu0 0.0
    %494 = vmatpush1.msra.mxu0 0.0
    %495 = vmatprep.subr.mxu0 0.0
    %496 = vmatpush1.msra.mxu0 0.0
    %497 = vmatprep.subr.mxu0 0.0
    %498 = vmatpush1.msra.mxu0 0.0
    %499 = vmatprep.subr.mxu0 0.0
    %500 = vmatpush1.msra.mxu0 0.0
    %501 = vmatprep.subr.mxu0 0.0
    %502 = vmatpush1.msra.mxu0 0.0
    %503 = vmatprep.subr.mxu0 0.0
    %504 = vmatpush1.msra.mxu0 0.0
    %505 = vmatprep.subr.mxu0 0.0
    %506 = vmatpush1.msra.mxu0 0.0
    %507 = vmatprep.subr.mxu0 0.0
    %508 = vmatpush1.msra.mxu0 0.0
    %509 = vmatprep.subr.mxu0 0.0
    %510 = vmatpush1.msra.mxu0 0.0
    %511 = vmatprep.subr.mxu0 0.0
    %512 = vmatpush1.msra.mxu0 0.0
    %513 = vmatprep.subr.mxu0 %v467
    %514 = vmatpush1.msra.mxu0 %v464
    %515 = vmatprep.subr.mxu0 %v444
    %516 = vmatpush1.msra.mxu0 %v443
    %517 = vmatprep.subr.mxu0 %v436
    %518 = vmatpush1.msra.mxu0 %v435
    %519 = vmatprep.subr.mxu0 0.0
    %520 = vmatpush2.msra.mxu0 0.0
    %521 = vmatprep.subr.mxu0 0.0
    %522 = vmatpush2.msra.mxu0 0.0
    %523 = vmatprep.subr.mxu0 0.0
    %524 = vmatpush2.msra.mxu0 0.0
    %525 = vmatprep.subr.mxu0 0.0
    %526 = vmatpush2.msra.mxu0 0.0
    %527 = vmatprep.subr.mxu0 0.0
    %528 = vmatpush2.msra.mxu0 0.0
    %529 = vmatprep.subr.mxu0 0.0
    %530 = vmatpush2.msra.mxu0 0.0
    %531 = vmatprep.subr.mxu0 0.0
    %532 = vmatpush2.msra.mxu0 0.0
    %533 = vmatprep.subr.mxu0 0.0
    %534 = vmatpush2.msra.mxu0 0.0
    %535 = vmatprep.subr.mxu0 0.0
    %536 = vmatpush2.msra.mxu0 0.0
    %537 = vmatprep.subr.mxu0 0.0
    %538 = vmatpush2.msra.mxu0 0.0
    %539 = vmatprep.subr.mxu0 0.0
    %540 = vmatpush2.msra.mxu0 0.0
    %541 = vmatprep.subr.mxu0 0.0
    %542 = vmatpush2.msra.mxu0 0.0
    %543 = vmatprep.subr.mxu0 0.0
    %544 = vmatpush2.msra.mxu0 0.0
    %545 = vmatprep.subr.mxu0 0.0
    %546 = vmatpush2.msra.mxu0 0.0
    %547 = vmatprep.subr.mxu0 0.0
    %548 = vmatpush2.msra.mxu0 0.0
    %549 = vmatprep.subr.mxu0 0.0
    %550 = vmatpush2.msra.mxu0 0.0
    %551 = vmatprep.mubr.f32.mxu0 0.0
    %552 = vmatmul.mubr.f32.gmra.mxu0 %v460
    %v553 = vpop.f32.mrf.mxu0
    %v554 = vadd.f32 0.0, %v553
    %v555 = vpop.f32.mrf.mxu0
    %v556 = vadd.f32 0.0, %v555
    %557 = vdwg.mxu0
    %558 = vmatprep.subr.mxu0 0.0
    %559 = vmatpush1.msra.mxu0 0.0
    %560 = vmatprep.subr.mxu0 0.0
    %561 = vmatpush1.msra.mxu0 0.0
    %562 = vmatprep.subr.mxu0 0.0
    %563 = vmatpush1.msra.mxu0 0.0
    %564 = vmatprep.subr.mxu0 0.0
    %565 = vmatpush1.msra.mxu0 0.0
    %566 = vmatprep.subr.mxu0 0.0
    %567 = vmatpush1.msra.mxu0 0.0
    %568 = vmatprep.subr.mxu0 0.0
    %569 = vmatpush1.msra.mxu0 0.0
    %570 = vmatprep.subr.mxu0 0.0
    %571 = vmatpush1.msra.mxu0 0.0
    %572 = vmatprep.subr.mxu0 0.0
    %573 = vmatpush1.msra.mxu0 0.0
    %574 = vmatprep.subr.mxu0 0.0
    %575 = vmatpush1.msra.mxu0 0.0
    %576 = vmatprep.subr.mxu0 0.0
    %577 = vmatpush1.msra.mxu0 0.0
    %578 = vmatprep.subr.mxu0 0.0
    %579 = vmatpush1.msra.mxu0 0.0
    %580 = vmatprep.subr.mxu0 0.0
    %581 = vmatpush1.msra.mxu0 0.0
    %582 = vmatprep.subr.mxu0 0.0
    %583 = vmatpush1.msra.mxu0 0.0
    %584 = vmatprep.subr.mxu0 %v473
    %585 = vmatpush1.msra.mxu0 %v470
    %586 = vmatprep.subr.mxu0 %v446
    %587 = vmatpush1.msra.mxu0 %v445
    %588 = vmatprep.subr.mxu0 %v438
    %589 = vmatpush1.msra.mxu0 %v437
    %590 = vmatprep.subr.mxu0 0.0
    %591 = vmatpush2.msra.mxu0 0.0
    %592 = vmatprep.subr.mxu0 0.0
    %593 = vmatpush2.msra.mxu0 0.0
    %594 = vmatprep.subr.mxu0 0.0
    %595 = vmatpush2.msra.mxu0 0.0
    %596 = vmatprep.subr.mxu0 0.0
    %597 = vmatpush2.msra.mxu0 0.0
    %598 = vmatprep.subr.mxu0 0.0
    %599 = vmatpush2.msra.mxu0 0.0
    %600 = vmatprep.subr.mxu0 0.0
    %601 = vmatpush2.msra.mxu0 0.0
    %602 = vmatprep.subr.mxu0 0.0
    %603 = vmatpush2.msra.mxu0 0.0
    %604 = vmatprep.subr.mxu0 0.0
    %605 = vmatpush2.msra.mxu0 0.0
    %606 = vmatprep.subr.mxu0 0.0
    %607 = vmatpush2.msra.mxu0 0.0
    %608 = vmatprep.subr.mxu0 0.0
    %609 = vmatpush2.msra.mxu0 0.0
    %610 = vmatprep.subr.mxu0 0.0
    %611 = vmatpush2.msra.mxu0 0.0
    %612 = vmatprep.subr.mxu0 0.0
    %613 = vmatpush2.msra.mxu0 0.0
    %614 = vmatprep.subr.mxu0 0.0
    %615 = vmatpush2.msra.mxu0 0.0
    %616 = vmatprep.subr.mxu0 0.0
    %617 = vmatpush2.msra.mxu0 0.0
    %618 = vmatprep.subr.mxu0 0.0
    %619 = vmatpush2.msra.mxu0 0.0
    %620 = vmatprep.subr.mxu0 0.0
    %621 = vmatpush2.msra.mxu0 0.0
    %622 = vmatprep.mubr.f32.mxu0 0.0
    %623 = vmatmul.mubr.f32.gmra.mxu0 %v460
    %v624 = vpop.f32.mrf.mxu0
    %v625 = vadd.f32 0.0, %v624
    %v626 = vpop.f32.mrf.mxu0
    %v627 = vadd.f32 0.0, %v626
    %628 = vdwg.mxu0
    %629 = vmatprep.subr.mxu0 0.0
    %630 = vmatpush1.msra.mxu0 0.0
    %631 = vmatprep.subr.mxu0 0.0
    %632 = vmatpush1.msra.mxu0 0.0
    %633 = vmatprep.subr.mxu0 0.0
    %634 = vmatpush1.msra.mxu0 0.0
    %635 = vmatprep.subr.mxu0 0.0
    %636 = vmatpush1.msra.mxu0 0.0
    %637 = vmatprep.subr.mxu0 0.0
    %638 = vmatpush1.msra.mxu0 0.0
    %639 = vmatprep.subr.mxu0 0.0
    %640 = vmatpush1.msra.mxu0 0.0
    %641 = vmatprep.subr.mxu0 0.0
    %642 = vmatpush1.msra.mxu0 0.0
    %643 = vmatprep.subr.mxu0 0.0
    %644 = vmatpush1.msra.mxu0 0.0
    %645 = vmatprep.subr.mxu0 0.0
    %646 = vmatpush1.msra.mxu0 0.0
    %647 = vmatprep.subr.mxu0 0.0
    %648 = vmatpush1.msra.mxu0 0.0
    %649 = vmatprep.subr.mxu0 0.0
    %650 = vmatpush1.msra.mxu0 0.0
    %651 = vmatprep.subr.mxu0 0.0
    %652 = vmatpush1.msra.mxu0 0.0
    %653 = vmatprep.subr.mxu0 0.0
    %654 = vmatpush1.msra.mxu0 0.0
    %655 = vmatprep.subr.mxu0 %v479
    %656 = vmatpush1.msra.mxu0 %v476
    %657 = vmatprep.subr.mxu0 %v448
    %658 = vmatpush1.msra.mxu0 %v447
    %659 = vmatprep.subr.mxu0 %v440
    %660 = vmatpush1.msra.mxu0 %v439
    %661 = vmatprep.subr.mxu0 0.0
    %662 = vmatpush2.msra.mxu0 0.0
    %663 = vmatprep.subr.mxu0 0.0
    %664 = vmatpush2.msra.mxu0 0.0
    %665 = vmatprep.subr.mxu0 0.0
    %666 = vmatpush2.msra.mxu0 0.0
    %667 = vmatprep.subr.mxu0 0.0
    %668 = vmatpush2.msra.mxu0 0.0
    %669 = vmatprep.subr.mxu0 0.0
    %670 = vmatpush2.msra.mxu0 0.0
    %671 = vmatprep.subr.mxu0 0.0
    %672 = vmatpush2.msra.mxu0 0.0
    %673 = vmatprep.subr.mxu0 0.0
    %674 = vmatpush2.msra.mxu0 0.0
    %675 = vmatprep.subr.mxu0 0.0
    %676 = vmatpush2.msra.mxu0 0.0
    %677 = vmatprep.subr.mxu0 0.0
    %678 = vmatpush2.msra.mxu0 0.0
    %679 = vmatprep.subr.mxu0 0.0
    %680 = vmatpush2.msra.mxu0 0.0
    %681 = vmatprep.subr.mxu0 0.0
    %682 = vmatpush2.msra.mxu0 0.0
    %683 = vmatprep.subr.mxu0 0.0
    %684 = vmatpush2.msra.mxu0 0.0
    %685 = vmatprep.subr.mxu0 0.0
    %686 = vmatpush2.msra.mxu0 0.0
    %687 = vmatprep.subr.mxu0 0.0
    %688 = vmatpush2.msra.mxu0 0.0
    %689 = vmatprep.subr.mxu0 0.0
    %690 = vmatpush2.msra.mxu0 0.0
    %691 = vmatprep.subr.mxu0 0.0
    %692 = vmatpush2.msra.mxu0 0.0
    %693 = vmatprep.mubr.f32.mxu0 0.0
    %694 = vmatmul.mubr.f32.gmra.mxu0 %v460
    %v695 = vpop.f32.mrf.mxu0
    %v696 = vadd.f32 0.0, %v695
    %v697 = vpop.f32.mrf.mxu0
    %v698 = vadd.f32 0.0, %v697
    %699 = vdwg.mxu0
    %700 = vmatprep.subr.mxu0 0.0
    %701 = vmatpush1.msra.mxu0 0.0
    %702 = vmatprep.subr.mxu0 0.0
    %703 = vmatpush1.msra.mxu0 0.0
    %704 = vmatprep.subr.mxu0 0.0
    %705 = vmatpush1.msra.mxu0 0.0
    %706 = vmatprep.subr.mxu0 0.0
    %707 = vmatpush1.msra.mxu0 0.0
    %708 = vmatprep.subr.mxu0 0.0
    %709 = vmatpush1.msra.mxu0 0.0
    %710 = vmatprep.subr.mxu0 0.0
    %711 = vmatpush1.msra.mxu0 0.0
    %712 = vmatprep.subr.mxu0 0.0
    %713 = vmatpush1.msra.mxu0 0.0
    %714 = vmatprep.subr.mxu0 0.0
    %715 = vmatpush1.msra.mxu0 0.0
    %716 = vmatprep.subr.mxu0 0.0
    %717 = vmatpush1.msra.mxu0 0.0
    %718 = vmatprep.subr.mxu0 0.0
    %719 = vmatpush1.msra.mxu0 0.0
    %720 = vmatprep.subr.mxu0 0.0
    %721 = vmatpush1.msra.mxu0 0.0
    %722 = vmatprep.subr.mxu0 0.0
    %723 = vmatpush1.msra.mxu0 0.0
    %724 = vmatprep.subr.mxu0 0.0
    %725 = vmatpush1.msra.mxu0 0.0
    %726 = vmatprep.subr.mxu0 %v485
    %727 = vmatpush1.msra.mxu0 %v482
    %728 = vmatprep.subr.mxu0 %v450
    %729 = vmatpush1.msra.mxu0 %v449
    %730 = vmatprep.subr.mxu0 %v442
    %731 = vmatpush1.msra.mxu0 %v441
    %732 = vmatprep.subr.mxu0 0.0
    %733 = vmatpush2.msra.mxu0 0.0
    %734 = vmatprep.subr.mxu0 0.0
    %735 = vmatpush2.msra.mxu0 0.0
    %736 = vmatprep.subr.mxu0 0.0
    %737 = vmatpush2.msra.mxu0 0.0
    %738 = vmatprep.subr.mxu0 0.0
    %739 = vmatpush2.msra.mxu0 0.0
    %740 = vmatprep.subr.mxu0 0.0
    %741 = vmatpush2.msra.mxu0 0.0
    %742 = vmatprep.subr.mxu0 0.0
    %743 = vmatpush2.msra.mxu0 0.0
    %744 = vmatprep.subr.mxu0 0.0
    %745 = vmatpush2.msra.mxu0 0.0
    %746 = vmatprep.subr.mxu0 0.0
    %747 = vmatpush2.msra.mxu0 0.0
    %748 = vmatprep.subr.mxu0 0.0
    %749 = vmatpush2.msra.mxu0 0.0
    %750 = vmatprep.subr.mxu0 0.0
    %751 = vmatpush2.msra.mxu0 0.0
    %752 = vmatprep.subr.mxu0 0.0
    %753 = vmatpush2.msra.mxu0 0.0
    %754 = vmatprep.subr.mxu0 0.0
    %755 = vmatpush2.msra.mxu0 0.0
    %756 = vmatprep.subr.mxu0 0.0
    %757 = vmatpush2.msra.mxu0 0.0
    %758 = vmatprep.subr.mxu0 0.0
    %759 = vmatpush2.msra.mxu0 0.0
    %760 = vmatprep.subr.mxu0 0.0
    %761 = vmatpush2.msra.mxu0 0.0
    %762 = vmatprep.subr.mxu0 0.0
    %763 = vmatpush2.msra.mxu0 0.0
    %764 = vmatprep.mubr.f32.mxu0 0.0
    %765 = vmatmul.mubr.f32.gmra.mxu0 %v460
    %v766 = vpop.f32.mrf.mxu0
    %v767 = vadd.f32 0.0, %v766
    %v768 = vpop.f32.mrf.mxu0
    %v769 = vadd.f32 0.0, %v768
    %770 = vdwg.mxu0
    %771 = vmatprep.subr.mxu0 %v299
    %772 = vmatpush1.msra.mxu0 %v298
    %773 = vmatprep.subr.mxu0 %v291
    %774 = vmatpush1.msra.mxu0 %v290
    %775 = vmatprep.subr.mxu0 %v283
    %776 = vmatpush1.msra.mxu0 %v282
    %777 = vmatprep.subr.mxu0 %v275
    %778 = vmatpush1.msra.mxu0 %v274
    %779 = vmatprep.subr.mxu0 %v267
    %780 = vmatpush1.msra.mxu0 %v266
    %781 = vmatprep.subr.mxu0 %v259
    %782 = vmatpush1.msra.mxu0 %v258
    %783 = vmatprep.subr.mxu0 %v251
    %784 = vmatpush1.msra.mxu0 %v250
    %785 = vmatprep.subr.mxu0 %v243
    %786 = vmatpush1.msra.mxu0 %v242
    %787 = vmatprep.subr.mxu0 %v235
    %788 = vmatpush1.msra.mxu0 %v234
    %789 = vmatprep.subr.mxu0 %v227
    %790 = vmatpush1.msra.mxu0 %v226
    %791 = vmatprep.subr.mxu0 %v219
    %792 = vmatpush1.msra.mxu0 %v218
    %793 = vmatprep.subr.mxu0 %v211
    %794 = vmatpush1.msra.mxu0 %v210
    %795 = vmatprep.subr.mxu0 %v203
    %796 = vmatpush1.msra.mxu0 %v202
    %797 = vmatprep.subr.mxu0 %v195
    %798 = vmatpush1.msra.mxu0 %v194
    %799 = vmatprep.subr.mxu0 %v187
    %800 = vmatpush1.msra.mxu0 %v186
    %801 = vmatprep.subr.mxu0 %v179
    %802 = vmatpush1.msra.mxu0 %v178
    %803 = vmatprep.subr.mxu0 %v427
    %804 = vmatpush2.msra.mxu0 %v426
    %805 = vmatprep.subr.mxu0 %v419
    %806 = vmatpush2.msra.mxu0 %v418
    %807 = vmatprep.subr.mxu0 %v411
    %808 = vmatpush2.msra.mxu0 %v410
    %809 = vmatprep.subr.mxu0 %v403
    %810 = vmatpush2.msra.mxu0 %v402
    %811 = vmatprep.subr.mxu0 %v395
    %812 = vmatpush2.msra.mxu0 %v394
    %813 = vmatprep.subr.mxu0 %v387
    %814 = vmatpush2.msra.mxu0 %v386
    %815 = vmatprep.subr.mxu0 %v379
    %816 = vmatpush2.msra.mxu0 %v378
    %817 = vmatprep.subr.mxu0 %v371
    %818 = vmatpush2.msra.mxu0 %v370
    %819 = vmatprep.subr.mxu0 %v363
    %820 = vmatpush2.msra.mxu0 %v362
    %821 = vmatprep.subr.mxu0 %v355
    %822 = vmatpush2.msra.mxu0 %v354
    %823 = vmatprep.subr.mxu0 %v347
    %824 = vmatpush2.msra.mxu0 %v346
    %825 = vmatprep.subr.mxu0 %v339
    %826 = vmatpush2.msra.mxu0 %v338
    %827 = vmatprep.subr.mxu0 %v331
    %828 = vmatpush2.msra.mxu0 %v330
    %829 = vmatprep.subr.mxu0 %v323
    %830 = vmatpush2.msra.mxu0 %v322
    %831 = vmatprep.subr.mxu0 %v315
    %832 = vmatpush2.msra.mxu0 %v314
    %833 = vmatprep.subr.mxu0 %v307
    %834 = vmatpush2.msra.mxu0 %v306
    %835 = vmatprep.mubr.f32.mxu0 %v177
    %836 = vmatmul.mubr.f32.gmra.mxu0 %v176
    %v837 = vpop.f32.mrf.mxu0
    %v838 = vadd.f32 %v554, %v837
    %v839 = vpop.f32.mrf.mxu0
    %v840 = vadd.f32 %v556, %v839
    %841 = vdwg.mxu0
    %842 = vmatprep.subr.mxu0 %v301
    %843 = vmatpush1.msra.mxu0 %v300
    %844 = vmatprep.subr.mxu0 %v293
    %845 = vmatpush1.msra.mxu0 %v292
    %846 = vmatprep.subr.mxu0 %v285
    %847 = vmatpush1.msra.mxu0 %v284
    %848 = vmatprep.subr.mxu0 %v277
    %849 = vmatpush1.msra.mxu0 %v276
    %850 = vmatprep.subr.mxu0 %v269
    %851 = vmatpush1.msra.mxu0 %v268
    %852 = vmatprep.subr.mxu0 %v261
    %853 = vmatpush1.msra.mxu0 %v260
    %854 = vmatprep.subr.mxu0 %v253
    %855 = vmatpush1.msra.mxu0 %v252
    %856 = vmatprep.subr.mxu0 %v245
    %857 = vmatpush1.msra.mxu0 %v244
    %858 = vmatprep.subr.mxu0 %v237
    %859 = vmatpush1.msra.mxu0 %v236
    %860 = vmatprep.subr.mxu0 %v229
    %861 = vmatpush1.msra.mxu0 %v228
    %862 = vmatprep.subr.mxu0 %v221
    %863 = vmatpush1.msra.mxu0 %v220
    %864 = vmatprep.subr.mxu0 %v213
    %865 = vmatpush1.msra.mxu0 %v212
    %866 = vmatprep.subr.mxu0 %v205
    %867 = vmatpush1.msra.mxu0 %v204
    %868 = vmatprep.subr.mxu0 %v197
    %869 = vmatpush1.msra.mxu0 %v196
    %870 = vmatprep.subr.mxu0 %v189
    %871 = vmatpush1.msra.mxu0 %v188
    %872 = vmatprep.subr.mxu0 %v181
    %873 = vmatpush1.msra.mxu0 %v180
    %874 = vmatprep.subr.mxu0 %v429
    %875 = vmatpush2.msra.mxu0 %v428
    %876 = vmatprep.subr.mxu0 %v421
    %877 = vmatpush2.msra.mxu0 %v420
    %878 = vmatprep.subr.mxu0 %v413
    %879 = vmatpush2.msra.mxu0 %v412
    %880 = vmatprep.subr.mxu0 %v405
    %881 = vmatpush2.msra.mxu0 %v404
    %882 = vmatprep.subr.mxu0 %v397
    %883 = vmatpush2.msra.mxu0 %v396
    %884 = vmatprep.subr.mxu0 %v389
    %885 = vmatpush2.msra.mxu0 %v388
    %886 = vmatprep.subr.mxu0 %v381
    %887 = vmatpush2.msra.mxu0 %v380
    %888 = vmatprep.subr.mxu0 %v373
    %889 = vmatpush2.msra.mxu0 %v372
    %890 = vmatprep.subr.mxu0 %v365
    %891 = vmatpush2.msra.mxu0 %v364
    %892 = vmatprep.subr.mxu0 %v357
    %893 = vmatpush2.msra.mxu0 %v356
    %894 = vmatprep.subr.mxu0 %v349
    %895 = vmatpush2.msra.mxu0 %v348
    %896 = vmatprep.subr.mxu0 %v341
    %897 = vmatpush2.msra.mxu0 %v340
    %898 = vmatprep.subr.mxu0 %v333
    %899 = vmatpush2.msra.mxu0 %v332
    %900 = vmatprep.subr.mxu0 %v325
    %901 = vmatpush2.msra.mxu0 %v324
    %902 = vmatprep.subr.mxu0 %v317
    %903 = vmatpush2.msra.mxu0 %v316
    %904 = vmatprep.subr.mxu0 %v309
    %905 = vmatpush2.msra.mxu0 %v308
    %906 = vmatprep.mubr.f32.mxu0 %v177
    %907 = vmatmul.mubr.f32.gmra.mxu0 %v176
    %v908 = vpop.f32.mrf.mxu0
    %v909 = vadd.f32 %v625, %v908
    %v910 = vpop.f32.mrf.mxu0
    %v911 = vadd.f32 %v627, %v910
    %912 = vdwg.mxu0
    %913 = vmatprep.subr.mxu0 %v303
    %914 = vmatpush1.msra.mxu0 %v302
    %915 = vmatprep.subr.mxu0 %v295
    %916 = vmatpush1.msra.mxu0 %v294
    %917 = vmatprep.subr.mxu0 %v287
    %918 = vmatpush1.msra.mxu0 %v286
    %919 = vmatprep.subr.mxu0 %v279
    %920 = vmatpush1.msra.mxu0 %v278
    %921 = vmatprep.subr.mxu0 %v271
    %922 = vmatpush1.msra.mxu0 %v270
    %923 = vmatprep.subr.mxu0 %v263
    %924 = vmatpush1.msra.mxu0 %v262
    %925 = vmatprep.subr.mxu0 %v255
    %926 = vmatpush1.msra.mxu0 %v254
    %927 = vmatprep.subr.mxu0 %v247
    %928 = vmatpush1.msra.mxu0 %v246
    %929 = vmatprep.subr.mxu0 %v239
    %930 = vmatpush1.msra.mxu0 %v238
    %931 = vmatprep.subr.mxu0 %v231
    %932 = vmatpush1.msra.mxu0 %v230
    %933 = vmatprep.subr.mxu0 %v223
    %934 = vmatpush1.msra.mxu0 %v222
    %935 = vmatprep.subr.mxu0 %v215
    %936 = vmatpush1.msra.mxu0 %v214
    %937 = vmatprep.subr.mxu0 %v207
    %938 = vmatpush1.msra.mxu0 %v206
    %939 = vmatprep.subr.mxu0 %v199
    %940 = vmatpush1.msra.mxu0 %v198
    %941 = vmatprep.subr.mxu0 %v191
    %942 = vmatpush1.msra.mxu0 %v190
    %943 = vmatprep.subr.mxu0 %v183
    %944 = vmatpush1.msra.mxu0 %v182
    %945 = vmatprep.subr.mxu0 %v431
    %946 = vmatpush2.msra.mxu0 %v430
    %947 = vmatprep.subr.mxu0 %v423
    %948 = vmatpush2.msra.mxu0 %v422
    %949 = vmatprep.subr.mxu0 %v415
    %950 = vmatpush2.msra.mxu0 %v414
    %951 = vmatprep.subr.mxu0 %v407
    %952 = vmatpush2.msra.mxu0 %v406
    %953 = vmatprep.subr.mxu0 %v399
    %954 = vmatpush2.msra.mxu0 %v398
    %955 = vmatprep.subr.mxu0 %v391
    %956 = vmatpush2.msra.mxu0 %v390
    %957 = vmatprep.subr.mxu0 %v383
    %958 = vmatpush2.msra.mxu0 %v382
    %959 = vmatprep.subr.mxu0 %v375
    %960 = vmatpush2.msra.mxu0 %v374
    %961 = vmatprep.subr.mxu0 %v367
    %962 = vmatpush2.msra.mxu0 %v366
    %963 = vmatprep.subr.mxu0 %v359
    %964 = vmatpush2.msra.mxu0 %v358
    %965 = vmatprep.subr.mxu0 %v351
    %966 = vmatpush2.msra.mxu0 %v350
    %967 = vmatprep.subr.mxu0 %v343
    %968 = vmatpush2.msra.mxu0 %v342
    %969 = vmatprep.subr.mxu0 %v335
    %970 = vmatpush2.msra.mxu0 %v334
    %971 = vmatprep.subr.mxu0 %v327
    %972 = vmatpush2.msra.mxu0 %v326
    %973 = vmatprep.subr.mxu0 %v319
    %974 = vmatpush2.msra.mxu0 %v318
    %975 = vmatprep.subr.mxu0 %v311
    %976 = vmatpush2.msra.mxu0 %v310
    %977 = vmatprep.mubr.f32.mxu0 %v177
    %978 = vmatmul.mubr.f32.gmra.mxu0 %v176
    %v979 = vpop.f32.mrf.mxu0
    %v980 = vadd.f32 %v696, %v979
    %v981 = vpop.f32.mrf.mxu0
    %v982 = vadd.f32 %v698, %v981
    %983 = vdwg.mxu0
    %984 = vmatprep.subr.mxu0 %v305
    %985 = vmatpush1.msra.mxu0 %v304
    %986 = vmatprep.subr.mxu0 %v297
    %987 = vmatpush1.msra.mxu0 %v296
    %988 = vmatprep.subr.mxu0 %v289
    %989 = vmatpush1.msra.mxu0 %v288
    %990 = vmatprep.subr.mxu0 %v281
    %991 = vmatpush1.msra.mxu0 %v280
    %992 = vmatprep.subr.mxu0 %v273
    %993 = vmatpush1.msra.mxu0 %v272
    %994 = vmatprep.subr.mxu0 %v265
    %995 = vmatpush1.msra.mxu0 %v264
    %996 = vmatprep.subr.mxu0 %v257
    %997 = vmatpush1.msra.mxu0 %v256
    %998 = vmatprep.subr.mxu0 %v249
    %999 = vmatpush1.msra.mxu0 %v248
    %1000 = vmatprep.subr.mxu0 %v241
    %1001 = vmatpush1.msra.mxu0 %v240
    %1002 = vmatprep.subr.mxu0 %v233
    %1003 = vmatpush1.msra.mxu0 %v232
    %1004 = vmatprep.subr.mxu0 %v225
    %1005 = vmatpush1.msra.mxu0 %v224
    %1006 = vmatprep.subr.mxu0 %v217
    %1007 = vmatpush1.msra.mxu0 %v216
    %1008 = vmatprep.subr.mxu0 %v209
    %1009 = vmatpush1.msra.mxu0 %v208
    %1010 = vmatprep.subr.mxu0 %v201
    %1011 = vmatpush1.msra.mxu0 %v200
    %1012 = vmatprep.subr.mxu0 %v193
    %1013 = vmatpush1.msra.mxu0 %v192
    %1014 = vmatprep.subr.mxu0 %v185
    %1015 = vmatpush1.msra.mxu0 %v184
    %1016 = vmatprep.subr.mxu0 %v433
    %1017 = vmatpush2.msra.mxu0 %v432
    %1018 = vmatprep.subr.mxu0 %v425
    %1019 = vmatpush2.msra.mxu0 %v424
    %1020 = vmatprep.subr.mxu0 %v417
    %1021 = vmatpush2.msra.mxu0 %v416
    %1022 = vmatprep.subr.mxu0 %v409
    %1023 = vmatpush2.msra.mxu0 %v408
    %1024 = vmatprep.subr.mxu0 %v401
    %1025 = vmatpush2.msra.mxu0 %v400
    %1026 = vmatprep.subr.mxu0 %v393
    %1027 = vmatpush2.msra.mxu0 %v392
    %1028 = vmatprep.subr.mxu0 %v385
    %1029 = vmatpush2.msra.mxu0 %v384
    %1030 = vmatprep.subr.mxu0 %v377
    %1031 = vmatpush2.msra.mxu0 %v376
    %1032 = vmatprep.subr.mxu0 %v369
    %1033 = vmatpush2.msra.mxu0 %v368
    %1034 = vmatprep.subr.mxu0 %v361
    %1035 = vmatpush2.msra.mxu0 %v360
    %1036 = vmatprep.subr.mxu0 %v353
    %1037 = vmatpush2.msra.mxu0 %v352
    %1038 = vmatprep.subr.mxu0 %v345
    %1039 = vmatpush2.msra.mxu0 %v344
    %1040 = vmatprep.subr.mxu0 %v337
    %1041 = vmatpush2.msra.mxu0 %v336
    %1042 = vmatprep.subr.mxu0 %v329
    %1043 = vmatpush2.msra.mxu0 %v328
    %1044 = vmatprep.subr.mxu0 %v321
    %1045 = vmatpush2.msra.mxu0 %v320
    %1046 = vmatprep.subr.mxu0 %v313
    %1047 = vmatpush2.msra.mxu0 %v312
    %1048 = vmatprep.mubr.f32.mxu0 %v177
    %1049 = vmatmul.mubr.f32.gmra.mxu0 %v176
    %v1050 = vpop.f32.mrf.mxu0
    %v1051 = vadd.f32 %v767, %v1050
    %v1052 = vpop.f32.mrf.mxu0
    %v1053 = vadd.f32 %v769, %v1052
    %1054 = vdwg.mxu0
    %v1055 = vld [vmem:[%s8] sm:$0xff]
    %v1057 = vlaneseq
    %v1058 = vshrl.u32 %v1057, 7
    %v1059 = vsub.s32 0, %v1058
    %v1060 = vrot.slane %v1055, %v1059
    %v1061 = vlaneseq
    %v1062 = vshrl.u32 %v1061, 7
    %v1063 = vsub.s32 1, %v1062
    %v1064 = vrot.slane %v1055, %v1063
    %v1065 = vlaneseq
    %v1066 = vshrl.u32 %v1065, 7
    %v1067 = vsub.s32 2, %v1066
    %v1068 = vrot.slane %v1055, %v1067
    %v1069 = vlaneseq
    %v1070 = vshrl.u32 %v1069, 7
    %v1071 = vsub.s32 3, %v1070
    %v1072 = vrot.slane %v1055, %v1071
    %v1073 = vlaneseq
    %v1074 = vshrl.u32 %v1073, 7
    %v1075 = vsub.s32 4, %v1074
    %v1076 = vrot.slane %v1055, %v1075
    %v1077 = vlaneseq
    %v1078 = vshrl.u32 %v1077, 7
    %v1079 = vsub.s32 5, %v1078
    %v1080 = vrot.slane %v1055, %v1079
    %v1081 = vlaneseq
    %v1082 = vshrl.u32 %v1081, 7
    %v1083 = vsub.s32 6, %v1082
    %v1084 = vrot.slane %v1055, %v1083
    %v1085 = vlaneseq
    %v1086 = vshrl.u32 %v1085, 7
    %v1087 = vsub.s32 7, %v1086
    %v1088 = vrot.slane %v1055, %v1087
    %v1097 = vadd.f32 %v838, %v1060
    %v1098 = vadd.f32 %v840, %v1064
    %v1099 = vadd.f32 %v909, %v1068
    %v1100 = vadd.f32 %v911, %v1072
    %v1101 = vadd.f32 %v980, %v1076
    %v1102 = vadd.f32 %v982, %v1080
    %v1103 = vadd.f32 %v1051, %v1084
    %v1104 = vadd.f32 %v1053, %v1088
    %1105 = vst [vmem:[#allocation4] sm:$0xff] %v1097
    %1106 = vst [vmem:[#allocation4 + $0x8] sm:$0xff] %v1098
    %1107 = vst [vmem:[#allocation4 + $0x10] sm:$0xff] %v1099
    %1108 = vst [vmem:[#allocation4 + $0x18] sm:$0xff] %v1100
    %1109 = vst [vmem:[#allocation4 + $0x20] sm:$0xff] %v1101
    %1110 = vst [vmem:[#allocation4 + $0x28] sm:$0xff] %v1102
    %1111 = vst [vmem:[#allocation4 + $0x30] sm:$0xff] %v1103
    %1112 = vst [vmem:[#allocation4 + $0x38] sm:$0xff] %v1104
    %v1113 = vld [vmem:[%s9] sm:$0x3]
    %v1114 = vld [vmem:[%s10] sm:$0x3]
    %v1115 = vld [vmem:[#allocation4] ss:$8 sm:$0xf]
    %v1116 = vld [vmem:[#allocation4] ss:$8 sm:$0xf0]
    %v1117 = vor.u32 %v1115, %v1116
    %v1118 = vld [vmem:[%s7] sm:$0xff]
    %v1119 = vld [vmem:[%s7 + $0x8] sm:$0xff]
    %v1120 = vld [vmem:[%s7 + $0x10] sm:$0xff]
    %v1121 = vld [vmem:[%s7 + $0x18] sm:$0xff]
    %v1122 = vld [vmem:[%s7 + $0x20] sm:$0xff]
    %v1123 = vld [vmem:[%s7 + $0x28] sm:$0xff]
    %v1124 = vld [vmem:[%s7 + $0x30] sm:$0xff]
    %v1125 = vld [vmem:[%s7 + $0x38] sm:$0xff]
    %v1126 = vld [vmem:[%s7 + $0x40] sm:$0xff]
    %v1127 = vld [vmem:[%s7 + $0x48] sm:$0xff]
    %v1128 = vld [vmem:[%s7 + $0x50] sm:$0xff]
    %v1129 = vld [vmem:[%s7 + $0x58] sm:$0xff]
    %v1130 = vld [vmem:[%s7 + $0x60] sm:$0xff]
    %v1131 = vld [vmem:[%s7 + $0x68] sm:$0xff]
    %v1132 = vld [vmem:[%s7 + $0x70] sm:$0xff]
    %v1133 = vld [vmem:[%s7 + $0x78] sm:$0xff]
    %v1134 = vld [vmem:[%s7 + $0x80] sm:$0xff]
    %v1135 = vld [vmem:[%s7 + $0x88] sm:$0xff]
    %v1136 = vld [vmem:[%s7 + $0x90] sm:$0xff]
    %v1137 = vld [vmem:[%s7 + $0x98] sm:$0xff]
    %v1138 = vld [vmem:[%s7 + $0xa0] sm:$0xff]
    %v1139 = vld [vmem:[%s7 + $0xa8] sm:$0xff]
    %v1140 = vld [vmem:[%s7 + $0xb0] sm:$0xff]
    %v1141 = vld [vmem:[%s7 + $0xb8] sm:$0xff]
    %v1142 = vld [vmem:[%s7 + $0xc0] sm:$0xff]
    %v1143 = vld [vmem:[%s7 + $0xc8] sm:$0xff]
    %v1144 = vld [vmem:[%s7 + $0xd0] sm:$0xff]
    %v1145 = vld [vmem:[%s7 + $0xd8] sm:$0xff]
    %v1146 = vld [vmem:[%s7 + $0xe0] sm:$0xff]
    %v1147 = vld [vmem:[%s7 + $0xe8] sm:$0xff]
    %v1148 = vld [vmem:[%s7 + $0xf0] sm:$0xff]
    %v1149 = vld [vmem:[%s7 + $0xf8] sm:$0xff]
    %v1150 = vld [vmem:[%s7 + $0x100] sm:$0xff]
    %v1151 = vld [vmem:[%s7 + $0x108] sm:$0xff]
    %v1152 = vld [vmem:[%s7 + $0x110] sm:$0xff]
    %v1153 = vld [vmem:[%s7 + $0x118] sm:$0xff]
    %v1154 = vld [vmem:[%s7 + $0x120] sm:$0xff]
    %v1155 = vld [vmem:[%s7 + $0x128] sm:$0xff]
    %v1156 = vld [vmem:[%s7 + $0x130] sm:$0xff]
    %v1157 = vld [vmem:[%s7 + $0x138] sm:$0xff]
    %v1158 = vld [vmem:[%s7 + $0x140] sm:$0xff]
    %v1159 = vld [vmem:[%s7 + $0x148] sm:$0xff]
    %v1160 = vld [vmem:[%s7 + $0x150] sm:$0xff]
    %v1161 = vld [vmem:[%s7 + $0x158] sm:$0xff]
    %v1162 = vld [vmem:[%s7 + $0x160] sm:$0xff]
    %v1163 = vld [vmem:[%s7 + $0x168] sm:$0xff]
    %v1164 = vld [vmem:[%s7 + $0x170] sm:$0xff]
    %v1165 = vld [vmem:[%s7 + $0x178] sm:$0xff]
    %v1166 = vld [vmem:[%s7 + $0x180] sm:$0xff]
    %v1167 = vld [vmem:[%s7 + $0x188] sm:$0xff]
    %v1168 = vld [vmem:[%s7 + $0x190] sm:$0xff]
    %v1169 = vld [vmem:[%s7 + $0x198] sm:$0xff]
    %v1170 = vld [vmem:[%s7 + $0x1a0] sm:$0xff]
    %v1171 = vld [vmem:[%s7 + $0x1a8] sm:$0xff]
    %v1172 = vld [vmem:[%s7 + $0x1b0] sm:$0xff]
    %v1173 = vld [vmem:[%s7 + $0x1b8] sm:$0xff]
    %v1174 = vld [vmem:[%s7 + $0x1c0] sm:$0xff]
    %v1175 = vld [vmem:[%s7 + $0x1c8] sm:$0xff]
    %v1176 = vld [vmem:[%s7 + $0x1d0] sm:$0xff]
    %v1177 = vld [vmem:[%s7 + $0x1d8] sm:$0xff]
    %v1178 = vld [vmem:[%s7 + $0x1e0] sm:$0xff]
    %v1179 = vld [vmem:[%s7 + $0x1e8] sm:$0xff]
    %v1180 = vld [vmem:[%s7 + $0x1f0] sm:$0xff]
    %v1181 = vld [vmem:[%s7 + $0x1f8] sm:$0xff]
    %v1182 = vld [vmem:[%s7 + $0x200] sm:$0xff]
    %v1183 = vld [vmem:[%s7 + $0x208] sm:$0xff]
    %v1184 = vld [vmem:[%s7 + $0x210] sm:$0xff]
    %v1185 = vld [vmem:[%s7 + $0x218] sm:$0xff]
    %v1186 = vld [vmem:[%s7 + $0x220] sm:$0xff]
    %v1187 = vld [vmem:[%s7 + $0x228] sm:$0xff]
    %v1188 = vld [vmem:[%s7 + $0x230] sm:$0xff]
    %v1189 = vld [vmem:[%s7 + $0x238] sm:$0xff]
    %v1190 = vld [vmem:[%s7 + $0x240] sm:$0xff]
    %v1191 = vld [vmem:[%s7 + $0x248] sm:$0xff]
    %v1192 = vld [vmem:[%s7 + $0x250] sm:$0xff]
    %v1193 = vld [vmem:[%s7 + $0x258] sm:$0xff]
    %v1194 = vld [vmem:[%s7 + $0x260] sm:$0xff]
    %v1195 = vld [vmem:[%s7 + $0x268] sm:$0xff]
    %v1196 = vld [vmem:[%s7 + $0x270] sm:$0xff]
    %v1197 = vld [vmem:[%s7 + $0x278] sm:$0xff]
    %v1198 = vld [vmem:[%s7 + $0x280] sm:$0xff]
    %v1199 = vld [vmem:[%s7 + $0x288] sm:$0xff]
    %v1200 = vld [vmem:[%s7 + $0x290] sm:$0xff]
    %v1201 = vld [vmem:[%s7 + $0x298] sm:$0xff]
    %v1202 = vld [vmem:[%s7 + $0x2a0] sm:$0xff]
    %v1203 = vld [vmem:[%s7 + $0x2a8] sm:$0xff]
    %v1204 = vld [vmem:[%s7 + $0x2b0] sm:$0xff]
    %v1205 = vld [vmem:[%s7 + $0x2b8] sm:$0xff]
    %v1206 = vld [vmem:[%s7 + $0x2c0] sm:$0xff]
    %v1207 = vld [vmem:[%s7 + $0x2c8] sm:$0xff]
    %v1208 = vld [vmem:[%s7 + $0x2d0] sm:$0xff]
    %v1209 = vld [vmem:[%s7 + $0x2d8] sm:$0xff]
    %v1210 = vld [vmem:[%s7 + $0x2e0] sm:$0xff]
    %v1211 = vld [vmem:[%s7 + $0x2e8] sm:$0xff]
    %v1212 = vld [vmem:[%s7 + $0x2f0] sm:$0xff]
    %v1213 = vld [vmem:[%s7 + $0x2f8] sm:$0xff]
    %v1214 = vld [vmem:[%s7 + $0x300] sm:$0xff]
    %v1215 = vld [vmem:[%s7 + $0x308] sm:$0xff]
    %v1216 = vld [vmem:[%s7 + $0x310] sm:$0xff]
    %v1217 = vld [vmem:[%s7 + $0x318] sm:$0xff]
    %v1218 = vld [vmem:[%s7 + $0x320] sm:$0xff]
    %v1219 = vld [vmem:[%s7 + $0x328] sm:$0xff]
    %v1220 = vld [vmem:[%s7 + $0x330] sm:$0xff]
    %v1221 = vld [vmem:[%s7 + $0x338] sm:$0xff]
    %v1222 = vld [vmem:[%s7 + $0x340] sm:$0xff]
    %v1223 = vld [vmem:[%s7 + $0x348] sm:$0xff]
    %v1224 = vld [vmem:[%s7 + $0x350] sm:$0xff]
    %v1225 = vld [vmem:[%s7 + $0x358] sm:$0xff]
    %v1226 = vld [vmem:[%s7 + $0x360] sm:$0xff]
    %v1227 = vld [vmem:[%s7 + $0x368] sm:$0xff]
    %v1228 = vld [vmem:[%s7 + $0x370] sm:$0xff]
    %v1229 = vld [vmem:[%s7 + $0x378] sm:$0xff]
    %v1230 = vld [vmem:[%s7 + $0x380] sm:$0xff]
    %v1231 = vld [vmem:[%s7 + $0x388] sm:$0xff]
    %v1232 = vld [vmem:[%s7 + $0x390] sm:$0xff]
    %v1233 = vld [vmem:[%s7 + $0x398] sm:$0xff]
    %v1234 = vld [vmem:[%s7 + $0x3a0] sm:$0xff]
    %v1235 = vld [vmem:[%s7 + $0x3a8] sm:$0xff]
    %v1236 = vld [vmem:[%s7 + $0x3b0] sm:$0xff]
    %v1237 = vld [vmem:[%s7 + $0x3b8] sm:$0xff]
    %v1238 = vld [vmem:[%s7 + $0x3c0] sm:$0xff]
    %v1239 = vld [vmem:[%s7 + $0x3c8] sm:$0xff]
    %v1240 = vld [vmem:[%s7 + $0x3d0] sm:$0xff]
    %v1241 = vld [vmem:[%s7 + $0x3d8] sm:$0xff]
    %v1242 = vld [vmem:[%s7 + $0x3e0] sm:$0xff]
    %v1243 = vld [vmem:[%s7 + $0x3e8] sm:$0xff]
    %v1244 = vld [vmem:[%s7 + $0x3f0] sm:$0xff]
    %v1245 = vld [vmem:[%s7 + $0x3f8] sm:$0xff]
    %v1246 = vld [vmem:[%s7 + $0x400] sm:$0xff]
    %v1247 = vld [vmem:[%s7 + $0x408] sm:$0xff]
    %v1248 = vld [vmem:[%s7 + $0x410] sm:$0xff]
    %v1249 = vld [vmem:[%s7 + $0x418] sm:$0xff]
    %v1250 = vld [vmem:[%s7 + $0x420] sm:$0xff]
    %v1251 = vld [vmem:[%s7 + $0x428] sm:$0xff]
    %v1252 = vld [vmem:[%s7 + $0x430] sm:$0xff]
    %v1253 = vld [vmem:[%s7 + $0x438] sm:$0xff]
    %v1254 = vld [vmem:[%s7 + $0x440] sm:$0xff]
    %v1255 = vld [vmem:[%s7 + $0x448] sm:$0xff]
    %v1256 = vld [vmem:[%s7 + $0x450] sm:$0xff]
    %v1257 = vld [vmem:[%s7 + $0x458] sm:$0xff]
    %v1258 = vld [vmem:[%s7 + $0x460] sm:$0xff]
    %v1259 = vld [vmem:[%s7 + $0x468] sm:$0xff]
    %v1260 = vld [vmem:[%s7 + $0x470] sm:$0xff]
    %v1261 = vld [vmem:[%s7 + $0x478] sm:$0xff]
    %v1262 = vld [vmem:[%s7 + $0x480] sm:$0xff]
    %v1263 = vld [vmem:[%s7 + $0x488] sm:$0xff]
    %v1264 = vld [vmem:[%s7 + $0x490] sm:$0xff]
    %v1265 = vld [vmem:[%s7 + $0x498] sm:$0xff]
    %v1266 = vld [vmem:[%s7 + $0x4a0] sm:$0xff]
    %v1267 = vld [vmem:[%s7 + $0x4a8] sm:$0xff]
    %v1268 = vld [vmem:[%s7 + $0x4b0] sm:$0xff]
    %v1269 = vld [vmem:[%s7 + $0x4b8] sm:$0xff]
    %v1270 = vld [vmem:[%s7 + $0x4c0] sm:$0xff]
    %v1271 = vld [vmem:[%s7 + $0x4c8] sm:$0xff]
    %v1272 = vld [vmem:[%s7 + $0x4d0] sm:$0xff]
    %v1273 = vld [vmem:[%s7 + $0x4d8] sm:$0xff]
    %v1274 = vld [vmem:[%s7 + $0x4e0] sm:$0xff]
    %v1275 = vld [vmem:[%s7 + $0x4e8] sm:$0xff]
    %v1276 = vld [vmem:[%s7 + $0x4f0] sm:$0xff]
    %v1277 = vld [vmem:[%s7 + $0x4f8] sm:$0xff]
    %v1278 = vld [vmem:[%s7 + $0x500] sm:$0xff]
    %v1279 = vld [vmem:[%s7 + $0x508] sm:$0xff]
    %v1280 = vld [vmem:[%s7 + $0x510] sm:$0xff]
    %v1281 = vld [vmem:[%s7 + $0x518] sm:$0xff]
    %v1282 = vld [vmem:[%s7 + $0x520] sm:$0xff]
    %v1283 = vld [vmem:[%s7 + $0x528] sm:$0xff]
    %v1284 = vld [vmem:[%s7 + $0x530] sm:$0xff]
    %v1285 = vld [vmem:[%s7 + $0x538] sm:$0xff]
    %v1286 = vld [vmem:[%s7 + $0x540] sm:$0xff]
    %v1287 = vld [vmem:[%s7 + $0x548] sm:$0xff]
    %v1288 = vld [vmem:[%s7 + $0x550] sm:$0xff]
    %v1289 = vld [vmem:[%s7 + $0x558] sm:$0xff]
    %v1290 = vld [vmem:[%s7 + $0x560] sm:$0xff]
    %v1291 = vld [vmem:[%s7 + $0x568] sm:$0xff]
    %v1292 = vld [vmem:[%s7 + $0x570] sm:$0xff]
    %v1293 = vld [vmem:[%s7 + $0x578] sm:$0xff]
    %v1294 = vld [vmem:[%s7 + $0x580] sm:$0xff]
    %v1295 = vld [vmem:[%s7 + $0x588] sm:$0xff]
    %v1296 = vld [vmem:[%s7 + $0x590] sm:$0xff]
    %v1297 = vld [vmem:[%s7 + $0x598] sm:$0xff]
    %v1298 = vld [vmem:[%s7 + $0x5a0] sm:$0xff]
    %v1299 = vld [vmem:[%s7 + $0x5a8] sm:$0xff]
    %v1300 = vld [vmem:[%s7 + $0x5b0] sm:$0xff]
    %v1301 = vld [vmem:[%s7 + $0x5b8] sm:$0xff]
    %v1302 = vld [vmem:[%s7 + $0x5c0] sm:$0xff]
    %v1303 = vld [vmem:[%s7 + $0x5c8] sm:$0xff]
    %v1304 = vld [vmem:[%s7 + $0x5d0] sm:$0xff]
    %v1305 = vld [vmem:[%s7 + $0x5d8] sm:$0xff]
    %v1306 = vld [vmem:[%s7 + $0x5e0] sm:$0xff]
    %v1307 = vld [vmem:[%s7 + $0x5e8] sm:$0xff]
    %v1308 = vld [vmem:[%s7 + $0x5f0] sm:$0xff]
    %v1309 = vld [vmem:[%s7 + $0x5f8] sm:$0xff]
    %v1310 = vld [vmem:[%s7 + $0x600] sm:$0xff]
    %v1311 = vld [vmem:[%s7 + $0x608] sm:$0xff]
    %v1312 = vld [vmem:[%s7 + $0x610] sm:$0xff]
    %v1313 = vld [vmem:[%s7 + $0x618] sm:$0xff]
    %v1314 = vld [vmem:[%s7 + $0x620] sm:$0xff]
    %v1315 = vld [vmem:[%s7 + $0x628] sm:$0xff]
    %v1316 = vld [vmem:[%s7 + $0x630] sm:$0xff]
    %v1317 = vld [vmem:[%s7 + $0x638] sm:$0xff]
    %v1318 = vld [vmem:[%s7 + $0x640] sm:$0xff]
    %v1319 = vld [vmem:[%s7 + $0x648] sm:$0xff]
    %v1320 = vld [vmem:[%s7 + $0x650] sm:$0xff]
    %v1321 = vld [vmem:[%s7 + $0x658] sm:$0xff]
    %v1322 = vld [vmem:[%s7 + $0x660] sm:$0xff]
    %v1323 = vld [vmem:[%s7 + $0x668] sm:$0xff]
    %v1324 = vld [vmem:[%s7 + $0x670] sm:$0xff]
    %v1325 = vld [vmem:[%s7 + $0x678] sm:$0xff]
    %v1326 = vld [vmem:[%s7 + $0x680] sm:$0xff]
    %v1327 = vld [vmem:[%s7 + $0x688] sm:$0xff]
    %v1328 = vld [vmem:[%s7 + $0x690] sm:$0xff]
    %v1329 = vld [vmem:[%s7 + $0x698] sm:$0xff]
    %v1330 = vld [vmem:[%s7 + $0x6a0] sm:$0xff]
    %v1331 = vld [vmem:[%s7 + $0x6a8] sm:$0xff]
    %v1332 = vld [vmem:[%s7 + $0x6b0] sm:$0xff]
    %v1333 = vld [vmem:[%s7 + $0x6b8] sm:$0xff]
    %v1334 = vld [vmem:[%s7 + $0x6c0] sm:$0xff]
    %v1335 = vld [vmem:[%s7 + $0x6c8] sm:$0xff]
    %v1336 = vld [vmem:[%s7 + $0x6d0] sm:$0xff]
    %v1337 = vld [vmem:[%s7 + $0x6d8] sm:$0xff]
    %v1338 = vld [vmem:[%s7 + $0x6e0] sm:$0xff]
    %v1339 = vld [vmem:[%s7 + $0x6e8] sm:$0xff]
    %v1340 = vld [vmem:[%s7 + $0x6f0] sm:$0xff]
    %v1341 = vld [vmem:[%s7 + $0x6f8] sm:$0xff]
    %v1342 = vld [vmem:[%s7 + $0x700] sm:$0xff]
    %v1343 = vld [vmem:[%s7 + $0x708] sm:$0xff]
    %v1344 = vld [vmem:[%s7 + $0x710] sm:$0xff]
    %v1345 = vld [vmem:[%s7 + $0x718] sm:$0xff]
    %v1346 = vld [vmem:[%s7 + $0x720] sm:$0xff]
    %v1347 = vld [vmem:[%s7 + $0x728] sm:$0xff]
    %v1348 = vld [vmem:[%s7 + $0x730] sm:$0xff]
    %v1349 = vld [vmem:[%s7 + $0x738] sm:$0xff]
    %v1350 = vld [vmem:[%s7 + $0x740] sm:$0xff]
    %v1351 = vld [vmem:[%s7 + $0x748] sm:$0xff]
    %v1352 = vld [vmem:[%s7 + $0x750] sm:$0xff]
    %v1353 = vld [vmem:[%s7 + $0x758] sm:$0xff]
    %v1354 = vld [vmem:[%s7 + $0x760] sm:$0xff]
    %v1355 = vld [vmem:[%s7 + $0x768] sm:$0xff]
    %v1356 = vld [vmem:[%s7 + $0x770] sm:$0xff]
    %v1357 = vld [vmem:[%s7 + $0x778] sm:$0xff]
    %v1358 = vld [vmem:[%s7 + $0x780] sm:$0xff]
    %v1359 = vld [vmem:[%s7 + $0x788] sm:$0xff]
    %v1360 = vld [vmem:[%s7 + $0x790] sm:$0xff]
    %v1361 = vld [vmem:[%s7 + $0x798] sm:$0xff]
    %v1362 = vld [vmem:[%s7 + $0x7a0] sm:$0xff]
    %v1363 = vld [vmem:[%s7 + $0x7a8] sm:$0xff]
    %v1364 = vld [vmem:[%s7 + $0x7b0] sm:$0xff]
    %v1365 = vld [vmem:[%s7 + $0x7b8] sm:$0xff]
    %v1366 = vld [vmem:[%s7 + $0x7c0] sm:$0xff]
    %v1367 = vld [vmem:[%s7 + $0x7c8] sm:$0xff]
    %v1368 = vld [vmem:[%s7 + $0x7d0] sm:$0xff]
    %v1369 = vld [vmem:[%s7 + $0x7d8] sm:$0xff]
    %v1370 = vld [vmem:[%s7 + $0x7e0] sm:$0xff]
    %v1371 = vld [vmem:[%s7 + $0x7e8] sm:$0xff]
    %v1372 = vld [vmem:[%s7 + $0x7f0] sm:$0xff]
    %v1373 = vld [vmem:[%s7 + $0x7f8] sm:$0xff]
    %v1375 = vlaneseq
    %v1376 = vshrl.u32 %v1375, 7
    %v1377 = vsub.s32 0, %v1376
    %v1378 = vrot.slane %v1113, %v1377
    %v1379 = vlaneseq
    %v1380 = vshrl.u32 %v1379, 7
    %v1381 = vsub.s32 1, %v1380
    %v1382 = vrot.slane %v1113, %v1381
    %1385 = vmatprep.subr.mxu0 %v1239
    %1386 = vmatpush1.msra.mxu0 %v1238
    %1387 = vmatprep.subr.mxu0 %v1231
    %1388 = vmatpush1.msra.mxu0 %v1230
    %1389 = vmatprep.subr.mxu0 %v1223
    %1390 = vmatpush1.msra.mxu0 %v1222
    %1391 = vmatprep.subr.mxu0 %v1215
    %1392 = vmatpush1.msra.mxu0 %v1214
    %1393 = vmatprep.subr.mxu0 %v1207
    %1394 = vmatpush1.msra.mxu0 %v1206
    %1395 = vmatprep.subr.mxu0 %v1199
    %1396 = vmatpush1.msra.mxu0 %v1198
    %1397 = vmatprep.subr.mxu0 %v1191
    %1398 = vmatpush1.msra.mxu0 %v1190
    %1399 = vmatprep.subr.mxu0 %v1183
    %1400 = vmatpush1.msra.mxu0 %v1182
    %1401 = vmatprep.subr.mxu0 %v1175
    %1402 = vmatpush1.msra.mxu0 %v1174
    %1403 = vmatprep.subr.mxu0 %v1167
    %1404 = vmatpush1.msra.mxu0 %v1166
    %1405 = vmatprep.subr.mxu0 %v1159
    %1406 = vmatpush1.msra.mxu0 %v1158
    %1407 = vmatprep.subr.mxu0 %v1151
    %1408 = vmatpush1.msra.mxu0 %v1150
    %1409 = vmatprep.subr.mxu0 %v1143
    %1410 = vmatpush1.msra.mxu0 %v1142
    %1411 = vmatprep.subr.mxu0 %v1135
    %1412 = vmatpush1.msra.mxu0 %v1134
    %1413 = vmatprep.subr.mxu0 %v1127
    %1414 = vmatpush1.msra.mxu0 %v1126
    %1415 = vmatprep.subr.mxu0 %v1119
    %1416 = vmatpush1.msra.mxu0 %v1118
    %1417 = vmatprep.subr.mxu0 %v1367
    %1418 = vmatpush2.msra.mxu0 %v1366
    %1419 = vmatprep.subr.mxu0 %v1359
    %1420 = vmatpush2.msra.mxu0 %v1358
    %1421 = vmatprep.subr.mxu0 %v1351
    %1422 = vmatpush2.msra.mxu0 %v1350
    %1423 = vmatprep.subr.mxu0 %v1343
    %1424 = vmatpush2.msra.mxu0 %v1342
    %1425 = vmatprep.subr.mxu0 %v1335
    %1426 = vmatpush2.msra.mxu0 %v1334
    %1427 = vmatprep.subr.mxu0 %v1327
    %1428 = vmatpush2.msra.mxu0 %v1326
    %1429 = vmatprep.subr.mxu0 %v1319
    %1430 = vmatpush2.msra.mxu0 %v1318
    %1431 = vmatprep.subr.mxu0 %v1311
    %1432 = vmatpush2.msra.mxu0 %v1310
    %1433 = vmatprep.subr.mxu0 %v1303
    %1434 = vmatpush2.msra.mxu0 %v1302
    %1435 = vmatprep.subr.mxu0 %v1295
    %1436 = vmatpush2.msra.mxu0 %v1294
    %1437 = vmatprep.subr.mxu0 %v1287
    %1438 = vmatpush2.msra.mxu0 %v1286
    %1439 = vmatprep.subr.mxu0 %v1279
    %1440 = vmatpush2.msra.mxu0 %v1278
    %1441 = vmatprep.subr.mxu0 %v1271
    %1442 = vmatpush2.msra.mxu0 %v1270
    %1443 = vmatprep.subr.mxu0 %v1263
    %1444 = vmatpush2.msra.mxu0 %v1262
    %1445 = vmatprep.subr.mxu0 %v1255
    %1446 = vmatpush2.msra.mxu0 %v1254
    %1447 = vmatprep.subr.mxu0 %v1247
    %1448 = vmatpush2.msra.mxu0 %v1246
    %1449 = vmatprep.mubr.f32.mxu0 %v1382
    %1450 = vmatmul.mubr.f32.gmra.mxu0 %v1378
    %v1451 = vpop.f32.mrf.mxu0
    %v1452 = vadd.f32 0.0, %v1451
    %v1453 = vpop.f32.mrf.mxu0
    %v1454 = vadd.f32 0.0, %v1453
    %1455 = vdwg.mxu0
    %1456 = vmatprep.subr.mxu0 %v1241
    %1457 = vmatpush1.msra.mxu0 %v1240
    %1458 = vmatprep.subr.mxu0 %v1233
    %1459 = vmatpush1.msra.mxu0 %v1232
    %1460 = vmatprep.subr.mxu0 %v1225
    %1461 = vmatpush1.msra.mxu0 %v1224
    %1462 = vmatprep.subr.mxu0 %v1217
    %1463 = vmatpush1.msra.mxu0 %v1216
    %1464 = vmatprep.subr.mxu0 %v1209
    %1465 = vmatpush1.msra.mxu0 %v1208
    %1466 = vmatprep.subr.mxu0 %v1201
    %1467 = vmatpush1.msra.mxu0 %v1200
    %1468 = vmatprep.subr.mxu0 %v1193
    %1469 = vmatpush1.msra.mxu0 %v1192
    %1470 = vmatprep.subr.mxu0 %v1185
    %1471 = vmatpush1.msra.mxu0 %v1184
    %1472 = vmatprep.subr.mxu0 %v1177
    %1473 = vmatpush1.msra.mxu0 %v1176
    %1474 = vmatprep.subr.mxu0 %v1169
    %1475 = vmatpush1.msra.mxu0 %v1168
    %1476 = vmatprep.subr.mxu0 %v1161
    %1477 = vmatpush1.msra.mxu0 %v1160
    %1478 = vmatprep.subr.mxu0 %v1153
    %1479 = vmatpush1.msra.mxu0 %v1152
    %1480 = vmatprep.subr.mxu0 %v1145
    %1481 = vmatpush1.msra.mxu0 %v1144
    %1482 = vmatprep.subr.mxu0 %v1137
    %1483 = vmatpush1.msra.mxu0 %v1136
    %1484 = vmatprep.subr.mxu0 %v1129
    %1485 = vmatpush1.msra.mxu0 %v1128
    %1486 = vmatprep.subr.mxu0 %v1121
    %1487 = vmatpush1.msra.mxu0 %v1120
    %1488 = vmatprep.subr.mxu0 %v1369
    %1489 = vmatpush2.msra.mxu0 %v1368
    %1490 = vmatprep.subr.mxu0 %v1361
    %1491 = vmatpush2.msra.mxu0 %v1360
    %1492 = vmatprep.subr.mxu0 %v1353
    %1493 = vmatpush2.msra.mxu0 %v1352
    %1494 = vmatprep.subr.mxu0 %v1345
    %1495 = vmatpush2.msra.mxu0 %v1344
    %1496 = vmatprep.subr.mxu0 %v1337
    %1497 = vmatpush2.msra.mxu0 %v1336
    %1498 = vmatprep.subr.mxu0 %v1329
    %1499 = vmatpush2.msra.mxu0 %v1328
    %1500 = vmatprep.subr.mxu0 %v1321
    %1501 = vmatpush2.msra.mxu0 %v1320
    %1502 = vmatprep.subr.mxu0 %v1313
    %1503 = vmatpush2.msra.mxu0 %v1312
    %1504 = vmatprep.subr.mxu0 %v1305
    %1505 = vmatpush2.msra.mxu0 %v1304
    %1506 = vmatprep.subr.mxu0 %v1297
    %1507 = vmatpush2.msra.mxu0 %v1296
    %1508 = vmatprep.subr.mxu0 %v1289
    %1509 = vmatpush2.msra.mxu0 %v1288
    %1510 = vmatprep.subr.mxu0 %v1281
    %1511 = vmatpush2.msra.mxu0 %v1280
    %1512 = vmatprep.subr.mxu0 %v1273
    %1513 = vmatpush2.msra.mxu0 %v1272
    %1514 = vmatprep.subr.mxu0 %v1265
    %1515 = vmatpush2.msra.mxu0 %v1264
    %1516 = vmatprep.subr.mxu0 %v1257
    %1517 = vmatpush2.msra.mxu0 %v1256
    %1518 = vmatprep.subr.mxu0 %v1249
    %1519 = vmatpush2.msra.mxu0 %v1248
    %1520 = vmatprep.mubr.f32.mxu0 %v1382
    %1521 = vmatmul.mubr.f32.gmra.mxu0 %v1378
    %v1522 = vpop.f32.mrf.mxu0
    %v1523 = vadd.f32 0.0, %v1522
    %v1524 = vpop.f32.mrf.mxu0
    %v1525 = vadd.f32 0.0, %v1524
    %1526 = vdwg.mxu0
    %1527 = vmatprep.subr.mxu0 %v1243
    %1528 = vmatpush1.msra.mxu0 %v1242
    %1529 = vmatprep.subr.mxu0 %v1235
    %1530 = vmatpush1.msra.mxu0 %v1234
    %1531 = vmatprep.subr.mxu0 %v1227
    %1532 = vmatpush1.msra.mxu0 %v1226
    %1533 = vmatprep.subr.mxu0 %v1219
    %1534 = vmatpush1.msra.mxu0 %v1218
    %1535 = vmatprep.subr.mxu0 %v1211
    %1536 = vmatpush1.msra.mxu0 %v1210
    %1537 = vmatprep.subr.mxu0 %v1203
    %1538 = vmatpush1.msra.mxu0 %v1202
    %1539 = vmatprep.subr.mxu0 %v1195
    %1540 = vmatpush1.msra.mxu0 %v1194
    %1541 = vmatprep.subr.mxu0 %v1187
    %1542 = vmatpush1.msra.mxu0 %v1186
    %1543 = vmatprep.subr.mxu0 %v1179
    %1544 = vmatpush1.msra.mxu0 %v1178
    %1545 = vmatprep.subr.mxu0 %v1171
    %1546 = vmatpush1.msra.mxu0 %v1170
    %1547 = vmatprep.subr.mxu0 %v1163
    %1548 = vmatpush1.msra.mxu0 %v1162
    %1549 = vmatprep.subr.mxu0 %v1155
    %1550 = vmatpush1.msra.mxu0 %v1154
    %1551 = vmatprep.subr.mxu0 %v1147
    %1552 = vmatpush1.msra.mxu0 %v1146
    %1553 = vmatprep.subr.mxu0 %v1139
    %1554 = vmatpush1.msra.mxu0 %v1138
    %1555 = vmatprep.subr.mxu0 %v1131
    %1556 = vmatpush1.msra.mxu0 %v1130
    %1557 = vmatprep.subr.mxu0 %v1123
    %1558 = vmatpush1.msra.mxu0 %v1122
    %1559 = vmatprep.subr.mxu0 %v1371
    %1560 = vmatpush2.msra.mxu0 %v1370
    %1561 = vmatprep.subr.mxu0 %v1363
    %1562 = vmatpush2.msra.mxu0 %v1362
    %1563 = vmatprep.subr.mxu0 %v1355
    %1564 = vmatpush2.msra.mxu0 %v1354
    %1565 = vmatprep.subr.mxu0 %v1347
    %1566 = vmatpush2.msra.mxu0 %v1346
    %1567 = vmatprep.subr.mxu0 %v1339
    %1568 = vmatpush2.msra.mxu0 %v1338
    %1569 = vmatprep.subr.mxu0 %v1331
    %1570 = vmatpush2.msra.mxu0 %v1330
    %1571 = vmatprep.subr.mxu0 %v1323
    %1572 = vmatpush2.msra.mxu0 %v1322
    %1573 = vmatprep.subr.mxu0 %v1315
    %1574 = vmatpush2.msra.mxu0 %v1314
    %1575 = vmatprep.subr.mxu0 %v1307
    %1576 = vmatpush2.msra.mxu0 %v1306
    %1577 = vmatprep.subr.mxu0 %v1299
    %1578 = vmatpush2.msra.mxu0 %v1298
    %1579 = vmatprep.subr.mxu0 %v1291
    %1580 = vmatpush2.msra.mxu0 %v1290
    %1581 = vmatprep.subr.mxu0 %v1283
    %1582 = vmatpush2.msra.mxu0 %v1282
    %1583 = vmatprep.subr.mxu0 %v1275
    %1584 = vmatpush2.msra.mxu0 %v1274
    %1585 = vmatprep.subr.mxu0 %v1267
    %1586 = vmatpush2.msra.mxu0 %v1266
    %1587 = vmatprep.subr.mxu0 %v1259
    %1588 = vmatpush2.msra.mxu0 %v1258
    %1589 = vmatprep.subr.mxu0 %v1251
    %1590 = vmatpush2.msra.mxu0 %v1250
    %1591 = vmatprep.mubr.f32.mxu0 %v1382
    %1592 = vmatmul.mubr.f32.gmra.mxu0 %v1378
    %v1593 = vpop.f32.mrf.mxu0
    %v1594 = vadd.f32 0.0, %v1593
    %v1595 = vpop.f32.mrf.mxu0
    %v1596 = vadd.f32 0.0, %v1595
    %1597 = vdwg.mxu0
    %1598 = vmatprep.subr.mxu0 %v1245
    %1599 = vmatpush1.msra.mxu0 %v1244
    %1600 = vmatprep.subr.mxu0 %v1237
    %1601 = vmatpush1.msra.mxu0 %v1236
    %1602 = vmatprep.subr.mxu0 %v1229
    %1603 = vmatpush1.msra.mxu0 %v1228
    %1604 = vmatprep.subr.mxu0 %v1221
    %1605 = vmatpush1.msra.mxu0 %v1220
    %1606 = vmatprep.subr.mxu0 %v1213
    %1607 = vmatpush1.msra.mxu0 %v1212
    %1608 = vmatprep.subr.mxu0 %v1205
    %1609 = vmatpush1.msra.mxu0 %v1204
    %1610 = vmatprep.subr.mxu0 %v1197
    %1611 = vmatpush1.msra.mxu0 %v1196
    %1612 = vmatprep.subr.mxu0 %v1189
    %1613 = vmatpush1.msra.mxu0 %v1188
    %1614 = vmatprep.subr.mxu0 %v1181
    %1615 = vmatpush1.msra.mxu0 %v1180
    %1616 = vmatprep.subr.mxu0 %v1173
    %1617 = vmatpush1.msra.mxu0 %v1172
    %1618 = vmatprep.subr.mxu0 %v1165
    %1619 = vmatpush1.msra.mxu0 %v1164
    %1620 = vmatprep.subr.mxu0 %v1157
    %1621 = vmatpush1.msra.mxu0 %v1156
    %1622 = vmatprep.subr.mxu0 %v1149
    %1623 = vmatpush1.msra.mxu0 %v1148
    %1624 = vmatprep.subr.mxu0 %v1141
    %1625 = vmatpush1.msra.mxu0 %v1140
    %1626 = vmatprep.subr.mxu0 %v1133
    %1627 = vmatpush1.msra.mxu0 %v1132
    %1628 = vmatprep.subr.mxu0 %v1125
    %1629 = vmatpush1.msra.mxu0 %v1124
    %1630 = vmatprep.subr.mxu0 %v1373
    %1631 = vmatpush2.msra.mxu0 %v1372
    %1632 = vmatprep.subr.mxu0 %v1365
    %1633 = vmatpush2.msra.mxu0 %v1364
    %1634 = vmatprep.subr.mxu0 %v1357
    %1635 = vmatpush2.msra.mxu0 %v1356
    %1636 = vmatprep.subr.mxu0 %v1349
    %1637 = vmatpush2.msra.mxu0 %v1348
    %1638 = vmatprep.subr.mxu0 %v1341
    %1639 = vmatpush2.msra.mxu0 %v1340
    %1640 = vmatprep.subr.mxu0 %v1333
    %1641 = vmatpush2.msra.mxu0 %v1332
    %1642 = vmatprep.subr.mxu0 %v1325
    %1643 = vmatpush2.msra.mxu0 %v1324
    %1644 = vmatprep.subr.mxu0 %v1317
    %1645 = vmatpush2.msra.mxu0 %v1316
    %1646 = vmatprep.subr.mxu0 %v1309
    %1647 = vmatpush2.msra.mxu0 %v1308
    %1648 = vmatprep.subr.mxu0 %v1301
    %1649 = vmatpush2.msra.mxu0 %v1300
    %1650 = vmatprep.subr.mxu0 %v1293
    %1651 = vmatpush2.msra.mxu0 %v1292
    %1652 = vmatprep.subr.mxu0 %v1285
    %1653 = vmatpush2.msra.mxu0 %v1284
    %1654 = vmatprep.subr.mxu0 %v1277
    %1655 = vmatpush2.msra.mxu0 %v1276
    %1656 = vmatprep.subr.mxu0 %v1269
    %1657 = vmatpush2.msra.mxu0 %v1268
    %1658 = vmatprep.subr.mxu0 %v1261
    %1659 = vmatpush2.msra.mxu0 %v1260
    %1660 = vmatprep.subr.mxu0 %v1253
    %1661 = vmatpush2.msra.mxu0 %v1252
    %1662 = vmatprep.mubr.f32.mxu0 %v1382
    %1663 = vmatmul.mubr.f32.gmra.mxu0 %v1378
    %v1664 = vpop.f32.mrf.mxu0
    %v1665 = vadd.f32 0.0, %v1664
    %v1666 = vpop.f32.mrf.mxu0
    %v1667 = vadd.f32 0.0, %v1666
    %1668 = vdwg.mxu0
    %v1677 = vcombine.low %v1452, %v1454
    %v1678 = vcombine.low %v1523, %v1525
    %v1679 = vcombine.low %v1594, %v1596
    %v1680 = vcombine.low %v1665, %v1667
    %v1682 = vunpack.c.l.s4 1966171168
    %v1683 = vunpack.c.0.s8 %v1682
    %v1684 = vlaneseq
    %v1685 = vshrl.u32 %v1684, 7
    %v1686 = vsub.s32 %v1683, %v1685
    %v1687 = vrot.slane %v1677, %v1686
    %v1689 = vunpack.c.l.s4 1966171168
    %v1690 = vunpack.c.0.s8 %v1689
    %v1691 = vlaneseq
    %v1692 = vshrl.u32 %v1691, 7
    %v1693 = vsub.s32 %v1690, %v1692
    %v1694 = vrot.slane %v1678, %v1693
    %v1696 = vunpack.c.l.s4 1966171168
    %v1697 = vunpack.c.0.s8 %v1696
    %v1698 = vlaneseq
    %v1699 = vshrl.u32 %v1698, 7
    %v1700 = vsub.s32 %v1697, %v1699
    %v1701 = vrot.slane %v1679, %v1700
    %v1703 = vunpack.c.l.s4 1966171168
    %v1704 = vunpack.c.0.s8 %v1703
    %v1705 = vlaneseq
    %v1706 = vshrl.u32 %v1705, 7
    %v1707 = vsub.s32 %v1704, %v1706
    %v1708 = vrot.slane %v1680, %v1707
    %v1709 = vcombine.low %v1687, %v1694
    %v1710 = vcombine.low %v1701, %v1708
    %v1712 = vunpack.c.l.s4 1966171168
    %v1713 = vunpack.c.0.s8 %v1712
    %v1714 = vlaneseq
    %v1715 = vshrl.u32 %v1714, 7
    %v1716 = vsub.s32 %v1713, %v1715
    %v1717 = vrot.slane %v1709, %v1716
    %v1719 = vunpack.c.l.s4 1966171168
    %v1720 = vunpack.c.0.s8 %v1719
    %v1721 = vlaneseq
    %v1722 = vshrl.u32 %v1721, 7
    %v1723 = vsub.s32 %v1720, %v1722
    %v1724 = vrot.slane %v1710, %v1723
    %v1725 = vcombine.low %v1717, %v1724
    %v1727 = vadd.f32 %v1117, %v1725
    %v1728 = vxor.u32 %v1727, 2147483648
    %v1729 = vmul.f32 %v1728, 1.442695
    %v1730 = vpow.pop %v1729
    %v1731 = vadd.f32 %v1730, 1.0
    %v1732 = vrcp.pop %v1731
    %v1733 = vmul.f32 1.0, %v1732
    %v1735 = vrot.slane %v1727, 2
    %v1737 = vxor.u32 %v1735, 2147483648
    %v1738 = vmul.f32 %v1737, 1.442695
    %v1739 = vpow.pop %v1738
    %v1740 = vadd.f32 %v1739, 1.0
    %v1741 = vrcp.pop %v1740
    %v1742 = vmul.f32 1.0, %v1741
    %v1743 = vrot.slane %v1727, 4
    %v1745 = vtanh.pop %v1743
    %v1746 = vrot.slane %v1727, 6
    %v1748 = vxor.u32 %v1746, 2147483648
    %v1749 = vmul.f32 %v1748, 1.442695
    %v1750 = vpow.pop %v1749
    %v1751 = vadd.f32 %v1750, 1.0
    %v1752 = vrcp.pop %v1751
    %v1753 = vmul.f32 1.0, %v1752
    %v1754 = vmul.f32 %v1742, %v1114
    %v1755 = vmul.f32 %v1733, %v1745
    %v1756 = vadd.f32 %v1754, %v1755
    %v1757 = vtanh.pop %v1756
    %v1758 = vmul.f32 %v1753, %v1757
    %1759 = vst.msk [vmem:[#allocation11] ss:$8 sm:$0x3] %vm64, %v1758
    %1760 = vst.msk [vmem:[#allocation11] ss:$8 sm:$0x0] %vm64, %v1758
    %s1761 = scalar_lea.vmem [#allocation4], 1
    %v1762 = vld [vmem:[%s1761] ss:$8 sm:$0xf]
    %v1763 = vld [vmem:[%s1761] ss:$8 sm:$0xf0]
    %v1764 = vor.u32 %v1762, %v1763
    %v1765 = vld [vmem:[%s7] sm:$0xff]
    %v1766 = vld [vmem:[%s7 + $0x8] sm:$0xff]
    %v1767 = vld [vmem:[%s7 + $0x10] sm:$0xff]
    %v1768 = vld [vmem:[%s7 + $0x18] sm:$0xff]
    %v1769 = vld [vmem:[%s7 + $0x20] sm:$0xff]
    %v1770 = vld [vmem:[%s7 + $0x28] sm:$0xff]
    %v1771 = vld [vmem:[%s7 + $0x30] sm:$0xff]
    %v1772 = vld [vmem:[%s7 + $0x38] sm:$0xff]
    %v1773 = vld [vmem:[%s7 + $0x40] sm:$0xff]
    %v1774 = vld [vmem:[%s7 + $0x48] sm:$0xff]
    %v1775 = vld [vmem:[%s7 + $0x50] sm:$0xff]
    %v1776 = vld [vmem:[%s7 + $0x58] sm:$0xff]
    %v1777 = vld [vmem:[%s7 + $0x60] sm:$0xff]
    %v1778 = vld [vmem:[%s7 + $0x68] sm:$0xff]
    %v1779 = vld [vmem:[%s7 + $0x70] sm:$0xff]
    %v1780 = vld [vmem:[%s7 + $0x78] sm:$0xff]
    %v1781 = vld [vmem:[%s7 + $0x80] sm:$0xff]
    %v1782 = vld [vmem:[%s7 + $0x88] sm:$0xff]
    %v1783 = vld [vmem:[%s7 + $0x90] sm:$0xff]
    %v1784 = vld [vmem:[%s7 + $0x98] sm:$0xff]
    %v1785 = vld [vmem:[%s7 + $0xa0] sm:$0xff]
    %v1786 = vld [vmem:[%s7 + $0xa8] sm:$0xff]
    %v1787 = vld [vmem:[%s7 + $0xb0] sm:$0xff]
    %v1788 = vld [vmem:[%s7 + $0xb8] sm:$0xff]
    %v1789 = vld [vmem:[%s7 + $0xc0] sm:$0xff]
    %v1790 = vld [vmem:[%s7 + $0xc8] sm:$0xff]
    %v1791 = vld [vmem:[%s7 + $0xd0] sm:$0xff]
    %v1792 = vld [vmem:[%s7 + $0xd8] sm:$0xff]
    %v1793 = vld [vmem:[%s7 + $0xe0] sm:$0xff]
    %v1794 = vld [vmem:[%s7 + $0xe8] sm:$0xff]
    %v1795 = vld [vmem:[%s7 + $0xf0] sm:$0xff]
    %v1796 = vld [vmem:[%s7 + $0xf8] sm:$0xff]
    %v1797 = vld [vmem:[%s7 + $0x100] sm:$0xff]
    %v1798 = vld [vmem:[%s7 + $0x108] sm:$0xff]
    %v1799 = vld [vmem:[%s7 + $0x110] sm:$0xff]
    %v1800 = vld [vmem:[%s7 + $0x118] sm:$0xff]
    %v1801 = vld [vmem:[%s7 + $0x120] sm:$0xff]
    %v1802 = vld [vmem:[%s7 + $0x128] sm:$0xff]
    %v1803 = vld [vmem:[%s7 + $0x130] sm:$0xff]
    %v1804 = vld [vmem:[%s7 + $0x138] sm:$0xff]
    %v1805 = vld [vmem:[%s7 + $0x140] sm:$0xff]
    %v1806 = vld [vmem:[%s7 + $0x148] sm:$0xff]
    %v1807 = vld [vmem:[%s7 + $0x150] sm:$0xff]
    %v1808 = vld [vmem:[%s7 + $0x158] sm:$0xff]
    %v1809 = vld [vmem:[%s7 + $0x160] sm:$0xff]
    %v1810 = vld [vmem:[%s7 + $0x168] sm:$0xff]
    %v1811 = vld [vmem:[%s7 + $0x170] sm:$0xff]
    %v1812 = vld [vmem:[%s7 + $0x178] sm:$0xff]
    %v1813 = vld [vmem:[%s7 + $0x180] sm:$0xff]
    %v1814 = vld [vmem:[%s7 + $0x188] sm:$0xff]
    %v1815 = vld [vmem:[%s7 + $0x190] sm:$0xff]
    %v1816 = vld [vmem:[%s7 + $0x198] sm:$0xff]
    %v1817 = vld [vmem:[%s7 + $0x1a0] sm:$0xff]
    %v1818 = vld [vmem:[%s7 + $0x1a8] sm:$0xff]
    %v1819 = vld [vmem:[%s7 + $0x1b0] sm:$0xff]
    %v1820 = vld [vmem:[%s7 + $0x1b8] sm:$0xff]
    %v1821 = vld [vmem:[%s7 + $0x1c0] sm:$0xff]
    %v1822 = vld [vmem:[%s7 + $0x1c8] sm:$0xff]
    %v1823 = vld [vmem:[%s7 + $0x1d0] sm:$0xff]
    %v1824 = vld [vmem:[%s7 + $0x1d8] sm:$0xff]
    %v1825 = vld [vmem:[%s7 + $0x1e0] sm:$0xff]
    %v1826 = vld [vmem:[%s7 + $0x1e8] sm:$0xff]
    %v1827 = vld [vmem:[%s7 + $0x1f0] sm:$0xff]
    %v1828 = vld [vmem:[%s7 + $0x1f8] sm:$0xff]
    %v1829 = vld [vmem:[%s7 + $0x200] sm:$0xff]
    %v1830 = vld [vmem:[%s7 + $0x208] sm:$0xff]
    %v1831 = vld [vmem:[%s7 + $0x210] sm:$0xff]
    %v1832 = vld [vmem:[%s7 + $0x218] sm:$0xff]
    %v1833 = vld [vmem:[%s7 + $0x220] sm:$0xff]
    %v1834 = vld [vmem:[%s7 + $0x228] sm:$0xff]
    %v1835 = vld [vmem:[%s7 + $0x230] sm:$0xff]
    %v1836 = vld [vmem:[%s7 + $0x238] sm:$0xff]
    %v1837 = vld [vmem:[%s7 + $0x240] sm:$0xff]
    %v1838 = vld [vmem:[%s7 + $0x248] sm:$0xff]
    %v1839 = vld [vmem:[%s7 + $0x250] sm:$0xff]
    %v1840 = vld [vmem:[%s7 + $0x258] sm:$0xff]
    %v1841 = vld [vmem:[%s7 + $0x260] sm:$0xff]
    %v1842 = vld [vmem:[%s7 + $0x268] sm:$0xff]
    %v1843 = vld [vmem:[%s7 + $0x270] sm:$0xff]
    %v1844 = vld [vmem:[%s7 + $0x278] sm:$0xff]
    %v1845 = vld [vmem:[%s7 + $0x280] sm:$0xff]
    %v1846 = vld [vmem:[%s7 + $0x288] sm:$0xff]
    %v1847 = vld [vmem:[%s7 + $0x290] sm:$0xff]
    %v1848 = vld [vmem:[%s7 + $0x298] sm:$0xff]
    %v1849 = vld [vmem:[%s7 + $0x2a0] sm:$0xff]
    %v1850 = vld [vmem:[%s7 + $0x2a8] sm:$0xff]
    %v1851 = vld [vmem:[%s7 + $0x2b0] sm:$0xff]
    %v1852 = vld [vmem:[%s7 + $0x2b8] sm:$0xff]
    %v1853 = vld [vmem:[%s7 + $0x2c0] sm:$0xff]
    %v1854 = vld [vmem:[%s7 + $0x2c8] sm:$0xff]
    %v1855 = vld [vmem:[%s7 + $0x2d0] sm:$0xff]
    %v1856 = vld [vmem:[%s7 + $0x2d8] sm:$0xff]
    %v1857 = vld [vmem:[%s7 + $0x2e0] sm:$0xff]
    %v1858 = vld [vmem:[%s7 + $0x2e8] sm:$0xff]
    %v1859 = vld [vmem:[%s7 + $0x2f0] sm:$0xff]
    %v1860 = vld [vmem:[%s7 + $0x2f8] sm:$0xff]
    %v1861 = vld [vmem:[%s7 + $0x300] sm:$0xff]
    %v1862 = vld [vmem:[%s7 + $0x308] sm:$0xff]
    %v1863 = vld [vmem:[%s7 + $0x310] sm:$0xff]
    %v1864 = vld [vmem:[%s7 + $0x318] sm:$0xff]
    %v1865 = vld [vmem:[%s7 + $0x320] sm:$0xff]
    %v1866 = vld [vmem:[%s7 + $0x328] sm:$0xff]
    %v1867 = vld [vmem:[%s7 + $0x330] sm:$0xff]
    %v1868 = vld [vmem:[%s7 + $0x338] sm:$0xff]
    %v1869 = vld [vmem:[%s7 + $0x340] sm:$0xff]
    %v1870 = vld [vmem:[%s7 + $0x348] sm:$0xff]
    %v1871 = vld [vmem:[%s7 + $0x350] sm:$0xff]
    %v1872 = vld [vmem:[%s7 + $0x358] sm:$0xff]
    %v1873 = vld [vmem:[%s7 + $0x360] sm:$0xff]
    %v1874 = vld [vmem:[%s7 + $0x368] sm:$0xff]
    %v1875 = vld [vmem:[%s7 + $0x370] sm:$0xff]
    %v1876 = vld [vmem:[%s7 + $0x378] sm:$0xff]
    %v1877 = vld [vmem:[%s7 + $0x380] sm:$0xff]
    %v1878 = vld [vmem:[%s7 + $0x388] sm:$0xff]
    %v1879 = vld [vmem:[%s7 + $0x390] sm:$0xff]
    %v1880 = vld [vmem:[%s7 + $0x398] sm:$0xff]
    %v1881 = vld [vmem:[%s7 + $0x3a0] sm:$0xff]
    %v1882 = vld [vmem:[%s7 + $0x3a8] sm:$0xff]
    %v1883 = vld [vmem:[%s7 + $0x3b0] sm:$0xff]
    %v1884 = vld [vmem:[%s7 + $0x3b8] sm:$0xff]
    %v1885 = vld [vmem:[%s7 + $0x3c0] sm:$0xff]
    %v1886 = vld [vmem:[%s7 + $0x3c8] sm:$0xff]
    %v1887 = vld [vmem:[%s7 + $0x3d0] sm:$0xff]
    %v1888 = vld [vmem:[%s7 + $0x3d8] sm:$0xff]
    %v1889 = vld [vmem:[%s7 + $0x3e0] sm:$0xff]
    %v1890 = vld [vmem:[%s7 + $0x3e8] sm:$0xff]
    %v1891 = vld [vmem:[%s7 + $0x3f0] sm:$0xff]
    %v1892 = vld [vmem:[%s7 + $0x3f8] sm:$0xff]
    %v1893 = vld [vmem:[%s7 + $0x400] sm:$0xff]
    %v1894 = vld [vmem:[%s7 + $0x408] sm:$0xff]
    %v1895 = vld [vmem:[%s7 + $0x410] sm:$0xff]
    %v1896 = vld [vmem:[%s7 + $0x418] sm:$0xff]
    %v1897 = vld [vmem:[%s7 + $0x420] sm:$0xff]
    %v1898 = vld [vmem:[%s7 + $0x428] sm:$0xff]
    %v1899 = vld [vmem:[%s7 + $0x430] sm:$0xff]
    %v1900 = vld [vmem:[%s7 + $0x438] sm:$0xff]
    %v1901 = vld [vmem:[%s7 + $0x440] sm:$0xff]
    %v1902 = vld [vmem:[%s7 + $0x448] sm:$0xff]
    %v1903 = vld [vmem:[%s7 + $0x450] sm:$0xff]
    %v1904 = vld [vmem:[%s7 + $0x458] sm:$0xff]
    %v1905 = vld [vmem:[%s7 + $0x460] sm:$0xff]
    %v1906 = vld [vmem:[%s7 + $0x468] sm:$0xff]
    %v1907 = vld [vmem:[%s7 + $0x470] sm:$0xff]
    %v1908 = vld [vmem:[%s7 + $0x478] sm:$0xff]
    %v1909 = vld [vmem:[%s7 + $0x480] sm:$0xff]
    %v1910 = vld [vmem:[%s7 + $0x488] sm:$0xff]
    %v1911 = vld [vmem:[%s7 + $0x490] sm:$0xff]
    %v1912 = vld [vmem:[%s7 + $0x498] sm:$0xff]
    %v1913 = vld [vmem:[%s7 + $0x4a0] sm:$0xff]
    %v1914 = vld [vmem:[%s7 + $0x4a8] sm:$0xff]
    %v1915 = vld [vmem:[%s7 + $0x4b0] sm:$0xff]
    %v1916 = vld [vmem:[%s7 + $0x4b8] sm:$0xff]
    %v1917 = vld [vmem:[%s7 + $0x4c0] sm:$0xff]
    %v1918 = vld [vmem:[%s7 + $0x4c8] sm:$0xff]
    %v1919 = vld [vmem:[%s7 + $0x4d0] sm:$0xff]
    %v1920 = vld [vmem:[%s7 + $0x4d8] sm:$0xff]
    %v1921 = vld [vmem:[%s7 + $0x4e0] sm:$0xff]
    %v1922 = vld [vmem:[%s7 + $0x4e8] sm:$0xff]
    %v1923 = vld [vmem:[%s7 + $0x4f0] sm:$0xff]
    %v1924 = vld [vmem:[%s7 + $0x4f8] sm:$0xff]
    %v1925 = vld [vmem:[%s7 + $0x500] sm:$0xff]
    %v1926 = vld [vmem:[%s7 + $0x508] sm:$0xff]
    %v1927 = vld [vmem:[%s7 + $0x510] sm:$0xff]
    %v1928 = vld [vmem:[%s7 + $0x518] sm:$0xff]
    %v1929 = vld [vmem:[%s7 + $0x520] sm:$0xff]
    %v1930 = vld [vmem:[%s7 + $0x528] sm:$0xff]
    %v1931 = vld [vmem:[%s7 + $0x530] sm:$0xff]
    %v1932 = vld [vmem:[%s7 + $0x538] sm:$0xff]
    %v1933 = vld [vmem:[%s7 + $0x540] sm:$0xff]
    %v1934 = vld [vmem:[%s7 + $0x548] sm:$0xff]
    %v1935 = vld [vmem:[%s7 + $0x550] sm:$0xff]
    %v1936 = vld [vmem:[%s7 + $0x558] sm:$0xff]
    %v1937 = vld [vmem:[%s7 + $0x560] sm:$0xff]
    %v1938 = vld [vmem:[%s7 + $0x568] sm:$0xff]
    %v1939 = vld [vmem:[%s7 + $0x570] sm:$0xff]
    %v1940 = vld [vmem:[%s7 + $0x578] sm:$0xff]
    %v1941 = vld [vmem:[%s7 + $0x580] sm:$0xff]
    %v1942 = vld [vmem:[%s7 + $0x588] sm:$0xff]
    %v1943 = vld [vmem:[%s7 + $0x590] sm:$0xff]
    %v1944 = vld [vmem:[%s7 + $0x598] sm:$0xff]
    %v1945 = vld [vmem:[%s7 + $0x5a0] sm:$0xff]
    %v1946 = vld [vmem:[%s7 + $0x5a8] sm:$0xff]
    %v1947 = vld [vmem:[%s7 + $0x5b0] sm:$0xff]
    %v1948 = vld [vmem:[%s7 + $0x5b8] sm:$0xff]
    %v1949 = vld [vmem:[%s7 + $0x5c0] sm:$0xff]
    %v1950 = vld [vmem:[%s7 + $0x5c8] sm:$0xff]
    %v1951 = vld [vmem:[%s7 + $0x5d0] sm:$0xff]
    %v1952 = vld [vmem:[%s7 + $0x5d8] sm:$0xff]
    %v1953 = vld [vmem:[%s7 + $0x5e0] sm:$0xff]
    %v1954 = vld [vmem:[%s7 + $0x5e8] sm:$0xff]
    %v1955 = vld [vmem:[%s7 + $0x5f0] sm:$0xff]
    %v1956 = vld [vmem:[%s7 + $0x5f8] sm:$0xff]
    %v1957 = vld [vmem:[%s7 + $0x600] sm:$0xff]
    %v1958 = vld [vmem:[%s7 + $0x608] sm:$0xff]
    %v1959 = vld [vmem:[%s7 + $0x610] sm:$0xff]
    %v1960 = vld [vmem:[%s7 + $0x618] sm:$0xff]
    %v1961 = vld [vmem:[%s7 + $0x620] sm:$0xff]
    %v1962 = vld [vmem:[%s7 + $0x628] sm:$0xff]
    %v1963 = vld [vmem:[%s7 + $0x630] sm:$0xff]
    %v1964 = vld [vmem:[%s7 + $0x638] sm:$0xff]
    %v1965 = vld [vmem:[%s7 + $0x640] sm:$0xff]
    %v1966 = vld [vmem:[%s7 + $0x648] sm:$0xff]
    %v1967 = vld [vmem:[%s7 + $0x650] sm:$0xff]
    %v1968 = vld [vmem:[%s7 + $0x658] sm:$0xff]
    %v1969 = vld [vmem:[%s7 + $0x660] sm:$0xff]
    %v1970 = vld [vmem:[%s7 + $0x668] sm:$0xff]
    %v1971 = vld [vmem:[%s7 + $0x670] sm:$0xff]
    %v1972 = vld [vmem:[%s7 + $0x678] sm:$0xff]
    %v1973 = vld [vmem:[%s7 + $0x680] sm:$0xff]
    %v1974 = vld [vmem:[%s7 + $0x688] sm:$0xff]
    %v1975 = vld [vmem:[%s7 + $0x690] sm:$0xff]
    %v1976 = vld [vmem:[%s7 + $0x698] sm:$0xff]
    %v1977 = vld [vmem:[%s7 + $0x6a0] sm:$0xff]
    %v1978 = vld [vmem:[%s7 + $0x6a8] sm:$0xff]
    %v1979 = vld [vmem:[%s7 + $0x6b0] sm:$0xff]
    %v1980 = vld [vmem:[%s7 + $0x6b8] sm:$0xff]
    %v1981 = vld [vmem:[%s7 + $0x6c0] sm:$0xff]
    %v1982 = vld [vmem:[%s7 + $0x6c8] sm:$0xff]
    %v1983 = vld [vmem:[%s7 + $0x6d0] sm:$0xff]
    %v1984 = vld [vmem:[%s7 + $0x6d8] sm:$0xff]
    %v1985 = vld [vmem:[%s7 + $0x6e0] sm:$0xff]
    %v1986 = vld [vmem:[%s7 + $0x6e8] sm:$0xff]
    %v1987 = vld [vmem:[%s7 + $0x6f0] sm:$0xff]
    %v1988 = vld [vmem:[%s7 + $0x6f8] sm:$0xff]
    %v1989 = vld [vmem:[%s7 + $0x700] sm:$0xff]
    %v1990 = vld [vmem:[%s7 + $0x708] sm:$0xff]
    %v1991 = vld [vmem:[%s7 + $0x710] sm:$0xff]
    %v1992 = vld [vmem:[%s7 + $0x718] sm:$0xff]
    %v1993 = vld [vmem:[%s7 + $0x720] sm:$0xff]
    %v1994 = vld [vmem:[%s7 + $0x728] sm:$0xff]
    %v1995 = vld [vmem:[%s7 + $0x730] sm:$0xff]
    %v1996 = vld [vmem:[%s7 + $0x738] sm:$0xff]
    %v1997 = vld [vmem:[%s7 + $0x740] sm:$0xff]
    %v1998 = vld [vmem:[%s7 + $0x748] sm:$0xff]
    %v1999 = vld [vmem:[%s7 + $0x750] sm:$0xff]
    %v2000 = vld [vmem:[%s7 + $0x758] sm:$0xff]
    %v2001 = vld [vmem:[%s7 + $0x760] sm:$0xff]
    %v2002 = vld [vmem:[%s7 + $0x768] sm:$0xff]
    %v2003 = vld [vmem:[%s7 + $0x770] sm:$0xff]
    %v2004 = vld [vmem:[%s7 + $0x778] sm:$0xff]
    %v2005 = vld [vmem:[%s7 + $0x780] sm:$0xff]
    %v2006 = vld [vmem:[%s7 + $0x788] sm:$0xff]
    %v2007 = vld [vmem:[%s7 + $0x790] sm:$0xff]
    %v2008 = vld [vmem:[%s7 + $0x798] sm:$0xff]
    %v2009 = vld [vmem:[%s7 + $0x7a0] sm:$0xff]
    %v2010 = vld [vmem:[%s7 + $0x7a8] sm:$0xff]
    %v2011 = vld [vmem:[%s7 + $0x7b0] sm:$0xff]
    %v2012 = vld [vmem:[%s7 + $0x7b8] sm:$0xff]
    %v2013 = vld [vmem:[%s7 + $0x7c0] sm:$0xff]
    %v2014 = vld [vmem:[%s7 + $0x7c8] sm:$0xff]
    %v2015 = vld [vmem:[%s7 + $0x7d0] sm:$0xff]
    %v2016 = vld [vmem:[%s7 + $0x7d8] sm:$0xff]
    %v2017 = vld [vmem:[%s7 + $0x7e0] sm:$0xff]
    %v2018 = vld [vmem:[%s7 + $0x7e8] sm:$0xff]
    %v2019 = vld [vmem:[%s7 + $0x7f0] sm:$0xff]
    %v2020 = vld [vmem:[%s7 + $0x7f8] sm:$0xff]
    %v2022 = vlaneseq
    %v2023 = vshrl.u32 %v2022, 7
    %v2024 = vsub.s32 0, %v2023
    %v2025 = vrot.slane %v1758, %v2024
    %v2026 = vlaneseq
    %v2027 = vshrl.u32 %v2026, 7
    %v2028 = vsub.s32 1, %v2027
    %v2029 = vrot.slane %v1758, %v2028
    %2032 = vmatprep.subr.mxu0 %v1886
    %2033 = vmatpush1.msra.mxu0 %v1885
    %2034 = vmatprep.subr.mxu0 %v1878
    %2035 = vmatpush1.msra.mxu0 %v1877
    %2036 = vmatprep.subr.mxu0 %v1870
    %2037 = vmatpush1.msra.mxu0 %v1869
    %2038 = vmatprep.subr.mxu0 %v1862
    %2039 = vmatpush1.msra.mxu0 %v1861
    %2040 = vmatprep.subr.mxu0 %v1854
    %2041 = vmatpush1.msra.mxu0 %v1853
    %2042 = vmatprep.subr.mxu0 %v1846
    %2043 = vmatpush1.msra.mxu0 %v1845
    %2044 = vmatprep.subr.mxu0 %v1838
    %2045 = vmatpush1.msra.mxu0 %v1837
    %2046 = vmatprep.subr.mxu0 %v1830
    %2047 = vmatpush1.msra.mxu0 %v1829
    %2048 = vmatprep.subr.mxu0 %v1822
    %2049 = vmatpush1.msra.mxu0 %v1821
    %2050 = vmatprep.subr.mxu0 %v1814
    %2051 = vmatpush1.msra.mxu0 %v1813
    %2052 = vmatprep.subr.mxu0 %v1806
    %2053 = vmatpush1.msra.mxu0 %v1805
    %2054 = vmatprep.subr.mxu0 %v1798
    %2055 = vmatpush1.msra.mxu0 %v1797
    %2056 = vmatprep.subr.mxu0 %v1790
    %2057 = vmatpush1.msra.mxu0 %v1789
    %2058 = vmatprep.subr.mxu0 %v1782
    %2059 = vmatpush1.msra.mxu0 %v1781
    %2060 = vmatprep.subr.mxu0 %v1774
    %2061 = vmatpush1.msra.mxu0 %v1773
    %2062 = vmatprep.subr.mxu0 %v1766
    %2063 = vmatpush1.msra.mxu0 %v1765
    %2064 = vmatprep.subr.mxu0 %v2014
    %2065 = vmatpush2.msra.mxu0 %v2013
    %2066 = vmatprep.subr.mxu0 %v2006
    %2067 = vmatpush2.msra.mxu0 %v2005
    %2068 = vmatprep.subr.mxu0 %v1998
    %2069 = vmatpush2.msra.mxu0 %v1997
    %2070 = vmatprep.subr.mxu0 %v1990
    %2071 = vmatpush2.msra.mxu0 %v1989
    %2072 = vmatprep.subr.mxu0 %v1982
    %2073 = vmatpush2.msra.mxu0 %v1981
    %2074 = vmatprep.subr.mxu0 %v1974
    %2075 = vmatpush2.msra.mxu0 %v1973
    %2076 = vmatprep.subr.mxu0 %v1966
    %2077 = vmatpush2.msra.mxu0 %v1965
    %2078 = vmatprep.subr.mxu0 %v1958
    %2079 = vmatpush2.msra.mxu0 %v1957
    %2080 = vmatprep.subr.mxu0 %v1950
    %2081 = vmatpush2.msra.mxu0 %v1949
    %2082 = vmatprep.subr.mxu0 %v1942
    %2083 = vmatpush2.msra.mxu0 %v1941
    %2084 = vmatprep.subr.mxu0 %v1934
    %2085 = vmatpush2.msra.mxu0 %v1933
    %2086 = vmatprep.subr.mxu0 %v1926
    %2087 = vmatpush2.msra.mxu0 %v1925
    %2088 = vmatprep.subr.mxu0 %v1918
    %2089 = vmatpush2.msra.mxu0 %v1917
    %2090 = vmatprep.subr.mxu0 %v1910
    %2091 = vmatpush2.msra.mxu0 %v1909
    %2092 = vmatprep.subr.mxu0 %v1902
    %2093 = vmatpush2.msra.mxu0 %v1901
    %2094 = vmatprep.subr.mxu0 %v1894
    %2095 = vmatpush2.msra.mxu0 %v1893
    %2096 = vmatprep.mubr.f32.mxu0 %v2029
    %2097 = vmatmul.mubr.f32.gmra.mxu0 %v2025
    %v2098 = vpop.f32.mrf.mxu0
    %v2099 = vadd.f32 0.0, %v2098
    %v2100 = vpop.f32.mrf.mxu0
    %v2101 = vadd.f32 0.0, %v2100
    %2102 = vdwg.mxu0
    %2103 = vmatprep.subr.mxu0 %v1888
    %2104 = vmatpush1.msra.mxu0 %v1887
    %2105 = vmatprep.subr.mxu0 %v1880
    %2106 = vmatpush1.msra.mxu0 %v1879
    %2107 = vmatprep.subr.mxu0 %v1872
    %2108 = vmatpush1.msra.mxu0 %v1871
    %2109 = vmatprep.subr.mxu0 %v1864
    %2110 = vmatpush1.msra.mxu0 %v1863
    %2111 = vmatprep.subr.mxu0 %v1856
    %2112 = vmatpush1.msra.mxu0 %v1855
    %2113 = vmatprep.subr.mxu0 %v1848
    %2114 = vmatpush1.msra.mxu0 %v1847
    %2115 = vmatprep.subr.mxu0 %v1840
    %2116 = vmatpush1.msra.mxu0 %v1839
    %2117 = vmatprep.subr.mxu0 %v1832
    %2118 = vmatpush1.msra.mxu0 %v1831
    %2119 = vmatprep.subr.mxu0 %v1824
    %2120 = vmatpush1.msra.mxu0 %v1823
    %2121 = vmatprep.subr.mxu0 %v1816
    %2122 = vmatpush1.msra.mxu0 %v1815
    %2123 = vmatprep.subr.mxu0 %v1808
    %2124 = vmatpush1.msra.mxu0 %v1807
    %2125 = vmatprep.subr.mxu0 %v1800
    %2126 = vmatpush1.msra.mxu0 %v1799
    %2127 = vmatprep.subr.mxu0 %v1792
    %2128 = vmatpush1.msra.mxu0 %v1791
    %2129 = vmatprep.subr.mxu0 %v1784
    %2130 = vmatpush1.msra.mxu0 %v1783
    %2131 = vmatprep.subr.mxu0 %v1776
    %2132 = vmatpush1.msra.mxu0 %v1775
    %2133 = vmatprep.subr.mxu0 %v1768
    %2134 = vmatpush1.msra.mxu0 %v1767
    %2135 = vmatprep.subr.mxu0 %v2016
    %2136 = vmatpush2.msra.mxu0 %v2015
    %2137 = vmatprep.subr.mxu0 %v2008
    %2138 = vmatpush2.msra.mxu0 %v2007
    %2139 = vmatprep.subr.mxu0 %v2000
    %2140 = vmatpush2.msra.mxu0 %v1999
    %2141 = vmatprep.subr.mxu0 %v1992
    %2142 = vmatpush2.msra.mxu0 %v1991
    %2143 = vmatprep.subr.mxu0 %v1984
    %2144 = vmatpush2.msra.mxu0 %v1983
    %2145 = vmatprep.subr.mxu0 %v1976
    %2146 = vmatpush2.msra.mxu0 %v1975
    %2147 = vmatprep.subr.mxu0 %v1968
    %2148 = vmatpush2.msra.mxu0 %v1967
    %2149 = vmatprep.subr.mxu0 %v1960
    %2150 = vmatpush2.msra.mxu0 %v1959
    %2151 = vmatprep.subr.mxu0 %v1952
    %2152 = vmatpush2.msra.mxu0 %v1951
    %2153 = vmatprep.subr.mxu0 %v1944
    %2154 = vmatpush2.msra.mxu0 %v1943
    %2155 = vmatprep.subr.mxu0 %v1936
    %2156 = vmatpush2.msra.mxu0 %v1935
    %2157 = vmatprep.subr.mxu0 %v1928
    %2158 = vmatpush2.msra.mxu0 %v1927
    %2159 = vmatprep.subr.mxu0 %v1920
    %2160 = vmatpush2.msra.mxu0 %v1919
    %2161 = vmatprep.subr.mxu0 %v1912
    %2162 = vmatpush2.msra.mxu0 %v1911
    %2163 = vmatprep.subr.mxu0 %v1904
    %2164 = vmatpush2.msra.mxu0 %v1903
    %2165 = vmatprep.subr.mxu0 %v1896
    %2166 = vmatpush2.msra.mxu0 %v1895
    %2167 = vmatprep.mubr.f32.mxu0 %v2029
    %2168 = vmatmul.mubr.f32.gmra.mxu0 %v2025
    %v2169 = vpop.f32.mrf.mxu0
    %v2170 = vadd.f32 0.0, %v2169
    %v2171 = vpop.f32.mrf.mxu0
    %v2172 = vadd.f32 0.0, %v2171
    %2173 = vdwg.mxu0
    %2174 = vmatprep.subr.mxu0 %v1890
    %2175 = vmatpush1.msra.mxu0 %v1889
    %2176 = vmatprep.subr.mxu0 %v1882
    %2177 = vmatpush1.msra.mxu0 %v1881
    %2178 = vmatprep.subr.mxu0 %v1874
    %2179 = vmatpush1.msra.mxu0 %v1873
    %2180 = vmatprep.subr.mxu0 %v1866
    %2181 = vmatpush1.msra.mxu0 %v1865
    %2182 = vmatprep.subr.mxu0 %v1858
    %2183 = vmatpush1.msra.mxu0 %v1857
    %2184 = vmatprep.subr.mxu0 %v1850
    %2185 = vmatpush1.msra.mxu0 %v1849
    %2186 = vmatprep.subr.mxu0 %v1842
    %2187 = vmatpush1.msra.mxu0 %v1841
    %2188 = vmatprep.subr.mxu0 %v1834
    %2189 = vmatpush1.msra.mxu0 %v1833
    %2190 = vmatprep.subr.mxu0 %v1826
    %2191 = vmatpush1.msra.mxu0 %v1825
    %2192 = vmatprep.subr.mxu0 %v1818
    %2193 = vmatpush1.msra.mxu0 %v1817
    %2194 = vmatprep.subr.mxu0 %v1810
    %2195 = vmatpush1.msra.mxu0 %v1809
    %2196 = vmatprep.subr.mxu0 %v1802
    %2197 = vmatpush1.msra.mxu0 %v1801
    %2198 = vmatprep.subr.mxu0 %v1794
    %2199 = vmatpush1.msra.mxu0 %v1793
    %2200 = vmatprep.subr.mxu0 %v1786
    %2201 = vmatpush1.msra.mxu0 %v1785
    %2202 = vmatprep.subr.mxu0 %v1778
    %2203 = vmatpush1.msra.mxu0 %v1777
    %2204 = vmatprep.subr.mxu0 %v1770
    %2205 = vmatpush1.msra.mxu0 %v1769
    %2206 = vmatprep.subr.mxu0 %v2018
    %2207 = vmatpush2.msra.mxu0 %v2017
    %2208 = vmatprep.subr.mxu0 %v2010
    %2209 = vmatpush2.msra.mxu0 %v2009
    %2210 = vmatprep.subr.mxu0 %v2002
    %2211 = vmatpush2.msra.mxu0 %v2001
    %2212 = vmatprep.subr.mxu0 %v1994
    %2213 = vmatpush2.msra.mxu0 %v1993
    %2214 = vmatprep.subr.mxu0 %v1986
    %2215 = vmatpush2.msra.mxu0 %v1985
    %2216 = vmatprep.subr.mxu0 %v1978
    %2217 = vmatpush2.msra.mxu0 %v1977
    %2218 = vmatprep.subr.mxu0 %v1970
    %2219 = vmatpush2.msra.mxu0 %v1969
    %2220 = vmatprep.subr.mxu0 %v1962
    %2221 = vmatpush2.msra.mxu0 %v1961
    %2222 = vmatprep.subr.mxu0 %v1954
    %2223 = vmatpush2.msra.mxu0 %v1953
    %2224 = vmatprep.subr.mxu0 %v1946
    %2225 = vmatpush2.msra.mxu0 %v1945
    %2226 = vmatprep.subr.mxu0 %v1938
    %2227 = vmatpush2.msra.mxu0 %v1937
    %2228 = vmatprep.subr.mxu0 %v1930
    %2229 = vmatpush2.msra.mxu0 %v1929
    %2230 = vmatprep.subr.mxu0 %v1922
    %2231 = vmatpush2.msra.mxu0 %v1921
    %2232 = vmatprep.subr.mxu0 %v1914
    %2233 = vmatpush2.msra.mxu0 %v1913
    %2234 = vmatprep.subr.mxu0 %v1906
    %2235 = vmatpush2.msra.mxu0 %v1905
    %2236 = vmatprep.subr.mxu0 %v1898
    %2237 = vmatpush2.msra.mxu0 %v1897
    %2238 = vmatprep.mubr.f32.mxu0 %v2029
    %2239 = vmatmul.mubr.f32.gmra.mxu0 %v2025
    %v2240 = vpop.f32.mrf.mxu0
    %v2241 = vadd.f32 0.0, %v2240
    %v2242 = vpop.f32.mrf.mxu0
    %v2243 = vadd.f32 0.0, %v2242
    %2244 = vdwg.mxu0
    %2245 = vmatprep.subr.mxu0 %v1892
    %2246 = vmatpush1.msra.mxu0 %v1891
    %2247 = vmatprep.subr.mxu0 %v1884
    %2248 = vmatpush1.msra.mxu0 %v1883
    %2249 = vmatprep.subr.mxu0 %v1876
    %2250 = vmatpush1.msra.mxu0 %v1875
    %2251 = vmatprep.subr.mxu0 %v1868
    %2252 = vmatpush1.msra.mxu0 %v1867
    %2253 = vmatprep.subr.mxu0 %v1860
    %2254 = vmatpush1.msra.mxu0 %v1859
    %2255 = vmatprep.subr.mxu0 %v1852
    %2256 = vmatpush1.msra.mxu0 %v1851
    %2257 = vmatprep.subr.mxu0 %v1844
    %2258 = vmatpush1.msra.mxu0 %v1843
    %2259 = vmatprep.subr.mxu0 %v1836
    %2260 = vmatpush1.msra.mxu0 %v1835
    %2261 = vmatprep.subr.mxu0 %v1828
    %2262 = vmatpush1.msra.mxu0 %v1827
    %2263 = vmatprep.subr.mxu0 %v1820
    %2264 = vmatpush1.msra.mxu0 %v1819
    %2265 = vmatprep.subr.mxu0 %v1812
    %2266 = vmatpush1.msra.mxu0 %v1811
    %2267 = vmatprep.subr.mxu0 %v1804
    %2268 = vmatpush1.msra.mxu0 %v1803
    %2269 = vmatprep.subr.mxu0 %v1796
    %2270 = vmatpush1.msra.mxu0 %v1795
    %2271 = vmatprep.subr.mxu0 %v1788
    %2272 = vmatpush1.msra.mxu0 %v1787
    %2273 = vmatprep.subr.mxu0 %v1780
    %2274 = vmatpush1.msra.mxu0 %v1779
    %2275 = vmatprep.subr.mxu0 %v1772
    %2276 = vmatpush1.msra.mxu0 %v1771
    %2277 = vmatprep.subr.mxu0 %v2020
    %2278 = vmatpush2.msra.mxu0 %v2019
    %2279 = vmatprep.subr.mxu0 %v2012
    %2280 = vmatpush2.msra.mxu0 %v2011
    %2281 = vmatprep.subr.mxu0 %v2004
    %2282 = vmatpush2.msra.mxu0 %v2003
    %2283 = vmatprep.subr.mxu0 %v1996
    %2284 = vmatpush2.msra.mxu0 %v1995
    %2285 = vmatprep.subr.mxu0 %v1988
    %2286 = vmatpush2.msra.mxu0 %v1987
    %2287 = vmatprep.subr.mxu0 %v1980
    %2288 = vmatpush2.msra.mxu0 %v1979
    %2289 = vmatprep.subr.mxu0 %v1972
    %2290 = vmatpush2.msra.mxu0 %v1971
    %2291 = vmatprep.subr.mxu0 %v1964
    %2292 = vmatpush2.msra.mxu0 %v1963
    %2293 = vmatprep.subr.mxu0 %v1956
    %2294 = vmatpush2.msra.mxu0 %v1955
    %2295 = vmatprep.subr.mxu0 %v1948
    %2296 = vmatpush2.msra.mxu0 %v1947
    %2297 = vmatprep.subr.mxu0 %v1940
    %2298 = vmatpush2.msra.mxu0 %v1939
    %2299 = vmatprep.subr.mxu0 %v1932
    %2300 = vmatpush2.msra.mxu0 %v1931
    %2301 = vmatprep.subr.mxu0 %v1924
    %2302 = vmatpush2.msra.mxu0 %v1923
    %2303 = vmatprep.subr.mxu0 %v1916
    %2304 = vmatpush2.msra.mxu0 %v1915
    %2305 = vmatprep.subr.mxu0 %v1908
    %2306 = vmatpush2.msra.mxu0 %v1907
    %2307 = vmatprep.subr.mxu0 %v1900
    %2308 = vmatpush2.msra.mxu0 %v1899
    %2309 = vmatprep.mubr.f32.mxu0 %v2029
    %2310 = vmatmul.mubr.f32.gmra.mxu0 %v2025
    %v2311 = vpop.f32.mrf.mxu0
    %v2312 = vadd.f32 0.0, %v2311
    %v2313 = vpop.f32.mrf.mxu0
    %v2314 = vadd.f32 0.0, %v2313
    %2315 = vdwg.mxu0
    %v2324 = vcombine.low %v2099, %v2101
    %v2325 = vcombine.low %v2170, %v2172
    %v2326 = vcombine.low %v2241, %v2243
    %v2327 = vcombine.low %v2312, %v2314
    %v2329 = vunpack.c.l.s4 1966171168
    %v2330 = vunpack.c.0.s8 %v2329
    %v2331 = vlaneseq
    %v2332 = vshrl.u32 %v2331, 7
    %v2333 = vsub.s32 %v2330, %v2332
    %v2334 = vrot.slane %v2324, %v2333
    %v2336 = vunpack.c.l.s4 1966171168
    %v2337 = vunpack.c.0.s8 %v2336
    %v2338 = vlaneseq
    %v2339 = vshrl.u32 %v2338, 7
    %v2340 = vsub.s32 %v2337, %v2339
    %v2341 = vrot.slane %v2325, %v2340
    %v2343 = vunpack.c.l.s4 1966171168
    %v2344 = vunpack.c.0.s8 %v2343
    %v2345 = vlaneseq
    %v2346 = vshrl.u32 %v2345, 7
    %v2347 = vsub.s32 %v2344, %v2346
    %v2348 = vrot.slane %v2326, %v2347
    %v2350 = vunpack.c.l.s4 1966171168
    %v2351 = vunpack.c.0.s8 %v2350
    %v2352 = vlaneseq
    %v2353 = vshrl.u32 %v2352, 7
    %v2354 = vsub.s32 %v2351, %v2353
    %v2355 = vrot.slane %v2327, %v2354
    %v2356 = vcombine.low %v2334, %v2341
    %v2357 = vcombine.low %v2348, %v2355
    %v2359 = vunpack.c.l.s4 1966171168
    %v2360 = vunpack.c.0.s8 %v2359
    %v2361 = vlaneseq
    %v2362 = vshrl.u32 %v2361, 7
    %v2363 = vsub.s32 %v2360, %v2362
    %v2364 = vrot.slane %v2356, %v2363
    %v2366 = vunpack.c.l.s4 1966171168
    %v2367 = vunpack.c.0.s8 %v2366
    %v2368 = vlaneseq
    %v2369 = vshrl.u32 %v2368, 7
    %v2370 = vsub.s32 %v2367, %v2369
    %v2371 = vrot.slane %v2357, %v2370
    %v2372 = vcombine.low %v2364, %v2371
    %v2374 = vadd.f32 %v1764, %v2372
    %v2375 = vxor.u32 %v2374, 2147483648
    %v2376 = vmul.f32 %v2375, 1.442695
    %v2377 = vpow.pop %v2376
    %v2378 = vadd.f32 %v2377, 1.0
    %v2379 = vrcp.pop %v2378
    %v2380 = vmul.f32 1.0, %v2379
    %v2382 = vrot.slane %v2374, 2
    %v2384 = vxor.u32 %v2382, 2147483648
    %v2385 = vmul.f32 %v2384, 1.442695
    %v2386 = vpow.pop %v2385
    %v2387 = vadd.f32 %v2386, 1.0
    %v2388 = vrcp.pop %v2387
    %v2389 = vmul.f32 1.0, %v2388
    %v2390 = vrot.slane %v2374, 4
    %v2392 = vtanh.pop %v2390
    %v2393 = vrot.slane %v2374, 6
    %v2395 = vxor.u32 %v2393, 2147483648
    %v2396 = vmul.f32 %v2395, 1.442695
    %v2397 = vpow.pop %v2396
    %v2398 = vadd.f32 %v2397, 1.0
    %v2399 = vrcp.pop %v2398
    %v2400 = vmul.f32 1.0, %v2399
    %v2401 = vmul.f32 %v2389, %v1756
    %v2402 = vmul.f32 %v2380, %v2392
    %v2403 = vadd.f32 %v2401, %v2402
    %v2404 = vtanh.pop %v2403
    %v2405 = vmul.f32 %v2400, %v2404
    %s2406 = scalar_lea.vmem [#allocation11], 1
    %2407 = vst.msk [vmem:[%s2406] ss:$8 sm:$0x3] %vm64, %v2405
    %2408 = vst.msk [vmem:[%s2406] ss:$8 sm:$0x0] %vm64, %v2405
    %s2409 = scalar_lea.vmem [#allocation4], 2
    %v2410 = vld [vmem:[%s2409] ss:$8 sm:$0xf]
    %v2411 = vld [vmem:[%s2409] ss:$8 sm:$0xf0]
    %v2412 = vor.u32 %v2410, %v2411
    %v2413 = vld [vmem:[%s7] sm:$0xff]
    %v2414 = vld [vmem:[%s7 + $0x8] sm:$0xff]
    %v2415 = vld [vmem:[%s7 + $0x10] sm:$0xff]
    %v2416 = vld [vmem:[%s7 + $0x18] sm:$0xff]
    %v2417 = vld [vmem:[%s7 + $0x20] sm:$0xff]
    %v2418 = vld [vmem:[%s7 + $0x28] sm:$0xff]
    %v2419 = vld [vmem:[%s7 + $0x30] sm:$0xff]
    %v2420 = vld [vmem:[%s7 + $0x38] sm:$0xff]
    %v2421 = vld [vmem:[%s7 + $0x40] sm:$0xff]
    %v2422 = vld [vmem:[%s7 + $0x48] sm:$0xff]
    %v2423 = vld [vmem:[%s7 + $0x50] sm:$0xff]
    %v2424 = vld [vmem:[%s7 + $0x58] sm:$0xff]
    %v2425 = vld [vmem:[%s7 + $0x60] sm:$0xff]
    %v2426 = vld [vmem:[%s7 + $0x68] sm:$0xff]
    %v2427 = vld [vmem:[%s7 + $0x70] sm:$0xff]
    %v2428 = vld [vmem:[%s7 + $0x78] sm:$0xff]
    %v2429 = vld [vmem:[%s7 + $0x80] sm:$0xff]
    %v2430 = vld [vmem:[%s7 + $0x88] sm:$0xff]
    %v2431 = vld [vmem:[%s7 + $0x90] sm:$0xff]
    %v2432 = vld [vmem:[%s7 + $0x98] sm:$0xff]
    %v2433 = vld [vmem:[%s7 + $0xa0] sm:$0xff]
    %v2434 = vld [vmem:[%s7 + $0xa8] sm:$0xff]
    %v2435 = vld [vmem:[%s7 + $0xb0] sm:$0xff]
    %v2436 = vld [vmem:[%s7 + $0xb8] sm:$0xff]
    %v2437 = vld [vmem:[%s7 + $0xc0] sm:$0xff]
    %v2438 = vld [vmem:[%s7 + $0xc8] sm:$0xff]
    %v2439 = vld [vmem:[%s7 + $0xd0] sm:$0xff]
    %v2440 = vld [vmem:[%s7 + $0xd8] sm:$0xff]
    %v2441 = vld [vmem:[%s7 + $0xe0] sm:$0xff]
    %v2442 = vld [vmem:[%s7 + $0xe8] sm:$0xff]
    %v2443 = vld [vmem:[%s7 + $0xf0] sm:$0xff]
    %v2444 = vld [vmem:[%s7 + $0xf8] sm:$0xff]
    %v2445 = vld [vmem:[%s7 + $0x100] sm:$0xff]
    %v2446 = vld [vmem:[%s7 + $0x108] sm:$0xff]
    %v2447 = vld [vmem:[%s7 + $0x110] sm:$0xff]
    %v2448 = vld [vmem:[%s7 + $0x118] sm:$0xff]
    %v2449 = vld [vmem:[%s7 + $0x120] sm:$0xff]
    %v2450 = vld [vmem:[%s7 + $0x128] sm:$0xff]
    %v2451 = vld [vmem:[%s7 + $0x130] sm:$0xff]
    %v2452 = vld [vmem:[%s7 + $0x138] sm:$0xff]
    %v2453 = vld [vmem:[%s7 + $0x140] sm:$0xff]
    %v2454 = vld [vmem:[%s7 + $0x148] sm:$0xff]
    %v2455 = vld [vmem:[%s7 + $0x150] sm:$0xff]
    %v2456 = vld [vmem:[%s7 + $0x158] sm:$0xff]
    %v2457 = vld [vmem:[%s7 + $0x160] sm:$0xff]
    %v2458 = vld [vmem:[%s7 + $0x168] sm:$0xff]
    %v2459 = vld [vmem:[%s7 + $0x170] sm:$0xff]
    %v2460 = vld [vmem:[%s7 + $0x178] sm:$0xff]
    %v2461 = vld [vmem:[%s7 + $0x180] sm:$0xff]
    %v2462 = vld [vmem:[%s7 + $0x188] sm:$0xff]
    %v2463 = vld [vmem:[%s7 + $0x190] sm:$0xff]
    %v2464 = vld [vmem:[%s7 + $0x198] sm:$0xff]
    %v2465 = vld [vmem:[%s7 + $0x1a0] sm:$0xff]
    %v2466 = vld [vmem:[%s7 + $0x1a8] sm:$0xff]
    %v2467 = vld [vmem:[%s7 + $0x1b0] sm:$0xff]
    %v2468 = vld [vmem:[%s7 + $0x1b8] sm:$0xff]
    %v2469 = vld [vmem:[%s7 + $0x1c0] sm:$0xff]
    %v2470 = vld [vmem:[%s7 + $0x1c8] sm:$0xff]
    %v2471 = vld [vmem:[%s7 + $0x1d0] sm:$0xff]
    %v2472 = vld [vmem:[%s7 + $0x1d8] sm:$0xff]
    %v2473 = vld [vmem:[%s7 + $0x1e0] sm:$0xff]
    %v2474 = vld [vmem:[%s7 + $0x1e8] sm:$0xff]
    %v2475 = vld [vmem:[%s7 + $0x1f0] sm:$0xff]
    %v2476 = vld [vmem:[%s7 + $0x1f8] sm:$0xff]
    %v2477 = vld [vmem:[%s7 + $0x200] sm:$0xff]
    %v2478 = vld [vmem:[%s7 + $0x208] sm:$0xff]
    %v2479 = vld [vmem:[%s7 + $0x210] sm:$0xff]
    %v2480 = vld [vmem:[%s7 + $0x218] sm:$0xff]
    %v2481 = vld [vmem:[%s7 + $0x220] sm:$0xff]
    %v2482 = vld [vmem:[%s7 + $0x228] sm:$0xff]
    %v2483 = vld [vmem:[%s7 + $0x230] sm:$0xff]
    %v2484 = vld [vmem:[%s7 + $0x238] sm:$0xff]
    %v2485 = vld [vmem:[%s7 + $0x240] sm:$0xff]
    %v2486 = vld [vmem:[%s7 + $0x248] sm:$0xff]
    %v2487 = vld [vmem:[%s7 + $0x250] sm:$0xff]
    %v2488 = vld [vmem:[%s7 + $0x258] sm:$0xff]
    %v2489 = vld [vmem:[%s7 + $0x260] sm:$0xff]
    %v2490 = vld [vmem:[%s7 + $0x268] sm:$0xff]
    %v2491 = vld [vmem:[%s7 + $0x270] sm:$0xff]
    %v2492 = vld [vmem:[%s7 + $0x278] sm:$0xff]
    %v2493 = vld [vmem:[%s7 + $0x280] sm:$0xff]
    %v2494 = vld [vmem:[%s7 + $0x288] sm:$0xff]
    %v2495 = vld [vmem:[%s7 + $0x290] sm:$0xff]
    %v2496 = vld [vmem:[%s7 + $0x298] sm:$0xff]
    %v2497 = vld [vmem:[%s7 + $0x2a0] sm:$0xff]
    %v2498 = vld [vmem:[%s7 + $0x2a8] sm:$0xff]
    %v2499 = vld [vmem:[%s7 + $0x2b0] sm:$0xff]
    %v2500 = vld [vmem:[%s7 + $0x2b8] sm:$0xff]
    %v2501 = vld [vmem:[%s7 + $0x2c0] sm:$0xff]
    %v2502 = vld [vmem:[%s7 + $0x2c8] sm:$0xff]
    %v2503 = vld [vmem:[%s7 + $0x2d0] sm:$0xff]
    %v2504 = vld [vmem:[%s7 + $0x2d8] sm:$0xff]
    %v2505 = vld [vmem:[%s7 + $0x2e0] sm:$0xff]
    %v2506 = vld [vmem:[%s7 + $0x2e8] sm:$0xff]
    %v2507 = vld [vmem:[%s7 + $0x2f0] sm:$0xff]
    %v2508 = vld [vmem:[%s7 + $0x2f8] sm:$0xff]
    %v2509 = vld [vmem:[%s7 + $0x300] sm:$0xff]
    %v2510 = vld [vmem:[%s7 + $0x308] sm:$0xff]
    %v2511 = vld [vmem:[%s7 + $0x310] sm:$0xff]
    %v2512 = vld [vmem:[%s7 + $0x318] sm:$0xff]
    %v2513 = vld [vmem:[%s7 + $0x320] sm:$0xff]
    %v2514 = vld [vmem:[%s7 + $0x328] sm:$0xff]
    %v2515 = vld [vmem:[%s7 + $0x330] sm:$0xff]
    %v2516 = vld [vmem:[%s7 + $0x338] sm:$0xff]
    %v2517 = vld [vmem:[%s7 + $0x340] sm:$0xff]
    %v2518 = vld [vmem:[%s7 + $0x348] sm:$0xff]
    %v2519 = vld [vmem:[%s7 + $0x350] sm:$0xff]
    %v2520 = vld [vmem:[%s7 + $0x358] sm:$0xff]
    %v2521 = vld [vmem:[%s7 + $0x360] sm:$0xff]
    %v2522 = vld [vmem:[%s7 + $0x368] sm:$0xff]
    %v2523 = vld [vmem:[%s7 + $0x370] sm:$0xff]
    %v2524 = vld [vmem:[%s7 + $0x378] sm:$0xff]
    %v2525 = vld [vmem:[%s7 + $0x380] sm:$0xff]
    %v2526 = vld [vmem:[%s7 + $0x388] sm:$0xff]
    %v2527 = vld [vmem:[%s7 + $0x390] sm:$0xff]
    %v2528 = vld [vmem:[%s7 + $0x398] sm:$0xff]
    %v2529 = vld [vmem:[%s7 + $0x3a0] sm:$0xff]
    %v2530 = vld [vmem:[%s7 + $0x3a8] sm:$0xff]
    %v2531 = vld [vmem:[%s7 + $0x3b0] sm:$0xff]
    %v2532 = vld [vmem:[%s7 + $0x3b8] sm:$0xff]
    %v2533 = vld [vmem:[%s7 + $0x3c0] sm:$0xff]
    %v2534 = vld [vmem:[%s7 + $0x3c8] sm:$0xff]
    %v2535 = vld [vmem:[%s7 + $0x3d0] sm:$0xff]
    %v2536 = vld [vmem:[%s7 + $0x3d8] sm:$0xff]
    %v2537 = vld [vmem:[%s7 + $0x3e0] sm:$0xff]
    %v2538 = vld [vmem:[%s7 + $0x3e8] sm:$0xff]
    %v2539 = vld [vmem:[%s7 + $0x3f0] sm:$0xff]
    %v2540 = vld [vmem:[%s7 + $0x3f8] sm:$0xff]
    %v2541 = vld [vmem:[%s7 + $0x400] sm:$0xff]
    %v2542 = vld [vmem:[%s7 + $0x408] sm:$0xff]
    %v2543 = vld [vmem:[%s7 + $0x410] sm:$0xff]
    %v2544 = vld [vmem:[%s7 + $0x418] sm:$0xff]
    %v2545 = vld [vmem:[%s7 + $0x420] sm:$0xff]
    %v2546 = vld [vmem:[%s7 + $0x428] sm:$0xff]
    %v2547 = vld [vmem:[%s7 + $0x430] sm:$0xff]
    %v2548 = vld [vmem:[%s7 + $0x438] sm:$0xff]
    %v2549 = vld [vmem:[%s7 + $0x440] sm:$0xff]
    %v2550 = vld [vmem:[%s7 + $0x448] sm:$0xff]
    %v2551 = vld [vmem:[%s7 + $0x450] sm:$0xff]
    %v2552 = vld [vmem:[%s7 + $0x458] sm:$0xff]
    %v2553 = vld [vmem:[%s7 + $0x460] sm:$0xff]
    %v2554 = vld [vmem:[%s7 + $0x468] sm:$0xff]
    %v2555 = vld [vmem:[%s7 + $0x470] sm:$0xff]
    %v2556 = vld [vmem:[%s7 + $0x478] sm:$0xff]
    %v2557 = vld [vmem:[%s7 + $0x480] sm:$0xff]
    %v2558 = vld [vmem:[%s7 + $0x488] sm:$0xff]
    %v2559 = vld [vmem:[%s7 + $0x490] sm:$0xff]
    %v2560 = vld [vmem:[%s7 + $0x498] sm:$0xff]
    %v2561 = vld [vmem:[%s7 + $0x4a0] sm:$0xff]
    %v2562 = vld [vmem:[%s7 + $0x4a8] sm:$0xff]
    %v2563 = vld [vmem:[%s7 + $0x4b0] sm:$0xff]
    %v2564 = vld [vmem:[%s7 + $0x4b8] sm:$0xff]
    %v2565 = vld [vmem:[%s7 + $0x4c0] sm:$0xff]
    %v2566 = vld [vmem:[%s7 + $0x4c8] sm:$0xff]
    %v2567 = vld [vmem:[%s7 + $0x4d0] sm:$0xff]
    %v2568 = vld [vmem:[%s7 + $0x4d8] sm:$0xff]
    %v2569 = vld [vmem:[%s7 + $0x4e0] sm:$0xff]
    %v2570 = vld [vmem:[%s7 + $0x4e8] sm:$0xff]
    %v2571 = vld [vmem:[%s7 + $0x4f0] sm:$0xff]
    %v2572 = vld [vmem:[%s7 + $0x4f8] sm:$0xff]
    %v2573 = vld [vmem:[%s7 + $0x500] sm:$0xff]
    %v2574 = vld [vmem:[%s7 + $0x508] sm:$0xff]
    %v2575 = vld [vmem:[%s7 + $0x510] sm:$0xff]
    %v2576 = vld [vmem:[%s7 + $0x518] sm:$0xff]
    %v2577 = vld [vmem:[%s7 + $0x520] sm:$0xff]
    %v2578 = vld [vmem:[%s7 + $0x528] sm:$0xff]
    %v2579 = vld [vmem:[%s7 + $0x530] sm:$0xff]
    %v2580 = vld [vmem:[%s7 + $0x538] sm:$0xff]
    %v2581 = vld [vmem:[%s7 + $0x540] sm:$0xff]
    %v2582 = vld [vmem:[%s7 + $0x548] sm:$0xff]
    %v2583 = vld [vmem:[%s7 + $0x550] sm:$0xff]
    %v2584 = vld [vmem:[%s7 + $0x558] sm:$0xff]
    %v2585 = vld [vmem:[%s7 + $0x560] sm:$0xff]
    %v2586 = vld [vmem:[%s7 + $0x568] sm:$0xff]
    %v2587 = vld [vmem:[%s7 + $0x570] sm:$0xff]
    %v2588 = vld [vmem:[%s7 + $0x578] sm:$0xff]
    %v2589 = vld [vmem:[%s7 + $0x580] sm:$0xff]
    %v2590 = vld [vmem:[%s7 + $0x588] sm:$0xff]
    %v2591 = vld [vmem:[%s7 + $0x590] sm:$0xff]
    %v2592 = vld [vmem:[%s7 + $0x598] sm:$0xff]
    %v2593 = vld [vmem:[%s7 + $0x5a0] sm:$0xff]
    %v2594 = vld [vmem:[%s7 + $0x5a8] sm:$0xff]
    %v2595 = vld [vmem:[%s7 + $0x5b0] sm:$0xff]
    %v2596 = vld [vmem:[%s7 + $0x5b8] sm:$0xff]
    %v2597 = vld [vmem:[%s7 + $0x5c0] sm:$0xff]
    %v2598 = vld [vmem:[%s7 + $0x5c8] sm:$0xff]
    %v2599 = vld [vmem:[%s7 + $0x5d0] sm:$0xff]
    %v2600 = vld [vmem:[%s7 + $0x5d8] sm:$0xff]
    %v2601 = vld [vmem:[%s7 + $0x5e0] sm:$0xff]
    %v2602 = vld [vmem:[%s7 + $0x5e8] sm:$0xff]
    %v2603 = vld [vmem:[%s7 + $0x5f0] sm:$0xff]
    %v2604 = vld [vmem:[%s7 + $0x5f8] sm:$0xff]
    %v2605 = vld [vmem:[%s7 + $0x600] sm:$0xff]
    %v2606 = vld [vmem:[%s7 + $0x608] sm:$0xff]
    %v2607 = vld [vmem:[%s7 + $0x610] sm:$0xff]
    %v2608 = vld [vmem:[%s7 + $0x618] sm:$0xff]
    %v2609 = vld [vmem:[%s7 + $0x620] sm:$0xff]
    %v2610 = vld [vmem:[%s7 + $0x628] sm:$0xff]
    %v2611 = vld [vmem:[%s7 + $0x630] sm:$0xff]
    %v2612 = vld [vmem:[%s7 + $0x638] sm:$0xff]
    %v2613 = vld [vmem:[%s7 + $0x640] sm:$0xff]
    %v2614 = vld [vmem:[%s7 + $0x648] sm:$0xff]
    %v2615 = vld [vmem:[%s7 + $0x650] sm:$0xff]
    %v2616 = vld [vmem:[%s7 + $0x658] sm:$0xff]
    %v2617 = vld [vmem:[%s7 + $0x660] sm:$0xff]
    %v2618 = vld [vmem:[%s7 + $0x668] sm:$0xff]
    %v2619 = vld [vmem:[%s7 + $0x670] sm:$0xff]
    %v2620 = vld [vmem:[%s7 + $0x678] sm:$0xff]
    %v2621 = vld [vmem:[%s7 + $0x680] sm:$0xff]
    %v2622 = vld [vmem:[%s7 + $0x688] sm:$0xff]
    %v2623 = vld [vmem:[%s7 + $0x690] sm:$0xff]
    %v2624 = vld [vmem:[%s7 + $0x698] sm:$0xff]
    %v2625 = vld [vmem:[%s7 + $0x6a0] sm:$0xff]
    %v2626 = vld [vmem:[%s7 + $0x6a8] sm:$0xff]
    %v2627 = vld [vmem:[%s7 + $0x6b0] sm:$0xff]
    %v2628 = vld [vmem:[%s7 + $0x6b8] sm:$0xff]
    %v2629 = vld [vmem:[%s7 + $0x6c0] sm:$0xff]
    %v2630 = vld [vmem:[%s7 + $0x6c8] sm:$0xff]
    %v2631 = vld [vmem:[%s7 + $0x6d0] sm:$0xff]
    %v2632 = vld [vmem:[%s7 + $0x6d8] sm:$0xff]
    %v2633 = vld [vmem:[%s7 + $0x6e0] sm:$0xff]
    %v2634 = vld [vmem:[%s7 + $0x6e8] sm:$0xff]
    %v2635 = vld [vmem:[%s7 + $0x6f0] sm:$0xff]
    %v2636 = vld [vmem:[%s7 + $0x6f8] sm:$0xff]
    %v2637 = vld [vmem:[%s7 + $0x700] sm:$0xff]
    %v2638 = vld [vmem:[%s7 + $0x708] sm:$0xff]
    %v2639 = vld [vmem:[%s7 + $0x710] sm:$0xff]
    %v2640 = vld [vmem:[%s7 + $0x718] sm:$0xff]
    %v2641 = vld [vmem:[%s7 + $0x720] sm:$0xff]
    %v2642 = vld [vmem:[%s7 + $0x728] sm:$0xff]
    %v2643 = vld [vmem:[%s7 + $0x730] sm:$0xff]
    %v2644 = vld [vmem:[%s7 + $0x738] sm:$0xff]
    %v2645 = vld [vmem:[%s7 + $0x740] sm:$0xff]
    %v2646 = vld [vmem:[%s7 + $0x748] sm:$0xff]
    %v2647 = vld [vmem:[%s7 + $0x750] sm:$0xff]
    %v2648 = vld [vmem:[%s7 + $0x758] sm:$0xff]
    %v2649 = vld [vmem:[%s7 + $0x760] sm:$0xff]
    %v2650 = vld [vmem:[%s7 + $0x768] sm:$0xff]
    %v2651 = vld [vmem:[%s7 + $0x770] sm:$0xff]
    %v2652 = vld [vmem:[%s7 + $0x778] sm:$0xff]
    %v2653 = vld [vmem:[%s7 + $0x780] sm:$0xff]
    %v2654 = vld [vmem:[%s7 + $0x788] sm:$0xff]
    %v2655 = vld [vmem:[%s7 + $0x790] sm:$0xff]
    %v2656 = vld [vmem:[%s7 + $0x798] sm:$0xff]
    %v2657 = vld [vmem:[%s7 + $0x7a0] sm:$0xff]
    %v2658 = vld [vmem:[%s7 + $0x7a8] sm:$0xff]
    %v2659 = vld [vmem:[%s7 + $0x7b0] sm:$0xff]
    %v2660 = vld [vmem:[%s7 + $0x7b8] sm:$0xff]
    %v2661 = vld [vmem:[%s7 + $0x7c0] sm:$0xff]
    %v2662 = vld [vmem:[%s7 + $0x7c8] sm:$0xff]
    %v2663 = vld [vmem:[%s7 + $0x7d0] sm:$0xff]
    %v2664 = vld [vmem:[%s7 + $0x7d8] sm:$0xff]
    %v2665 = vld [vmem:[%s7 + $0x7e0] sm:$0xff]
    %v2666 = vld [vmem:[%s7 + $0x7e8] sm:$0xff]
    %v2667 = vld [vmem:[%s7 + $0x7f0] sm:$0xff]
    %v2668 = vld [vmem:[%s7 + $0x7f8] sm:$0xff]
    %v2670 = vlaneseq
    %v2671 = vshrl.u32 %v2670, 7
    %v2672 = vsub.s32 0, %v2671
    %v2673 = vrot.slane %v2405, %v2672
    %v2674 = vlaneseq
    %v2675 = vshrl.u32 %v2674, 7
    %v2676 = vsub.s32 1, %v2675
    %v2677 = vrot.slane %v2405, %v2676
    %2680 = vmatprep.subr.mxu0 %v2534
    %2681 = vmatpush1.msra.mxu0 %v2533
    %2682 = vmatprep.subr.mxu0 %v2526
    %2683 = vmatpush1.msra.mxu0 %v2525
    %2684 = vmatprep.subr.mxu0 %v2518
    %2685 = vmatpush1.msra.mxu0 %v2517
    %2686 = vmatprep.subr.mxu0 %v2510
    %2687 = vmatpush1.msra.mxu0 %v2509
    %2688 = vmatprep.subr.mxu0 %v2502
    %2689 = vmatpush1.msra.mxu0 %v2501
    %2690 = vmatprep.subr.mxu0 %v2494
    %2691 = vmatpush1.msra.mxu0 %v2493
    %2692 = vmatprep.subr.mxu0 %v2486
    %2693 = vmatpush1.msra.mxu0 %v2485
    %2694 = vmatprep.subr.mxu0 %v2478
    %2695 = vmatpush1.msra.mxu0 %v2477
    %2696 = vmatprep.subr.mxu0 %v2470
    %2697 = vmatpush1.msra.mxu0 %v2469
    %2698 = vmatprep.subr.mxu0 %v2462
    %2699 = vmatpush1.msra.mxu0 %v2461
    %2700 = vmatprep.subr.mxu0 %v2454
    %2701 = vmatpush1.msra.mxu0 %v2453
    %2702 = vmatprep.subr.mxu0 %v2446
    %2703 = vmatpush1.msra.mxu0 %v2445
    %2704 = vmatprep.subr.mxu0 %v2438
    %2705 = vmatpush1.msra.mxu0 %v2437
    %2706 = vmatprep.subr.mxu0 %v2430
    %2707 = vmatpush1.msra.mxu0 %v2429
    %2708 = vmatprep.subr.mxu0 %v2422
    %2709 = vmatpush1.msra.mxu0 %v2421
    %2710 = vmatprep.subr.mxu0 %v2414
    %2711 = vmatpush1.msra.mxu0 %v2413
    %2712 = vmatprep.subr.mxu0 %v2662
    %2713 = vmatpush2.msra.mxu0 %v2661
    %2714 = vmatprep.subr.mxu0 %v2654
    %2715 = vmatpush2.msra.mxu0 %v2653
    %2716 = vmatprep.subr.mxu0 %v2646
    %2717 = vmatpush2.msra.mxu0 %v2645
    %2718 = vmatprep.subr.mxu0 %v2638
    %2719 = vmatpush2.msra.mxu0 %v2637
    %2720 = vmatprep.subr.mxu0 %v2630
    %2721 = vmatpush2.msra.mxu0 %v2629
    %2722 = vmatprep.subr.mxu0 %v2622
    %2723 = vmatpush2.msra.mxu0 %v2621
    %2724 = vmatprep.subr.mxu0 %v2614
    %2725 = vmatpush2.msra.mxu0 %v2613
    %2726 = vmatprep.subr.mxu0 %v2606
    %2727 = vmatpush2.msra.mxu0 %v2605
    %2728 = vmatprep.subr.mxu0 %v2598
    %2729 = vmatpush2.msra.mxu0 %v2597
    %2730 = vmatprep.subr.mxu0 %v2590
    %2731 = vmatpush2.msra.mxu0 %v2589
    %2732 = vmatprep.subr.mxu0 %v2582
    %2733 = vmatpush2.msra.mxu0 %v2581
    %2734 = vmatprep.subr.mxu0 %v2574
    %2735 = vmatpush2.msra.mxu0 %v2573
    %2736 = vmatprep.subr.mxu0 %v2566
    %2737 = vmatpush2.msra.mxu0 %v2565
    %2738 = vmatprep.subr.mxu0 %v2558
    %2739 = vmatpush2.msra.mxu0 %v2557
    %2740 = vmatprep.subr.mxu0 %v2550
    %2741 = vmatpush2.msra.mxu0 %v2549
    %2742 = vmatprep.subr.mxu0 %v2542
    %2743 = vmatpush2.msra.mxu0 %v2541
    %2744 = vmatprep.mubr.f32.mxu0 %v2677
    %2745 = vmatmul.mubr.f32.gmra.mxu0 %v2673
    %v2746 = vpop.f32.mrf.mxu0
    %v2747 = vadd.f32 0.0, %v2746
    %v2748 = vpop.f32.mrf.mxu0
    %v2749 = vadd.f32 0.0, %v2748
    %2750 = vdwg.mxu0
    %2751 = vmatprep.subr.mxu0 %v2536
    %2752 = vmatpush1.msra.mxu0 %v2535
    %2753 = vmatprep.subr.mxu0 %v2528
    %2754 = vmatpush1.msra.mxu0 %v2527
    %2755 = vmatprep.subr.mxu0 %v2520
    %2756 = vmatpush1.msra.mxu0 %v2519
    %2757 = vmatprep.subr.mxu0 %v2512
    %2758 = vmatpush1.msra.mxu0 %v2511
    %2759 = vmatprep.subr.mxu0 %v2504
    %2760 = vmatpush1.msra.mxu0 %v2503
    %2761 = vmatprep.subr.mxu0 %v2496
    %2762 = vmatpush1.msra.mxu0 %v2495
    %2763 = vmatprep.subr.mxu0 %v2488
    %2764 = vmatpush1.msra.mxu0 %v2487
    %2765 = vmatprep.subr.mxu0 %v2480
    %2766 = vmatpush1.msra.mxu0 %v2479
    %2767 = vmatprep.subr.mxu0 %v2472
    %2768 = vmatpush1.msra.mxu0 %v2471
    %2769 = vmatprep.subr.mxu0 %v2464
    %2770 = vmatpush1.msra.mxu0 %v2463
    %2771 = vmatprep.subr.mxu0 %v2456
    %2772 = vmatpush1.msra.mxu0 %v2455
    %2773 = vmatprep.subr.mxu0 %v2448
    %2774 = vmatpush1.msra.mxu0 %v2447
    %2775 = vmatprep.subr.mxu0 %v2440
    %2776 = vmatpush1.msra.mxu0 %v2439
    %2777 = vmatprep.subr.mxu0 %v2432
    %2778 = vmatpush1.msra.mxu0 %v2431
    %2779 = vmatprep.subr.mxu0 %v2424
    %2780 = vmatpush1.msra.mxu0 %v2423
    %2781 = vmatprep.subr.mxu0 %v2416
    %2782 = vmatpush1.msra.mxu0 %v2415
    %2783 = vmatprep.subr.mxu0 %v2664
    %2784 = vmatpush2.msra.mxu0 %v2663
    %2785 = vmatprep.subr.mxu0 %v2656
    %2786 = vmatpush2.msra.mxu0 %v2655
    %2787 = vmatprep.subr.mxu0 %v2648
    %2788 = vmatpush2.msra.mxu0 %v2647
    %2789 = vmatprep.subr.mxu0 %v2640
    %2790 = vmatpush2.msra.mxu0 %v2639
    %2791 = vmatprep.subr.mxu0 %v2632
    %2792 = vmatpush2.msra.mxu0 %v2631
    %2793 = vmatprep.subr.mxu0 %v2624
    %2794 = vmatpush2.msra.mxu0 %v2623
    %2795 = vmatprep.subr.mxu0 %v2616
    %2796 = vmatpush2.msra.mxu0 %v2615
    %2797 = vmatprep.subr.mxu0 %v2608
    %2798 = vmatpush2.msra.mxu0 %v2607
    %2799 = vmatprep.subr.mxu0 %v2600
    %2800 = vmatpush2.msra.mxu0 %v2599
    %2801 = vmatprep.subr.mxu0 %v2592
    %2802 = vmatpush2.msra.mxu0 %v2591
    %2803 = vmatprep.subr.mxu0 %v2584
    %2804 = vmatpush2.msra.mxu0 %v2583
    %2805 = vmatprep.subr.mxu0 %v2576
    %2806 = vmatpush2.msra.mxu0 %v2575
    %2807 = vmatprep.subr.mxu0 %v2568
    %2808 = vmatpush2.msra.mxu0 %v2567
    %2809 = vmatprep.subr.mxu0 %v2560
    %2810 = vmatpush2.msra.mxu0 %v2559
    %2811 = vmatprep.subr.mxu0 %v2552
    %2812 = vmatpush2.msra.mxu0 %v2551
    %2813 = vmatprep.subr.mxu0 %v2544
    %2814 = vmatpush2.msra.mxu0 %v2543
    %2815 = vmatprep.mubr.f32.mxu0 %v2677
    %2816 = vmatmul.mubr.f32.gmra.mxu0 %v2673
    %v2817 = vpop.f32.mrf.mxu0
    %v2818 = vadd.f32 0.0, %v2817
    %v2819 = vpop.f32.mrf.mxu0
    %v2820 = vadd.f32 0.0, %v2819
    %2821 = vdwg.mxu0
    %2822 = vmatprep.subr.mxu0 %v2538
    %2823 = vmatpush1.msra.mxu0 %v2537
    %2824 = vmatprep.subr.mxu0 %v2530
    %2825 = vmatpush1.msra.mxu0 %v2529
    %2826 = vmatprep.subr.mxu0 %v2522
    %2827 = vmatpush1.msra.mxu0 %v2521
    %2828 = vmatprep.subr.mxu0 %v2514
    %2829 = vmatpush1.msra.mxu0 %v2513
    %2830 = vmatprep.subr.mxu0 %v2506
    %2831 = vmatpush1.msra.mxu0 %v2505
    %2832 = vmatprep.subr.mxu0 %v2498
    %2833 = vmatpush1.msra.mxu0 %v2497
    %2834 = vmatprep.subr.mxu0 %v2490
    %2835 = vmatpush1.msra.mxu0 %v2489
    %2836 = vmatprep.subr.mxu0 %v2482
    %2837 = vmatpush1.msra.mxu0 %v2481
    %2838 = vmatprep.subr.mxu0 %v2474
    %2839 = vmatpush1.msra.mxu0 %v2473
    %2840 = vmatprep.subr.mxu0 %v2466
    %2841 = vmatpush1.msra.mxu0 %v2465
    %2842 = vmatprep.subr.mxu0 %v2458
    %2843 = vmatpush1.msra.mxu0 %v2457
    %2844 = vmatprep.subr.mxu0 %v2450
    %2845 = vmatpush1.msra.mxu0 %v2449
    %2846 = vmatprep.subr.mxu0 %v2442
    %2847 = vmatpush1.msra.mxu0 %v2441
    %2848 = vmatprep.subr.mxu0 %v2434
    %2849 = vmatpush1.msra.mxu0 %v2433
    %2850 = vmatprep.subr.mxu0 %v2426
    %2851 = vmatpush1.msra.mxu0 %v2425
    %2852 = vmatprep.subr.mxu0 %v2418
    %2853 = vmatpush1.msra.mxu0 %v2417
    %2854 = vmatprep.subr.mxu0 %v2666
    %2855 = vmatpush2.msra.mxu0 %v2665
    %2856 = vmatprep.subr.mxu0 %v2658
    %2857 = vmatpush2.msra.mxu0 %v2657
    %2858 = vmatprep.subr.mxu0 %v2650
    %2859 = vmatpush2.msra.mxu0 %v2649
    %2860 = vmatprep.subr.mxu0 %v2642
    %2861 = vmatpush2.msra.mxu0 %v2641
    %2862 = vmatprep.subr.mxu0 %v2634
    %2863 = vmatpush2.msra.mxu0 %v2633
    %2864 = vmatprep.subr.mxu0 %v2626
    %2865 = vmatpush2.msra.mxu0 %v2625
    %2866 = vmatprep.subr.mxu0 %v2618
    %2867 = vmatpush2.msra.mxu0 %v2617
    %2868 = vmatprep.subr.mxu0 %v2610
    %2869 = vmatpush2.msra.mxu0 %v2609
    %2870 = vmatprep.subr.mxu0 %v2602
    %2871 = vmatpush2.msra.mxu0 %v2601
    %2872 = vmatprep.subr.mxu0 %v2594
    %2873 = vmatpush2.msra.mxu0 %v2593
    %2874 = vmatprep.subr.mxu0 %v2586
    %2875 = vmatpush2.msra.mxu0 %v2585
    %2876 = vmatprep.subr.mxu0 %v2578
    %2877 = vmatpush2.msra.mxu0 %v2577
    %2878 = vmatprep.subr.mxu0 %v2570
    %2879 = vmatpush2.msra.mxu0 %v2569
    %2880 = vmatprep.subr.mxu0 %v2562
    %2881 = vmatpush2.msra.mxu0 %v2561
    %2882 = vmatprep.subr.mxu0 %v2554
    %2883 = vmatpush2.msra.mxu0 %v2553
    %2884 = vmatprep.subr.mxu0 %v2546
    %2885 = vmatpush2.msra.mxu0 %v2545
    %2886 = vmatprep.mubr.f32.mxu0 %v2677
    %2887 = vmatmul.mubr.f32.gmra.mxu0 %v2673
    %v2888 = vpop.f32.mrf.mxu0
    %v2889 = vadd.f32 0.0, %v2888
    %v2890 = vpop.f32.mrf.mxu0
    %v2891 = vadd.f32 0.0, %v2890
    %2892 = vdwg.mxu0
    %2893 = vmatprep.subr.mxu0 %v2540
    %2894 = vmatpush1.msra.mxu0 %v2539
    %2895 = vmatprep.subr.mxu0 %v2532
    %2896 = vmatpush1.msra.mxu0 %v2531
    %2897 = vmatprep.subr.mxu0 %v2524
    %2898 = vmatpush1.msra.mxu0 %v2523
    %2899 = vmatprep.subr.mxu0 %v2516
    %2900 = vmatpush1.msra.mxu0 %v2515
    %2901 = vmatprep.subr.mxu0 %v2508
    %2902 = vmatpush1.msra.mxu0 %v2507
    %2903 = vmatprep.subr.mxu0 %v2500
    %2904 = vmatpush1.msra.mxu0 %v2499
    %2905 = vmatprep.subr.mxu0 %v2492
    %2906 = vmatpush1.msra.mxu0 %v2491
    %2907 = vmatprep.subr.mxu0 %v2484
    %2908 = vmatpush1.msra.mxu0 %v2483
    %2909 = vmatprep.subr.mxu0 %v2476
    %2910 = vmatpush1.msra.mxu0 %v2475
    %2911 = vmatprep.subr.mxu0 %v2468
    %2912 = vmatpush1.msra.mxu0 %v2467
    %2913 = vmatprep.subr.mxu0 %v2460
    %2914 = vmatpush1.msra.mxu0 %v2459
    %2915 = vmatprep.subr.mxu0 %v2452
    %2916 = vmatpush1.msra.mxu0 %v2451
    %2917 = vmatprep.subr.mxu0 %v2444
    %2918 = vmatpush1.msra.mxu0 %v2443
    %2919 = vmatprep.subr.mxu0 %v2436
    %2920 = vmatpush1.msra.mxu0 %v2435
    %2921 = vmatprep.subr.mxu0 %v2428
    %2922 = vmatpush1.msra.mxu0 %v2427
    %2923 = vmatprep.subr.mxu0 %v2420
    %2924 = vmatpush1.msra.mxu0 %v2419
    %2925 = vmatprep.subr.mxu0 %v2668
    %2926 = vmatpush2.msra.mxu0 %v2667
    %2927 = vmatprep.subr.mxu0 %v2660
    %2928 = vmatpush2.msra.mxu0 %v2659
    %2929 = vmatprep.subr.mxu0 %v2652
    %2930 = vmatpush2.msra.mxu0 %v2651
    %2931 = vmatprep.subr.mxu0 %v2644
    %2932 = vmatpush2.msra.mxu0 %v2643
    %2933 = vmatprep.subr.mxu0 %v2636
    %2934 = vmatpush2.msra.mxu0 %v2635
    %2935 = vmatprep.subr.mxu0 %v2628
    %2936 = vmatpush2.msra.mxu0 %v2627
    %2937 = vmatprep.subr.mxu0 %v2620
    %2938 = vmatpush2.msra.mxu0 %v2619
    %2939 = vmatprep.subr.mxu0 %v2612
    %2940 = vmatpush2.msra.mxu0 %v2611
    %2941 = vmatprep.subr.mxu0 %v2604
    %2942 = vmatpush2.msra.mxu0 %v2603
    %2943 = vmatprep.subr.mxu0 %v2596
    %2944 = vmatpush2.msra.mxu0 %v2595
    %2945 = vmatprep.subr.mxu0 %v2588
    %2946 = vmatpush2.msra.mxu0 %v2587
    %2947 = vmatprep.subr.mxu0 %v2580
    %2948 = vmatpush2.msra.mxu0 %v2579
    %2949 = vmatprep.subr.mxu0 %v2572
    %2950 = vmatpush2.msra.mxu0 %v2571
    %2951 = vmatprep.subr.mxu0 %v2564
    %2952 = vmatpush2.msra.mxu0 %v2563
    %2953 = vmatprep.subr.mxu0 %v2556
    %2954 = vmatpush2.msra.mxu0 %v2555
    %2955 = vmatprep.subr.mxu0 %v2548
    %2956 = vmatpush2.msra.mxu0 %v2547
    %2957 = vmatprep.mubr.f32.mxu0 %v2677
    %2958 = vmatmul.mubr.f32.gmra.mxu0 %v2673
    %v2959 = vpop.f32.mrf.mxu0
    %v2960 = vadd.f32 0.0, %v2959
    %v2961 = vpop.f32.mrf.mxu0
    %v2962 = vadd.f32 0.0, %v2961
    %2963 = vdwg.mxu0
    %v2972 = vcombine.low %v2747, %v2749
    %v2973 = vcombine.low %v2818, %v2820
    %v2974 = vcombine.low %v2889, %v2891
    %v2975 = vcombine.low %v2960, %v2962
    %v2977 = vunpack.c.l.s4 1966171168
    %v2978 = vunpack.c.0.s8 %v2977
    %v2979 = vlaneseq
    %v2980 = vshrl.u32 %v2979, 7
    %v2981 = vsub.s32 %v2978, %v2980
    %v2982 = vrot.slane %v2972, %v2981
    %v2984 = vunpack.c.l.s4 1966171168
    %v2985 = vunpack.c.0.s8 %v2984
    %v2986 = vlaneseq
    %v2987 = vshrl.u32 %v2986, 7
    %v2988 = vsub.s32 %v2985, %v2987
    %v2989 = vrot.slane %v2973, %v2988
    %v2991 = vunpack.c.l.s4 1966171168
    %v2992 = vunpack.c.0.s8 %v2991
    %v2993 = vlaneseq
    %v2994 = vshrl.u32 %v2993, 7
    %v2995 = vsub.s32 %v2992, %v2994
    %v2996 = vrot.slane %v2974, %v2995
    %v2998 = vunpack.c.l.s4 1966171168
    %v2999 = vunpack.c.0.s8 %v2998
    %v3000 = vlaneseq
    %v3001 = vshrl.u32 %v3000, 7
    %v3002 = vsub.s32 %v2999, %v3001
    %v3003 = vrot.slane %v2975, %v3002
    %v3004 = vcombine.low %v2982, %v2989
    %v3005 = vcombine.low %v2996, %v3003
    %v3007 = vunpack.c.l.s4 1966171168
    %v3008 = vunpack.c.0.s8 %v3007
    %v3009 = vlaneseq
    %v3010 = vshrl.u32 %v3009, 7
    %v3011 = vsub.s32 %v3008, %v3010
    %v3012 = vrot.slane %v3004, %v3011
    %v3014 = vunpack.c.l.s4 1966171168
    %v3015 = vunpack.c.0.s8 %v3014
    %v3016 = vlaneseq
    %v3017 = vshrl.u32 %v3016, 7
    %v3018 = vsub.s32 %v3015, %v3017
    %v3019 = vrot.slane %v3005, %v3018
    %v3020 = vcombine.low %v3012, %v3019
    %v3022 = vadd.f32 %v2412, %v3020
    %v3023 = vxor.u32 %v3022, 2147483648
    %v3024 = vmul.f32 %v3023, 1.442695
    %v3025 = vpow.pop %v3024
    %v3026 = vadd.f32 %v3025, 1.0
    %v3027 = vrcp.pop %v3026
    %v3028 = vmul.f32 1.0, %v3027
    %v3030 = vrot.slane %v3022, 2
    %v3032 = vxor.u32 %v3030, 2147483648
    %v3033 = vmul.f32 %v3032, 1.442695
    %v3034 = vpow.pop %v3033
    %v3035 = vadd.f32 %v3034, 1.0
    %v3036 = vrcp.pop %v3035
    %v3037 = vmul.f32 1.0, %v3036
    %v3038 = vrot.slane %v3022, 4
    %v3040 = vtanh.pop %v3038
    %v3041 = vrot.slane %v3022, 6
    %v3043 = vxor.u32 %v3041, 2147483648
    %v3044 = vmul.f32 %v3043, 1.442695
    %v3045 = vpow.pop %v3044
    %v3046 = vadd.f32 %v3045, 1.0
    %v3047 = vrcp.pop %v3046
    %v3048 = vmul.f32 1.0, %v3047
    %v3049 = vmul.f32 %v3037, %v2403
    %v3050 = vmul.f32 %v3028, %v3040
    %v3051 = vadd.f32 %v3049, %v3050
    %v3052 = vtanh.pop %v3051
    %v3053 = vmul.f32 %v3048, %v3052
    %s3054 = scalar_lea.vmem [#allocation11], 2
    %3055 = vst.msk [vmem:[%s3054] ss:$8 sm:$0x3] %vm64, %v3053
    %3056 = vst.msk [vmem:[%s3054] ss:$8 sm:$0x0] %vm64, %v3053
    %s3057 = scalar_lea.vmem [#allocation4], 3
    %v3058 = vld [vmem:[%s3057] ss:$8 sm:$0xf]
    %v3059 = vld [vmem:[%s3057] ss:$8 sm:$0xf0]
    %v3060 = vor.u32 %v3058, %v3059
    %v3061 = vld [vmem:[%s7] sm:$0xff]
    %v3062 = vld [vmem:[%s7 + $0x8] sm:$0xff]
    %v3063 = vld [vmem:[%s7 + $0x10] sm:$0xff]
    %v3064 = vld [vmem:[%s7 + $0x18] sm:$0xff]
    %v3065 = vld [vmem:[%s7 + $0x20] sm:$0xff]
    %v3066 = vld [vmem:[%s7 + $0x28] sm:$0xff]
    %v3067 = vld [vmem:[%s7 + $0x30] sm:$0xff]
    %v3068 = vld [vmem:[%s7 + $0x38] sm:$0xff]
    %v3069 = vld [vmem:[%s7 + $0x40] sm:$0xff]
    %v3070 = vld [vmem:[%s7 + $0x48] sm:$0xff]
    %v3071 = vld [vmem:[%s7 + $0x50] sm:$0xff]
    %v3072 = vld [vmem:[%s7 + $0x58] sm:$0xff]
    %v3073 = vld [vmem:[%s7 + $0x60] sm:$0xff]
    %v3074 = vld [vmem:[%s7 + $0x68] sm:$0xff]
    %v3075 = vld [vmem:[%s7 + $0x70] sm:$0xff]
    %v3076 = vld [vmem:[%s7 + $0x78] sm:$0xff]
    %v3077 = vld [vmem:[%s7 + $0x80] sm:$0xff]
    %v3078 = vld [vmem:[%s7 + $0x88] sm:$0xff]
    %v3079 = vld [vmem:[%s7 + $0x90] sm:$0xff]
    %v3080 = vld [vmem:[%s7 + $0x98] sm:$0xff]
    %v3081 = vld [vmem:[%s7 + $0xa0] sm:$0xff]
    %v3082 = vld [vmem:[%s7 + $0xa8] sm:$0xff]
    %v3083 = vld [vmem:[%s7 + $0xb0] sm:$0xff]
    %v3084 = vld [vmem:[%s7 + $0xb8] sm:$0xff]
    %v3085 = vld [vmem:[%s7 + $0xc0] sm:$0xff]
    %v3086 = vld [vmem:[%s7 + $0xc8] sm:$0xff]
    %v3087 = vld [vmem:[%s7 + $0xd0] sm:$0xff]
    %v3088 = vld [vmem:[%s7 + $0xd8] sm:$0xff]
    %v3089 = vld [vmem:[%s7 + $0xe0] sm:$0xff]
    %v3090 = vld [vmem:[%s7 + $0xe8] sm:$0xff]
    %v3091 = vld [vmem:[%s7 + $0xf0] sm:$0xff]
    %v3092 = vld [vmem:[%s7 + $0xf8] sm:$0xff]
    %v3093 = vld [vmem:[%s7 + $0x100] sm:$0xff]
    %v3094 = vld [vmem:[%s7 + $0x108] sm:$0xff]
    %v3095 = vld [vmem:[%s7 + $0x110] sm:$0xff]
    %v3096 = vld [vmem:[%s7 + $0x118] sm:$0xff]
    %v3097 = vld [vmem:[%s7 + $0x120] sm:$0xff]
    %v3098 = vld [vmem:[%s7 + $0x128] sm:$0xff]
    %v3099 = vld [vmem:[%s7 + $0x130] sm:$0xff]
    %v3100 = vld [vmem:[%s7 + $0x138] sm:$0xff]
    %v3101 = vld [vmem:[%s7 + $0x140] sm:$0xff]
    %v3102 = vld [vmem:[%s7 + $0x148] sm:$0xff]
    %v3103 = vld [vmem:[%s7 + $0x150] sm:$0xff]
    %v3104 = vld [vmem:[%s7 + $0x158] sm:$0xff]
    %v3105 = vld [vmem:[%s7 + $0x160] sm:$0xff]
    %v3106 = vld [vmem:[%s7 + $0x168] sm:$0xff]
    %v3107 = vld [vmem:[%s7 + $0x170] sm:$0xff]
    %v3108 = vld [vmem:[%s7 + $0x178] sm:$0xff]
    %v3109 = vld [vmem:[%s7 + $0x180] sm:$0xff]
    %v3110 = vld [vmem:[%s7 + $0x188] sm:$0xff]
    %v3111 = vld [vmem:[%s7 + $0x190] sm:$0xff]
    %v3112 = vld [vmem:[%s7 + $0x198] sm:$0xff]
    %v3113 = vld [vmem:[%s7 + $0x1a0] sm:$0xff]
    %v3114 = vld [vmem:[%s7 + $0x1a8] sm:$0xff]
    %v3115 = vld [vmem:[%s7 + $0x1b0] sm:$0xff]
    %v3116 = vld [vmem:[%s7 + $0x1b8] sm:$0xff]
    %v3117 = vld [vmem:[%s7 + $0x1c0] sm:$0xff]
    %v3118 = vld [vmem:[%s7 + $0x1c8] sm:$0xff]
    %v3119 = vld [vmem:[%s7 + $0x1d0] sm:$0xff]
    %v3120 = vld [vmem:[%s7 + $0x1d8] sm:$0xff]
    %v3121 = vld [vmem:[%s7 + $0x1e0] sm:$0xff]
    %v3122 = vld [vmem:[%s7 + $0x1e8] sm:$0xff]
    %v3123 = vld [vmem:[%s7 + $0x1f0] sm:$0xff]
    %v3124 = vld [vmem:[%s7 + $0x1f8] sm:$0xff]
    %v3125 = vld [vmem:[%s7 + $0x200] sm:$0xff]
    %v3126 = vld [vmem:[%s7 + $0x208] sm:$0xff]
    %v3127 = vld [vmem:[%s7 + $0x210] sm:$0xff]
    %v3128 = vld [vmem:[%s7 + $0x218] sm:$0xff]
    %v3129 = vld [vmem:[%s7 + $0x220] sm:$0xff]
    %v3130 = vld [vmem:[%s7 + $0x228] sm:$0xff]
    %v3131 = vld [vmem:[%s7 + $0x230] sm:$0xff]
    %v3132 = vld [vmem:[%s7 + $0x238] sm:$0xff]
    %v3133 = vld [vmem:[%s7 + $0x240] sm:$0xff]
    %v3134 = vld [vmem:[%s7 + $0x248] sm:$0xff]
    %v3135 = vld [vmem:[%s7 + $0x250] sm:$0xff]
    %v3136 = vld [vmem:[%s7 + $0x258] sm:$0xff]
    %v3137 = vld [vmem:[%s7 + $0x260] sm:$0xff]
    %v3138 = vld [vmem:[%s7 + $0x268] sm:$0xff]
    %v3139 = vld [vmem:[%s7 + $0x270] sm:$0xff]
    %v3140 = vld [vmem:[%s7 + $0x278] sm:$0xff]
    %v3141 = vld [vmem:[%s7 + $0x280] sm:$0xff]
    %v3142 = vld [vmem:[%s7 + $0x288] sm:$0xff]
    %v3143 = vld [vmem:[%s7 + $0x290] sm:$0xff]
    %v3144 = vld [vmem:[%s7 + $0x298] sm:$0xff]
    %v3145 = vld [vmem:[%s7 + $0x2a0] sm:$0xff]
    %v3146 = vld [vmem:[%s7 + $0x2a8] sm:$0xff]
    %v3147 = vld [vmem:[%s7 + $0x2b0] sm:$0xff]
    %v3148 = vld [vmem:[%s7 + $0x2b8] sm:$0xff]
    %v3149 = vld [vmem:[%s7 + $0x2c0] sm:$0xff]
    %v3150 = vld [vmem:[%s7 + $0x2c8] sm:$0xff]
    %v3151 = vld [vmem:[%s7 + $0x2d0] sm:$0xff]
    %v3152 = vld [vmem:[%s7 + $0x2d8] sm:$0xff]
    %v3153 = vld [vmem:[%s7 + $0x2e0] sm:$0xff]
    %v3154 = vld [vmem:[%s7 + $0x2e8] sm:$0xff]
    %v3155 = vld [vmem:[%s7 + $0x2f0] sm:$0xff]
    %v3156 = vld [vmem:[%s7 + $0x2f8] sm:$0xff]
    %v3157 = vld [vmem:[%s7 + $0x300] sm:$0xff]
    %v3158 = vld [vmem:[%s7 + $0x308] sm:$0xff]
    %v3159 = vld [vmem:[%s7 + $0x310] sm:$0xff]
    %v3160 = vld [vmem:[%s7 + $0x318] sm:$0xff]
    %v3161 = vld [vmem:[%s7 + $0x320] sm:$0xff]
    %v3162 = vld [vmem:[%s7 + $0x328] sm:$0xff]
    %v3163 = vld [vmem:[%s7 + $0x330] sm:$0xff]
    %v3164 = vld [vmem:[%s7 + $0x338] sm:$0xff]
    %v3165 = vld [vmem:[%s7 + $0x340] sm:$0xff]
    %v3166 = vld [vmem:[%s7 + $0x348] sm:$0xff]
    %v3167 = vld [vmem:[%s7 + $0x350] sm:$0xff]
    %v3168 = vld [vmem:[%s7 + $0x358] sm:$0xff]
    %v3169 = vld [vmem:[%s7 + $0x360] sm:$0xff]
    %v3170 = vld [vmem:[%s7 + $0x368] sm:$0xff]
    %v3171 = vld [vmem:[%s7 + $0x370] sm:$0xff]
    %v3172 = vld [vmem:[%s7 + $0x378] sm:$0xff]
    %v3173 = vld [vmem:[%s7 + $0x380] sm:$0xff]
    %v3174 = vld [vmem:[%s7 + $0x388] sm:$0xff]
    %v3175 = vld [vmem:[%s7 + $0x390] sm:$0xff]
    %v3176 = vld [vmem:[%s7 + $0x398] sm:$0xff]
    %v3177 = vld [vmem:[%s7 + $0x3a0] sm:$0xff]
    %v3178 = vld [vmem:[%s7 + $0x3a8] sm:$0xff]
    %v3179 = vld [vmem:[%s7 + $0x3b0] sm:$0xff]
    %v3180 = vld [vmem:[%s7 + $0x3b8] sm:$0xff]
    %v3181 = vld [vmem:[%s7 + $0x3c0] sm:$0xff]
    %v3182 = vld [vmem:[%s7 + $0x3c8] sm:$0xff]
    %v3183 = vld [vmem:[%s7 + $0x3d0] sm:$0xff]
    %v3184 = vld [vmem:[%s7 + $0x3d8] sm:$0xff]
    %v3185 = vld [vmem:[%s7 + $0x3e0] sm:$0xff]
    %v3186 = vld [vmem:[%s7 + $0x3e8] sm:$0xff]
    %v3187 = vld [vmem:[%s7 + $0x3f0] sm:$0xff]
    %v3188 = vld [vmem:[%s7 + $0x3f8] sm:$0xff]
    %v3189 = vld [vmem:[%s7 + $0x400] sm:$0xff]
    %v3190 = vld [vmem:[%s7 + $0x408] sm:$0xff]
    %v3191 = vld [vmem:[%s7 + $0x410] sm:$0xff]
    %v3192 = vld [vmem:[%s7 + $0x418] sm:$0xff]
    %v3193 = vld [vmem:[%s7 + $0x420] sm:$0xff]
    %v3194 = vld [vmem:[%s7 + $0x428] sm:$0xff]
    %v3195 = vld [vmem:[%s7 + $0x430] sm:$0xff]
    %v3196 = vld [vmem:[%s7 + $0x438] sm:$0xff]
    %v3197 = vld [vmem:[%s7 + $0x440] sm:$0xff]
    %v3198 = vld [vmem:[%s7 + $0x448] sm:$0xff]
    %v3199 = vld [vmem:[%s7 + $0x450] sm:$0xff]
    %v3200 = vld [vmem:[%s7 + $0x458] sm:$0xff]
    %v3201 = vld [vmem:[%s7 + $0x460] sm:$0xff]
    %v3202 = vld [vmem:[%s7 + $0x468] sm:$0xff]
    %v3203 = vld [vmem:[%s7 + $0x470] sm:$0xff]
    %v3204 = vld [vmem:[%s7 + $0x478] sm:$0xff]
    %v3205 = vld [vmem:[%s7 + $0x480] sm:$0xff]
    %v3206 = vld [vmem:[%s7 + $0x488] sm:$0xff]
    %v3207 = vld [vmem:[%s7 + $0x490] sm:$0xff]
    %v3208 = vld [vmem:[%s7 + $0x498] sm:$0xff]
    %v3209 = vld [vmem:[%s7 + $0x4a0] sm:$0xff]
    %v3210 = vld [vmem:[%s7 + $0x4a8] sm:$0xff]
    %v3211 = vld [vmem:[%s7 + $0x4b0] sm:$0xff]
    %v3212 = vld [vmem:[%s7 + $0x4b8] sm:$0xff]
    %v3213 = vld [vmem:[%s7 + $0x4c0] sm:$0xff]
    %v3214 = vld [vmem:[%s7 + $0x4c8] sm:$0xff]
    %v3215 = vld [vmem:[%s7 + $0x4d0] sm:$0xff]
    %v3216 = vld [vmem:[%s7 + $0x4d8] sm:$0xff]
    %v3217 = vld [vmem:[%s7 + $0x4e0] sm:$0xff]
    %v3218 = vld [vmem:[%s7 + $0x4e8] sm:$0xff]
    %v3219 = vld [vmem:[%s7 + $0x4f0] sm:$0xff]
    %v3220 = vld [vmem:[%s7 + $0x4f8] sm:$0xff]
    %v3221 = vld [vmem:[%s7 + $0x500] sm:$0xff]
    %v3222 = vld [vmem:[%s7 + $0x508] sm:$0xff]
    %v3223 = vld [vmem:[%s7 + $0x510] sm:$0xff]
    %v3224 = vld [vmem:[%s7 + $0x518] sm:$0xff]
    %v3225 = vld [vmem:[%s7 + $0x520] sm:$0xff]
    %v3226 = vld [vmem:[%s7 + $0x528] sm:$0xff]
    %v3227 = vld [vmem:[%s7 + $0x530] sm:$0xff]
    %v3228 = vld [vmem:[%s7 + $0x538] sm:$0xff]
    %v3229 = vld [vmem:[%s7 + $0x540] sm:$0xff]
    %v3230 = vld [vmem:[%s7 + $0x548] sm:$0xff]
    %v3231 = vld [vmem:[%s7 + $0x550] sm:$0xff]
    %v3232 = vld [vmem:[%s7 + $0x558] sm:$0xff]
    %v3233 = vld [vmem:[%s7 + $0x560] sm:$0xff]
    %v3234 = vld [vmem:[%s7 + $0x568] sm:$0xff]
    %v3235 = vld [vmem:[%s7 + $0x570] sm:$0xff]
    %v3236 = vld [vmem:[%s7 + $0x578] sm:$0xff]
    %v3237 = vld [vmem:[%s7 + $0x580] sm:$0xff]
    %v3238 = vld [vmem:[%s7 + $0x588] sm:$0xff]
    %v3239 = vld [vmem:[%s7 + $0x590] sm:$0xff]
    %v3240 = vld [vmem:[%s7 + $0x598] sm:$0xff]
    %v3241 = vld [vmem:[%s7 + $0x5a0] sm:$0xff]
    %v3242 = vld [vmem:[%s7 + $0x5a8] sm:$0xff]
    %v3243 = vld [vmem:[%s7 + $0x5b0] sm:$0xff]
    %v3244 = vld [vmem:[%s7 + $0x5b8] sm:$0xff]
    %v3245 = vld [vmem:[%s7 + $0x5c0] sm:$0xff]
    %v3246 = vld [vmem:[%s7 + $0x5c8] sm:$0xff]
    %v3247 = vld [vmem:[%s7 + $0x5d0] sm:$0xff]
    %v3248 = vld [vmem:[%s7 + $0x5d8] sm:$0xff]
    %v3249 = vld [vmem:[%s7 + $0x5e0] sm:$0xff]
    %v3250 = vld [vmem:[%s7 + $0x5e8] sm:$0xff]
    %v3251 = vld [vmem:[%s7 + $0x5f0] sm:$0xff]
    %v3252 = vld [vmem:[%s7 + $0x5f8] sm:$0xff]
    %v3253 = vld [vmem:[%s7 + $0x600] sm:$0xff]
    %v3254 = vld [vmem:[%s7 + $0x608] sm:$0xff]
    %v3255 = vld [vmem:[%s7 + $0x610] sm:$0xff]
    %v3256 = vld [vmem:[%s7 + $0x618] sm:$0xff]
    %v3257 = vld [vmem:[%s7 + $0x620] sm:$0xff]
    %v3258 = vld [vmem:[%s7 + $0x628] sm:$0xff]
    %v3259 = vld [vmem:[%s7 + $0x630] sm:$0xff]
    %v3260 = vld [vmem:[%s7 + $0x638] sm:$0xff]
    %v3261 = vld [vmem:[%s7 + $0x640] sm:$0xff]
    %v3262 = vld [vmem:[%s7 + $0x648] sm:$0xff]
    %v3263 = vld [vmem:[%s7 + $0x650] sm:$0xff]
    %v3264 = vld [vmem:[%s7 + $0x658] sm:$0xff]
    %v3265 = vld [vmem:[%s7 + $0x660] sm:$0xff]
    %v3266 = vld [vmem:[%s7 + $0x668] sm:$0xff]
    %v3267 = vld [vmem:[%s7 + $0x670] sm:$0xff]
    %v3268 = vld [vmem:[%s7 + $0x678] sm:$0xff]
    %v3269 = vld [vmem:[%s7 + $0x680] sm:$0xff]
    %v3270 = vld [vmem:[%s7 + $0x688] sm:$0xff]
    %v3271 = vld [vmem:[%s7 + $0x690] sm:$0xff]
    %v3272 = vld [vmem:[%s7 + $0x698] sm:$0xff]
    %v3273 = vld [vmem:[%s7 + $0x6a0] sm:$0xff]
    %v3274 = vld [vmem:[%s7 + $0x6a8] sm:$0xff]
    %v3275 = vld [vmem:[%s7 + $0x6b0] sm:$0xff]
    %v3276 = vld [vmem:[%s7 + $0x6b8] sm:$0xff]
    %v3277 = vld [vmem:[%s7 + $0x6c0] sm:$0xff]
    %v3278 = vld [vmem:[%s7 + $0x6c8] sm:$0xff]
    %v3279 = vld [vmem:[%s7 + $0x6d0] sm:$0xff]
    %v3280 = vld [vmem:[%s7 + $0x6d8] sm:$0xff]
    %v3281 = vld [vmem:[%s7 + $0x6e0] sm:$0xff]
    %v3282 = vld [vmem:[%s7 + $0x6e8] sm:$0xff]
    %v3283 = vld [vmem:[%s7 + $0x6f0] sm:$0xff]
    %v3284 = vld [vmem:[%s7 + $0x6f8] sm:$0xff]
    %v3285 = vld [vmem:[%s7 + $0x700] sm:$0xff]
    %v3286 = vld [vmem:[%s7 + $0x708] sm:$0xff]
    %v3287 = vld [vmem:[%s7 + $0x710] sm:$0xff]
    %v3288 = vld [vmem:[%s7 + $0x718] sm:$0xff]
    %v3289 = vld [vmem:[%s7 + $0x720] sm:$0xff]
    %v3290 = vld [vmem:[%s7 + $0x728] sm:$0xff]
    %v3291 = vld [vmem:[%s7 + $0x730] sm:$0xff]
    %v3292 = vld [vmem:[%s7 + $0x738] sm:$0xff]
    %v3293 = vld [vmem:[%s7 + $0x740] sm:$0xff]
    %v3294 = vld [vmem:[%s7 + $0x748] sm:$0xff]
    %v3295 = vld [vmem:[%s7 + $0x750] sm:$0xff]
    %v3296 = vld [vmem:[%s7 + $0x758] sm:$0xff]
    %v3297 = vld [vmem:[%s7 + $0x760] sm:$0xff]
    %v3298 = vld [vmem:[%s7 + $0x768] sm:$0xff]
    %v3299 = vld [vmem:[%s7 + $0x770] sm:$0xff]
    %v3300 = vld [vmem:[%s7 + $0x778] sm:$0xff]
    %v3301 = vld [vmem:[%s7 + $0x780] sm:$0xff]
    %v3302 = vld [vmem:[%s7 + $0x788] sm:$0xff]
    %v3303 = vld [vmem:[%s7 + $0x790] sm:$0xff]
    %v3304 = vld [vmem:[%s7 + $0x798] sm:$0xff]
    %v3305 = vld [vmem:[%s7 + $0x7a0] sm:$0xff]
    %v3306 = vld [vmem:[%s7 + $0x7a8] sm:$0xff]
    %v3307 = vld [vmem:[%s7 + $0x7b0] sm:$0xff]
    %v3308 = vld [vmem:[%s7 + $0x7b8] sm:$0xff]
    %v3309 = vld [vmem:[%s7 + $0x7c0] sm:$0xff]
    %v3310 = vld [vmem:[%s7 + $0x7c8] sm:$0xff]
    %v3311 = vld [vmem:[%s7 + $0x7d0] sm:$0xff]
    %v3312 = vld [vmem:[%s7 + $0x7d8] sm:$0xff]
    %v3313 = vld [vmem:[%s7 + $0x7e0] sm:$0xff]
    %v3314 = vld [vmem:[%s7 + $0x7e8] sm:$0xff]
    %v3315 = vld [vmem:[%s7 + $0x7f0] sm:$0xff]
    %v3316 = vld [vmem:[%s7 + $0x7f8] sm:$0xff]
    %v3318 = vlaneseq
    %v3319 = vshrl.u32 %v3318, 7
    %v3320 = vsub.s32 0, %v3319
    %v3321 = vrot.slane %v3053, %v3320
    %v3322 = vlaneseq
    %v3323 = vshrl.u32 %v3322, 7
    %v3324 = vsub.s32 1, %v3323
    %v3325 = vrot.slane %v3053, %v3324
    %3328 = vmatprep.subr.mxu0 %v3182
    %3329 = vmatpush1.msra.mxu0 %v3181
    %3330 = vmatprep.subr.mxu0 %v3174
    %3331 = vmatpush1.msra.mxu0 %v3173
    %3332 = vmatprep.subr.mxu0 %v3166
    %3333 = vmatpush1.msra.mxu0 %v3165
    %3334 = vmatprep.subr.mxu0 %v3158
    %3335 = vmatpush1.msra.mxu0 %v3157
    %3336 = vmatprep.subr.mxu0 %v3150
    %3337 = vmatpush1.msra.mxu0 %v3149
    %3338 = vmatprep.subr.mxu0 %v3142
    %3339 = vmatpush1.msra.mxu0 %v3141
    %3340 = vmatprep.subr.mxu0 %v3134
    %3341 = vmatpush1.msra.mxu0 %v3133
    %3342 = vmatprep.subr.mxu0 %v3126
    %3343 = vmatpush1.msra.mxu0 %v3125
    %3344 = vmatprep.subr.mxu0 %v3118
    %3345 = vmatpush1.msra.mxu0 %v3117
    %3346 = vmatprep.subr.mxu0 %v3110
    %3347 = vmatpush1.msra.mxu0 %v3109
    %3348 = vmatprep.subr.mxu0 %v3102
    %3349 = vmatpush1.msra.mxu0 %v3101
    %3350 = vmatprep.subr.mxu0 %v3094
    %3351 = vmatpush1.msra.mxu0 %v3093
    %3352 = vmatprep.subr.mxu0 %v3086
    %3353 = vmatpush1.msra.mxu0 %v3085
    %3354 = vmatprep.subr.mxu0 %v3078
    %3355 = vmatpush1.msra.mxu0 %v3077
    %3356 = vmatprep.subr.mxu0 %v3070
    %3357 = vmatpush1.msra.mxu0 %v3069
    %3358 = vmatprep.subr.mxu0 %v3062
    %3359 = vmatpush1.msra.mxu0 %v3061
    %3360 = vmatprep.subr.mxu0 %v3310
    %3361 = vmatpush2.msra.mxu0 %v3309
    %3362 = vmatprep.subr.mxu0 %v3302
    %3363 = vmatpush2.msra.mxu0 %v3301
    %3364 = vmatprep.subr.mxu0 %v3294
    %3365 = vmatpush2.msra.mxu0 %v3293
    %3366 = vmatprep.subr.mxu0 %v3286
    %3367 = vmatpush2.msra.mxu0 %v3285
    %3368 = vmatprep.subr.mxu0 %v3278
    %3369 = vmatpush2.msra.mxu0 %v3277
    %3370 = vmatprep.subr.mxu0 %v3270
    %3371 = vmatpush2.msra.mxu0 %v3269
    %3372 = vmatprep.subr.mxu0 %v3262
    %3373 = vmatpush2.msra.mxu0 %v3261
    %3374 = vmatprep.subr.mxu0 %v3254
    %3375 = vmatpush2.msra.mxu0 %v3253
    %3376 = vmatprep.subr.mxu0 %v3246
    %3377 = vmatpush2.msra.mxu0 %v3245
    %3378 = vmatprep.subr.mxu0 %v3238
    %3379 = vmatpush2.msra.mxu0 %v3237
    %3380 = vmatprep.subr.mxu0 %v3230
    %3381 = vmatpush2.msra.mxu0 %v3229
    %3382 = vmatprep.subr.mxu0 %v3222
    %3383 = vmatpush2.msra.mxu0 %v3221
    %3384 = vmatprep.subr.mxu0 %v3214
    %3385 = vmatpush2.msra.mxu0 %v3213
    %3386 = vmatprep.subr.mxu0 %v3206
    %3387 = vmatpush2.msra.mxu0 %v3205
    %3388 = vmatprep.subr.mxu0 %v3198
    %3389 = vmatpush2.msra.mxu0 %v3197
    %3390 = vmatprep.subr.mxu0 %v3190
    %3391 = vmatpush2.msra.mxu0 %v3189
    %3392 = vmatprep.mubr.f32.mxu0 %v3325
    %3393 = vmatmul.mubr.f32.gmra.mxu0 %v3321
    %v3394 = vpop.f32.mrf.mxu0
    %v3395 = vadd.f32 0.0, %v3394
    %v3396 = vpop.f32.mrf.mxu0
    %v3397 = vadd.f32 0.0, %v3396
    %3398 = vdwg.mxu0
    %3399 = vmatprep.subr.mxu0 %v3184
    %3400 = vmatpush1.msra.mxu0 %v3183
    %3401 = vmatprep.subr.mxu0 %v3176
    %3402 = vmatpush1.msra.mxu0 %v3175
    %3403 = vmatprep.subr.mxu0 %v3168
    %3404 = vmatpush1.msra.mxu0 %v3167
    %3405 = vmatprep.subr.mxu0 %v3160
    %3406 = vmatpush1.msra.mxu0 %v3159
    %3407 = vmatprep.subr.mxu0 %v3152
    %3408 = vmatpush1.msra.mxu0 %v3151
    %3409 = vmatprep.subr.mxu0 %v3144
    %3410 = vmatpush1.msra.mxu0 %v3143
    %3411 = vmatprep.subr.mxu0 %v3136
    %3412 = vmatpush1.msra.mxu0 %v3135
    %3413 = vmatprep.subr.mxu0 %v3128
    %3414 = vmatpush1.msra.mxu0 %v3127
    %3415 = vmatprep.subr.mxu0 %v3120
    %3416 = vmatpush1.msra.mxu0 %v3119
    %3417 = vmatprep.subr.mxu0 %v3112
    %3418 = vmatpush1.msra.mxu0 %v3111
    %3419 = vmatprep.subr.mxu0 %v3104
    %3420 = vmatpush1.msra.mxu0 %v3103
    %3421 = vmatprep.subr.mxu0 %v3096
    %3422 = vmatpush1.msra.mxu0 %v3095
    %3423 = vmatprep.subr.mxu0 %v3088
    %3424 = vmatpush1.msra.mxu0 %v3087
    %3425 = vmatprep.subr.mxu0 %v3080
    %3426 = vmatpush1.msra.mxu0 %v3079
    %3427 = vmatprep.subr.mxu0 %v3072
    %3428 = vmatpush1.msra.mxu0 %v3071
    %3429 = vmatprep.subr.mxu0 %v3064
    %3430 = vmatpush1.msra.mxu0 %v3063
    %3431 = vmatprep.subr.mxu0 %v3312
    %3432 = vmatpush2.msra.mxu0 %v3311
    %3433 = vmatprep.subr.mxu0 %v3304
    %3434 = vmatpush2.msra.mxu0 %v3303
    %3435 = vmatprep.subr.mxu0 %v3296
    %3436 = vmatpush2.msra.mxu0 %v3295
    %3437 = vmatprep.subr.mxu0 %v3288
    %3438 = vmatpush2.msra.mxu0 %v3287
    %3439 = vmatprep.subr.mxu0 %v3280
    %3440 = vmatpush2.msra.mxu0 %v3279
    %3441 = vmatprep.subr.mxu0 %v3272
    %3442 = vmatpush2.msra.mxu0 %v3271
    %3443 = vmatprep.subr.mxu0 %v3264
    %3444 = vmatpush2.msra.mxu0 %v3263
    %3445 = vmatprep.subr.mxu0 %v3256
    %3446 = vmatpush2.msra.mxu0 %v3255
    %3447 = vmatprep.subr.mxu0 %v3248
    %3448 = vmatpush2.msra.mxu0 %v3247
    %3449 = vmatprep.subr.mxu0 %v3240
    %3450 = vmatpush2.msra.mxu0 %v3239
    %3451 = vmatprep.subr.mxu0 %v3232
    %3452 = vmatpush2.msra.mxu0 %v3231
    %3453 = vmatprep.subr.mxu0 %v3224
    %3454 = vmatpush2.msra.mxu0 %v3223
    %3455 = vmatprep.subr.mxu0 %v3216
    %3456 = vmatpush2.msra.mxu0 %v3215
    %3457 = vmatprep.subr.mxu0 %v3208
    %3458 = vmatpush2.msra.mxu0 %v3207
    %3459 = vmatprep.subr.mxu0 %v3200
    %3460 = vmatpush2.msra.mxu0 %v3199
    %3461 = vmatprep.subr.mxu0 %v3192
    %3462 = vmatpush2.msra.mxu0 %v3191
    %3463 = vmatprep.mubr.f32.mxu0 %v3325
    %3464 = vmatmul.mubr.f32.gmra.mxu0 %v3321
    %v3465 = vpop.f32.mrf.mxu0
    %v3466 = vadd.f32 0.0, %v3465
    %v3467 = vpop.f32.mrf.mxu0
    %v3468 = vadd.f32 0.0, %v3467
    %3469 = vdwg.mxu0
    %3470 = vmatprep.subr.mxu0 %v3186
    %3471 = vmatpush1.msra.mxu0 %v3185
    %3472 = vmatprep.subr.mxu0 %v3178
    %3473 = vmatpush1.msra.mxu0 %v3177
    %3474 = vmatprep.subr.mxu0 %v3170
    %3475 = vmatpush1.msra.mxu0 %v3169
    %3476 = vmatprep.subr.mxu0 %v3162
    %3477 = vmatpush1.msra.mxu0 %v3161
    %3478 = vmatprep.subr.mxu0 %v3154
    %3479 = vmatpush1.msra.mxu0 %v3153
    %3480 = vmatprep.subr.mxu0 %v3146
    %3481 = vmatpush1.msra.mxu0 %v3145
    %3482 = vmatprep.subr.mxu0 %v3138
    %3483 = vmatpush1.msra.mxu0 %v3137
    %3484 = vmatprep.subr.mxu0 %v3130
    %3485 = vmatpush1.msra.mxu0 %v3129
    %3486 = vmatprep.subr.mxu0 %v3122
    %3487 = vmatpush1.msra.mxu0 %v3121
    %3488 = vmatprep.subr.mxu0 %v3114
    %3489 = vmatpush1.msra.mxu0 %v3113
    %3490 = vmatprep.subr.mxu0 %v3106
    %3491 = vmatpush1.msra.mxu0 %v3105
    %3492 = vmatprep.subr.mxu0 %v3098
    %3493 = vmatpush1.msra.mxu0 %v3097
    %3494 = vmatprep.subr.mxu0 %v3090
    %3495 = vmatpush1.msra.mxu0 %v3089
    %3496 = vmatprep.subr.mxu0 %v3082
    %3497 = vmatpush1.msra.mxu0 %v3081
    %3498 = vmatprep.subr.mxu0 %v3074
    %3499 = vmatpush1.msra.mxu0 %v3073
    %3500 = vmatprep.subr.mxu0 %v3066
    %3501 = vmatpush1.msra.mxu0 %v3065
    %3502 = vmatprep.subr.mxu0 %v3314
    %3503 = vmatpush2.msra.mxu0 %v3313
    %3504 = vmatprep.subr.mxu0 %v3306
    %3505 = vmatpush2.msra.mxu0 %v3305
    %3506 = vmatprep.subr.mxu0 %v3298
    %3507 = vmatpush2.msra.mxu0 %v3297
    %3508 = vmatprep.subr.mxu0 %v3290
    %3509 = vmatpush2.msra.mxu0 %v3289
    %3510 = vmatprep.subr.mxu0 %v3282
    %3511 = vmatpush2.msra.mxu0 %v3281
    %3512 = vmatprep.subr.mxu0 %v3274
    %3513 = vmatpush2.msra.mxu0 %v3273
    %3514 = vmatprep.subr.mxu0 %v3266
    %3515 = vmatpush2.msra.mxu0 %v3265
    %3516 = vmatprep.subr.mxu0 %v3258
    %3517 = vmatpush2.msra.mxu0 %v3257
    %3518 = vmatprep.subr.mxu0 %v3250
    %3519 = vmatpush2.msra.mxu0 %v3249
    %3520 = vmatprep.subr.mxu0 %v3242
    %3521 = vmatpush2.msra.mxu0 %v3241
    %3522 = vmatprep.subr.mxu0 %v3234
    %3523 = vmatpush2.msra.mxu0 %v3233
    %3524 = vmatprep.subr.mxu0 %v3226
    %3525 = vmatpush2.msra.mxu0 %v3225
    %3526 = vmatprep.subr.mxu0 %v3218
    %3527 = vmatpush2.msra.mxu0 %v3217
    %3528 = vmatprep.subr.mxu0 %v3210
    %3529 = vmatpush2.msra.mxu0 %v3209
    %3530 = vmatprep.subr.mxu0 %v3202
    %3531 = vmatpush2.msra.mxu0 %v3201
    %3532 = vmatprep.subr.mxu0 %v3194
    %3533 = vmatpush2.msra.mxu0 %v3193
    %3534 = vmatprep.mubr.f32.mxu0 %v3325
    %3535 = vmatmul.mubr.f32.gmra.mxu0 %v3321
    %v3536 = vpop.f32.mrf.mxu0
    %v3537 = vadd.f32 0.0, %v3536
    %v3538 = vpop.f32.mrf.mxu0
    %v3539 = vadd.f32 0.0, %v3538
    %3540 = vdwg.mxu0
    %3541 = vmatprep.subr.mxu0 %v3188
    %3542 = vmatpush1.msra.mxu0 %v3187
    %3543 = vmatprep.subr.mxu0 %v3180
    %3544 = vmatpush1.msra.mxu0 %v3179
    %3545 = vmatprep.subr.mxu0 %v3172
    %3546 = vmatpush1.msra.mxu0 %v3171
    %3547 = vmatprep.subr.mxu0 %v3164
    %3548 = vmatpush1.msra.mxu0 %v3163
    %3549 = vmatprep.subr.mxu0 %v3156
    %3550 = vmatpush1.msra.mxu0 %v3155
    %3551 = vmatprep.subr.mxu0 %v3148
    %3552 = vmatpush1.msra.mxu0 %v3147
    %3553 = vmatprep.subr.mxu0 %v3140
    %3554 = vmatpush1.msra.mxu0 %v3139
    %3555 = vmatprep.subr.mxu0 %v3132
    %3556 = vmatpush1.msra.mxu0 %v3131
    %3557 = vmatprep.subr.mxu0 %v3124
    %3558 = vmatpush1.msra.mxu0 %v3123
    %3559 = vmatprep.subr.mxu0 %v3116
    %3560 = vmatpush1.msra.mxu0 %v3115
    %3561 = vmatprep.subr.mxu0 %v3108
    %3562 = vmatpush1.msra.mxu0 %v3107
    %3563 = vmatprep.subr.mxu0 %v3100
    %3564 = vmatpush1.msra.mxu0 %v3099
    %3565 = vmatprep.subr.mxu0 %v3092
    %3566 = vmatpush1.msra.mxu0 %v3091
    %3567 = vmatprep.subr.mxu0 %v3084
    %3568 = vmatpush1.msra.mxu0 %v3083
    %3569 = vmatprep.subr.mxu0 %v3076
    %3570 = vmatpush1.msra.mxu0 %v3075
    %3571 = vmatprep.subr.mxu0 %v3068
    %3572 = vmatpush1.msra.mxu0 %v3067
    %3573 = vmatprep.subr.mxu0 %v3316
    %3574 = vmatpush2.msra.mxu0 %v3315
    %3575 = vmatprep.subr.mxu0 %v3308
    %3576 = vmatpush2.msra.mxu0 %v3307
    %3577 = vmatprep.subr.mxu0 %v3300
    %3578 = vmatpush2.msra.mxu0 %v3299
    %3579 = vmatprep.subr.mxu0 %v3292
    %3580 = vmatpush2.msra.mxu0 %v3291
    %3581 = vmatprep.subr.mxu0 %v3284
    %3582 = vmatpush2.msra.mxu0 %v3283
    %3583 = vmatprep.subr.mxu0 %v3276
    %3584 = vmatpush2.msra.mxu0 %v3275
    %3585 = vmatprep.subr.mxu0 %v3268
    %3586 = vmatpush2.msra.mxu0 %v3267
    %3587 = vmatprep.subr.mxu0 %v3260
    %3588 = vmatpush2.msra.mxu0 %v3259
    %3589 = vmatprep.subr.mxu0 %v3252
    %3590 = vmatpush2.msra.mxu0 %v3251
    %3591 = vmatprep.subr.mxu0 %v3244
    %3592 = vmatpush2.msra.mxu0 %v3243
    %3593 = vmatprep.subr.mxu0 %v3236
    %3594 = vmatpush2.msra.mxu0 %v3235
    %3595 = vmatprep.subr.mxu0 %v3228
    %3596 = vmatpush2.msra.mxu0 %v3227
    %3597 = vmatprep.subr.mxu0 %v3220
    %3598 = vmatpush2.msra.mxu0 %v3219
    %3599 = vmatprep.subr.mxu0 %v3212
    %3600 = vmatpush2.msra.mxu0 %v3211
    %3601 = vmatprep.subr.mxu0 %v3204
    %3602 = vmatpush2.msra.mxu0 %v3203
    %3603 = vmatprep.subr.mxu0 %v3196
    %3604 = vmatpush2.msra.mxu0 %v3195
    %3605 = vmatprep.mubr.f32.mxu0 %v3325
    %3606 = vmatmul.mubr.f32.gmra.mxu0 %v3321
    %v3607 = vpop.f32.mrf.mxu0
    %v3608 = vadd.f32 0.0, %v3607
    %v3609 = vpop.f32.mrf.mxu0
    %v3610 = vadd.f32 0.0, %v3609
    %3611 = vdwg.mxu0
    %v3620 = vcombine.low %v3395, %v3397
    %v3621 = vcombine.low %v3466, %v3468
    %v3622 = vcombine.low %v3537, %v3539
    %v3623 = vcombine.low %v3608, %v3610
    %v3625 = vunpack.c.l.s4 1966171168
    %v3626 = vunpack.c.0.s8 %v3625
    %v3627 = vlaneseq
    %v3628 = vshrl.u32 %v3627, 7
    %v3629 = vsub.s32 %v3626, %v3628
    %v3630 = vrot.slane %v3620, %v3629
    %v3632 = vunpack.c.l.s4 1966171168
    %v3633 = vunpack.c.0.s8 %v3632
    %v3634 = vlaneseq
    %v3635 = vshrl.u32 %v3634, 7
    %v3636 = vsub.s32 %v3633, %v3635
    %v3637 = vrot.slane %v3621, %v3636
    %v3639 = vunpack.c.l.s4 1966171168
    %v3640 = vunpack.c.0.s8 %v3639
    %v3641 = vlaneseq
    %v3642 = vshrl.u32 %v3641, 7
    %v3643 = vsub.s32 %v3640, %v3642
    %v3644 = vrot.slane %v3622, %v3643
    %v3646 = vunpack.c.l.s4 1966171168
    %v3647 = vunpack.c.0.s8 %v3646
    %v3648 = vlaneseq
    %v3649 = vshrl.u32 %v3648, 7
    %v3650 = vsub.s32 %v3647, %v3649
    %v3651 = vrot.slane %v3623, %v3650
    %v3652 = vcombine.low %v3630, %v3637
    %v3653 = vcombine.low %v3644, %v3651
    %v3655 = vunpack.c.l.s4 1966171168
    %v3656 = vunpack.c.0.s8 %v3655
    %v3657 = vlaneseq
    %v3658 = vshrl.u32 %v3657, 7
    %v3659 = vsub.s32 %v3656, %v3658
    %v3660 = vrot.slane %v3652, %v3659
    %v3662 = vunpack.c.l.s4 1966171168
    %v3663 = vunpack.c.0.s8 %v3662
    %v3664 = vlaneseq
    %v3665 = vshrl.u32 %v3664, 7
    %v3666 = vsub.s32 %v3663, %v3665
    %v3667 = vrot.slane %v3653, %v3666
    %v3668 = vcombine.low %v3660, %v3667
    %v3670 = vadd.f32 %v3060, %v3668
    %v3671 = vxor.u32 %v3670, 2147483648
    %v3672 = vmul.f32 %v3671, 1.442695
    %v3673 = vpow.pop %v3672
    %v3674 = vadd.f32 %v3673, 1.0
    %v3675 = vrcp.pop %v3674
    %v3676 = vmul.f32 1.0, %v3675
    %v3678 = vrot.slane %v3670, 2
    %v3680 = vxor.u32 %v3678, 2147483648
    %v3681 = vmul.f32 %v3680, 1.442695
    %v3682 = vpow.pop %v3681
    %v3683 = vadd.f32 %v3682, 1.0
    %v3684 = vrcp.pop %v3683
    %v3685 = vmul.f32 1.0, %v3684
    %v3686 = vrot.slane %v3670, 4
    %v3688 = vtanh.pop %v3686
    %v3689 = vrot.slane %v3670, 6
    %v3691 = vxor.u32 %v3689, 2147483648
    %v3692 = vmul.f32 %v3691, 1.442695
    %v3693 = vpow.pop %v3692
    %v3694 = vadd.f32 %v3693, 1.0
    %v3695 = vrcp.pop %v3694
    %v3696 = vmul.f32 1.0, %v3695
    %v3697 = vmul.f32 %v3685, %v3051
    %v3698 = vmul.f32 %v3676, %v3688
    %v3699 = vadd.f32 %v3697, %v3698
    %v3700 = vtanh.pop %v3699
    %v3701 = vmul.f32 %v3696, %v3700
    %s3702 = scalar_lea.vmem [#allocation11], 3
    %3703 = vst.msk [vmem:[%s3702] ss:$8 sm:$0x3] %vm64, %v3701
    %3704 = vst.msk [vmem:[%s3702] ss:$8 sm:$0x0] %vm64, %v3701
    %s3705 = scalar_lea.vmem [#allocation4], 4
    %v3706 = vld [vmem:[%s3705] ss:$8 sm:$0xf]
    %v3707 = vld [vmem:[%s3705] ss:$8 sm:$0xf0]
    %v3708 = vor.u32 %v3706, %v3707
    %v3709 = vld [vmem:[%s7] sm:$0xff]
    %v3710 = vld [vmem:[%s7 + $0x8] sm:$0xff]
    %v3711 = vld [vmem:[%s7 + $0x10] sm:$0xff]
    %v3712 = vld [vmem:[%s7 + $0x18] sm:$0xff]
    %v3713 = vld [vmem:[%s7 + $0x20] sm:$0xff]
    %v3714 = vld [vmem:[%s7 + $0x28] sm:$0xff]
    %v3715 = vld [vmem:[%s7 + $0x30] sm:$0xff]
    %v3716 = vld [vmem:[%s7 + $0x38] sm:$0xff]
    %v3717 = vld [vmem:[%s7 + $0x40] sm:$0xff]
    %v3718 = vld [vmem:[%s7 + $0x48] sm:$0xff]
    %v3719 = vld [vmem:[%s7 + $0x50] sm:$0xff]
    %v3720 = vld [vmem:[%s7 + $0x58] sm:$0xff]
    %v3721 = vld [vmem:[%s7 + $0x60] sm:$0xff]
    %v3722 = vld [vmem:[%s7 + $0x68] sm:$0xff]
    %v3723 = vld [vmem:[%s7 + $0x70] sm:$0xff]
    %v3724 = vld [vmem:[%s7 + $0x78] sm:$0xff]
    %v3725 = vld [vmem:[%s7 + $0x80] sm:$0xff]
    %v3726 = vld [vmem:[%s7 + $0x88] sm:$0xff]
    %v3727 = vld [vmem:[%s7 + $0x90] sm:$0xff]
    %v3728 = vld [vmem:[%s7 + $0x98] sm:$0xff]
    %v3729 = vld [vmem:[%s7 + $0xa0] sm:$0xff]
    %v3730 = vld [vmem:[%s7 + $0xa8] sm:$0xff]
    %v3731 = vld [vmem:[%s7 + $0xb0] sm:$0xff]
    %v3732 = vld [vmem:[%s7 + $0xb8] sm:$0xff]
    %v3733 = vld [vmem:[%s7 + $0xc0] sm:$0xff]
    %v3734 = vld [vmem:[%s7 + $0xc8] sm:$0xff]
    %v3735 = vld [vmem:[%s7 + $0xd0] sm:$0xff]
    %v3736 = vld [vmem:[%s7 + $0xd8] sm:$0xff]
    %v3737 = vld [vmem:[%s7 + $0xe0] sm:$0xff]
    %v3738 = vld [vmem:[%s7 + $0xe8] sm:$0xff]
    %v3739 = vld [vmem:[%s7 + $0xf0] sm:$0xff]
    %v3740 = vld [vmem:[%s7 + $0xf8] sm:$0xff]
    %v3741 = vld [vmem:[%s7 + $0x100] sm:$0xff]
    %v3742 = vld [vmem:[%s7 + $0x108] sm:$0xff]
    %v3743 = vld [vmem:[%s7 + $0x110] sm:$0xff]
    %v3744 = vld [vmem:[%s7 + $0x118] sm:$0xff]
    %v3745 = vld [vmem:[%s7 + $0x120] sm:$0xff]
    %v3746 = vld [vmem:[%s7 + $0x128] sm:$0xff]
    %v3747 = vld [vmem:[%s7 + $0x130] sm:$0xff]
    %v3748 = vld [vmem:[%s7 + $0x138] sm:$0xff]
    %v3749 = vld [vmem:[%s7 + $0x140] sm:$0xff]
    %v3750 = vld [vmem:[%s7 + $0x148] sm:$0xff]
    %v3751 = vld [vmem:[%s7 + $0x150] sm:$0xff]
    %v3752 = vld [vmem:[%s7 + $0x158] sm:$0xff]
    %v3753 = vld [vmem:[%s7 + $0x160] sm:$0xff]
    %v3754 = vld [vmem:[%s7 + $0x168] sm:$0xff]
    %v3755 = vld [vmem:[%s7 + $0x170] sm:$0xff]
    %v3756 = vld [vmem:[%s7 + $0x178] sm:$0xff]
    %v3757 = vld [vmem:[%s7 + $0x180] sm:$0xff]
    %v3758 = vld [vmem:[%s7 + $0x188] sm:$0xff]
    %v3759 = vld [vmem:[%s7 + $0x190] sm:$0xff]
    %v3760 = vld [vmem:[%s7 + $0x198] sm:$0xff]
    %v3761 = vld [vmem:[%s7 + $0x1a0] sm:$0xff]
    %v3762 = vld [vmem:[%s7 + $0x1a8] sm:$0xff]
    %v3763 = vld [vmem:[%s7 + $0x1b0] sm:$0xff]
    %v3764 = vld [vmem:[%s7 + $0x1b8] sm:$0xff]
    %v3765 = vld [vmem:[%s7 + $0x1c0] sm:$0xff]
    %v3766 = vld [vmem:[%s7 + $0x1c8] sm:$0xff]
    %v3767 = vld [vmem:[%s7 + $0x1d0] sm:$0xff]
    %v3768 = vld [vmem:[%s7 + $0x1d8] sm:$0xff]
    %v3769 = vld [vmem:[%s7 + $0x1e0] sm:$0xff]
    %v3770 = vld [vmem:[%s7 + $0x1e8] sm:$0xff]
    %v3771 = vld [vmem:[%s7 + $0x1f0] sm:$0xff]
    %v3772 = vld [vmem:[%s7 + $0x1f8] sm:$0xff]
    %v3773 = vld [vmem:[%s7 + $0x200] sm:$0xff]
    %v3774 = vld [vmem:[%s7 + $0x208] sm:$0xff]
    %v3775 = vld [vmem:[%s7 + $0x210] sm:$0xff]
    %v3776 = vld [vmem:[%s7 + $0x218] sm:$0xff]
    %v3777 = vld [vmem:[%s7 + $0x220] sm:$0xff]
    %v3778 = vld [vmem:[%s7 + $0x228] sm:$0xff]
    %v3779 = vld [vmem:[%s7 + $0x230] sm:$0xff]
    %v3780 = vld [vmem:[%s7 + $0x238] sm:$0xff]
    %v3781 = vld [vmem:[%s7 + $0x240] sm:$0xff]
    %v3782 = vld [vmem:[%s7 + $0x248] sm:$0xff]
    %v3783 = vld [vmem:[%s7 + $0x250] sm:$0xff]
    %v3784 = vld [vmem:[%s7 + $0x258] sm:$0xff]
    %v3785 = vld [vmem:[%s7 + $0x260] sm:$0xff]
    %v3786 = vld [vmem:[%s7 + $0x268] sm:$0xff]
    %v3787 = vld [vmem:[%s7 + $0x270] sm:$0xff]
    %v3788 = vld [vmem:[%s7 + $0x278] sm:$0xff]
    %v3789 = vld [vmem:[%s7 + $0x280] sm:$0xff]
    %v3790 = vld [vmem:[%s7 + $0x288] sm:$0xff]
    %v3791 = vld [vmem:[%s7 + $0x290] sm:$0xff]
    %v3792 = vld [vmem:[%s7 + $0x298] sm:$0xff]
    %v3793 = vld [vmem:[%s7 + $0x2a0] sm:$0xff]
    %v3794 = vld [vmem:[%s7 + $0x2a8] sm:$0xff]
    %v3795 = vld [vmem:[%s7 + $0x2b0] sm:$0xff]
    %v3796 = vld [vmem:[%s7 + $0x2b8] sm:$0xff]
    %v3797 = vld [vmem:[%s7 + $0x2c0] sm:$0xff]
    %v3798 = vld [vmem:[%s7 + $0x2c8] sm:$0xff]
    %v3799 = vld [vmem:[%s7 + $0x2d0] sm:$0xff]
    %v3800 = vld [vmem:[%s7 + $0x2d8] sm:$0xff]
    %v3801 = vld [vmem:[%s7 + $0x2e0] sm:$0xff]
    %v3802 = vld [vmem:[%s7 + $0x2e8] sm:$0xff]
    %v3803 = vld [vmem:[%s7 + $0x2f0] sm:$0xff]
    %v3804 = vld [vmem:[%s7 + $0x2f8] sm:$0xff]
    %v3805 = vld [vmem:[%s7 + $0x300] sm:$0xff]
    %v3806 = vld [vmem:[%s7 + $0x308] sm:$0xff]
    %v3807 = vld [vmem:[%s7 + $0x310] sm:$0xff]
    %v3808 = vld [vmem:[%s7 + $0x318] sm:$0xff]
    %v3809 = vld [vmem:[%s7 + $0x320] sm:$0xff]
    %v3810 = vld [vmem:[%s7 + $0x328] sm:$0xff]
    %v3811 = vld [vmem:[%s7 + $0x330] sm:$0xff]
    %v3812 = vld [vmem:[%s7 + $0x338] sm:$0xff]
    %v3813 = vld [vmem:[%s7 + $0x340] sm:$0xff]
    %v3814 = vld [vmem:[%s7 + $0x348] sm:$0xff]
    %v3815 = vld [vmem:[%s7 + $0x350] sm:$0xff]
    %v3816 = vld [vmem:[%s7 + $0x358] sm:$0xff]
    %v3817 = vld [vmem:[%s7 + $0x360] sm:$0xff]
    %v3818 = vld [vmem:[%s7 + $0x368] sm:$0xff]
    %v3819 = vld [vmem:[%s7 + $0x370] sm:$0xff]
    %v3820 = vld [vmem:[%s7 + $0x378] sm:$0xff]
    %v3821 = vld [vmem:[%s7 + $0x380] sm:$0xff]
    %v3822 = vld [vmem:[%s7 + $0x388] sm:$0xff]
    %v3823 = vld [vmem:[%s7 + $0x390] sm:$0xff]
    %v3824 = vld [vmem:[%s7 + $0x398] sm:$0xff]
    %v3825 = vld [vmem:[%s7 + $0x3a0] sm:$0xff]
    %v3826 = vld [vmem:[%s7 + $0x3a8] sm:$0xff]
    %v3827 = vld [vmem:[%s7 + $0x3b0] sm:$0xff]
    %v3828 = vld [vmem:[%s7 + $0x3b8] sm:$0xff]
    %v3829 = vld [vmem:[%s7 + $0x3c0] sm:$0xff]
    %v3830 = vld [vmem:[%s7 + $0x3c8] sm:$0xff]
    %v3831 = vld [vmem:[%s7 + $0x3d0] sm:$0xff]
    %v3832 = vld [vmem:[%s7 + $0x3d8] sm:$0xff]
    %v3833 = vld [vmem:[%s7 + $0x3e0] sm:$0xff]
    %v3834 = vld [vmem:[%s7 + $0x3e8] sm:$0xff]
    %v3835 = vld [vmem:[%s7 + $0x3f0] sm:$0xff]
    %v3836 = vld [vmem:[%s7 + $0x3f8] sm:$0xff]
    %v3837 = vld [vmem:[%s7 + $0x400] sm:$0xff]
    %v3838 = vld [vmem:[%s7 + $0x408] sm:$0xff]
    %v3839 = vld [vmem:[%s7 + $0x410] sm:$0xff]
    %v3840 = vld [vmem:[%s7 + $0x418] sm:$0xff]
    %v3841 = vld [vmem:[%s7 + $0x420] sm:$0xff]
    %v3842 = vld [vmem:[%s7 + $0x428] sm:$0xff]
    %v3843 = vld [vmem:[%s7 + $0x430] sm:$0xff]
    %v3844 = vld [vmem:[%s7 + $0x438] sm:$0xff]
    %v3845 = vld [vmem:[%s7 + $0x440] sm:$0xff]
    %v3846 = vld [vmem:[%s7 + $0x448] sm:$0xff]
    %v3847 = vld [vmem:[%s7 + $0x450] sm:$0xff]
    %v3848 = vld [vmem:[%s7 + $0x458] sm:$0xff]
    %v3849 = vld [vmem:[%s7 + $0x460] sm:$0xff]
    %v3850 = vld [vmem:[%s7 + $0x468] sm:$0xff]
    %v3851 = vld [vmem:[%s7 + $0x470] sm:$0xff]
    %v3852 = vld [vmem:[%s7 + $0x478] sm:$0xff]
    %v3853 = vld [vmem:[%s7 + $0x480] sm:$0xff]
    %v3854 = vld [vmem:[%s7 + $0x488] sm:$0xff]
    %v3855 = vld [vmem:[%s7 + $0x490] sm:$0xff]
    %v3856 = vld [vmem:[%s7 + $0x498] sm:$0xff]
    %v3857 = vld [vmem:[%s7 + $0x4a0] sm:$0xff]
    %v3858 = vld [vmem:[%s7 + $0x4a8] sm:$0xff]
    %v3859 = vld [vmem:[%s7 + $0x4b0] sm:$0xff]
    %v3860 = vld [vmem:[%s7 + $0x4b8] sm:$0xff]
    %v3861 = vld [vmem:[%s7 + $0x4c0] sm:$0xff]
    %v3862 = vld [vmem:[%s7 + $0x4c8] sm:$0xff]
    %v3863 = vld [vmem:[%s7 + $0x4d0] sm:$0xff]
    %v3864 = vld [vmem:[%s7 + $0x4d8] sm:$0xff]
    %v3865 = vld [vmem:[%s7 + $0x4e0] sm:$0xff]
    %v3866 = vld [vmem:[%s7 + $0x4e8] sm:$0xff]
    %v3867 = vld [vmem:[%s7 + $0x4f0] sm:$0xff]
    %v3868 = vld [vmem:[%s7 + $0x4f8] sm:$0xff]
    %v3869 = vld [vmem:[%s7 + $0x500] sm:$0xff]
    %v3870 = vld [vmem:[%s7 + $0x508] sm:$0xff]
    %v3871 = vld [vmem:[%s7 + $0x510] sm:$0xff]
    %v3872 = vld [vmem:[%s7 + $0x518] sm:$0xff]
    %v3873 = vld [vmem:[%s7 + $0x520] sm:$0xff]
    %v3874 = vld [vmem:[%s7 + $0x528] sm:$0xff]
    %v3875 = vld [vmem:[%s7 + $0x530] sm:$0xff]
    %v3876 = vld [vmem:[%s7 + $0x538] sm:$0xff]
    %v3877 = vld [vmem:[%s7 + $0x540] sm:$0xff]
    %v3878 = vld [vmem:[%s7 + $0x548] sm:$0xff]
    %v3879 = vld [vmem:[%s7 + $0x550] sm:$0xff]
    %v3880 = vld [vmem:[%s7 + $0x558] sm:$0xff]
    %v3881 = vld [vmem:[%s7 + $0x560] sm:$0xff]
    %v3882 = vld [vmem:[%s7 + $0x568] sm:$0xff]
    %v3883 = vld [vmem:[%s7 + $0x570] sm:$0xff]
    %v3884 = vld [vmem:[%s7 + $0x578] sm:$0xff]
    %v3885 = vld [vmem:[%s7 + $0x580] sm:$0xff]
    %v3886 = vld [vmem:[%s7 + $0x588] sm:$0xff]
    %v3887 = vld [vmem:[%s7 + $0x590] sm:$0xff]
    %v3888 = vld [vmem:[%s7 + $0x598] sm:$0xff]
    %v3889 = vld [vmem:[%s7 + $0x5a0] sm:$0xff]
    %v3890 = vld [vmem:[%s7 + $0x5a8] sm:$0xff]
    %v3891 = vld [vmem:[%s7 + $0x5b0] sm:$0xff]
    %v3892 = vld [vmem:[%s7 + $0x5b8] sm:$0xff]
    %v3893 = vld [vmem:[%s7 + $0x5c0] sm:$0xff]
    %v3894 = vld [vmem:[%s7 + $0x5c8] sm:$0xff]
    %v3895 = vld [vmem:[%s7 + $0x5d0] sm:$0xff]
    %v3896 = vld [vmem:[%s7 + $0x5d8] sm:$0xff]
    %v3897 = vld [vmem:[%s7 + $0x5e0] sm:$0xff]
    %v3898 = vld [vmem:[%s7 + $0x5e8] sm:$0xff]
    %v3899 = vld [vmem:[%s7 + $0x5f0] sm:$0xff]
    %v3900 = vld [vmem:[%s7 + $0x5f8] sm:$0xff]
    %v3901 = vld [vmem:[%s7 + $0x600] sm:$0xff]
    %v3902 = vld [vmem:[%s7 + $0x608] sm:$0xff]
    %v3903 = vld [vmem:[%s7 + $0x610] sm:$0xff]
    %v3904 = vld [vmem:[%s7 + $0x618] sm:$0xff]
    %v3905 = vld [vmem:[%s7 + $0x620] sm:$0xff]
    %v3906 = vld [vmem:[%s7 + $0x628] sm:$0xff]
    %v3907 = vld [vmem:[%s7 + $0x630] sm:$0xff]
    %v3908 = vld [vmem:[%s7 + $0x638] sm:$0xff]
    %v3909 = vld [vmem:[%s7 + $0x640] sm:$0xff]
    %v3910 = vld [vmem:[%s7 + $0x648] sm:$0xff]
    %v3911 = vld [vmem:[%s7 + $0x650] sm:$0xff]
    %v3912 = vld [vmem:[%s7 + $0x658] sm:$0xff]
    %v3913 = vld [vmem:[%s7 + $0x660] sm:$0xff]
    %v3914 = vld [vmem:[%s7 + $0x668] sm:$0xff]
    %v3915 = vld [vmem:[%s7 + $0x670] sm:$0xff]
    %v3916 = vld [vmem:[%s7 + $0x678] sm:$0xff]
    %v3917 = vld [vmem:[%s7 + $0x680] sm:$0xff]
    %v3918 = vld [vmem:[%s7 + $0x688] sm:$0xff]
    %v3919 = vld [vmem:[%s7 + $0x690] sm:$0xff]
    %v3920 = vld [vmem:[%s7 + $0x698] sm:$0xff]
    %v3921 = vld [vmem:[%s7 + $0x6a0] sm:$0xff]
    %v3922 = vld [vmem:[%s7 + $0x6a8] sm:$0xff]
    %v3923 = vld [vmem:[%s7 + $0x6b0] sm:$0xff]
    %v3924 = vld [vmem:[%s7 + $0x6b8] sm:$0xff]
    %v3925 = vld [vmem:[%s7 + $0x6c0] sm:$0xff]
    %v3926 = vld [vmem:[%s7 + $0x6c8] sm:$0xff]
    %v3927 = vld [vmem:[%s7 + $0x6d0] sm:$0xff]
    %v3928 = vld [vmem:[%s7 + $0x6d8] sm:$0xff]
    %v3929 = vld [vmem:[%s7 + $0x6e0] sm:$0xff]
    %v3930 = vld [vmem:[%s7 + $0x6e8] sm:$0xff]
    %v3931 = vld [vmem:[%s7 + $0x6f0] sm:$0xff]
    %v3932 = vld [vmem:[%s7 + $0x6f8] sm:$0xff]
    %v3933 = vld [vmem:[%s7 + $0x700] sm:$0xff]
    %v3934 = vld [vmem:[%s7 + $0x708] sm:$0xff]
    %v3935 = vld [vmem:[%s7 + $0x710] sm:$0xff]
    %v3936 = vld [vmem:[%s7 + $0x718] sm:$0xff]
    %v3937 = vld [vmem:[%s7 + $0x720] sm:$0xff]
    %v3938 = vld [vmem:[%s7 + $0x728] sm:$0xff]
    %v3939 = vld [vmem:[%s7 + $0x730] sm:$0xff]
    %v3940 = vld [vmem:[%s7 + $0x738] sm:$0xff]
    %v3941 = vld [vmem:[%s7 + $0x740] sm:$0xff]
    %v3942 = vld [vmem:[%s7 + $0x748] sm:$0xff]
    %v3943 = vld [vmem:[%s7 + $0x750] sm:$0xff]
    %v3944 = vld [vmem:[%s7 + $0x758] sm:$0xff]
    %v3945 = vld [vmem:[%s7 + $0x760] sm:$0xff]
    %v3946 = vld [vmem:[%s7 + $0x768] sm:$0xff]
    %v3947 = vld [vmem:[%s7 + $0x770] sm:$0xff]
    %v3948 = vld [vmem:[%s7 + $0x778] sm:$0xff]
    %v3949 = vld [vmem:[%s7 + $0x780] sm:$0xff]
    %v3950 = vld [vmem:[%s7 + $0x788] sm:$0xff]
    %v3951 = vld [vmem:[%s7 + $0x790] sm:$0xff]
    %v3952 = vld [vmem:[%s7 + $0x798] sm:$0xff]
    %v3953 = vld [vmem:[%s7 + $0x7a0] sm:$0xff]
    %v3954 = vld [vmem:[%s7 + $0x7a8] sm:$0xff]
    %v3955 = vld [vmem:[%s7 + $0x7b0] sm:$0xff]
    %v3956 = vld [vmem:[%s7 + $0x7b8] sm:$0xff]
    %v3957 = vld [vmem:[%s7 + $0x7c0] sm:$0xff]
    %v3958 = vld [vmem:[%s7 + $0x7c8] sm:$0xff]
    %v3959 = vld [vmem:[%s7 + $0x7d0] sm:$0xff]
    %v3960 = vld [vmem:[%s7 + $0x7d8] sm:$0xff]
    %v3961 = vld [vmem:[%s7 + $0x7e0] sm:$0xff]
    %v3962 = vld [vmem:[%s7 + $0x7e8] sm:$0xff]
    %v3963 = vld [vmem:[%s7 + $0x7f0] sm:$0xff]
    %v3964 = vld [vmem:[%s7 + $0x7f8] sm:$0xff]
    %v3966 = vlaneseq
    %v3967 = vshrl.u32 %v3966, 7
    %v3968 = vsub.s32 0, %v3967
    %v3969 = vrot.slane %v3701, %v3968
    %v3970 = vlaneseq
    %v3971 = vshrl.u32 %v3970, 7
    %v3972 = vsub.s32 1, %v3971
    %v3973 = vrot.slane %v3701, %v3972
    %3976 = vmatprep.subr.mxu0 %v3830
    %3977 = vmatpush1.msra.mxu0 %v3829
    %3978 = vmatprep.subr.mxu0 %v3822
    %3979 = vmatpush1.msra.mxu0 %v3821
    %3980 = vmatprep.subr.mxu0 %v3814
    %3981 = vmatpush1.msra.mxu0 %v3813
    %3982 = vmatprep.subr.mxu0 %v3806
    %3983 = vmatpush1.msra.mxu0 %v3805
    %3984 = vmatprep.subr.mxu0 %v3798
    %3985 = vmatpush1.msra.mxu0 %v3797
    %3986 = vmatprep.subr.mxu0 %v3790
    %3987 = vmatpush1.msra.mxu0 %v3789
    %3988 = vmatprep.subr.mxu0 %v3782
    %3989 = vmatpush1.msra.mxu0 %v3781
    %3990 = vmatprep.subr.mxu0 %v3774
    %3991 = vmatpush1.msra.mxu0 %v3773
    %3992 = vmatprep.subr.mxu0 %v3766
    %3993 = vmatpush1.msra.mxu0 %v3765
    %3994 = vmatprep.subr.mxu0 %v3758
    %3995 = vmatpush1.msra.mxu0 %v3757
    %3996 = vmatprep.subr.mxu0 %v3750
    %3997 = vmatpush1.msra.mxu0 %v3749
    %3998 = vmatprep.subr.mxu0 %v3742
    %3999 = vmatpush1.msra.mxu0 %v3741
    %4000 = vmatprep.subr.mxu0 %v3734
    %4001 = vmatpush1.msra.mxu0 %v3733
    %4002 = vmatprep.subr.mxu0 %v3726
    %4003 = vmatpush1.msra.mxu0 %v3725
    %4004 = vmatprep.subr.mxu0 %v3718
    %4005 = vmatpush1.msra.mxu0 %v3717
    %4006 = vmatprep.subr.mxu0 %v3710
    %4007 = vmatpush1.msra.mxu0 %v3709
    %4008 = vmatprep.subr.mxu0 %v3958
    %4009 = vmatpush2.msra.mxu0 %v3957
    %4010 = vmatprep.subr.mxu0 %v3950
    %4011 = vmatpush2.msra.mxu0 %v3949
    %4012 = vmatprep.subr.mxu0 %v3942
    %4013 = vmatpush2.msra.mxu0 %v3941
    %4014 = vmatprep.subr.mxu0 %v3934
    %4015 = vmatpush2.msra.mxu0 %v3933
    %4016 = vmatprep.subr.mxu0 %v3926
    %4017 = vmatpush2.msra.mxu0 %v3925
    %4018 = vmatprep.subr.mxu0 %v3918
    %4019 = vmatpush2.msra.mxu0 %v3917
    %4020 = vmatprep.subr.mxu0 %v3910
    %4021 = vmatpush2.msra.mxu0 %v3909
    %4022 = vmatprep.subr.mxu0 %v3902
    %4023 = vmatpush2.msra.mxu0 %v3901
    %4024 = vmatprep.subr.mxu0 %v3894
    %4025 = vmatpush2.msra.mxu0 %v3893
    %4026 = vmatprep.subr.mxu0 %v3886
    %4027 = vmatpush2.msra.mxu0 %v3885
    %4028 = vmatprep.subr.mxu0 %v3878
    %4029 = vmatpush2.msra.mxu0 %v3877
    %4030 = vmatprep.subr.mxu0 %v3870
    %4031 = vmatpush2.msra.mxu0 %v3869
    %4032 = vmatprep.subr.mxu0 %v3862
    %4033 = vmatpush2.msra.mxu0 %v3861
    %4034 = vmatprep.subr.mxu0 %v3854
    %4035 = vmatpush2.msra.mxu0 %v3853
    %4036 = vmatprep.subr.mxu0 %v3846
    %4037 = vmatpush2.msra.mxu0 %v3845
    %4038 = vmatprep.subr.mxu0 %v3838
    %4039 = vmatpush2.msra.mxu0 %v3837
    %4040 = vmatprep.mubr.f32.mxu0 %v3973
    %4041 = vmatmul.mubr.f32.gmra.mxu0 %v3969
    %v4042 = vpop.f32.mrf.mxu0
    %v4043 = vadd.f32 0.0, %v4042
    %v4044 = vpop.f32.mrf.mxu0
    %v4045 = vadd.f32 0.0, %v4044
    %4046 = vdwg.mxu0
    %4047 = vmatprep.subr.mxu0 %v3832
    %4048 = vmatpush1.msra.mxu0 %v3831
    %4049 = vmatprep.subr.mxu0 %v3824
    %4050 = vmatpush1.msra.mxu0 %v3823
    %4051 = vmatprep.subr.mxu0 %v3816
    %4052 = vmatpush1.msra.mxu0 %v3815
    %4053 = vmatprep.subr.mxu0 %v3808
    %4054 = vmatpush1.msra.mxu0 %v3807
    %4055 = vmatprep.subr.mxu0 %v3800
    %4056 = vmatpush1.msra.mxu0 %v3799
    %4057 = vmatprep.subr.mxu0 %v3792
    %4058 = vmatpush1.msra.mxu0 %v3791
    %4059 = vmatprep.subr.mxu0 %v3784
    %4060 = vmatpush1.msra.mxu0 %v3783
    %4061 = vmatprep.subr.mxu0 %v3776
    %4062 = vmatpush1.msra.mxu0 %v3775
    %4063 = vmatprep.subr.mxu0 %v3768
    %4064 = vmatpush1.msra.mxu0 %v3767
    %4065 = vmatprep.subr.mxu0 %v3760
    %4066 = vmatpush1.msra.mxu0 %v3759
    %4067 = vmatprep.subr.mxu0 %v3752
    %4068 = vmatpush1.msra.mxu0 %v3751
    %4069 = vmatprep.subr.mxu0 %v3744
    %4070 = vmatpush1.msra.mxu0 %v3743
    %4071 = vmatprep.subr.mxu0 %v3736
    %4072 = vmatpush1.msra.mxu0 %v3735
    %4073 = vmatprep.subr.mxu0 %v3728
    %4074 = vmatpush1.msra.mxu0 %v3727
    %4075 = vmatprep.subr.mxu0 %v3720
    %4076 = vmatpush1.msra.mxu0 %v3719
    %4077 = vmatprep.subr.mxu0 %v3712
    %4078 = vmatpush1.msra.mxu0 %v3711
    %4079 = vmatprep.subr.mxu0 %v3960
    %4080 = vmatpush2.msra.mxu0 %v3959
    %4081 = vmatprep.subr.mxu0 %v3952
    %4082 = vmatpush2.msra.mxu0 %v3951
    %4083 = vmatprep.subr.mxu0 %v3944
    %4084 = vmatpush2.msra.mxu0 %v3943
    %4085 = vmatprep.subr.mxu0 %v3936
    %4086 = vmatpush2.msra.mxu0 %v3935
    %4087 = vmatprep.subr.mxu0 %v3928
    %4088 = vmatpush2.msra.mxu0 %v3927
    %4089 = vmatprep.subr.mxu0 %v3920
    %4090 = vmatpush2.msra.mxu0 %v3919
    %4091 = vmatprep.subr.mxu0 %v3912
    %4092 = vmatpush2.msra.mxu0 %v3911
    %4093 = vmatprep.subr.mxu0 %v3904
    %4094 = vmatpush2.msra.mxu0 %v3903
    %4095 = vmatprep.subr.mxu0 %v3896
    %4096 = vmatpush2.msra.mxu0 %v3895
    %4097 = vmatprep.subr.mxu0 %v3888
    %4098 = vmatpush2.msra.mxu0 %v3887
    %4099 = vmatprep.subr.mxu0 %v3880
    %4100 = vmatpush2.msra.mxu0 %v3879
    %4101 = vmatprep.subr.mxu0 %v3872
    %4102 = vmatpush2.msra.mxu0 %v3871
    %4103 = vmatprep.subr.mxu0 %v3864
    %4104 = vmatpush2.msra.mxu0 %v3863
    %4105 = vmatprep.subr.mxu0 %v3856
    %4106 = vmatpush2.msra.mxu0 %v3855
    %4107 = vmatprep.subr.mxu0 %v3848
    %4108 = vmatpush2.msra.mxu0 %v3847
    %4109 = vmatprep.subr.mxu0 %v3840
    %4110 = vmatpush2.msra.mxu0 %v3839
    %4111 = vmatprep.mubr.f32.mxu0 %v3973
    %4112 = vmatmul.mubr.f32.gmra.mxu0 %v3969
    %v4113 = vpop.f32.mrf.mxu0
    %v4114 = vadd.f32 0.0, %v4113
    %v4115 = vpop.f32.mrf.mxu0
    %v4116 = vadd.f32 0.0, %v4115
    %4117 = vdwg.mxu0
    %4118 = vmatprep.subr.mxu0 %v3834
    %4119 = vmatpush1.msra.mxu0 %v3833
    %4120 = vmatprep.subr.mxu0 %v3826
    %4121 = vmatpush1.msra.mxu0 %v3825
    %4122 = vmatprep.subr.mxu0 %v3818
    %4123 = vmatpush1.msra.mxu0 %v3817
    %4124 = vmatprep.subr.mxu0 %v3810
    %4125 = vmatpush1.msra.mxu0 %v3809
    %4126 = vmatprep.subr.mxu0 %v3802
    %4127 = vmatpush1.msra.mxu0 %v3801
    %4128 = vmatprep.subr.mxu0 %v3794
    %4129 = vmatpush1.msra.mxu0 %v3793
    %4130 = vmatprep.subr.mxu0 %v3786
    %4131 = vmatpush1.msra.mxu0 %v3785
    %4132 = vmatprep.subr.mxu0 %v3778
    %4133 = vmatpush1.msra.mxu0 %v3777
    %4134 = vmatprep.subr.mxu0 %v3770
    %4135 = vmatpush1.msra.mxu0 %v3769
    %4136 = vmatprep.subr.mxu0 %v3762
    %4137 = vmatpush1.msra.mxu0 %v3761
    %4138 = vmatprep.subr.mxu0 %v3754
    %4139 = vmatpush1.msra.mxu0 %v3753
    %4140 = vmatprep.subr.mxu0 %v3746
    %4141 = vmatpush1.msra.mxu0 %v3745
    %4142 = vmatprep.subr.mxu0 %v3738
    %4143 = vmatpush1.msra.mxu0 %v3737
    %4144 = vmatprep.subr.mxu0 %v3730
    %4145 = vmatpush1.msra.mxu0 %v3729
    %4146 = vmatprep.subr.mxu0 %v3722
    %4147 = vmatpush1.msra.mxu0 %v3721
    %4148 = vmatprep.subr.mxu0 %v3714
    %4149 = vmatpush1.msra.mxu0 %v3713
    %4150 = vmatprep.subr.mxu0 %v3962
    %4151 = vmatpush2.msra.mxu0 %v3961
    %4152 = vmatprep.subr.mxu0 %v3954
    %4153 = vmatpush2.msra.mxu0 %v3953
    %4154 = vmatprep.subr.mxu0 %v3946
    %4155 = vmatpush2.msra.mxu0 %v3945
    %4156 = vmatprep.subr.mxu0 %v3938
    %4157 = vmatpush2.msra.mxu0 %v3937
    %4158 = vmatprep.subr.mxu0 %v3930
    %4159 = vmatpush2.msra.mxu0 %v3929
    %4160 = vmatprep.subr.mxu0 %v3922
    %4161 = vmatpush2.msra.mxu0 %v3921
    %4162 = vmatprep.subr.mxu0 %v3914
    %4163 = vmatpush2.msra.mxu0 %v3913
    %4164 = vmatprep.subr.mxu0 %v3906
    %4165 = vmatpush2.msra.mxu0 %v3905
    %4166 = vmatprep.subr.mxu0 %v3898
    %4167 = vmatpush2.msra.mxu0 %v3897
    %4168 = vmatprep.subr.mxu0 %v3890
    %4169 = vmatpush2.msra.mxu0 %v3889
    %4170 = vmatprep.subr.mxu0 %v3882
    %4171 = vmatpush2.msra.mxu0 %v3881
    %4172 = vmatprep.subr.mxu0 %v3874
    %4173 = vmatpush2.msra.mxu0 %v3873
    %4174 = vmatprep.subr.mxu0 %v3866
    %4175 = vmatpush2.msra.mxu0 %v3865
    %4176 = vmatprep.subr.mxu0 %v3858
    %4177 = vmatpush2.msra.mxu0 %v3857
    %4178 = vmatprep.subr.mxu0 %v3850
    %4179 = vmatpush2.msra.mxu0 %v3849
    %4180 = vmatprep.subr.mxu0 %v3842
    %4181 = vmatpush2.msra.mxu0 %v3841
    %4182 = vmatprep.mubr.f32.mxu0 %v3973
    %4183 = vmatmul.mubr.f32.gmra.mxu0 %v3969
    %v4184 = vpop.f32.mrf.mxu0
    %v4185 = vadd.f32 0.0, %v4184
    %v4186 = vpop.f32.mrf.mxu0
    %v4187 = vadd.f32 0.0, %v4186
    %4188 = vdwg.mxu0
    %4189 = vmatprep.subr.mxu0 %v3836
    %4190 = vmatpush1.msra.mxu0 %v3835
    %4191 = vmatprep.subr.mxu0 %v3828
    %4192 = vmatpush1.msra.mxu0 %v3827
    %4193 = vmatprep.subr.mxu0 %v3820
    %4194 = vmatpush1.msra.mxu0 %v3819
    %4195 = vmatprep.subr.mxu0 %v3812
    %4196 = vmatpush1.msra.mxu0 %v3811
    %4197 = vmatprep.subr.mxu0 %v3804
    %4198 = vmatpush1.msra.mxu0 %v3803
    %4199 = vmatprep.subr.mxu0 %v3796
    %4200 = vmatpush1.msra.mxu0 %v3795
    %4201 = vmatprep.subr.mxu0 %v3788
    %4202 = vmatpush1.msra.mxu0 %v3787
    %4203 = vmatprep.subr.mxu0 %v3780
    %4204 = vmatpush1.msra.mxu0 %v3779
    %4205 = vmatprep.subr.mxu0 %v3772
    %4206 = vmatpush1.msra.mxu0 %v3771
    %4207 = vmatprep.subr.mxu0 %v3764
    %4208 = vmatpush1.msra.mxu0 %v3763
    %4209 = vmatprep.subr.mxu0 %v3756
    %4210 = vmatpush1.msra.mxu0 %v3755
    %4211 = vmatprep.subr.mxu0 %v3748
    %4212 = vmatpush1.msra.mxu0 %v3747
    %4213 = vmatprep.subr.mxu0 %v3740
    %4214 = vmatpush1.msra.mxu0 %v3739
    %4215 = vmatprep.subr.mxu0 %v3732
    %4216 = vmatpush1.msra.mxu0 %v3731
    %4217 = vmatprep.subr.mxu0 %v3724
    %4218 = vmatpush1.msra.mxu0 %v3723
    %4219 = vmatprep.subr.mxu0 %v3716
    %4220 = vmatpush1.msra.mxu0 %v3715
    %4221 = vmatprep.subr.mxu0 %v3964
    %4222 = vmatpush2.msra.mxu0 %v3963
    %4223 = vmatprep.subr.mxu0 %v3956
    %4224 = vmatpush2.msra.mxu0 %v3955
    %4225 = vmatprep.subr.mxu0 %v3948
    %4226 = vmatpush2.msra.mxu0 %v3947
    %4227 = vmatprep.subr.mxu0 %v3940
    %4228 = vmatpush2.msra.mxu0 %v3939
    %4229 = vmatprep.subr.mxu0 %v3932
    %4230 = vmatpush2.msra.mxu0 %v3931
    %4231 = vmatprep.subr.mxu0 %v3924
    %4232 = vmatpush2.msra.mxu0 %v3923
    %4233 = vmatprep.subr.mxu0 %v3916
    %4234 = vmatpush2.msra.mxu0 %v3915
    %4235 = vmatprep.subr.mxu0 %v3908
    %4236 = vmatpush2.msra.mxu0 %v3907
    %4237 = vmatprep.subr.mxu0 %v3900
    %4238 = vmatpush2.msra.mxu0 %v3899
    %4239 = vmatprep.subr.mxu0 %v3892
    %4240 = vmatpush2.msra.mxu0 %v3891
    %4241 = vmatprep.subr.mxu0 %v3884
    %4242 = vmatpush2.msra.mxu0 %v3883
    %4243 = vmatprep.subr.mxu0 %v3876
    %4244 = vmatpush2.msra.mxu0 %v3875
    %4245 = vmatprep.subr.mxu0 %v3868
    %4246 = vmatpush2.msra.mxu0 %v3867
    %4247 = vmatprep.subr.mxu0 %v3860
    %4248 = vmatpush2.msra.mxu0 %v3859
    %4249 = vmatprep.subr.mxu0 %v3852
    %4250 = vmatpush2.msra.mxu0 %v3851
    %4251 = vmatprep.subr.mxu0 %v3844
    %4252 = vmatpush2.msra.mxu0 %v3843
    %4253 = vmatprep.mubr.f32.mxu0 %v3973
    %4254 = vmatmul.mubr.f32.gmra.mxu0 %v3969
    %v4255 = vpop.f32.mrf.mxu0
    %v4256 = vadd.f32 0.0, %v4255
    %v4257 = vpop.f32.mrf.mxu0
    %v4258 = vadd.f32 0.0, %v4257
    %4259 = vdwg.mxu0
    %v4268 = vcombine.low %v4043, %v4045
    %v4269 = vcombine.low %v4114, %v4116
    %v4270 = vcombine.low %v4185, %v4187
    %v4271 = vcombine.low %v4256, %v4258
    %v4273 = vunpack.c.l.s4 1966171168
    %v4274 = vunpack.c.0.s8 %v4273
    %v4275 = vlaneseq
    %v4276 = vshrl.u32 %v4275, 7
    %v4277 = vsub.s32 %v4274, %v4276
    %v4278 = vrot.slane %v4268, %v4277
    %v4280 = vunpack.c.l.s4 1966171168
    %v4281 = vunpack.c.0.s8 %v4280
    %v4282 = vlaneseq
    %v4283 = vshrl.u32 %v4282, 7
    %v4284 = vsub.s32 %v4281, %v4283
    %v4285 = vrot.slane %v4269, %v4284
    %v4287 = vunpack.c.l.s4 1966171168
    %v4288 = vunpack.c.0.s8 %v4287
    %v4289 = vlaneseq
    %v4290 = vshrl.u32 %v4289, 7
    %v4291 = vsub.s32 %v4288, %v4290
    %v4292 = vrot.slane %v4270, %v4291
    %v4294 = vunpack.c.l.s4 1966171168
    %v4295 = vunpack.c.0.s8 %v4294
    %v4296 = vlaneseq
    %v4297 = vshrl.u32 %v4296, 7
    %v4298 = vsub.s32 %v4295, %v4297
    %v4299 = vrot.slane %v4271, %v4298
    %v4300 = vcombine.low %v4278, %v4285
    %v4301 = vcombine.low %v4292, %v4299
    %v4303 = vunpack.c.l.s4 1966171168
    %v4304 = vunpack.c.0.s8 %v4303
    %v4305 = vlaneseq
    %v4306 = vshrl.u32 %v4305, 7
    %v4307 = vsub.s32 %v4304, %v4306
    %v4308 = vrot.slane %v4300, %v4307
    %v4310 = vunpack.c.l.s4 1966171168
    %v4311 = vunpack.c.0.s8 %v4310
    %v4312 = vlaneseq
    %v4313 = vshrl.u32 %v4312, 7
    %v4314 = vsub.s32 %v4311, %v4313
    %v4315 = vrot.slane %v4301, %v4314
    %v4316 = vcombine.low %v4308, %v4315
    %v4318 = vadd.f32 %v3708, %v4316
    %v4319 = vxor.u32 %v4318, 2147483648
    %v4320 = vmul.f32 %v4319, 1.442695
    %v4321 = vpow.pop %v4320
    %v4322 = vadd.f32 %v4321, 1.0
    %v4323 = vrcp.pop %v4322
    %v4324 = vmul.f32 1.0, %v4323
    %v4326 = vrot.slane %v4318, 2
    %v4328 = vxor.u32 %v4326, 2147483648
    %v4329 = vmul.f32 %v4328, 1.442695
    %v4330 = vpow.pop %v4329
    %v4331 = vadd.f32 %v4330, 1.0
    %v4332 = vrcp.pop %v4331
    %v4333 = vmul.f32 1.0, %v4332
    %v4334 = vrot.slane %v4318, 4
    %v4336 = vtanh.pop %v4334
    %v4337 = vrot.slane %v4318, 6
    %v4339 = vxor.u32 %v4337, 2147483648
    %v4340 = vmul.f32 %v4339, 1.442695
    %v4341 = vpow.pop %v4340
    %v4342 = vadd.f32 %v4341, 1.0
    %v4343 = vrcp.pop %v4342
    %v4344 = vmul.f32 1.0, %v4343
    %v4345 = vmul.f32 %v4333, %v3699
    %v4346 = vmul.f32 %v4324, %v4336
    %v4347 = vadd.f32 %v4345, %v4346
    %v4348 = vtanh.pop %v4347
    %v4349 = vmul.f32 %v4344, %v4348
    %s4350 = scalar_lea.vmem [#allocation11], 4
    %4351 = vst.msk [vmem:[%s4350] ss:$8 sm:$0x3] %vm64, %v4349
    %4352 = vst.msk [vmem:[%s4350] ss:$8 sm:$0x0] %vm64, %v4349
    %s4353 = scalar_lea.vmem [#allocation4], 5
    %v4354 = vld [vmem:[%s4353] ss:$8 sm:$0xf]
    %v4355 = vld [vmem:[%s4353] ss:$8 sm:$0xf0]
    %v4356 = vor.u32 %v4354, %v4355
    %v4357 = vld [vmem:[%s7] sm:$0xff]
    %v4358 = vld [vmem:[%s7 + $0x8] sm:$0xff]
    %v4359 = vld [vmem:[%s7 + $0x10] sm:$0xff]
    %v4360 = vld [vmem:[%s7 + $0x18] sm:$0xff]
    %v4361 = vld [vmem:[%s7 + $0x20] sm:$0xff]
    %v4362 = vld [vmem:[%s7 + $0x28] sm:$0xff]
    %v4363 = vld [vmem:[%s7 + $0x30] sm:$0xff]
    %v4364 = vld [vmem:[%s7 + $0x38] sm:$0xff]
    %v4365 = vld [vmem:[%s7 + $0x40] sm:$0xff]
    %v4366 = vld [vmem:[%s7 + $0x48] sm:$0xff]
    %v4367 = vld [vmem:[%s7 + $0x50] sm:$0xff]
    %v4368 = vld [vmem:[%s7 + $0x58] sm:$0xff]
    %v4369 = vld [vmem:[%s7 + $0x60] sm:$0xff]
    %v4370 = vld [vmem:[%s7 + $0x68] sm:$0xff]
    %v4371 = vld [vmem:[%s7 + $0x70] sm:$0xff]
    %v4372 = vld [vmem:[%s7 + $0x78] sm:$0xff]
    %v4373 = vld [vmem:[%s7 + $0x80] sm:$0xff]
    %v4374 = vld [vmem:[%s7 + $0x88] sm:$0xff]
    %v4375 = vld [vmem:[%s7 + $0x90] sm:$0xff]
    %v4376 = vld [vmem:[%s7 + $0x98] sm:$0xff]
    %v4377 = vld [vmem:[%s7 + $0xa0] sm:$0xff]
    %v4378 = vld [vmem:[%s7 + $0xa8] sm:$0xff]
    %v4379 = vld [vmem:[%s7 + $0xb0] sm:$0xff]
    %v4380 = vld [vmem:[%s7 + $0xb8] sm:$0xff]
    %v4381 = vld [vmem:[%s7 + $0xc0] sm:$0xff]
    %v4382 = vld [vmem:[%s7 + $0xc8] sm:$0xff]
    %v4383 = vld [vmem:[%s7 + $0xd0] sm:$0xff]
    %v4384 = vld [vmem:[%s7 + $0xd8] sm:$0xff]
    %v4385 = vld [vmem:[%s7 + $0xe0] sm:$0xff]
    %v4386 = vld [vmem:[%s7 + $0xe8] sm:$0xff]
    %v4387 = vld [vmem:[%s7 + $0xf0] sm:$0xff]
    %v4388 = vld [vmem:[%s7 + $0xf8] sm:$0xff]
    %v4389 = vld [vmem:[%s7 + $0x100] sm:$0xff]
    %v4390 = vld [vmem:[%s7 + $0x108] sm:$0xff]
    %v4391 = vld [vmem:[%s7 + $0x110] sm:$0xff]
    %v4392 = vld [vmem:[%s7 + $0x118] sm:$0xff]
    %v4393 = vld [vmem:[%s7 + $0x120] sm:$0xff]
    %v4394 = vld [vmem:[%s7 + $0x128] sm:$0xff]
    %v4395 = vld [vmem:[%s7 + $0x130] sm:$0xff]
    %v4396 = vld [vmem:[%s7 + $0x138] sm:$0xff]
    %v4397 = vld [vmem:[%s7 + $0x140] sm:$0xff]
    %v4398 = vld [vmem:[%s7 + $0x148] sm:$0xff]
    %v4399 = vld [vmem:[%s7 + $0x150] sm:$0xff]
    %v4400 = vld [vmem:[%s7 + $0x158] sm:$0xff]
    %v4401 = vld [vmem:[%s7 + $0x160] sm:$0xff]
    %v4402 = vld [vmem:[%s7 + $0x168] sm:$0xff]
    %v4403 = vld [vmem:[%s7 + $0x170] sm:$0xff]
    %v4404 = vld [vmem:[%s7 + $0x178] sm:$0xff]
    %v4405 = vld [vmem:[%s7 + $0x180] sm:$0xff]
    %v4406 = vld [vmem:[%s7 + $0x188] sm:$0xff]
    %v4407 = vld [vmem:[%s7 + $0x190] sm:$0xff]
    %v4408 = vld [vmem:[%s7 + $0x198] sm:$0xff]
    %v4409 = vld [vmem:[%s7 + $0x1a0] sm:$0xff]
    %v4410 = vld [vmem:[%s7 + $0x1a8] sm:$0xff]
    %v4411 = vld [vmem:[%s7 + $0x1b0] sm:$0xff]
    %v4412 = vld [vmem:[%s7 + $0x1b8] sm:$0xff]
    %v4413 = vld [vmem:[%s7 + $0x1c0] sm:$0xff]
    %v4414 = vld [vmem:[%s7 + $0x1c8] sm:$0xff]
    %v4415 = vld [vmem:[%s7 + $0x1d0] sm:$0xff]
    %v4416 = vld [vmem:[%s7 + $0x1d8] sm:$0xff]
    %v4417 = vld [vmem:[%s7 + $0x1e0] sm:$0xff]
    %v4418 = vld [vmem:[%s7 + $0x1e8] sm:$0xff]
    %v4419 = vld [vmem:[%s7 + $0x1f0] sm:$0xff]
    %v4420 = vld [vmem:[%s7 + $0x1f8] sm:$0xff]
    %v4421 = vld [vmem:[%s7 + $0x200] sm:$0xff]
    %v4422 = vld [vmem:[%s7 + $0x208] sm:$0xff]
    %v4423 = vld [vmem:[%s7 + $0x210] sm:$0xff]
    %v4424 = vld [vmem:[%s7 + $0x218] sm:$0xff]
    %v4425 = vld [vmem:[%s7 + $0x220] sm:$0xff]
    %v4426 = vld [vmem:[%s7 + $0x228] sm:$0xff]
    %v4427 = vld [vmem:[%s7 + $0x230] sm:$0xff]
    %v4428 = vld [vmem:[%s7 + $0x238] sm:$0xff]
    %v4429 = vld [vmem:[%s7 + $0x240] sm:$0xff]
    %v4430 = vld [vmem:[%s7 + $0x248] sm:$0xff]
    %v4431 = vld [vmem:[%s7 + $0x250] sm:$0xff]
    %v4432 = vld [vmem:[%s7 + $0x258] sm:$0xff]
    %v4433 = vld [vmem:[%s7 + $0x260] sm:$0xff]
    %v4434 = vld [vmem:[%s7 + $0x268] sm:$0xff]
    %v4435 = vld [vmem:[%s7 + $0x270] sm:$0xff]
    %v4436 = vld [vmem:[%s7 + $0x278] sm:$0xff]
    %v4437 = vld [vmem:[%s7 + $0x280] sm:$0xff]
    %v4438 = vld [vmem:[%s7 + $0x288] sm:$0xff]
    %v4439 = vld [vmem:[%s7 + $0x290] sm:$0xff]
    %v4440 = vld [vmem:[%s7 + $0x298] sm:$0xff]
    %v4441 = vld [vmem:[%s7 + $0x2a0] sm:$0xff]
    %v4442 = vld [vmem:[%s7 + $0x2a8] sm:$0xff]
    %v4443 = vld [vmem:[%s7 + $0x2b0] sm:$0xff]
    %v4444 = vld [vmem:[%s7 + $0x2b8] sm:$0xff]
    %v4445 = vld [vmem:[%s7 + $0x2c0] sm:$0xff]
    %v4446 = vld [vmem:[%s7 + $0x2c8] sm:$0xff]
    %v4447 = vld [vmem:[%s7 + $0x2d0] sm:$0xff]
    %v4448 = vld [vmem:[%s7 + $0x2d8] sm:$0xff]
    %v4449 = vld [vmem:[%s7 + $0x2e0] sm:$0xff]
    %v4450 = vld [vmem:[%s7 + $0x2e8] sm:$0xff]
    %v4451 = vld [vmem:[%s7 + $0x2f0] sm:$0xff]
    %v4452 = vld [vmem:[%s7 + $0x2f8] sm:$0xff]
    %v4453 = vld [vmem:[%s7 + $0x300] sm:$0xff]
    %v4454 = vld [vmem:[%s7 + $0x308] sm:$0xff]
    %v4455 = vld [vmem:[%s7 + $0x310] sm:$0xff]
    %v4456 = vld [vmem:[%s7 + $0x318] sm:$0xff]
    %v4457 = vld [vmem:[%s7 + $0x320] sm:$0xff]
    %v4458 = vld [vmem:[%s7 + $0x328] sm:$0xff]
    %v4459 = vld [vmem:[%s7 + $0x330] sm:$0xff]
    %v4460 = vld [vmem:[%s7 + $0x338] sm:$0xff]
    %v4461 = vld [vmem:[%s7 + $0x340] sm:$0xff]
    %v4462 = vld [vmem:[%s7 + $0x348] sm:$0xff]
    %v4463 = vld [vmem:[%s7 + $0x350] sm:$0xff]
    %v4464 = vld [vmem:[%s7 + $0x358] sm:$0xff]
    %v4465 = vld [vmem:[%s7 + $0x360] sm:$0xff]
    %v4466 = vld [vmem:[%s7 + $0x368] sm:$0xff]
    %v4467 = vld [vmem:[%s7 + $0x370] sm:$0xff]
    %v4468 = vld [vmem:[%s7 + $0x378] sm:$0xff]
    %v4469 = vld [vmem:[%s7 + $0x380] sm:$0xff]
    %v4470 = vld [vmem:[%s7 + $0x388] sm:$0xff]
    %v4471 = vld [vmem:[%s7 + $0x390] sm:$0xff]
    %v4472 = vld [vmem:[%s7 + $0x398] sm:$0xff]
    %v4473 = vld [vmem:[%s7 + $0x3a0] sm:$0xff]
    %v4474 = vld [vmem:[%s7 + $0x3a8] sm:$0xff]
    %v4475 = vld [vmem:[%s7 + $0x3b0] sm:$0xff]
    %v4476 = vld [vmem:[%s7 + $0x3b8] sm:$0xff]
    %v4477 = vld [vmem:[%s7 + $0x3c0] sm:$0xff]
    %v4478 = vld [vmem:[%s7 + $0x3c8] sm:$0xff]
    %v4479 = vld [vmem:[%s7 + $0x3d0] sm:$0xff]
    %v4480 = vld [vmem:[%s7 + $0x3d8] sm:$0xff]
    %v4481 = vld [vmem:[%s7 + $0x3e0] sm:$0xff]
    %v4482 = vld [vmem:[%s7 + $0x3e8] sm:$0xff]
    %v4483 = vld [vmem:[%s7 + $0x3f0] sm:$0xff]
    %v4484 = vld [vmem:[%s7 + $0x3f8] sm:$0xff]
    %v4485 = vld [vmem:[%s7 + $0x400] sm:$0xff]
    %v4486 = vld [vmem:[%s7 + $0x408] sm:$0xff]
    %v4487 = vld [vmem:[%s7 + $0x410] sm:$0xff]
    %v4488 = vld [vmem:[%s7 + $0x418] sm:$0xff]
    %v4489 = vld [vmem:[%s7 + $0x420] sm:$0xff]
    %v4490 = vld [vmem:[%s7 + $0x428] sm:$0xff]
    %v4491 = vld [vmem:[%s7 + $0x430] sm:$0xff]
    %v4492 = vld [vmem:[%s7 + $0x438] sm:$0xff]
    %v4493 = vld [vmem:[%s7 + $0x440] sm:$0xff]
    %v4494 = vld [vmem:[%s7 + $0x448] sm:$0xff]
    %v4495 = vld [vmem:[%s7 + $0x450] sm:$0xff]
    %v4496 = vld [vmem:[%s7 + $0x458] sm:$0xff]
    %v4497 = vld [vmem:[%s7 + $0x460] sm:$0xff]
    %v4498 = vld [vmem:[%s7 + $0x468] sm:$0xff]
    %v4499 = vld [vmem:[%s7 + $0x470] sm:$0xff]
    %v4500 = vld [vmem:[%s7 + $0x478] sm:$0xff]
    %v4501 = vld [vmem:[%s7 + $0x480] sm:$0xff]
    %v4502 = vld [vmem:[%s7 + $0x488] sm:$0xff]
    %v4503 = vld [vmem:[%s7 + $0x490] sm:$0xff]
    %v4504 = vld [vmem:[%s7 + $0x498] sm:$0xff]
    %v4505 = vld [vmem:[%s7 + $0x4a0] sm:$0xff]
    %v4506 = vld [vmem:[%s7 + $0x4a8] sm:$0xff]
    %v4507 = vld [vmem:[%s7 + $0x4b0] sm:$0xff]
    %v4508 = vld [vmem:[%s7 + $0x4b8] sm:$0xff]
    %v4509 = vld [vmem:[%s7 + $0x4c0] sm:$0xff]
    %v4510 = vld [vmem:[%s7 + $0x4c8] sm:$0xff]
    %v4511 = vld [vmem:[%s7 + $0x4d0] sm:$0xff]
    %v4512 = vld [vmem:[%s7 + $0x4d8] sm:$0xff]
    %v4513 = vld [vmem:[%s7 + $0x4e0] sm:$0xff]
    %v4514 = vld [vmem:[%s7 + $0x4e8] sm:$0xff]
    %v4515 = vld [vmem:[%s7 + $0x4f0] sm:$0xff]
    %v4516 = vld [vmem:[%s7 + $0x4f8] sm:$0xff]
    %v4517 = vld [vmem:[%s7 + $0x500] sm:$0xff]
    %v4518 = vld [vmem:[%s7 + $0x508] sm:$0xff]
    %v4519 = vld [vmem:[%s7 + $0x510] sm:$0xff]
    %v4520 = vld [vmem:[%s7 + $0x518] sm:$0xff]
    %v4521 = vld [vmem:[%s7 + $0x520] sm:$0xff]
    %v4522 = vld [vmem:[%s7 + $0x528] sm:$0xff]
    %v4523 = vld [vmem:[%s7 + $0x530] sm:$0xff]
    %v4524 = vld [vmem:[%s7 + $0x538] sm:$0xff]
    %v4525 = vld [vmem:[%s7 + $0x540] sm:$0xff]
    %v4526 = vld [vmem:[%s7 + $0x548] sm:$0xff]
    %v4527 = vld [vmem:[%s7 + $0x550] sm:$0xff]
    %v4528 = vld [vmem:[%s7 + $0x558] sm:$0xff]
    %v4529 = vld [vmem:[%s7 + $0x560] sm:$0xff]
    %v4530 = vld [vmem:[%s7 + $0x568] sm:$0xff]
    %v4531 = vld [vmem:[%s7 + $0x570] sm:$0xff]
    %v4532 = vld [vmem:[%s7 + $0x578] sm:$0xff]
    %v4533 = vld [vmem:[%s7 + $0x580] sm:$0xff]
    %v4534 = vld [vmem:[%s7 + $0x588] sm:$0xff]
    %v4535 = vld [vmem:[%s7 + $0x590] sm:$0xff]
    %v4536 = vld [vmem:[%s7 + $0x598] sm:$0xff]
    %v4537 = vld [vmem:[%s7 + $0x5a0] sm:$0xff]
    %v4538 = vld [vmem:[%s7 + $0x5a8] sm:$0xff]
    %v4539 = vld [vmem:[%s7 + $0x5b0] sm:$0xff]
    %v4540 = vld [vmem:[%s7 + $0x5b8] sm:$0xff]
    %v4541 = vld [vmem:[%s7 + $0x5c0] sm:$0xff]
    %v4542 = vld [vmem:[%s7 + $0x5c8] sm:$0xff]
    %v4543 = vld [vmem:[%s7 + $0x5d0] sm:$0xff]
    %v4544 = vld [vmem:[%s7 + $0x5d8] sm:$0xff]
    %v4545 = vld [vmem:[%s7 + $0x5e0] sm:$0xff]
    %v4546 = vld [vmem:[%s7 + $0x5e8] sm:$0xff]
    %v4547 = vld [vmem:[%s7 + $0x5f0] sm:$0xff]
    %v4548 = vld [vmem:[%s7 + $0x5f8] sm:$0xff]
    %v4549 = vld [vmem:[%s7 + $0x600] sm:$0xff]
    %v4550 = vld [vmem:[%s7 + $0x608] sm:$0xff]
    %v4551 = vld [vmem:[%s7 + $0x610] sm:$0xff]
    %v4552 = vld [vmem:[%s7 + $0x618] sm:$0xff]
    %v4553 = vld [vmem:[%s7 + $0x620] sm:$0xff]
    %v4554 = vld [vmem:[%s7 + $0x628] sm:$0xff]
    %v4555 = vld [vmem:[%s7 + $0x630] sm:$0xff]
    %v4556 = vld [vmem:[%s7 + $0x638] sm:$0xff]
    %v4557 = vld [vmem:[%s7 + $0x640] sm:$0xff]
    %v4558 = vld [vmem:[%s7 + $0x648] sm:$0xff]
    %v4559 = vld [vmem:[%s7 + $0x650] sm:$0xff]
    %v4560 = vld [vmem:[%s7 + $0x658] sm:$0xff]
    %v4561 = vld [vmem:[%s7 + $0x660] sm:$0xff]
    %v4562 = vld [vmem:[%s7 + $0x668] sm:$0xff]
    %v4563 = vld [vmem:[%s7 + $0x670] sm:$0xff]
    %v4564 = vld [vmem:[%s7 + $0x678] sm:$0xff]
    %v4565 = vld [vmem:[%s7 + $0x680] sm:$0xff]
    %v4566 = vld [vmem:[%s7 + $0x688] sm:$0xff]
    %v4567 = vld [vmem:[%s7 + $0x690] sm:$0xff]
    %v4568 = vld [vmem:[%s7 + $0x698] sm:$0xff]
    %v4569 = vld [vmem:[%s7 + $0x6a0] sm:$0xff]
    %v4570 = vld [vmem:[%s7 + $0x6a8] sm:$0xff]
    %v4571 = vld [vmem:[%s7 + $0x6b0] sm:$0xff]
    %v4572 = vld [vmem:[%s7 + $0x6b8] sm:$0xff]
    %v4573 = vld [vmem:[%s7 + $0x6c0] sm:$0xff]
    %v4574 = vld [vmem:[%s7 + $0x6c8] sm:$0xff]
    %v4575 = vld [vmem:[%s7 + $0x6d0] sm:$0xff]
    %v4576 = vld [vmem:[%s7 + $0x6d8] sm:$0xff]
    %v4577 = vld [vmem:[%s7 + $0x6e0] sm:$0xff]
    %v4578 = vld [vmem:[%s7 + $0x6e8] sm:$0xff]
    %v4579 = vld [vmem:[%s7 + $0x6f0] sm:$0xff]
    %v4580 = vld [vmem:[%s7 + $0x6f8] sm:$0xff]
    %v4581 = vld [vmem:[%s7 + $0x700] sm:$0xff]
    %v4582 = vld [vmem:[%s7 + $0x708] sm:$0xff]
    %v4583 = vld [vmem:[%s7 + $0x710] sm:$0xff]
    %v4584 = vld [vmem:[%s7 + $0x718] sm:$0xff]
    %v4585 = vld [vmem:[%s7 + $0x720] sm:$0xff]
    %v4586 = vld [vmem:[%s7 + $0x728] sm:$0xff]
    %v4587 = vld [vmem:[%s7 + $0x730] sm:$0xff]
    %v4588 = vld [vmem:[%s7 + $0x738] sm:$0xff]
    %v4589 = vld [vmem:[%s7 + $0x740] sm:$0xff]
    %v4590 = vld [vmem:[%s7 + $0x748] sm:$0xff]
    %v4591 = vld [vmem:[%s7 + $0x750] sm:$0xff]
    %v4592 = vld [vmem:[%s7 + $0x758] sm:$0xff]
    %v4593 = vld [vmem:[%s7 + $0x760] sm:$0xff]
    %v4594 = vld [vmem:[%s7 + $0x768] sm:$0xff]
    %v4595 = vld [vmem:[%s7 + $0x770] sm:$0xff]
    %v4596 = vld [vmem:[%s7 + $0x778] sm:$0xff]
    %v4597 = vld [vmem:[%s7 + $0x780] sm:$0xff]
    %v4598 = vld [vmem:[%s7 + $0x788] sm:$0xff]
    %v4599 = vld [vmem:[%s7 + $0x790] sm:$0xff]
    %v4600 = vld [vmem:[%s7 + $0x798] sm:$0xff]
    %v4601 = vld [vmem:[%s7 + $0x7a0] sm:$0xff]
    %v4602 = vld [vmem:[%s7 + $0x7a8] sm:$0xff]
    %v4603 = vld [vmem:[%s7 + $0x7b0] sm:$0xff]
    %v4604 = vld [vmem:[%s7 + $0x7b8] sm:$0xff]
    %v4605 = vld [vmem:[%s7 + $0x7c0] sm:$0xff]
    %v4606 = vld [vmem:[%s7 + $0x7c8] sm:$0xff]
    %v4607 = vld [vmem:[%s7 + $0x7d0] sm:$0xff]
    %v4608 = vld [vmem:[%s7 + $0x7d8] sm:$0xff]
    %v4609 = vld [vmem:[%s7 + $0x7e0] sm:$0xff]
    %v4610 = vld [vmem:[%s7 + $0x7e8] sm:$0xff]
    %v4611 = vld [vmem:[%s7 + $0x7f0] sm:$0xff]
    %v4612 = vld [vmem:[%s7 + $0x7f8] sm:$0xff]
    %v4614 = vlaneseq
    %v4615 = vshrl.u32 %v4614, 7
    %v4616 = vsub.s32 0, %v4615
    %v4617 = vrot.slane %v4349, %v4616
    %v4618 = vlaneseq
    %v4619 = vshrl.u32 %v4618, 7
    %v4620 = vsub.s32 1, %v4619
    %v4621 = vrot.slane %v4349, %v4620
    %4624 = vmatprep.subr.mxu0 %v4478
    %4625 = vmatpush1.msra.mxu0 %v4477
    %4626 = vmatprep.subr.mxu0 %v4470
    %4627 = vmatpush1.msra.mxu0 %v4469
    %4628 = vmatprep.subr.mxu0 %v4462
    %4629 = vmatpush1.msra.mxu0 %v4461
    %4630 = vmatprep.subr.mxu0 %v4454
    %4631 = vmatpush1.msra.mxu0 %v4453
    %4632 = vmatprep.subr.mxu0 %v4446
    %4633 = vmatpush1.msra.mxu0 %v4445
    %4634 = vmatprep.subr.mxu0 %v4438
    %4635 = vmatpush1.msra.mxu0 %v4437
    %4636 = vmatprep.subr.mxu0 %v4430
    %4637 = vmatpush1.msra.mxu0 %v4429
    %4638 = vmatprep.subr.mxu0 %v4422
    %4639 = vmatpush1.msra.mxu0 %v4421
    %4640 = vmatprep.subr.mxu0 %v4414
    %4641 = vmatpush1.msra.mxu0 %v4413
    %4642 = vmatprep.subr.mxu0 %v4406
    %4643 = vmatpush1.msra.mxu0 %v4405
    %4644 = vmatprep.subr.mxu0 %v4398
    %4645 = vmatpush1.msra.mxu0 %v4397
    %4646 = vmatprep.subr.mxu0 %v4390
    %4647 = vmatpush1.msra.mxu0 %v4389
    %4648 = vmatprep.subr.mxu0 %v4382
    %4649 = vmatpush1.msra.mxu0 %v4381
    %4650 = vmatprep.subr.mxu0 %v4374
    %4651 = vmatpush1.msra.mxu0 %v4373
    %4652 = vmatprep.subr.mxu0 %v4366
    %4653 = vmatpush1.msra.mxu0 %v4365
    %4654 = vmatprep.subr.mxu0 %v4358
    %4655 = vmatpush1.msra.mxu0 %v4357
    %4656 = vmatprep.subr.mxu0 %v4606
    %4657 = vmatpush2.msra.mxu0 %v4605
    %4658 = vmatprep.subr.mxu0 %v4598
    %4659 = vmatpush2.msra.mxu0 %v4597
    %4660 = vmatprep.subr.mxu0 %v4590
    %4661 = vmatpush2.msra.mxu0 %v4589
    %4662 = vmatprep.subr.mxu0 %v4582
    %4663 = vmatpush2.msra.mxu0 %v4581
    %4664 = vmatprep.subr.mxu0 %v4574
    %4665 = vmatpush2.msra.mxu0 %v4573
    %4666 = vmatprep.subr.mxu0 %v4566
    %4667 = vmatpush2.msra.mxu0 %v4565
    %4668 = vmatprep.subr.mxu0 %v4558
    %4669 = vmatpush2.msra.mxu0 %v4557
    %4670 = vmatprep.subr.mxu0 %v4550
    %4671 = vmatpush2.msra.mxu0 %v4549
    %4672 = vmatprep.subr.mxu0 %v4542
    %4673 = vmatpush2.msra.mxu0 %v4541
    %4674 = vmatprep.subr.mxu0 %v4534
    %4675 = vmatpush2.msra.mxu0 %v4533
    %4676 = vmatprep.subr.mxu0 %v4526
    %4677 = vmatpush2.msra.mxu0 %v4525
    %4678 = vmatprep.subr.mxu0 %v4518
    %4679 = vmatpush2.msra.mxu0 %v4517
    %4680 = vmatprep.subr.mxu0 %v4510
    %4681 = vmatpush2.msra.mxu0 %v4509
    %4682 = vmatprep.subr.mxu0 %v4502
    %4683 = vmatpush2.msra.mxu0 %v4501
    %4684 = vmatprep.subr.mxu0 %v4494
    %4685 = vmatpush2.msra.mxu0 %v4493
    %4686 = vmatprep.subr.mxu0 %v4486
    %4687 = vmatpush2.msra.mxu0 %v4485
    %4688 = vmatprep.mubr.f32.mxu0 %v4621
    %4689 = vmatmul.mubr.f32.gmra.mxu0 %v4617
    %v4690 = vpop.f32.mrf.mxu0
    %v4691 = vadd.f32 0.0, %v4690
    %v4692 = vpop.f32.mrf.mxu0
    %v4693 = vadd.f32 0.0, %v4692
    %4694 = vdwg.mxu0
    %4695 = vmatprep.subr.mxu0 %v4480
    %4696 = vmatpush1.msra.mxu0 %v4479
    %4697 = vmatprep.subr.mxu0 %v4472
    %4698 = vmatpush1.msra.mxu0 %v4471
    %4699 = vmatprep.subr.mxu0 %v4464
    %4700 = vmatpush1.msra.mxu0 %v4463
    %4701 = vmatprep.subr.mxu0 %v4456
    %4702 = vmatpush1.msra.mxu0 %v4455
    %4703 = vmatprep.subr.mxu0 %v4448
    %4704 = vmatpush1.msra.mxu0 %v4447
    %4705 = vmatprep.subr.mxu0 %v4440
    %4706 = vmatpush1.msra.mxu0 %v4439
    %4707 = vmatprep.subr.mxu0 %v4432
    %4708 = vmatpush1.msra.mxu0 %v4431
    %4709 = vmatprep.subr.mxu0 %v4424
    %4710 = vmatpush1.msra.mxu0 %v4423
    %4711 = vmatprep.subr.mxu0 %v4416
    %4712 = vmatpush1.msra.mxu0 %v4415
    %4713 = vmatprep.subr.mxu0 %v4408
    %4714 = vmatpush1.msra.mxu0 %v4407
    %4715 = vmatprep.subr.mxu0 %v4400
    %4716 = vmatpush1.msra.mxu0 %v4399
    %4717 = vmatprep.subr.mxu0 %v4392
    %4718 = vmatpush1.msra.mxu0 %v4391
    %4719 = vmatprep.subr.mxu0 %v4384
    %4720 = vmatpush1.msra.mxu0 %v4383
    %4721 = vmatprep.subr.mxu0 %v4376
    %4722 = vmatpush1.msra.mxu0 %v4375
    %4723 = vmatprep.subr.mxu0 %v4368
    %4724 = vmatpush1.msra.mxu0 %v4367
    %4725 = vmatprep.subr.mxu0 %v4360
    %4726 = vmatpush1.msra.mxu0 %v4359
    %4727 = vmatprep.subr.mxu0 %v4608
    %4728 = vmatpush2.msra.mxu0 %v4607
    %4729 = vmatprep.subr.mxu0 %v4600
    %4730 = vmatpush2.msra.mxu0 %v4599
    %4731 = vmatprep.subr.mxu0 %v4592
    %4732 = vmatpush2.msra.mxu0 %v4591
    %4733 = vmatprep.subr.mxu0 %v4584
    %4734 = vmatpush2.msra.mxu0 %v4583
    %4735 = vmatprep.subr.mxu0 %v4576
    %4736 = vmatpush2.msra.mxu0 %v4575
    %4737 = vmatprep.subr.mxu0 %v4568
    %4738 = vmatpush2.msra.mxu0 %v4567
    %4739 = vmatprep.subr.mxu0 %v4560
    %4740 = vmatpush2.msra.mxu0 %v4559
    %4741 = vmatprep.subr.mxu0 %v4552
    %4742 = vmatpush2.msra.mxu0 %v4551
    %4743 = vmatprep.subr.mxu0 %v4544
    %4744 = vmatpush2.msra.mxu0 %v4543
    %4745 = vmatprep.subr.mxu0 %v4536
    %4746 = vmatpush2.msra.mxu0 %v4535
    %4747 = vmatprep.subr.mxu0 %v4528
    %4748 = vmatpush2.msra.mxu0 %v4527
    %4749 = vmatprep.subr.mxu0 %v4520
    %4750 = vmatpush2.msra.mxu0 %v4519
    %4751 = vmatprep.subr.mxu0 %v4512
    %4752 = vmatpush2.msra.mxu0 %v4511
    %4753 = vmatprep.subr.mxu0 %v4504
    %4754 = vmatpush2.msra.mxu0 %v4503
    %4755 = vmatprep.subr.mxu0 %v4496
    %4756 = vmatpush2.msra.mxu0 %v4495
    %4757 = vmatprep.subr.mxu0 %v4488
    %4758 = vmatpush2.msra.mxu0 %v4487
    %4759 = vmatprep.mubr.f32.mxu0 %v4621
    %4760 = vmatmul.mubr.f32.gmra.mxu0 %v4617
    %v4761 = vpop.f32.mrf.mxu0
    %v4762 = vadd.f32 0.0, %v4761
    %v4763 = vpop.f32.mrf.mxu0
    %v4764 = vadd.f32 0.0, %v4763
    %4765 = vdwg.mxu0
    %4766 = vmatprep.subr.mxu0 %v4482
    %4767 = vmatpush1.msra.mxu0 %v4481
    %4768 = vmatprep.subr.mxu0 %v4474
    %4769 = vmatpush1.msra.mxu0 %v4473
    %4770 = vmatprep.subr.mxu0 %v4466
    %4771 = vmatpush1.msra.mxu0 %v4465
    %4772 = vmatprep.subr.mxu0 %v4458
    %4773 = vmatpush1.msra.mxu0 %v4457
    %4774 = vmatprep.subr.mxu0 %v4450
    %4775 = vmatpush1.msra.mxu0 %v4449
    %4776 = vmatprep.subr.mxu0 %v4442
    %4777 = vmatpush1.msra.mxu0 %v4441
    %4778 = vmatprep.subr.mxu0 %v4434
    %4779 = vmatpush1.msra.mxu0 %v4433
    %4780 = vmatprep.subr.mxu0 %v4426
    %4781 = vmatpush1.msra.mxu0 %v4425
    %4782 = vmatprep.subr.mxu0 %v4418
    %4783 = vmatpush1.msra.mxu0 %v4417
    %4784 = vmatprep.subr.mxu0 %v4410
    %4785 = vmatpush1.msra.mxu0 %v4409
    %4786 = vmatprep.subr.mxu0 %v4402
    %4787 = vmatpush1.msra.mxu0 %v4401
    %4788 = vmatprep.subr.mxu0 %v4394
    %4789 = vmatpush1.msra.mxu0 %v4393
    %4790 = vmatprep.subr.mxu0 %v4386
    %4791 = vmatpush1.msra.mxu0 %v4385
    %4792 = vmatprep.subr.mxu0 %v4378
    %4793 = vmatpush1.msra.mxu0 %v4377
    %4794 = vmatprep.subr.mxu0 %v4370
    %4795 = vmatpush1.msra.mxu0 %v4369
    %4796 = vmatprep.subr.mxu0 %v4362
    %4797 = vmatpush1.msra.mxu0 %v4361
    %4798 = vmatprep.subr.mxu0 %v4610
    %4799 = vmatpush2.msra.mxu0 %v4609
    %4800 = vmatprep.subr.mxu0 %v4602
    %4801 = vmatpush2.msra.mxu0 %v4601
    %4802 = vmatprep.subr.mxu0 %v4594
    %4803 = vmatpush2.msra.mxu0 %v4593
    %4804 = vmatprep.subr.mxu0 %v4586
    %4805 = vmatpush2.msra.mxu0 %v4585
    %4806 = vmatprep.subr.mxu0 %v4578
    %4807 = vmatpush2.msra.mxu0 %v4577
    %4808 = vmatprep.subr.mxu0 %v4570
    %4809 = vmatpush2.msra.mxu0 %v4569
    %4810 = vmatprep.subr.mxu0 %v4562
    %4811 = vmatpush2.msra.mxu0 %v4561
    %4812 = vmatprep.subr.mxu0 %v4554
    %4813 = vmatpush2.msra.mxu0 %v4553
    %4814 = vmatprep.subr.mxu0 %v4546
    %4815 = vmatpush2.msra.mxu0 %v4545
    %4816 = vmatprep.subr.mxu0 %v4538
    %4817 = vmatpush2.msra.mxu0 %v4537
    %4818 = vmatprep.subr.mxu0 %v4530
    %4819 = vmatpush2.msra.mxu0 %v4529
    %4820 = vmatprep.subr.mxu0 %v4522
    %4821 = vmatpush2.msra.mxu0 %v4521
    %4822 = vmatprep.subr.mxu0 %v4514
    %4823 = vmatpush2.msra.mxu0 %v4513
    %4824 = vmatprep.subr.mxu0 %v4506
    %4825 = vmatpush2.msra.mxu0 %v4505
    %4826 = vmatprep.subr.mxu0 %v4498
    %4827 = vmatpush2.msra.mxu0 %v4497
    %4828 = vmatprep.subr.mxu0 %v4490
    %4829 = vmatpush2.msra.mxu0 %v4489
    %4830 = vmatprep.mubr.f32.mxu0 %v4621
    %4831 = vmatmul.mubr.f32.gmra.mxu0 %v4617
    %v4832 = vpop.f32.mrf.mxu0
    %v4833 = vadd.f32 0.0, %v4832
    %v4834 = vpop.f32.mrf.mxu0
    %v4835 = vadd.f32 0.0, %v4834
    %4836 = vdwg.mxu0
    %4837 = vmatprep.subr.mxu0 %v4484
    %4838 = vmatpush1.msra.mxu0 %v4483
    %4839 = vmatprep.subr.mxu0 %v4476
    %4840 = vmatpush1.msra.mxu0 %v4475
    %4841 = vmatprep.subr.mxu0 %v4468
    %4842 = vmatpush1.msra.mxu0 %v4467
    %4843 = vmatprep.subr.mxu0 %v4460
    %4844 = vmatpush1.msra.mxu0 %v4459
    %4845 = vmatprep.subr.mxu0 %v4452
    %4846 = vmatpush1.msra.mxu0 %v4451
    %4847 = vmatprep.subr.mxu0 %v4444
    %4848 = vmatpush1.msra.mxu0 %v4443
    %4849 = vmatprep.subr.mxu0 %v4436
    %4850 = vmatpush1.msra.mxu0 %v4435
    %4851 = vmatprep.subr.mxu0 %v4428
    %4852 = vmatpush1.msra.mxu0 %v4427
    %4853 = vmatprep.subr.mxu0 %v4420
    %4854 = vmatpush1.msra.mxu0 %v4419
    %4855 = vmatprep.subr.mxu0 %v4412
    %4856 = vmatpush1.msra.mxu0 %v4411
    %4857 = vmatprep.subr.mxu0 %v4404
    %4858 = vmatpush1.msra.mxu0 %v4403
    %4859 = vmatprep.subr.mxu0 %v4396
    %4860 = vmatpush1.msra.mxu0 %v4395
    %4861 = vmatprep.subr.mxu0 %v4388
    %4862 = vmatpush1.msra.mxu0 %v4387
    %4863 = vmatprep.subr.mxu0 %v4380
    %4864 = vmatpush1.msra.mxu0 %v4379
    %4865 = vmatprep.subr.mxu0 %v4372
    %4866 = vmatpush1.msra.mxu0 %v4371
    %4867 = vmatprep.subr.mxu0 %v4364
    %4868 = vmatpush1.msra.mxu0 %v4363
    %4869 = vmatprep.subr.mxu0 %v4612
    %4870 = vmatpush2.msra.mxu0 %v4611
    %4871 = vmatprep.subr.mxu0 %v4604
    %4872 = vmatpush2.msra.mxu0 %v4603
    %4873 = vmatprep.subr.mxu0 %v4596
    %4874 = vmatpush2.msra.mxu0 %v4595
    %4875 = vmatprep.subr.mxu0 %v4588
    %4876 = vmatpush2.msra.mxu0 %v4587
    %4877 = vmatprep.subr.mxu0 %v4580
    %4878 = vmatpush2.msra.mxu0 %v4579
    %4879 = vmatprep.subr.mxu0 %v4572
    %4880 = vmatpush2.msra.mxu0 %v4571
    %4881 = vmatprep.subr.mxu0 %v4564
    %4882 = vmatpush2.msra.mxu0 %v4563
    %4883 = vmatprep.subr.mxu0 %v4556
    %4884 = vmatpush2.msra.mxu0 %v4555
    %4885 = vmatprep.subr.mxu0 %v4548
    %4886 = vmatpush2.msra.mxu0 %v4547
    %4887 = vmatprep.subr.mxu0 %v4540
    %4888 = vmatpush2.msra.mxu0 %v4539
    %4889 = vmatprep.subr.mxu0 %v4532
    %4890 = vmatpush2.msra.mxu0 %v4531
    %4891 = vmatprep.subr.mxu0 %v4524
    %4892 = vmatpush2.msra.mxu0 %v4523
    %4893 = vmatprep.subr.mxu0 %v4516
    %4894 = vmatpush2.msra.mxu0 %v4515
    %4895 = vmatprep.subr.mxu0 %v4508
    %4896 = vmatpush2.msra.mxu0 %v4507
    %4897 = vmatprep.subr.mxu0 %v4500
    %4898 = vmatpush2.msra.mxu0 %v4499
    %4899 = vmatprep.subr.mxu0 %v4492
    %4900 = vmatpush2.msra.mxu0 %v4491
    %4901 = vmatprep.mubr.f32.mxu0 %v4621
    %4902 = vmatmul.mubr.f32.gmra.mxu0 %v4617
    %v4903 = vpop.f32.mrf.mxu0
    %v4904 = vadd.f32 0.0, %v4903
    %v4905 = vpop.f32.mrf.mxu0
    %v4906 = vadd.f32 0.0, %v4905
    %4907 = vdwg.mxu0
    %v4916 = vcombine.low %v4691, %v4693
    %v4917 = vcombine.low %v4762, %v4764
    %v4918 = vcombine.low %v4833, %v4835
    %v4919 = vcombine.low %v4904, %v4906
    %v4921 = vunpack.c.l.s4 1966171168
    %v4922 = vunpack.c.0.s8 %v4921
    %v4923 = vlaneseq
    %v4924 = vshrl.u32 %v4923, 7
    %v4925 = vsub.s32 %v4922, %v4924
    %v4926 = vrot.slane %v4916, %v4925
    %v4928 = vunpack.c.l.s4 1966171168
    %v4929 = vunpack.c.0.s8 %v4928
    %v4930 = vlaneseq
    %v4931 = vshrl.u32 %v4930, 7
    %v4932 = vsub.s32 %v4929, %v4931
    %v4933 = vrot.slane %v4917, %v4932
    %v4935 = vunpack.c.l.s4 1966171168
    %v4936 = vunpack.c.0.s8 %v4935
    %v4937 = vlaneseq
    %v4938 = vshrl.u32 %v4937, 7
    %v4939 = vsub.s32 %v4936, %v4938
    %v4940 = vrot.slane %v4918, %v4939
    %v4942 = vunpack.c.l.s4 1966171168
    %v4943 = vunpack.c.0.s8 %v4942
    %v4944 = vlaneseq
    %v4945 = vshrl.u32 %v4944, 7
    %v4946 = vsub.s32 %v4943, %v4945
    %v4947 = vrot.slane %v4919, %v4946
    %v4948 = vcombine.low %v4926, %v4933
    %v4949 = vcombine.low %v4940, %v4947
    %v4951 = vunpack.c.l.s4 1966171168
    %v4952 = vunpack.c.0.s8 %v4951
    %v4953 = vlaneseq
    %v4954 = vshrl.u32 %v4953, 7
    %v4955 = vsub.s32 %v4952, %v4954
    %v4956 = vrot.slane %v4948, %v4955
    %v4958 = vunpack.c.l.s4 1966171168
    %v4959 = vunpack.c.0.s8 %v4958
    %v4960 = vlaneseq
    %v4961 = vshrl.u32 %v4960, 7
    %v4962 = vsub.s32 %v4959, %v4961
    %v4963 = vrot.slane %v4949, %v4962
    %v4964 = vcombine.low %v4956, %v4963
    %v4966 = vadd.f32 %v4356, %v4964
    %v4967 = vxor.u32 %v4966, 2147483648
    %v4968 = vmul.f32 %v4967, 1.442695
    %v4969 = vpow.pop %v4968
    %v4970 = vadd.f32 %v4969, 1.0
    %v4971 = vrcp.pop %v4970
    %v4972 = vmul.f32 1.0, %v4971
    %v4974 = vrot.slane %v4966, 2
    %v4976 = vxor.u32 %v4974, 2147483648
    %v4977 = vmul.f32 %v4976, 1.442695
    %v4978 = vpow.pop %v4977
    %v4979 = vadd.f32 %v4978, 1.0
    %v4980 = vrcp.pop %v4979
    %v4981 = vmul.f32 1.0, %v4980
    %v4982 = vrot.slane %v4966, 4
    %v4984 = vtanh.pop %v4982
    %v4985 = vrot.slane %v4966, 6
    %v4987 = vxor.u32 %v4985, 2147483648
    %v4988 = vmul.f32 %v4987, 1.442695
    %v4989 = vpow.pop %v4988
    %v4990 = vadd.f32 %v4989, 1.0
    %v4991 = vrcp.pop %v4990
    %v4992 = vmul.f32 1.0, %v4991
    %v4993 = vmul.f32 %v4981, %v4347
    %v4994 = vmul.f32 %v4972, %v4984
    %v4995 = vadd.f32 %v4993, %v4994
    %v4996 = vtanh.pop %v4995
    %v4997 = vmul.f32 %v4992, %v4996
    %s4998 = scalar_lea.vmem [#allocation11], 5
    %4999 = vst.msk [vmem:[%s4998] ss:$8 sm:$0x3] %vm64, %v4997
    %5000 = vst.msk [vmem:[%s4998] ss:$8 sm:$0x0] %vm64, %v4997
    %s5001 = scalar_lea.vmem [#allocation4], 6
    %v5002 = vld [vmem:[%s5001] ss:$8 sm:$0xf]
    %v5003 = vld [vmem:[%s5001] ss:$8 sm:$0xf0]
    %v5004 = vor.u32 %v5002, %v5003
    %v5005 = vld [vmem:[%s7] sm:$0xff]
    %v5006 = vld [vmem:[%s7 + $0x8] sm:$0xff]
    %v5007 = vld [vmem:[%s7 + $0x10] sm:$0xff]
    %v5008 = vld [vmem:[%s7 + $0x18] sm:$0xff]
    %v5009 = vld [vmem:[%s7 + $0x20] sm:$0xff]
    %v5010 = vld [vmem:[%s7 + $0x28] sm:$0xff]
    %v5011 = vld [vmem:[%s7 + $0x30] sm:$0xff]
    %v5012 = vld [vmem:[%s7 + $0x38] sm:$0xff]
    %v5013 = vld [vmem:[%s7 + $0x40] sm:$0xff]
    %v5014 = vld [vmem:[%s7 + $0x48] sm:$0xff]
    %v5015 = vld [vmem:[%s7 + $0x50] sm:$0xff]
    %v5016 = vld [vmem:[%s7 + $0x58] sm:$0xff]
    %v5017 = vld [vmem:[%s7 + $0x60] sm:$0xff]
    %v5018 = vld [vmem:[%s7 + $0x68] sm:$0xff]
    %v5019 = vld [vmem:[%s7 + $0x70] sm:$0xff]
    %v5020 = vld [vmem:[%s7 + $0x78] sm:$0xff]
    %v5021 = vld [vmem:[%s7 + $0x80] sm:$0xff]
    %v5022 = vld [vmem:[%s7 + $0x88] sm:$0xff]
    %v5023 = vld [vmem:[%s7 + $0x90] sm:$0xff]
    %v5024 = vld [vmem:[%s7 + $0x98] sm:$0xff]
    %v5025 = vld [vmem:[%s7 + $0xa0] sm:$0xff]
    %v5026 = vld [vmem:[%s7 + $0xa8] sm:$0xff]
    %v5027 = vld [vmem:[%s7 + $0xb0] sm:$0xff]
    %v5028 = vld [vmem:[%s7 + $0xb8] sm:$0xff]
    %v5029 = vld [vmem:[%s7 + $0xc0] sm:$0xff]
    %v5030 = vld [vmem:[%s7 + $0xc8] sm:$0xff]
    %v5031 = vld [vmem:[%s7 + $0xd0] sm:$0xff]
    %v5032 = vld [vmem:[%s7 + $0xd8] sm:$0xff]
    %v5033 = vld [vmem:[%s7 + $0xe0] sm:$0xff]
    %v5034 = vld [vmem:[%s7 + $0xe8] sm:$0xff]
    %v5035 = vld [vmem:[%s7 + $0xf0] sm:$0xff]
    %v5036 = vld [vmem:[%s7 + $0xf8] sm:$0xff]
    %v5037 = vld [vmem:[%s7 + $0x100] sm:$0xff]
    %v5038 = vld [vmem:[%s7 + $0x108] sm:$0xff]
    %v5039 = vld [vmem:[%s7 + $0x110] sm:$0xff]
    %v5040 = vld [vmem:[%s7 + $0x118] sm:$0xff]
    %v5041 = vld [vmem:[%s7 + $0x120] sm:$0xff]
    %v5042 = vld [vmem:[%s7 + $0x128] sm:$0xff]
    %v5043 = vld [vmem:[%s7 + $0x130] sm:$0xff]
    %v5044 = vld [vmem:[%s7 + $0x138] sm:$0xff]
    %v5045 = vld [vmem:[%s7 + $0x140] sm:$0xff]
    %v5046 = vld [vmem:[%s7 + $0x148] sm:$0xff]
    %v5047 = vld [vmem:[%s7 + $0x150] sm:$0xff]
    %v5048 = vld [vmem:[%s7 + $0x158] sm:$0xff]
    %v5049 = vld [vmem:[%s7 + $0x160] sm:$0xff]
    %v5050 = vld [vmem:[%s7 + $0x168] sm:$0xff]
    %v5051 = vld [vmem:[%s7 + $0x170] sm:$0xff]
    %v5052 = vld [vmem:[%s7 + $0x178] sm:$0xff]
    %v5053 = vld [vmem:[%s7 + $0x180] sm:$0xff]
    %v5054 = vld [vmem:[%s7 + $0x188] sm:$0xff]
    %v5055 = vld [vmem:[%s7 + $0x190] sm:$0xff]
    %v5056 = vld [vmem:[%s7 + $0x198] sm:$0xff]
    %v5057 = vld [vmem:[%s7 + $0x1a0] sm:$0xff]
    %v5058 = vld [vmem:[%s7 + $0x1a8] sm:$0xff]
    %v5059 = vld [vmem:[%s7 + $0x1b0] sm:$0xff]
    %v5060 = vld [vmem:[%s7 + $0x1b8] sm:$0xff]
    %v5061 = vld [vmem:[%s7 + $0x1c0] sm:$0xff]
    %v5062 = vld [vmem:[%s7 + $0x1c8] sm:$0xff]
    %v5063 = vld [vmem:[%s7 + $0x1d0] sm:$0xff]
    %v5064 = vld [vmem:[%s7 + $0x1d8] sm:$0xff]
    %v5065 = vld [vmem:[%s7 + $0x1e0] sm:$0xff]
    %v5066 = vld [vmem:[%s7 + $0x1e8] sm:$0xff]
    %v5067 = vld [vmem:[%s7 + $0x1f0] sm:$0xff]
    %v5068 = vld [vmem:[%s7 + $0x1f8] sm:$0xff]
    %v5069 = vld [vmem:[%s7 + $0x200] sm:$0xff]
    %v5070 = vld [vmem:[%s7 + $0x208] sm:$0xff]
    %v5071 = vld [vmem:[%s7 + $0x210] sm:$0xff]
    %v5072 = vld [vmem:[%s7 + $0x218] sm:$0xff]
    %v5073 = vld [vmem:[%s7 + $0x220] sm:$0xff]
    %v5074 = vld [vmem:[%s7 + $0x228] sm:$0xff]
    %v5075 = vld [vmem:[%s7 + $0x230] sm:$0xff]
    %v5076 = vld [vmem:[%s7 + $0x238] sm:$0xff]
    %v5077 = vld [vmem:[%s7 + $0x240] sm:$0xff]
    %v5078 = vld [vmem:[%s7 + $0x248] sm:$0xff]
    %v5079 = vld [vmem:[%s7 + $0x250] sm:$0xff]
    %v5080 = vld [vmem:[%s7 + $0x258] sm:$0xff]
    %v5081 = vld [vmem:[%s7 + $0x260] sm:$0xff]
    %v5082 = vld [vmem:[%s7 + $0x268] sm:$0xff]
    %v5083 = vld [vmem:[%s7 + $0x270] sm:$0xff]
    %v5084 = vld [vmem:[%s7 + $0x278] sm:$0xff]
    %v5085 = vld [vmem:[%s7 + $0x280] sm:$0xff]
    %v5086 = vld [vmem:[%s7 + $0x288] sm:$0xff]
    %v5087 = vld [vmem:[%s7 + $0x290] sm:$0xff]
    %v5088 = vld [vmem:[%s7 + $0x298] sm:$0xff]
    %v5089 = vld [vmem:[%s7 + $0x2a0] sm:$0xff]
    %v5090 = vld [vmem:[%s7 + $0x2a8] sm:$0xff]
    %v5091 = vld [vmem:[%s7 + $0x2b0] sm:$0xff]
    %v5092 = vld [vmem:[%s7 + $0x2b8] sm:$0xff]
    %v5093 = vld [vmem:[%s7 + $0x2c0] sm:$0xff]
    %v5094 = vld [vmem:[%s7 + $0x2c8] sm:$0xff]
    %v5095 = vld [vmem:[%s7 + $0x2d0] sm:$0xff]
    %v5096 = vld [vmem:[%s7 + $0x2d8] sm:$0xff]
    %v5097 = vld [vmem:[%s7 + $0x2e0] sm:$0xff]
    %v5098 = vld [vmem:[%s7 + $0x2e8] sm:$0xff]
    %v5099 = vld [vmem:[%s7 + $0x2f0] sm:$0xff]
    %v5100 = vld [vmem:[%s7 + $0x2f8] sm:$0xff]
    %v5101 = vld [vmem:[%s7 + $0x300] sm:$0xff]
    %v5102 = vld [vmem:[%s7 + $0x308] sm:$0xff]
    %v5103 = vld [vmem:[%s7 + $0x310] sm:$0xff]
    %v5104 = vld [vmem:[%s7 + $0x318] sm:$0xff]
    %v5105 = vld [vmem:[%s7 + $0x320] sm:$0xff]
    %v5106 = vld [vmem:[%s7 + $0x328] sm:$0xff]
    %v5107 = vld [vmem:[%s7 + $0x330] sm:$0xff]
    %v5108 = vld [vmem:[%s7 + $0x338] sm:$0xff]
    %v5109 = vld [vmem:[%s7 + $0x340] sm:$0xff]
    %v5110 = vld [vmem:[%s7 + $0x348] sm:$0xff]
    %v5111 = vld [vmem:[%s7 + $0x350] sm:$0xff]
    %v5112 = vld [vmem:[%s7 + $0x358] sm:$0xff]
    %v5113 = vld [vmem:[%s7 + $0x360] sm:$0xff]
    %v5114 = vld [vmem:[%s7 + $0x368] sm:$0xff]
    %v5115 = vld [vmem:[%s7 + $0x370] sm:$0xff]
    %v5116 = vld [vmem:[%s7 + $0x378] sm:$0xff]
    %v5117 = vld [vmem:[%s7 + $0x380] sm:$0xff]
    %v5118 = vld [vmem:[%s7 + $0x388] sm:$0xff]
    %v5119 = vld [vmem:[%s7 + $0x390] sm:$0xff]
    %v5120 = vld [vmem:[%s7 + $0x398] sm:$0xff]
    %v5121 = vld [vmem:[%s7 + $0x3a0] sm:$0xff]
    %v5122 = vld [vmem:[%s7 + $0x3a8] sm:$0xff]
    %v5123 = vld [vmem:[%s7 + $0x3b0] sm:$0xff]
    %v5124 = vld [vmem:[%s7 + $0x3b8] sm:$0xff]
    %v5125 = vld [vmem:[%s7 + $0x3c0] sm:$0xff]
    %v5126 = vld [vmem:[%s7 + $0x3c8] sm:$0xff]
    %v5127 = vld [vmem:[%s7 + $0x3d0] sm:$0xff]
    %v5128 = vld [vmem:[%s7 + $0x3d8] sm:$0xff]
    %v5129 = vld [vmem:[%s7 + $0x3e0] sm:$0xff]
    %v5130 = vld [vmem:[%s7 + $0x3e8] sm:$0xff]
    %v5131 = vld [vmem:[%s7 + $0x3f0] sm:$0xff]
    %v5132 = vld [vmem:[%s7 + $0x3f8] sm:$0xff]
    %v5133 = vld [vmem:[%s7 + $0x400] sm:$0xff]
    %v5134 = vld [vmem:[%s7 + $0x408] sm:$0xff]
    %v5135 = vld [vmem:[%s7 + $0x410] sm:$0xff]
    %v5136 = vld [vmem:[%s7 + $0x418] sm:$0xff]
    %v5137 = vld [vmem:[%s7 + $0x420] sm:$0xff]
    %v5138 = vld [vmem:[%s7 + $0x428] sm:$0xff]
    %v5139 = vld [vmem:[%s7 + $0x430] sm:$0xff]
    %v5140 = vld [vmem:[%s7 + $0x438] sm:$0xff]
    %v5141 = vld [vmem:[%s7 + $0x440] sm:$0xff]
    %v5142 = vld [vmem:[%s7 + $0x448] sm:$0xff]
    %v5143 = vld [vmem:[%s7 + $0x450] sm:$0xff]
    %v5144 = vld [vmem:[%s7 + $0x458] sm:$0xff]
    %v5145 = vld [vmem:[%s7 + $0x460] sm:$0xff]
    %v5146 = vld [vmem:[%s7 + $0x468] sm:$0xff]
    %v5147 = vld [vmem:[%s7 + $0x470] sm:$0xff]
    %v5148 = vld [vmem:[%s7 + $0x478] sm:$0xff]
    %v5149 = vld [vmem:[%s7 + $0x480] sm:$0xff]
    %v5150 = vld [vmem:[%s7 + $0x488] sm:$0xff]
    %v5151 = vld [vmem:[%s7 + $0x490] sm:$0xff]
    %v5152 = vld [vmem:[%s7 + $0x498] sm:$0xff]
    %v5153 = vld [vmem:[%s7 + $0x4a0] sm:$0xff]
    %v5154 = vld [vmem:[%s7 + $0x4a8] sm:$0xff]
    %v5155 = vld [vmem:[%s7 + $0x4b0] sm:$0xff]
    %v5156 = vld [vmem:[%s7 + $0x4b8] sm:$0xff]
    %v5157 = vld [vmem:[%s7 + $0x4c0] sm:$0xff]
    %v5158 = vld [vmem:[%s7 + $0x4c8] sm:$0xff]
    %v5159 = vld [vmem:[%s7 + $0x4d0] sm:$0xff]
    %v5160 = vld [vmem:[%s7 + $0x4d8] sm:$0xff]
    %v5161 = vld [vmem:[%s7 + $0x4e0] sm:$0xff]
    %v5162 = vld [vmem:[%s7 + $0x4e8] sm:$0xff]
    %v5163 = vld [vmem:[%s7 + $0x4f0] sm:$0xff]
    %v5164 = vld [vmem:[%s7 + $0x4f8] sm:$0xff]
    %v5165 = vld [vmem:[%s7 + $0x500] sm:$0xff]
    %v5166 = vld [vmem:[%s7 + $0x508] sm:$0xff]
    %v5167 = vld [vmem:[%s7 + $0x510] sm:$0xff]
    %v5168 = vld [vmem:[%s7 + $0x518] sm:$0xff]
    %v5169 = vld [vmem:[%s7 + $0x520] sm:$0xff]
    %v5170 = vld [vmem:[%s7 + $0x528] sm:$0xff]
    %v5171 = vld [vmem:[%s7 + $0x530] sm:$0xff]
    %v5172 = vld [vmem:[%s7 + $0x538] sm:$0xff]
    %v5173 = vld [vmem:[%s7 + $0x540] sm:$0xff]
    %v5174 = vld [vmem:[%s7 + $0x548] sm:$0xff]
    %v5175 = vld [vmem:[%s7 + $0x550] sm:$0xff]
    %v5176 = vld [vmem:[%s7 + $0x558] sm:$0xff]
    %v5177 = vld [vmem:[%s7 + $0x560] sm:$0xff]
    %v5178 = vld [vmem:[%s7 + $0x568] sm:$0xff]
    %v5179 = vld [vmem:[%s7 + $0x570] sm:$0xff]
    %v5180 = vld [vmem:[%s7 + $0x578] sm:$0xff]
    %v5181 = vld [vmem:[%s7 + $0x580] sm:$0xff]
    %v5182 = vld [vmem:[%s7 + $0x588] sm:$0xff]
    %v5183 = vld [vmem:[%s7 + $0x590] sm:$0xff]
    %v5184 = vld [vmem:[%s7 + $0x598] sm:$0xff]
    %v5185 = vld [vmem:[%s7 + $0x5a0] sm:$0xff]
    %v5186 = vld [vmem:[%s7 + $0x5a8] sm:$0xff]
    %v5187 = vld [vmem:[%s7 + $0x5b0] sm:$0xff]
    %v5188 = vld [vmem:[%s7 + $0x5b8] sm:$0xff]
    %v5189 = vld [vmem:[%s7 + $0x5c0] sm:$0xff]
    %v5190 = vld [vmem:[%s7 + $0x5c8] sm:$0xff]
    %v5191 = vld [vmem:[%s7 + $0x5d0] sm:$0xff]
    %v5192 = vld [vmem:[%s7 + $0x5d8] sm:$0xff]
    %v5193 = vld [vmem:[%s7 + $0x5e0] sm:$0xff]
    %v5194 = vld [vmem:[%s7 + $0x5e8] sm:$0xff]
    %v5195 = vld [vmem:[%s7 + $0x5f0] sm:$0xff]
    %v5196 = vld [vmem:[%s7 + $0x5f8] sm:$0xff]
    %v5197 = vld [vmem:[%s7 + $0x600] sm:$0xff]
    %v5198 = vld [vmem:[%s7 + $0x608] sm:$0xff]
    %v5199 = vld [vmem:[%s7 + $0x610] sm:$0xff]
    %v5200 = vld [vmem:[%s7 + $0x618] sm:$0xff]
    %v5201 = vld [vmem:[%s7 + $0x620] sm:$0xff]
    %v5202 = vld [vmem:[%s7 + $0x628] sm:$0xff]
    %v5203 = vld [vmem:[%s7 + $0x630] sm:$0xff]
    %v5204 = vld [vmem:[%s7 + $0x638] sm:$0xff]
    %v5205 = vld [vmem:[%s7 + $0x640] sm:$0xff]
    %v5206 = vld [vmem:[%s7 + $0x648] sm:$0xff]
    %v5207 = vld [vmem:[%s7 + $0x650] sm:$0xff]
    %v5208 = vld [vmem:[%s7 + $0x658] sm:$0xff]
    %v5209 = vld [vmem:[%s7 + $0x660] sm:$0xff]
    %v5210 = vld [vmem:[%s7 + $0x668] sm:$0xff]
    %v5211 = vld [vmem:[%s7 + $0x670] sm:$0xff]
    %v5212 = vld [vmem:[%s7 + $0x678] sm:$0xff]
    %v5213 = vld [vmem:[%s7 + $0x680] sm:$0xff]
    %v5214 = vld [vmem:[%s7 + $0x688] sm:$0xff]
    %v5215 = vld [vmem:[%s7 + $0x690] sm:$0xff]
    %v5216 = vld [vmem:[%s7 + $0x698] sm:$0xff]
    %v5217 = vld [vmem:[%s7 + $0x6a0] sm:$0xff]
    %v5218 = vld [vmem:[%s7 + $0x6a8] sm:$0xff]
    %v5219 = vld [vmem:[%s7 + $0x6b0] sm:$0xff]
    %v5220 = vld [vmem:[%s7 + $0x6b8] sm:$0xff]
    %v5221 = vld [vmem:[%s7 + $0x6c0] sm:$0xff]
    %v5222 = vld [vmem:[%s7 + $0x6c8] sm:$0xff]
    %v5223 = vld [vmem:[%s7 + $0x6d0] sm:$0xff]
    %v5224 = vld [vmem:[%s7 + $0x6d8] sm:$0xff]
    %v5225 = vld [vmem:[%s7 + $0x6e0] sm:$0xff]
    %v5226 = vld [vmem:[%s7 + $0x6e8] sm:$0xff]
    %v5227 = vld [vmem:[%s7 + $0x6f0] sm:$0xff]
    %v5228 = vld [vmem:[%s7 + $0x6f8] sm:$0xff]
    %v5229 = vld [vmem:[%s7 + $0x700] sm:$0xff]
    %v5230 = vld [vmem:[%s7 + $0x708] sm:$0xff]
    %v5231 = vld [vmem:[%s7 + $0x710] sm:$0xff]
    %v5232 = vld [vmem:[%s7 + $0x718] sm:$0xff]
    %v5233 = vld [vmem:[%s7 + $0x720] sm:$0xff]
    %v5234 = vld [vmem:[%s7 + $0x728] sm:$0xff]
    %v5235 = vld [vmem:[%s7 + $0x730] sm:$0xff]
    %v5236 = vld [vmem:[%s7 + $0x738] sm:$0xff]
    %v5237 = vld [vmem:[%s7 + $0x740] sm:$0xff]
    %v5238 = vld [vmem:[%s7 + $0x748] sm:$0xff]
    %v5239 = vld [vmem:[%s7 + $0x750] sm:$0xff]
    %v5240 = vld [vmem:[%s7 + $0x758] sm:$0xff]
    %v5241 = vld [vmem:[%s7 + $0x760] sm:$0xff]
    %v5242 = vld [vmem:[%s7 + $0x768] sm:$0xff]
    %v5243 = vld [vmem:[%s7 + $0x770] sm:$0xff]
    %v5244 = vld [vmem:[%s7 + $0x778] sm:$0xff]
    %v5245 = vld [vmem:[%s7 + $0x780] sm:$0xff]
    %v5246 = vld [vmem:[%s7 + $0x788] sm:$0xff]
    %v5247 = vld [vmem:[%s7 + $0x790] sm:$0xff]
    %v5248 = vld [vmem:[%s7 + $0x798] sm:$0xff]
    %v5249 = vld [vmem:[%s7 + $0x7a0] sm:$0xff]
    %v5250 = vld [vmem:[%s7 + $0x7a8] sm:$0xff]
    %v5251 = vld [vmem:[%s7 + $0x7b0] sm:$0xff]
    %v5252 = vld [vmem:[%s7 + $0x7b8] sm:$0xff]
    %v5253 = vld [vmem:[%s7 + $0x7c0] sm:$0xff]
    %v5254 = vld [vmem:[%s7 + $0x7c8] sm:$0xff]
    %v5255 = vld [vmem:[%s7 + $0x7d0] sm:$0xff]
    %v5256 = vld [vmem:[%s7 + $0x7d8] sm:$0xff]
    %v5257 = vld [vmem:[%s7 + $0x7e0] sm:$0xff]
    %v5258 = vld [vmem:[%s7 + $0x7e8] sm:$0xff]
    %v5259 = vld [vmem:[%s7 + $0x7f0] sm:$0xff]
    %v5260 = vld [vmem:[%s7 + $0x7f8] sm:$0xff]
    %v5262 = vlaneseq
    %v5263 = vshrl.u32 %v5262, 7
    %v5264 = vsub.s32 0, %v5263
    %v5265 = vrot.slane %v4997, %v5264
    %v5266 = vlaneseq
    %v5267 = vshrl.u32 %v5266, 7
    %v5268 = vsub.s32 1, %v5267
    %v5269 = vrot.slane %v4997, %v5268
    %5272 = vmatprep.subr.mxu0 %v5126
    %5273 = vmatpush1.msra.mxu0 %v5125
    %5274 = vmatprep.subr.mxu0 %v5118
    %5275 = vmatpush1.msra.mxu0 %v5117
    %5276 = vmatprep.subr.mxu0 %v5110
    %5277 = vmatpush1.msra.mxu0 %v5109
    %5278 = vmatprep.subr.mxu0 %v5102
    %5279 = vmatpush1.msra.mxu0 %v5101
    %5280 = vmatprep.subr.mxu0 %v5094
    %5281 = vmatpush1.msra.mxu0 %v5093
    %5282 = vmatprep.subr.mxu0 %v5086
    %5283 = vmatpush1.msra.mxu0 %v5085
    %5284 = vmatprep.subr.mxu0 %v5078
    %5285 = vmatpush1.msra.mxu0 %v5077
    %5286 = vmatprep.subr.mxu0 %v5070
    %5287 = vmatpush1.msra.mxu0 %v5069
    %5288 = vmatprep.subr.mxu0 %v5062
    %5289 = vmatpush1.msra.mxu0 %v5061
    %5290 = vmatprep.subr.mxu0 %v5054
    %5291 = vmatpush1.msra.mxu0 %v5053
    %5292 = vmatprep.subr.mxu0 %v5046
    %5293 = vmatpush1.msra.mxu0 %v5045
    %5294 = vmatprep.subr.mxu0 %v5038
    %5295 = vmatpush1.msra.mxu0 %v5037
    %5296 = vmatprep.subr.mxu0 %v5030
    %5297 = vmatpush1.msra.mxu0 %v5029
    %5298 = vmatprep.subr.mxu0 %v5022
    %5299 = vmatpush1.msra.mxu0 %v5021
    %5300 = vmatprep.subr.mxu0 %v5014
    %5301 = vmatpush1.msra.mxu0 %v5013
    %5302 = vmatprep.subr.mxu0 %v5006
    %5303 = vmatpush1.msra.mxu0 %v5005
    %5304 = vmatprep.subr.mxu0 %v5254
    %5305 = vmatpush2.msra.mxu0 %v5253
    %5306 = vmatprep.subr.mxu0 %v5246
    %5307 = vmatpush2.msra.mxu0 %v5245
    %5308 = vmatprep.subr.mxu0 %v5238
    %5309 = vmatpush2.msra.mxu0 %v5237
    %5310 = vmatprep.subr.mxu0 %v5230
    %5311 = vmatpush2.msra.mxu0 %v5229
    %5312 = vmatprep.subr.mxu0 %v5222
    %5313 = vmatpush2.msra.mxu0 %v5221
    %5314 = vmatprep.subr.mxu0 %v5214
    %5315 = vmatpush2.msra.mxu0 %v5213
    %5316 = vmatprep.subr.mxu0 %v5206
    %5317 = vmatpush2.msra.mxu0 %v5205
    %5318 = vmatprep.subr.mxu0 %v5198
    %5319 = vmatpush2.msra.mxu0 %v5197
    %5320 = vmatprep.subr.mxu0 %v5190
    %5321 = vmatpush2.msra.mxu0 %v5189
    %5322 = vmatprep.subr.mxu0 %v5182
    %5323 = vmatpush2.msra.mxu0 %v5181
    %5324 = vmatprep.subr.mxu0 %v5174
    %5325 = vmatpush2.msra.mxu0 %v5173
    %5326 = vmatprep.subr.mxu0 %v5166
    %5327 = vmatpush2.msra.mxu0 %v5165
    %5328 = vmatprep.subr.mxu0 %v5158
    %5329 = vmatpush2.msra.mxu0 %v5157
    %5330 = vmatprep.subr.mxu0 %v5150
    %5331 = vmatpush2.msra.mxu0 %v5149
    %5332 = vmatprep.subr.mxu0 %v5142
    %5333 = vmatpush2.msra.mxu0 %v5141
    %5334 = vmatprep.subr.mxu0 %v5134
    %5335 = vmatpush2.msra.mxu0 %v5133
    %5336 = vmatprep.mubr.f32.mxu0 %v5269
    %5337 = vmatmul.mubr.f32.gmra.mxu0 %v5265
    %v5338 = vpop.f32.mrf.mxu0
    %v5339 = vadd.f32 0.0, %v5338
    %v5340 = vpop.f32.mrf.mxu0
    %v5341 = vadd.f32 0.0, %v5340
    %5342 = vdwg.mxu0
    %5343 = vmatprep.subr.mxu0 %v5128
    %5344 = vmatpush1.msra.mxu0 %v5127
    %5345 = vmatprep.subr.mxu0 %v5120
    %5346 = vmatpush1.msra.mxu0 %v5119
    %5347 = vmatprep.subr.mxu0 %v5112
    %5348 = vmatpush1.msra.mxu0 %v5111
    %5349 = vmatprep.subr.mxu0 %v5104
    %5350 = vmatpush1.msra.mxu0 %v5103
    %5351 = vmatprep.subr.mxu0 %v5096
    %5352 = vmatpush1.msra.mxu0 %v5095
    %5353 = vmatprep.subr.mxu0 %v5088
    %5354 = vmatpush1.msra.mxu0 %v5087
    %5355 = vmatprep.subr.mxu0 %v5080
    %5356 = vmatpush1.msra.mxu0 %v5079
    %5357 = vmatprep.subr.mxu0 %v5072
    %5358 = vmatpush1.msra.mxu0 %v5071
    %5359 = vmatprep.subr.mxu0 %v5064
    %5360 = vmatpush1.msra.mxu0 %v5063
    %5361 = vmatprep.subr.mxu0 %v5056
    %5362 = vmatpush1.msra.mxu0 %v5055
    %5363 = vmatprep.subr.mxu0 %v5048
    %5364 = vmatpush1.msra.mxu0 %v5047
    %5365 = vmatprep.subr.mxu0 %v5040
    %5366 = vmatpush1.msra.mxu0 %v5039
    %5367 = vmatprep.subr.mxu0 %v5032
    %5368 = vmatpush1.msra.mxu0 %v5031
    %5369 = vmatprep.subr.mxu0 %v5024
    %5370 = vmatpush1.msra.mxu0 %v5023
    %5371 = vmatprep.subr.mxu0 %v5016
    %5372 = vmatpush1.msra.mxu0 %v5015
    %5373 = vmatprep.subr.mxu0 %v5008
    %5374 = vmatpush1.msra.mxu0 %v5007
    %5375 = vmatprep.subr.mxu0 %v5256
    %5376 = vmatpush2.msra.mxu0 %v5255
    %5377 = vmatprep.subr.mxu0 %v5248
    %5378 = vmatpush2.msra.mxu0 %v5247
    %5379 = vmatprep.subr.mxu0 %v5240
    %5380 = vmatpush2.msra.mxu0 %v5239
    %5381 = vmatprep.subr.mxu0 %v5232
    %5382 = vmatpush2.msra.mxu0 %v5231
    %5383 = vmatprep.subr.mxu0 %v5224
    %5384 = vmatpush2.msra.mxu0 %v5223
    %5385 = vmatprep.subr.mxu0 %v5216
    %5386 = vmatpush2.msra.mxu0 %v5215
    %5387 = vmatprep.subr.mxu0 %v5208
    %5388 = vmatpush2.msra.mxu0 %v5207
    %5389 = vmatprep.subr.mxu0 %v5200
    %5390 = vmatpush2.msra.mxu0 %v5199
    %5391 = vmatprep.subr.mxu0 %v5192
    %5392 = vmatpush2.msra.mxu0 %v5191
    %5393 = vmatprep.subr.mxu0 %v5184
    %5394 = vmatpush2.msra.mxu0 %v5183
    %5395 = vmatprep.subr.mxu0 %v5176
    %5396 = vmatpush2.msra.mxu0 %v5175
    %5397 = vmatprep.subr.mxu0 %v5168
    %5398 = vmatpush2.msra.mxu0 %v5167
    %5399 = vmatprep.subr.mxu0 %v5160
    %5400 = vmatpush2.msra.mxu0 %v5159
    %5401 = vmatprep.subr.mxu0 %v5152
    %5402 = vmatpush2.msra.mxu0 %v5151
    %5403 = vmatprep.subr.mxu0 %v5144
    %5404 = vmatpush2.msra.mxu0 %v5143
    %5405 = vmatprep.subr.mxu0 %v5136
    %5406 = vmatpush2.msra.mxu0 %v5135
    %5407 = vmatprep.mubr.f32.mxu0 %v5269
    %5408 = vmatmul.mubr.f32.gmra.mxu0 %v5265
    %v5409 = vpop.f32.mrf.mxu0
    %v5410 = vadd.f32 0.0, %v5409
    %v5411 = vpop.f32.mrf.mxu0
    %v5412 = vadd.f32 0.0, %v5411
    %5413 = vdwg.mxu0
    %5414 = vmatprep.subr.mxu0 %v5130
    %5415 = vmatpush1.msra.mxu0 %v5129
    %5416 = vmatprep.subr.mxu0 %v5122
    %5417 = vmatpush1.msra.mxu0 %v5121
    %5418 = vmatprep.subr.mxu0 %v5114
    %5419 = vmatpush1.msra.mxu0 %v5113
    %5420 = vmatprep.subr.mxu0 %v5106
    %5421 = vmatpush1.msra.mxu0 %v5105
    %5422 = vmatprep.subr.mxu0 %v5098
    %5423 = vmatpush1.msra.mxu0 %v5097
    %5424 = vmatprep.subr.mxu0 %v5090
    %5425 = vmatpush1.msra.mxu0 %v5089
    %5426 = vmatprep.subr.mxu0 %v5082
    %5427 = vmatpush1.msra.mxu0 %v5081
    %5428 = vmatprep.subr.mxu0 %v5074
    %5429 = vmatpush1.msra.mxu0 %v5073
    %5430 = vmatprep.subr.mxu0 %v5066
    %5431 = vmatpush1.msra.mxu0 %v5065
    %5432 = vmatprep.subr.mxu0 %v5058
    %5433 = vmatpush1.msra.mxu0 %v5057
    %5434 = vmatprep.subr.mxu0 %v5050
    %5435 = vmatpush1.msra.mxu0 %v5049
    %5436 = vmatprep.subr.mxu0 %v5042
    %5437 = vmatpush1.msra.mxu0 %v5041
    %5438 = vmatprep.subr.mxu0 %v5034
    %5439 = vmatpush1.msra.mxu0 %v5033
    %5440 = vmatprep.subr.mxu0 %v5026
    %5441 = vmatpush1.msra.mxu0 %v5025
    %5442 = vmatprep.subr.mxu0 %v5018
    %5443 = vmatpush1.msra.mxu0 %v5017
    %5444 = vmatprep.subr.mxu0 %v5010
    %5445 = vmatpush1.msra.mxu0 %v5009
    %5446 = vmatprep.subr.mxu0 %v5258
    %5447 = vmatpush2.msra.mxu0 %v5257
    %5448 = vmatprep.subr.mxu0 %v5250
    %5449 = vmatpush2.msra.mxu0 %v5249
    %5450 = vmatprep.subr.mxu0 %v5242
    %5451 = vmatpush2.msra.mxu0 %v5241
    %5452 = vmatprep.subr.mxu0 %v5234
    %5453 = vmatpush2.msra.mxu0 %v5233
    %5454 = vmatprep.subr.mxu0 %v5226
    %5455 = vmatpush2.msra.mxu0 %v5225
    %5456 = vmatprep.subr.mxu0 %v5218
    %5457 = vmatpush2.msra.mxu0 %v5217
    %5458 = vmatprep.subr.mxu0 %v5210
    %5459 = vmatpush2.msra.mxu0 %v5209
    %5460 = vmatprep.subr.mxu0 %v5202
    %5461 = vmatpush2.msra.mxu0 %v5201
    %5462 = vmatprep.subr.mxu0 %v5194
    %5463 = vmatpush2.msra.mxu0 %v5193
    %5464 = vmatprep.subr.mxu0 %v5186
    %5465 = vmatpush2.msra.mxu0 %v5185
    %5466 = vmatprep.subr.mxu0 %v5178
    %5467 = vmatpush2.msra.mxu0 %v5177
    %5468 = vmatprep.subr.mxu0 %v5170
    %5469 = vmatpush2.msra.mxu0 %v5169
    %5470 = vmatprep.subr.mxu0 %v5162
    %5471 = vmatpush2.msra.mxu0 %v5161
    %5472 = vmatprep.subr.mxu0 %v5154
    %5473 = vmatpush2.msra.mxu0 %v5153
    %5474 = vmatprep.subr.mxu0 %v5146
    %5475 = vmatpush2.msra.mxu0 %v5145
    %5476 = vmatprep.subr.mxu0 %v5138
    %5477 = vmatpush2.msra.mxu0 %v5137
    %5478 = vmatprep.mubr.f32.mxu0 %v5269
    %5479 = vmatmul.mubr.f32.gmra.mxu0 %v5265
    %v5480 = vpop.f32.mrf.mxu0
    %v5481 = vadd.f32 0.0, %v5480
    %v5482 = vpop.f32.mrf.mxu0
    %v5483 = vadd.f32 0.0, %v5482
    %5484 = vdwg.mxu0
    %5485 = vmatprep.subr.mxu0 %v5132
    %5486 = vmatpush1.msra.mxu0 %v5131
    %5487 = vmatprep.subr.mxu0 %v5124
    %5488 = vmatpush1.msra.mxu0 %v5123
    %5489 = vmatprep.subr.mxu0 %v5116
    %5490 = vmatpush1.msra.mxu0 %v5115
    %5491 = vmatprep.subr.mxu0 %v5108
    %5492 = vmatpush1.msra.mxu0 %v5107
    %5493 = vmatprep.subr.mxu0 %v5100
    %5494 = vmatpush1.msra.mxu0 %v5099
    %5495 = vmatprep.subr.mxu0 %v5092
    %5496 = vmatpush1.msra.mxu0 %v5091
    %5497 = vmatprep.subr.mxu0 %v5084
    %5498 = vmatpush1.msra.mxu0 %v5083
    %5499 = vmatprep.subr.mxu0 %v5076
    %5500 = vmatpush1.msra.mxu0 %v5075
    %5501 = vmatprep.subr.mxu0 %v5068
    %5502 = vmatpush1.msra.mxu0 %v5067
    %5503 = vmatprep.subr.mxu0 %v5060
    %5504 = vmatpush1.msra.mxu0 %v5059
    %5505 = vmatprep.subr.mxu0 %v5052
    %5506 = vmatpush1.msra.mxu0 %v5051
    %5507 = vmatprep.subr.mxu0 %v5044
    %5508 = vmatpush1.msra.mxu0 %v5043
    %5509 = vmatprep.subr.mxu0 %v5036
    %5510 = vmatpush1.msra.mxu0 %v5035
    %5511 = vmatprep.subr.mxu0 %v5028
    %5512 = vmatpush1.msra.mxu0 %v5027
    %5513 = vmatprep.subr.mxu0 %v5020
    %5514 = vmatpush1.msra.mxu0 %v5019
    %5515 = vmatprep.subr.mxu0 %v5012
    %5516 = vmatpush1.msra.mxu0 %v5011
    %5517 = vmatprep.subr.mxu0 %v5260
    %5518 = vmatpush2.msra.mxu0 %v5259
    %5519 = vmatprep.subr.mxu0 %v5252
    %5520 = vmatpush2.msra.mxu0 %v5251
    %5521 = vmatprep.subr.mxu0 %v5244
    %5522 = vmatpush2.msra.mxu0 %v5243
    %5523 = vmatprep.subr.mxu0 %v5236
    %5524 = vmatpush2.msra.mxu0 %v5235
    %5525 = vmatprep.subr.mxu0 %v5228
    %5526 = vmatpush2.msra.mxu0 %v5227
    %5527 = vmatprep.subr.mxu0 %v5220
    %5528 = vmatpush2.msra.mxu0 %v5219
    %5529 = vmatprep.subr.mxu0 %v5212
    %5530 = vmatpush2.msra.mxu0 %v5211
    %5531 = vmatprep.subr.mxu0 %v5204
    %5532 = vmatpush2.msra.mxu0 %v5203
    %5533 = vmatprep.subr.mxu0 %v5196
    %5534 = vmatpush2.msra.mxu0 %v5195
    %5535 = vmatprep.subr.mxu0 %v5188
    %5536 = vmatpush2.msra.mxu0 %v5187
    %5537 = vmatprep.subr.mxu0 %v5180
    %5538 = vmatpush2.msra.mxu0 %v5179
    %5539 = vmatprep.subr.mxu0 %v5172
    %5540 = vmatpush2.msra.mxu0 %v5171
    %5541 = vmatprep.subr.mxu0 %v5164
    %5542 = vmatpush2.msra.mxu0 %v5163
    %5543 = vmatprep.subr.mxu0 %v5156
    %5544 = vmatpush2.msra.mxu0 %v5155
    %5545 = vmatprep.subr.mxu0 %v5148
    %5546 = vmatpush2.msra.mxu0 %v5147
    %5547 = vmatprep.subr.mxu0 %v5140
    %5548 = vmatpush2.msra.mxu0 %v5139
    %5549 = vmatprep.mubr.f32.mxu0 %v5269
    %5550 = vmatmul.mubr.f32.gmra.mxu0 %v5265
    %v5551 = vpop.f32.mrf.mxu0
    %v5552 = vadd.f32 0.0, %v5551
    %v5553 = vpop.f32.mrf.mxu0
    %v5554 = vadd.f32 0.0, %v5553
    %5555 = vdwg.mxu0
    %v5564 = vcombine.low %v5339, %v5341
    %v5565 = vcombine.low %v5410, %v5412
    %v5566 = vcombine.low %v5481, %v5483
    %v5567 = vcombine.low %v5552, %v5554
    %v5569 = vunpack.c.l.s4 1966171168
    %v5570 = vunpack.c.0.s8 %v5569
    %v5571 = vlaneseq
    %v5572 = vshrl.u32 %v5571, 7
    %v5573 = vsub.s32 %v5570, %v5572
    %v5574 = vrot.slane %v5564, %v5573
    %v5576 = vunpack.c.l.s4 1966171168
    %v5577 = vunpack.c.0.s8 %v5576
    %v5578 = vlaneseq
    %v5579 = vshrl.u32 %v5578, 7
    %v5580 = vsub.s32 %v5577, %v5579
    %v5581 = vrot.slane %v5565, %v5580
    %v5583 = vunpack.c.l.s4 1966171168
    %v5584 = vunpack.c.0.s8 %v5583
    %v5585 = vlaneseq
    %v5586 = vshrl.u32 %v5585, 7
    %v5587 = vsub.s32 %v5584, %v5586
    %v5588 = vrot.slane %v5566, %v5587
    %v5590 = vunpack.c.l.s4 1966171168
    %v5591 = vunpack.c.0.s8 %v5590
    %v5592 = vlaneseq
    %v5593 = vshrl.u32 %v5592, 7
    %v5594 = vsub.s32 %v5591, %v5593
    %v5595 = vrot.slane %v5567, %v5594
    %v5596 = vcombine.low %v5574, %v5581
    %v5597 = vcombine.low %v5588, %v5595
    %v5599 = vunpack.c.l.s4 1966171168
    %v5600 = vunpack.c.0.s8 %v5599
    %v5601 = vlaneseq
    %v5602 = vshrl.u32 %v5601, 7
    %v5603 = vsub.s32 %v5600, %v5602
    %v5604 = vrot.slane %v5596, %v5603
    %v5606 = vunpack.c.l.s4 1966171168
    %v5607 = vunpack.c.0.s8 %v5606
    %v5608 = vlaneseq
    %v5609 = vshrl.u32 %v5608, 7
    %v5610 = vsub.s32 %v5607, %v5609
    %v5611 = vrot.slane %v5597, %v5610
    %v5612 = vcombine.low %v5604, %v5611
    %v5614 = vadd.f32 %v5004, %v5612
    %v5615 = vxor.u32 %v5614, 2147483648
    %v5616 = vmul.f32 %v5615, 1.442695
    %v5617 = vpow.pop %v5616
    %v5618 = vadd.f32 %v5617, 1.0
    %v5619 = vrcp.pop %v5618
    %v5620 = vmul.f32 1.0, %v5619
    %v5622 = vrot.slane %v5614, 2
    %v5624 = vxor.u32 %v5622, 2147483648
    %v5625 = vmul.f32 %v5624, 1.442695
    %v5626 = vpow.pop %v5625
    %v5627 = vadd.f32 %v5626, 1.0
    %v5628 = vrcp.pop %v5627
    %v5629 = vmul.f32 1.0, %v5628
    %v5630 = vrot.slane %v5614, 4
    %v5632 = vtanh.pop %v5630
    %v5633 = vrot.slane %v5614, 6
    %v5635 = vxor.u32 %v5633, 2147483648
    %v5636 = vmul.f32 %v5635, 1.442695
    %v5637 = vpow.pop %v5636
    %v5638 = vadd.f32 %v5637, 1.0
    %v5639 = vrcp.pop %v5638
    %v5640 = vmul.f32 1.0, %v5639
    %v5641 = vmul.f32 %v5629, %v4995
    %v5642 = vmul.f32 %v5620, %v5632
    %v5643 = vadd.f32 %v5641, %v5642
    %v5644 = vtanh.pop %v5643
    %v5645 = vmul.f32 %v5640, %v5644
    %s5646 = scalar_lea.vmem [#allocation11], 6
    %5647 = vst.msk [vmem:[%s5646] ss:$8 sm:$0x3] %vm64, %v5645
    %5648 = vst.msk [vmem:[%s5646] ss:$8 sm:$0x0] %vm64, %v5645
    %s5649 = scalar_lea.vmem [#allocation4], 7
    %v5650 = vld [vmem:[%s5649] ss:$8 sm:$0xf]
    %v5651 = vld [vmem:[%s5649] ss:$8 sm:$0xf0]
    %v5652 = vor.u32 %v5650, %v5651
    %v5653 = vld [vmem:[%s7] sm:$0xff]
    %v5654 = vld [vmem:[%s7 + $0x8] sm:$0xff]
    %v5655 = vld [vmem:[%s7 + $0x10] sm:$0xff]
    %v5656 = vld [vmem:[%s7 + $0x18] sm:$0xff]
    %v5657 = vld [vmem:[%s7 + $0x20] sm:$0xff]
    %v5658 = vld [vmem:[%s7 + $0x28] sm:$0xff]
    %v5659 = vld [vmem:[%s7 + $0x30] sm:$0xff]
    %v5660 = vld [vmem:[%s7 + $0x38] sm:$0xff]
    %v5661 = vld [vmem:[%s7 + $0x40] sm:$0xff]
    %v5662 = vld [vmem:[%s7 + $0x48] sm:$0xff]
    %v5663 = vld [vmem:[%s7 + $0x50] sm:$0xff]
    %v5664 = vld [vmem:[%s7 + $0x58] sm:$0xff]
    %v5665 = vld [vmem:[%s7 + $0x60] sm:$0xff]
    %v5666 = vld [vmem:[%s7 + $0x68] sm:$0xff]
    %v5667 = vld [vmem:[%s7 + $0x70] sm:$0xff]
    %v5668 = vld [vmem:[%s7 + $0x78] sm:$0xff]
    %v5669 = vld [vmem:[%s7 + $0x80] sm:$0xff]
    %v5670 = vld [vmem:[%s7 + $0x88] sm:$0xff]
    %v5671 = vld [vmem:[%s7 + $0x90] sm:$0xff]
    %v5672 = vld [vmem:[%s7 + $0x98] sm:$0xff]
    %v5673 = vld [vmem:[%s7 + $0xa0] sm:$0xff]
    %v5674 = vld [vmem:[%s7 + $0xa8] sm:$0xff]
    %v5675 = vld [vmem:[%s7 + $0xb0] sm:$0xff]
    %v5676 = vld [vmem:[%s7 + $0xb8] sm:$0xff]
    %v5677 = vld [vmem:[%s7 + $0xc0] sm:$0xff]
    %v5678 = vld [vmem:[%s7 + $0xc8] sm:$0xff]
    %v5679 = vld [vmem:[%s7 + $0xd0] sm:$0xff]
    %v5680 = vld [vmem:[%s7 + $0xd8] sm:$0xff]
    %v5681 = vld [vmem:[%s7 + $0xe0] sm:$0xff]
    %v5682 = vld [vmem:[%s7 + $0xe8] sm:$0xff]
    %v5683 = vld [vmem:[%s7 + $0xf0] sm:$0xff]
    %v5684 = vld [vmem:[%s7 + $0xf8] sm:$0xff]
    %v5685 = vld [vmem:[%s7 + $0x100] sm:$0xff]
    %v5686 = vld [vmem:[%s7 + $0x108] sm:$0xff]
    %v5687 = vld [vmem:[%s7 + $0x110] sm:$0xff]
    %v5688 = vld [vmem:[%s7 + $0x118] sm:$0xff]
    %v5689 = vld [vmem:[%s7 + $0x120] sm:$0xff]
    %v5690 = vld [vmem:[%s7 + $0x128] sm:$0xff]
    %v5691 = vld [vmem:[%s7 + $0x130] sm:$0xff]
    %v5692 = vld [vmem:[%s7 + $0x138] sm:$0xff]
    %v5693 = vld [vmem:[%s7 + $0x140] sm:$0xff]
    %v5694 = vld [vmem:[%s7 + $0x148] sm:$0xff]
    %v5695 = vld [vmem:[%s7 + $0x150] sm:$0xff]
    %v5696 = vld [vmem:[%s7 + $0x158] sm:$0xff]
    %v5697 = vld [vmem:[%s7 + $0x160] sm:$0xff]
    %v5698 = vld [vmem:[%s7 + $0x168] sm:$0xff]
    %v5699 = vld [vmem:[%s7 + $0x170] sm:$0xff]
    %v5700 = vld [vmem:[%s7 + $0x178] sm:$0xff]
    %v5701 = vld [vmem:[%s7 + $0x180] sm:$0xff]
    %v5702 = vld [vmem:[%s7 + $0x188] sm:$0xff]
    %v5703 = vld [vmem:[%s7 + $0x190] sm:$0xff]
    %v5704 = vld [vmem:[%s7 + $0x198] sm:$0xff]
    %v5705 = vld [vmem:[%s7 + $0x1a0] sm:$0xff]
    %v5706 = vld [vmem:[%s7 + $0x1a8] sm:$0xff]
    %v5707 = vld [vmem:[%s7 + $0x1b0] sm:$0xff]
    %v5708 = vld [vmem:[%s7 + $0x1b8] sm:$0xff]
    %v5709 = vld [vmem:[%s7 + $0x1c0] sm:$0xff]
    %v5710 = vld [vmem:[%s7 + $0x1c8] sm:$0xff]
    %v5711 = vld [vmem:[%s7 + $0x1d0] sm:$0xff]
    %v5712 = vld [vmem:[%s7 + $0x1d8] sm:$0xff]
    %v5713 = vld [vmem:[%s7 + $0x1e0] sm:$0xff]
    %v5714 = vld [vmem:[%s7 + $0x1e8] sm:$0xff]
    %v5715 = vld [vmem:[%s7 + $0x1f0] sm:$0xff]
    %v5716 = vld [vmem:[%s7 + $0x1f8] sm:$0xff]
    %v5717 = vld [vmem:[%s7 + $0x200] sm:$0xff]
    %v5718 = vld [vmem:[%s7 + $0x208] sm:$0xff]
    %v5719 = vld [vmem:[%s7 + $0x210] sm:$0xff]
    %v5720 = vld [vmem:[%s7 + $0x218] sm:$0xff]
    %v5721 = vld [vmem:[%s7 + $0x220] sm:$0xff]
    %v5722 = vld [vmem:[%s7 + $0x228] sm:$0xff]
    %v5723 = vld [vmem:[%s7 + $0x230] sm:$0xff]
    %v5724 = vld [vmem:[%s7 + $0x238] sm:$0xff]
    %v5725 = vld [vmem:[%s7 + $0x240] sm:$0xff]
    %v5726 = vld [vmem:[%s7 + $0x248] sm:$0xff]
    %v5727 = vld [vmem:[%s7 + $0x250] sm:$0xff]
    %v5728 = vld [vmem:[%s7 + $0x258] sm:$0xff]
    %v5729 = vld [vmem:[%s7 + $0x260] sm:$0xff]
    %v5730 = vld [vmem:[%s7 + $0x268] sm:$0xff]
    %v5731 = vld [vmem:[%s7 + $0x270] sm:$0xff]
    %v5732 = vld [vmem:[%s7 + $0x278] sm:$0xff]
    %v5733 = vld [vmem:[%s7 + $0x280] sm:$0xff]
    %v5734 = vld [vmem:[%s7 + $0x288] sm:$0xff]
    %v5735 = vld [vmem:[%s7 + $0x290] sm:$0xff]
    %v5736 = vld [vmem:[%s7 + $0x298] sm:$0xff]
    %v5737 = vld [vmem:[%s7 + $0x2a0] sm:$0xff]
    %v5738 = vld [vmem:[%s7 + $0x2a8] sm:$0xff]
    %v5739 = vld [vmem:[%s7 + $0x2b0] sm:$0xff]
    %v5740 = vld [vmem:[%s7 + $0x2b8] sm:$0xff]
    %v5741 = vld [vmem:[%s7 + $0x2c0] sm:$0xff]
    %v5742 = vld [vmem:[%s7 + $0x2c8] sm:$0xff]
    %v5743 = vld [vmem:[%s7 + $0x2d0] sm:$0xff]
    %v5744 = vld [vmem:[%s7 + $0x2d8] sm:$0xff]
    %v5745 = vld [vmem:[%s7 + $0x2e0] sm:$0xff]
    %v5746 = vld [vmem:[%s7 + $0x2e8] sm:$0xff]
    %v5747 = vld [vmem:[%s7 + $0x2f0] sm:$0xff]
    %v5748 = vld [vmem:[%s7 + $0x2f8] sm:$0xff]
    %v5749 = vld [vmem:[%s7 + $0x300] sm:$0xff]
    %v5750 = vld [vmem:[%s7 + $0x308] sm:$0xff]
    %v5751 = vld [vmem:[%s7 + $0x310] sm:$0xff]
    %v5752 = vld [vmem:[%s7 + $0x318] sm:$0xff]
    %v5753 = vld [vmem:[%s7 + $0x320] sm:$0xff]
    %v5754 = vld [vmem:[%s7 + $0x328] sm:$0xff]
    %v5755 = vld [vmem:[%s7 + $0x330] sm:$0xff]
    %v5756 = vld [vmem:[%s7 + $0x338] sm:$0xff]
    %v5757 = vld [vmem:[%s7 + $0x340] sm:$0xff]
    %v5758 = vld [vmem:[%s7 + $0x348] sm:$0xff]
    %v5759 = vld [vmem:[%s7 + $0x350] sm:$0xff]
    %v5760 = vld [vmem:[%s7 + $0x358] sm:$0xff]
    %v5761 = vld [vmem:[%s7 + $0x360] sm:$0xff]
    %v5762 = vld [vmem:[%s7 + $0x368] sm:$0xff]
    %v5763 = vld [vmem:[%s7 + $0x370] sm:$0xff]
    %v5764 = vld [vmem:[%s7 + $0x378] sm:$0xff]
    %v5765 = vld [vmem:[%s7 + $0x380] sm:$0xff]
    %v5766 = vld [vmem:[%s7 + $0x388] sm:$0xff]
    %v5767 = vld [vmem:[%s7 + $0x390] sm:$0xff]
    %v5768 = vld [vmem:[%s7 + $0x398] sm:$0xff]
    %v5769 = vld [vmem:[%s7 + $0x3a0] sm:$0xff]
    %v5770 = vld [vmem:[%s7 + $0x3a8] sm:$0xff]
    %v5771 = vld [vmem:[%s7 + $0x3b0] sm:$0xff]
    %v5772 = vld [vmem:[%s7 + $0x3b8] sm:$0xff]
    %v5773 = vld [vmem:[%s7 + $0x3c0] sm:$0xff]
    %v5774 = vld [vmem:[%s7 + $0x3c8] sm:$0xff]
    %v5775 = vld [vmem:[%s7 + $0x3d0] sm:$0xff]
    %v5776 = vld [vmem:[%s7 + $0x3d8] sm:$0xff]
    %v5777 = vld [vmem:[%s7 + $0x3e0] sm:$0xff]
    %v5778 = vld [vmem:[%s7 + $0x3e8] sm:$0xff]
    %v5779 = vld [vmem:[%s7 + $0x3f0] sm:$0xff]
    %v5780 = vld [vmem:[%s7 + $0x3f8] sm:$0xff]
    %v5781 = vld [vmem:[%s7 + $0x400] sm:$0xff]
    %v5782 = vld [vmem:[%s7 + $0x408] sm:$0xff]
    %v5783 = vld [vmem:[%s7 + $0x410] sm:$0xff]
    %v5784 = vld [vmem:[%s7 + $0x418] sm:$0xff]
    %v5785 = vld [vmem:[%s7 + $0x420] sm:$0xff]
    %v5786 = vld [vmem:[%s7 + $0x428] sm:$0xff]
    %v5787 = vld [vmem:[%s7 + $0x430] sm:$0xff]
    %v5788 = vld [vmem:[%s7 + $0x438] sm:$0xff]
    %v5789 = vld [vmem:[%s7 + $0x440] sm:$0xff]
    %v5790 = vld [vmem:[%s7 + $0x448] sm:$0xff]
    %v5791 = vld [vmem:[%s7 + $0x450] sm:$0xff]
    %v5792 = vld [vmem:[%s7 + $0x458] sm:$0xff]
    %v5793 = vld [vmem:[%s7 + $0x460] sm:$0xff]
    %v5794 = vld [vmem:[%s7 + $0x468] sm:$0xff]
    %v5795 = vld [vmem:[%s7 + $0x470] sm:$0xff]
    %v5796 = vld [vmem:[%s7 + $0x478] sm:$0xff]
    %v5797 = vld [vmem:[%s7 + $0x480] sm:$0xff]
    %v5798 = vld [vmem:[%s7 + $0x488] sm:$0xff]
    %v5799 = vld [vmem:[%s7 + $0x490] sm:$0xff]
    %v5800 = vld [vmem:[%s7 + $0x498] sm:$0xff]
    %v5801 = vld [vmem:[%s7 + $0x4a0] sm:$0xff]
    %v5802 = vld [vmem:[%s7 + $0x4a8] sm:$0xff]
    %v5803 = vld [vmem:[%s7 + $0x4b0] sm:$0xff]
    %v5804 = vld [vmem:[%s7 + $0x4b8] sm:$0xff]
    %v5805 = vld [vmem:[%s7 + $0x4c0] sm:$0xff]
    %v5806 = vld [vmem:[%s7 + $0x4c8] sm:$0xff]
    %v5807 = vld [vmem:[%s7 + $0x4d0] sm:$0xff]
    %v5808 = vld [vmem:[%s7 + $0x4d8] sm:$0xff]
    %v5809 = vld [vmem:[%s7 + $0x4e0] sm:$0xff]
    %v5810 = vld [vmem:[%s7 + $0x4e8] sm:$0xff]
    %v5811 = vld [vmem:[%s7 + $0x4f0] sm:$0xff]
    %v5812 = vld [vmem:[%s7 + $0x4f8] sm:$0xff]
    %v5813 = vld [vmem:[%s7 + $0x500] sm:$0xff]
    %v5814 = vld [vmem:[%s7 + $0x508] sm:$0xff]
    %v5815 = vld [vmem:[%s7 + $0x510] sm:$0xff]
    %v5816 = vld [vmem:[%s7 + $0x518] sm:$0xff]
    %v5817 = vld [vmem:[%s7 + $0x520] sm:$0xff]
    %v5818 = vld [vmem:[%s7 + $0x528] sm:$0xff]
    %v5819 = vld [vmem:[%s7 + $0x530] sm:$0xff]
    %v5820 = vld [vmem:[%s7 + $0x538] sm:$0xff]
    %v5821 = vld [vmem:[%s7 + $0x540] sm:$0xff]
    %v5822 = vld [vmem:[%s7 + $0x548] sm:$0xff]
    %v5823 = vld [vmem:[%s7 + $0x550] sm:$0xff]
    %v5824 = vld [vmem:[%s7 + $0x558] sm:$0xff]
    %v5825 = vld [vmem:[%s7 + $0x560] sm:$0xff]
    %v5826 = vld [vmem:[%s7 + $0x568] sm:$0xff]
    %v5827 = vld [vmem:[%s7 + $0x570] sm:$0xff]
    %v5828 = vld [vmem:[%s7 + $0x578] sm:$0xff]
    %v5829 = vld [vmem:[%s7 + $0x580] sm:$0xff]
    %v5830 = vld [vmem:[%s7 + $0x588] sm:$0xff]
    %v5831 = vld [vmem:[%s7 + $0x590] sm:$0xff]
    %v5832 = vld [vmem:[%s7 + $0x598] sm:$0xff]
    %v5833 = vld [vmem:[%s7 + $0x5a0] sm:$0xff]
    %v5834 = vld [vmem:[%s7 + $0x5a8] sm:$0xff]
    %v5835 = vld [vmem:[%s7 + $0x5b0] sm:$0xff]
    %v5836 = vld [vmem:[%s7 + $0x5b8] sm:$0xff]
    %v5837 = vld [vmem:[%s7 + $0x5c0] sm:$0xff]
    %v5838 = vld [vmem:[%s7 + $0x5c8] sm:$0xff]
    %v5839 = vld [vmem:[%s7 + $0x5d0] sm:$0xff]
    %v5840 = vld [vmem:[%s7 + $0x5d8] sm:$0xff]
    %v5841 = vld [vmem:[%s7 + $0x5e0] sm:$0xff]
    %v5842 = vld [vmem:[%s7 + $0x5e8] sm:$0xff]
    %v5843 = vld [vmem:[%s7 + $0x5f0] sm:$0xff]
    %v5844 = vld [vmem:[%s7 + $0x5f8] sm:$0xff]
    %v5845 = vld [vmem:[%s7 + $0x600] sm:$0xff]
    %v5846 = vld [vmem:[%s7 + $0x608] sm:$0xff]
    %v5847 = vld [vmem:[%s7 + $0x610] sm:$0xff]
    %v5848 = vld [vmem:[%s7 + $0x618] sm:$0xff]
    %v5849 = vld [vmem:[%s7 + $0x620] sm:$0xff]
    %v5850 = vld [vmem:[%s7 + $0x628] sm:$0xff]
    %v5851 = vld [vmem:[%s7 + $0x630] sm:$0xff]
    %v5852 = vld [vmem:[%s7 + $0x638] sm:$0xff]
    %v5853 = vld [vmem:[%s7 + $0x640] sm:$0xff]
    %v5854 = vld [vmem:[%s7 + $0x648] sm:$0xff]
    %v5855 = vld [vmem:[%s7 + $0x650] sm:$0xff]
    %v5856 = vld [vmem:[%s7 + $0x658] sm:$0xff]
    %v5857 = vld [vmem:[%s7 + $0x660] sm:$0xff]
    %v5858 = vld [vmem:[%s7 + $0x668] sm:$0xff]
    %v5859 = vld [vmem:[%s7 + $0x670] sm:$0xff]
    %v5860 = vld [vmem:[%s7 + $0x678] sm:$0xff]
    %v5861 = vld [vmem:[%s7 + $0x680] sm:$0xff]
    %v5862 = vld [vmem:[%s7 + $0x688] sm:$0xff]
    %v5863 = vld [vmem:[%s7 + $0x690] sm:$0xff]
    %v5864 = vld [vmem:[%s7 + $0x698] sm:$0xff]
    %v5865 = vld [vmem:[%s7 + $0x6a0] sm:$0xff]
    %v5866 = vld [vmem:[%s7 + $0x6a8] sm:$0xff]
    %v5867 = vld [vmem:[%s7 + $0x6b0] sm:$0xff]
    %v5868 = vld [vmem:[%s7 + $0x6b8] sm:$0xff]
    %v5869 = vld [vmem:[%s7 + $0x6c0] sm:$0xff]
    %v5870 = vld [vmem:[%s7 + $0x6c8] sm:$0xff]
    %v5871 = vld [vmem:[%s7 + $0x6d0] sm:$0xff]
    %v5872 = vld [vmem:[%s7 + $0x6d8] sm:$0xff]
    %v5873 = vld [vmem:[%s7 + $0x6e0] sm:$0xff]
    %v5874 = vld [vmem:[%s7 + $0x6e8] sm:$0xff]
    %v5875 = vld [vmem:[%s7 + $0x6f0] sm:$0xff]
    %v5876 = vld [vmem:[%s7 + $0x6f8] sm:$0xff]
    %v5877 = vld [vmem:[%s7 + $0x700] sm:$0xff]
    %v5878 = vld [vmem:[%s7 + $0x708] sm:$0xff]
    %v5879 = vld [vmem:[%s7 + $0x710] sm:$0xff]
    %v5880 = vld [vmem:[%s7 + $0x718] sm:$0xff]
    %v5881 = vld [vmem:[%s7 + $0x720] sm:$0xff]
    %v5882 = vld [vmem:[%s7 + $0x728] sm:$0xff]
    %v5883 = vld [vmem:[%s7 + $0x730] sm:$0xff]
    %v5884 = vld [vmem:[%s7 + $0x738] sm:$0xff]
    %v5885 = vld [vmem:[%s7 + $0x740] sm:$0xff]
    %v5886 = vld [vmem:[%s7 + $0x748] sm:$0xff]
    %v5887 = vld [vmem:[%s7 + $0x750] sm:$0xff]
    %v5888 = vld [vmem:[%s7 + $0x758] sm:$0xff]
    %v5889 = vld [vmem:[%s7 + $0x760] sm:$0xff]
    %v5890 = vld [vmem:[%s7 + $0x768] sm:$0xff]
    %v5891 = vld [vmem:[%s7 + $0x770] sm:$0xff]
    %v5892 = vld [vmem:[%s7 + $0x778] sm:$0xff]
    %v5893 = vld [vmem:[%s7 + $0x780] sm:$0xff]
    %v5894 = vld [vmem:[%s7 + $0x788] sm:$0xff]
    %v5895 = vld [vmem:[%s7 + $0x790] sm:$0xff]
    %v5896 = vld [vmem:[%s7 + $0x798] sm:$0xff]
    %v5897 = vld [vmem:[%s7 + $0x7a0] sm:$0xff]
    %v5898 = vld [vmem:[%s7 + $0x7a8] sm:$0xff]
    %v5899 = vld [vmem:[%s7 + $0x7b0] sm:$0xff]
    %v5900 = vld [vmem:[%s7 + $0x7b8] sm:$0xff]
    %v5901 = vld [vmem:[%s7 + $0x7c0] sm:$0xff]
    %v5902 = vld [vmem:[%s7 + $0x7c8] sm:$0xff]
    %v5903 = vld [vmem:[%s7 + $0x7d0] sm:$0xff]
    %v5904 = vld [vmem:[%s7 + $0x7d8] sm:$0xff]
    %v5905 = vld [vmem:[%s7 + $0x7e0] sm:$0xff]
    %v5906 = vld [vmem:[%s7 + $0x7e8] sm:$0xff]
    %v5907 = vld [vmem:[%s7 + $0x7f0] sm:$0xff]
    %v5908 = vld [vmem:[%s7 + $0x7f8] sm:$0xff]
    %v5910 = vlaneseq
    %v5911 = vshrl.u32 %v5910, 7
    %v5912 = vsub.s32 0, %v5911
    %v5913 = vrot.slane %v5645, %v5912
    %v5914 = vlaneseq
    %v5915 = vshrl.u32 %v5914, 7
    %v5916 = vsub.s32 1, %v5915
    %v5917 = vrot.slane %v5645, %v5916
    %5920 = vmatprep.subr.mxu0 %v5774
    %5921 = vmatpush1.msra.mxu0 %v5773
    %5922 = vmatprep.subr.mxu0 %v5766
    %5923 = vmatpush1.msra.mxu0 %v5765
    %5924 = vmatprep.subr.mxu0 %v5758
    %5925 = vmatpush1.msra.mxu0 %v5757
    %5926 = vmatprep.subr.mxu0 %v5750
    %5927 = vmatpush1.msra.mxu0 %v5749
    %5928 = vmatprep.subr.mxu0 %v5742
    %5929 = vmatpush1.msra.mxu0 %v5741
    %5930 = vmatprep.subr.mxu0 %v5734
    %5931 = vmatpush1.msra.mxu0 %v5733
    %5932 = vmatprep.subr.mxu0 %v5726
    %5933 = vmatpush1.msra.mxu0 %v5725
    %5934 = vmatprep.subr.mxu0 %v5718
    %5935 = vmatpush1.msra.mxu0 %v5717
    %5936 = vmatprep.subr.mxu0 %v5710
    %5937 = vmatpush1.msra.mxu0 %v5709
    %5938 = vmatprep.subr.mxu0 %v5702
    %5939 = vmatpush1.msra.mxu0 %v5701
    %5940 = vmatprep.subr.mxu0 %v5694
    %5941 = vmatpush1.msra.mxu0 %v5693
    %5942 = vmatprep.subr.mxu0 %v5686
    %5943 = vmatpush1.msra.mxu0 %v5685
    %5944 = vmatprep.subr.mxu0 %v5678
    %5945 = vmatpush1.msra.mxu0 %v5677
    %5946 = vmatprep.subr.mxu0 %v5670
    %5947 = vmatpush1.msra.mxu0 %v5669
    %5948 = vmatprep.subr.mxu0 %v5662
    %5949 = vmatpush1.msra.mxu0 %v5661
    %5950 = vmatprep.subr.mxu0 %v5654
    %5951 = vmatpush1.msra.mxu0 %v5653
    %5952 = vmatprep.subr.mxu0 %v5902
    %5953 = vmatpush2.msra.mxu0 %v5901
    %5954 = vmatprep.subr.mxu0 %v5894
    %5955 = vmatpush2.msra.mxu0 %v5893
    %5956 = vmatprep.subr.mxu0 %v5886
    %5957 = vmatpush2.msra.mxu0 %v5885
    %5958 = vmatprep.subr.mxu0 %v5878
    %5959 = vmatpush2.msra.mxu0 %v5877
    %5960 = vmatprep.subr.mxu0 %v5870
    %5961 = vmatpush2.msra.mxu0 %v5869
    %5962 = vmatprep.subr.mxu0 %v5862
    %5963 = vmatpush2.msra.mxu0 %v5861
    %5964 = vmatprep.subr.mxu0 %v5854
    %5965 = vmatpush2.msra.mxu0 %v5853
    %5966 = vmatprep.subr.mxu0 %v5846
    %5967 = vmatpush2.msra.mxu0 %v5845
    %5968 = vmatprep.subr.mxu0 %v5838
    %5969 = vmatpush2.msra.mxu0 %v5837
    %5970 = vmatprep.subr.mxu0 %v5830
    %5971 = vmatpush2.msra.mxu0 %v5829
    %5972 = vmatprep.subr.mxu0 %v5822
    %5973 = vmatpush2.msra.mxu0 %v5821
    %5974 = vmatprep.subr.mxu0 %v5814
    %5975 = vmatpush2.msra.mxu0 %v5813
    %5976 = vmatprep.subr.mxu0 %v5806
    %5977 = vmatpush2.msra.mxu0 %v5805
    %5978 = vmatprep.subr.mxu0 %v5798
    %5979 = vmatpush2.msra.mxu0 %v5797
    %5980 = vmatprep.subr.mxu0 %v5790
    %5981 = vmatpush2.msra.mxu0 %v5789
    %5982 = vmatprep.subr.mxu0 %v5782
    %5983 = vmatpush2.msra.mxu0 %v5781
    %5984 = vmatprep.mubr.f32.mxu0 %v5917
    %5985 = vmatmul.mubr.f32.gmra.mxu0 %v5913
    %v5986 = vpop.f32.mrf.mxu0
    %v5987 = vadd.f32 0.0, %v5986
    %v5988 = vpop.f32.mrf.mxu0
    %v5989 = vadd.f32 0.0, %v5988
    %5990 = vdwg.mxu0
    %5991 = vmatprep.subr.mxu0 %v5776
    %5992 = vmatpush1.msra.mxu0 %v5775
    %5993 = vmatprep.subr.mxu0 %v5768
    %5994 = vmatpush1.msra.mxu0 %v5767
    %5995 = vmatprep.subr.mxu0 %v5760
    %5996 = vmatpush1.msra.mxu0 %v5759
    %5997 = vmatprep.subr.mxu0 %v5752
    %5998 = vmatpush1.msra.mxu0 %v5751
    %5999 = vmatprep.subr.mxu0 %v5744
    %6000 = vmatpush1.msra.mxu0 %v5743
    %6001 = vmatprep.subr.mxu0 %v5736
    %6002 = vmatpush1.msra.mxu0 %v5735
    %6003 = vmatprep.subr.mxu0 %v5728
    %6004 = vmatpush1.msra.mxu0 %v5727
    %6005 = vmatprep.subr.mxu0 %v5720
    %6006 = vmatpush1.msra.mxu0 %v5719
    %6007 = vmatprep.subr.mxu0 %v5712
    %6008 = vmatpush1.msra.mxu0 %v5711
    %6009 = vmatprep.subr.mxu0 %v5704
    %6010 = vmatpush1.msra.mxu0 %v5703
    %6011 = vmatprep.subr.mxu0 %v5696
    %6012 = vmatpush1.msra.mxu0 %v5695
    %6013 = vmatprep.subr.mxu0 %v5688
    %6014 = vmatpush1.msra.mxu0 %v5687
    %6015 = vmatprep.subr.mxu0 %v5680
    %6016 = vmatpush1.msra.mxu0 %v5679
    %6017 = vmatprep.subr.mxu0 %v5672
    %6018 = vmatpush1.msra.mxu0 %v5671
    %6019 = vmatprep.subr.mxu0 %v5664
    %6020 = vmatpush1.msra.mxu0 %v5663
    %6021 = vmatprep.subr.mxu0 %v5656
    %6022 = vmatpush1.msra.mxu0 %v5655
    %6023 = vmatprep.subr.mxu0 %v5904
    %6024 = vmatpush2.msra.mxu0 %v5903
    %6025 = vmatprep.subr.mxu0 %v5896
    %6026 = vmatpush2.msra.mxu0 %v5895
    %6027 = vmatprep.subr.mxu0 %v5888
    %6028 = vmatpush2.msra.mxu0 %v5887
    %6029 = vmatprep.subr.mxu0 %v5880
    %6030 = vmatpush2.msra.mxu0 %v5879
    %6031 = vmatprep.subr.mxu0 %v5872
    %6032 = vmatpush2.msra.mxu0 %v5871
    %6033 = vmatprep.subr.mxu0 %v5864
    %6034 = vmatpush2.msra.mxu0 %v5863
    %6035 = vmatprep.subr.mxu0 %v5856
    %6036 = vmatpush2.msra.mxu0 %v5855
    %6037 = vmatprep.subr.mxu0 %v5848
    %6038 = vmatpush2.msra.mxu0 %v5847
    %6039 = vmatprep.subr.mxu0 %v5840
    %6040 = vmatpush2.msra.mxu0 %v5839
    %6041 = vmatprep.subr.mxu0 %v5832
    %6042 = vmatpush2.msra.mxu0 %v5831
    %6043 = vmatprep.subr.mxu0 %v5824
    %6044 = vmatpush2.msra.mxu0 %v5823
    %6045 = vmatprep.subr.mxu0 %v5816
    %6046 = vmatpush2.msra.mxu0 %v5815
    %6047 = vmatprep.subr.mxu0 %v5808
    %6048 = vmatpush2.msra.mxu0 %v5807
    %6049 = vmatprep.subr.mxu0 %v5800
    %6050 = vmatpush2.msra.mxu0 %v5799
    %6051 = vmatprep.subr.mxu0 %v5792
    %6052 = vmatpush2.msra.mxu0 %v5791
    %6053 = vmatprep.subr.mxu0 %v5784
    %6054 = vmatpush2.msra.mxu0 %v5783
    %6055 = vmatprep.mubr.f32.mxu0 %v5917
    %6056 = vmatmul.mubr.f32.gmra.mxu0 %v5913
    %v6057 = vpop.f32.mrf.mxu0
    %v6058 = vadd.f32 0.0, %v6057
    %v6059 = vpop.f32.mrf.mxu0
    %v6060 = vadd.f32 0.0, %v6059
    %6061 = vdwg.mxu0
    %6062 = vmatprep.subr.mxu0 %v5778
    %6063 = vmatpush1.msra.mxu0 %v5777
    %6064 = vmatprep.subr.mxu0 %v5770
    %6065 = vmatpush1.msra.mxu0 %v5769
    %6066 = vmatprep.subr.mxu0 %v5762
    %6067 = vmatpush1.msra.mxu0 %v5761
    %6068 = vmatprep.subr.mxu0 %v5754
    %6069 = vmatpush1.msra.mxu0 %v5753
    %6070 = vmatprep.subr.mxu0 %v5746
    %6071 = vmatpush1.msra.mxu0 %v5745
    %6072 = vmatprep.subr.mxu0 %v5738
    %6073 = vmatpush1.msra.mxu0 %v5737
    %6074 = vmatprep.subr.mxu0 %v5730
    %6075 = vmatpush1.msra.mxu0 %v5729
    %6076 = vmatprep.subr.mxu0 %v5722
    %6077 = vmatpush1.msra.mxu0 %v5721
    %6078 = vmatprep.subr.mxu0 %v5714
    %6079 = vmatpush1.msra.mxu0 %v5713
    %6080 = vmatprep.subr.mxu0 %v5706
    %6081 = vmatpush1.msra.mxu0 %v5705
    %6082 = vmatprep.subr.mxu0 %v5698
    %6083 = vmatpush1.msra.mxu0 %v5697
    %6084 = vmatprep.subr.mxu0 %v5690
    %6085 = vmatpush1.msra.mxu0 %v5689
    %6086 = vmatprep.subr.mxu0 %v5682
    %6087 = vmatpush1.msra.mxu0 %v5681
    %6088 = vmatprep.subr.mxu0 %v5674
    %6089 = vmatpush1.msra.mxu0 %v5673
    %6090 = vmatprep.subr.mxu0 %v5666
    %6091 = vmatpush1.msra.mxu0 %v5665
    %6092 = vmatprep.subr.mxu0 %v5658
    %6093 = vmatpush1.msra.mxu0 %v5657
    %6094 = vmatprep.subr.mxu0 %v5906
    %6095 = vmatpush2.msra.mxu0 %v5905
    %6096 = vmatprep.subr.mxu0 %v5898
    %6097 = vmatpush2.msra.mxu0 %v5897
    %6098 = vmatprep.subr.mxu0 %v5890
    %6099 = vmatpush2.msra.mxu0 %v5889
    %6100 = vmatprep.subr.mxu0 %v5882
    %6101 = vmatpush2.msra.mxu0 %v5881
    %6102 = vmatprep.subr.mxu0 %v5874
    %6103 = vmatpush2.msra.mxu0 %v5873
    %6104 = vmatprep.subr.mxu0 %v5866
    %6105 = vmatpush2.msra.mxu0 %v5865
    %6106 = vmatprep.subr.mxu0 %v5858
    %6107 = vmatpush2.msra.mxu0 %v5857
    %6108 = vmatprep.subr.mxu0 %v5850
    %6109 = vmatpush2.msra.mxu0 %v5849
    %6110 = vmatprep.subr.mxu0 %v5842
    %6111 = vmatpush2.msra.mxu0 %v5841
    %6112 = vmatprep.subr.mxu0 %v5834
    %6113 = vmatpush2.msra.mxu0 %v5833
    %6114 = vmatprep.subr.mxu0 %v5826
    %6115 = vmatpush2.msra.mxu0 %v5825
    %6116 = vmatprep.subr.mxu0 %v5818
    %6117 = vmatpush2.msra.mxu0 %v5817
    %6118 = vmatprep.subr.mxu0 %v5810
    %6119 = vmatpush2.msra.mxu0 %v5809
    %6120 = vmatprep.subr.mxu0 %v5802
    %6121 = vmatpush2.msra.mxu0 %v5801
    %6122 = vmatprep.subr.mxu0 %v5794
    %6123 = vmatpush2.msra.mxu0 %v5793
    %6124 = vmatprep.subr.mxu0 %v5786
    %6125 = vmatpush2.msra.mxu0 %v5785
    %6126 = vmatprep.mubr.f32.mxu0 %v5917
    %6127 = vmatmul.mubr.f32.gmra.mxu0 %v5913
    %v6128 = vpop.f32.mrf.mxu0
    %v6129 = vadd.f32 0.0, %v6128
    %v6130 = vpop.f32.mrf.mxu0
    %v6131 = vadd.f32 0.0, %v6130
    %6132 = vdwg.mxu0
    %6133 = vmatprep.subr.mxu0 %v5780
    %6134 = vmatpush1.msra.mxu0 %v5779
    %6135 = vmatprep.subr.mxu0 %v5772
    %6136 = vmatpush1.msra.mxu0 %v5771
    %6137 = vmatprep.subr.mxu0 %v5764
    %6138 = vmatpush1.msra.mxu0 %v5763
    %6139 = vmatprep.subr.mxu0 %v5756
    %6140 = vmatpush1.msra.mxu0 %v5755
    %6141 = vmatprep.subr.mxu0 %v5748
    %6142 = vmatpush1.msra.mxu0 %v5747
    %6143 = vmatprep.subr.mxu0 %v5740
    %6144 = vmatpush1.msra.mxu0 %v5739
    %6145 = vmatprep.subr.mxu0 %v5732
    %6146 = vmatpush1.msra.mxu0 %v5731
    %6147 = vmatprep.subr.mxu0 %v5724
    %6148 = vmatpush1.msra.mxu0 %v5723
    %6149 = vmatprep.subr.mxu0 %v5716
    %6150 = vmatpush1.msra.mxu0 %v5715
    %6151 = vmatprep.subr.mxu0 %v5708
    %6152 = vmatpush1.msra.mxu0 %v5707
    %6153 = vmatprep.subr.mxu0 %v5700
    %6154 = vmatpush1.msra.mxu0 %v5699
    %6155 = vmatprep.subr.mxu0 %v5692
    %6156 = vmatpush1.msra.mxu0 %v5691
    %6157 = vmatprep.subr.mxu0 %v5684
    %6158 = vmatpush1.msra.mxu0 %v5683
    %6159 = vmatprep.subr.mxu0 %v5676
    %6160 = vmatpush1.msra.mxu0 %v5675
    %6161 = vmatprep.subr.mxu0 %v5668
    %6162 = vmatpush1.msra.mxu0 %v5667
    %6163 = vmatprep.subr.mxu0 %v5660
    %6164 = vmatpush1.msra.mxu0 %v5659
    %6165 = vmatprep.subr.mxu0 %v5908
    %6166 = vmatpush2.msra.mxu0 %v5907
    %6167 = vmatprep.subr.mxu0 %v5900
    %6168 = vmatpush2.msra.mxu0 %v5899
    %6169 = vmatprep.subr.mxu0 %v5892
    %6170 = vmatpush2.msra.mxu0 %v5891
    %6171 = vmatprep.subr.mxu0 %v5884
    %6172 = vmatpush2.msra.mxu0 %v5883
    %6173 = vmatprep.subr.mxu0 %v5876
    %6174 = vmatpush2.msra.mxu0 %v5875
    %6175 = vmatprep.subr.mxu0 %v5868
    %6176 = vmatpush2.msra.mxu0 %v5867
    %6177 = vmatprep.subr.mxu0 %v5860
    %6178 = vmatpush2.msra.mxu0 %v5859
    %6179 = vmatprep.subr.mxu0 %v5852
    %6180 = vmatpush2.msra.mxu0 %v5851
    %6181 = vmatprep.subr.mxu0 %v5844
    %6182 = vmatpush2.msra.mxu0 %v5843
    %6183 = vmatprep.subr.mxu0 %v5836
    %6184 = vmatpush2.msra.mxu0 %v5835
    %6185 = vmatprep.subr.mxu0 %v5828
    %6186 = vmatpush2.msra.mxu0 %v5827
    %6187 = vmatprep.subr.mxu0 %v5820
    %6188 = vmatpush2.msra.mxu0 %v5819
    %6189 = vmatprep.subr.mxu0 %v5812
    %6190 = vmatpush2.msra.mxu0 %v5811
    %6191 = vmatprep.subr.mxu0 %v5804
    %6192 = vmatpush2.msra.mxu0 %v5803
    %6193 = vmatprep.subr.mxu0 %v5796
    %6194 = vmatpush2.msra.mxu0 %v5795
    %6195 = vmatprep.subr.mxu0 %v5788
    %6196 = vmatpush2.msra.mxu0 %v5787
    %6197 = vmatprep.mubr.f32.mxu0 %v5917
    %6198 = vmatmul.mubr.f32.gmra.mxu0 %v5913
    %v6199 = vpop.f32.mrf.mxu0
    %v6200 = vadd.f32 0.0, %v6199
    %v6201 = vpop.f32.mrf.mxu0
    %v6202 = vadd.f32 0.0, %v6201
    %6203 = vdwg.mxu0
    %v6212 = vcombine.low %v5987, %v5989
    %v6213 = vcombine.low %v6058, %v6060
    %v6214 = vcombine.low %v6129, %v6131
    %v6215 = vcombine.low %v6200, %v6202
    %v6217 = vunpack.c.l.s4 1966171168
    %v6218 = vunpack.c.0.s8 %v6217
    %v6219 = vlaneseq
    %v6220 = vshrl.u32 %v6219, 7
    %v6221 = vsub.s32 %v6218, %v6220
    %v6222 = vrot.slane %v6212, %v6221
    %v6224 = vunpack.c.l.s4 1966171168
    %v6225 = vunpack.c.0.s8 %v6224
    %v6226 = vlaneseq
    %v6227 = vshrl.u32 %v6226, 7
    %v6228 = vsub.s32 %v6225, %v6227
    %v6229 = vrot.slane %v6213, %v6228
    %v6231 = vunpack.c.l.s4 1966171168
    %v6232 = vunpack.c.0.s8 %v6231
    %v6233 = vlaneseq
    %v6234 = vshrl.u32 %v6233, 7
    %v6235 = vsub.s32 %v6232, %v6234
    %v6236 = vrot.slane %v6214, %v6235
    %v6238 = vunpack.c.l.s4 1966171168
    %v6239 = vunpack.c.0.s8 %v6238
    %v6240 = vlaneseq
    %v6241 = vshrl.u32 %v6240, 7
    %v6242 = vsub.s32 %v6239, %v6241
    %v6243 = vrot.slane %v6215, %v6242
    %v6244 = vcombine.low %v6222, %v6229
    %v6245 = vcombine.low %v6236, %v6243
    %v6247 = vunpack.c.l.s4 1966171168
    %v6248 = vunpack.c.0.s8 %v6247
    %v6249 = vlaneseq
    %v6250 = vshrl.u32 %v6249, 7
    %v6251 = vsub.s32 %v6248, %v6250
    %v6252 = vrot.slane %v6244, %v6251
    %v6254 = vunpack.c.l.s4 1966171168
    %v6255 = vunpack.c.0.s8 %v6254
    %v6256 = vlaneseq
    %v6257 = vshrl.u32 %v6256, 7
    %v6258 = vsub.s32 %v6255, %v6257
    %v6259 = vrot.slane %v6245, %v6258
    %v6260 = vcombine.low %v6252, %v6259
    %v6262 = vadd.f32 %v5652, %v6260
    %v6263 = vxor.u32 %v6262, 2147483648
    %v6264 = vmul.f32 %v6263, 1.442695
    %v6265 = vpow.pop %v6264
    %v6266 = vadd.f32 %v6265, 1.0
    %v6267 = vrcp.pop %v6266
    %v6268 = vmul.f32 1.0, %v6267
    %v6270 = vrot.slane %v6262, 2
    %v6272 = vxor.u32 %v6270, 2147483648
    %v6273 = vmul.f32 %v6272, 1.442695
    %v6274 = vpow.pop %v6273
    %v6275 = vadd.f32 %v6274, 1.0
    %v6276 = vrcp.pop %v6275
    %v6277 = vmul.f32 1.0, %v6276
    %v6278 = vrot.slane %v6262, 4
    %v6280 = vtanh.pop %v6278
    %v6281 = vrot.slane %v6262, 6
    %v6283 = vxor.u32 %v6281, 2147483648
    %v6284 = vmul.f32 %v6283, 1.442695
    %v6285 = vpow.pop %v6284
    %v6286 = vadd.f32 %v6285, 1.0
    %v6287 = vrcp.pop %v6286
    %v6288 = vmul.f32 1.0, %v6287
    %v6289 = vmul.f32 %v6277, %v5643
    %v6290 = vmul.f32 %v6268, %v6280
    %v6291 = vadd.f32 %v6289, %v6290
    %v6292 = vtanh.pop %v6291
    %v6293 = vmul.f32 %v6288, %v6292
    %s6294 = scalar_lea.vmem [#allocation11], 7
    %6295 = vst.msk [vmem:[%s6294] ss:$8 sm:$0x3] %vm64, %v6293
    %6296 = vst.msk [vmem:[%s6294] ss:$8 sm:$0x0] %vm64, %v6293
    %6297 = vst.msk [vmem:[#allocation13] sm:$0x3] %vm64, %v6293
    %6298 = vst.msk [vmem:[#allocation14] sm:$0x3] %vm64, %v6291
    // Predicated region
    $region34: #{encoder_rnn_sequence.1} parent=1 // pred_check
      _
    $region35: #{encoder_rnn_sequence.1} parent=1 // pred_check_branch
      %6300 = sbr.rel (0) target = $region37
    $region36: #{encoder_rnn_sequence.1} parent=1 // pred_region
      %s6302 = ssub.s32 384, 384
      %6303 = vsyncadd [#allocation10], %s6302
      %s6305 = sshll.u32 [#allocation9], 4
      %s6306 = int_to_ptr.vmem [resolvable:$true] %s6305
      %6308 = dma.vmem_to_hbm [thread:$0]  %s6306, 384, %s11, [#allocation10]
    $region37: #{encoder_rnn_sequence.1} parent=1 // pred_fallthru
      _
    // Predicated region
    $region38: #{encoder_rnn_sequence.1} parent=1 // pred_check
      _
    $region39: #{encoder_rnn_sequence.1} parent=1 // pred_check_branch
      %6310 = sbr.rel (0) target = $region41
    $region40: #{encoder_rnn_sequence.1} parent=1 // pred_region
      %s6312 = ssub.s32 256, 256
      %6313 = vsyncadd [#allocation12], %s6312
      %s6315 = sshll.u32 [#allocation11], 4
      %s6316 = int_to_ptr.vmem [resolvable:$true] %s6315
      %6318 = dma.vmem_to_hbm [thread:$0]  %s6316, 256, %s12, [#allocation12]
    $region41: #{encoder_rnn_sequence.1} parent=1 // pred_fallthru
      _
    // Predicated region
    $region42: #{encoder_rnn_sequence.1} parent=1 // pred_check
      _
    $region43: #{encoder_rnn_sequence.1} parent=1 // pred_check_branch
      %6320 = sbr.rel (0) target = $region45
    $region44: #{encoder_rnn_sequence.1} parent=1 // pred_region
      %s6322 = ssub.s32 32, 32
      %6323 = vsyncadd [#allocation12], %s6322
      %s6325 = sshll.u32 [#allocation13], 4
      %s6326 = int_to_ptr.vmem [resolvable:$true] %s6325
      %6328 = dma.vmem_to_hbm [thread:$0]  %s6326, 32, %s13, [#allocation12]
    $region45: #{encoder_rnn_sequence.1} parent=1 // pred_fallthru
      _
    // Predicated region
    $region46: #{encoder_rnn_sequence.1} parent=1 // pred_check
      _
    $region47: #{encoder_rnn_sequence.1} parent=1 // pred_check_branch
      %6330 = sbr.rel (0) target = $region49
    $region48: #{encoder_rnn_sequence.1} parent=1 // pred_region
      %s6332 = ssub.s32 32, 32
      %6333 = vsyncadd [#allocation15], %s6332
      %s6335 = sshll.u32 [#allocation14], 4
      %s6336 = int_to_ptr.vmem [resolvable:$true] %s6335
      %6338 = dma.vmem_to_hbm [thread:$0]  %s6336, 32, %s14, [#allocation15]
    $region49: #{encoder_rnn_sequence.1} parent=1 // pred_fallthru
      _
    // Predicated region
    $region50: #{encoder_rnn_sequence.1} parent=1 // pred_check
      _
    $region51: #{encoder_rnn_sequence.1} parent=1 // pred_check_branch
      %6340 = sbr.rel (0) target = $region53
    $region52: #{encoder_rnn_sequence.1} parent=1 // pred_region
      %6341 = dma.done [#allocation10], 384
    $region53: #{encoder_rnn_sequence.1} parent=1 // pred_fallthru
      _
    // Predicated region
    $region54: #{encoder_rnn_sequence.1} parent=1 // pred_check
      _
    $region55: #{encoder_rnn_sequence.1} parent=1 // pred_check_branch
      %6343 = sbr.rel (0) target = $region57
    $region56: #{encoder_rnn_sequence.1} parent=1 // pred_region
      %6344 = dma.done [#allocation12], 256
    $region57: #{encoder_rnn_sequence.1} parent=1 // pred_fallthru
      _
    // Predicated region
    $region58: #{encoder_rnn_sequence.1} parent=1 // pred_check
      _
    $region59: #{encoder_rnn_sequence.1} parent=1 // pred_check_branch
      %6346 = sbr.rel (0) target = $region61
    $region60: #{encoder_rnn_sequence.1} parent=1 // pred_region
      %6347 = dma.done [#allocation12], 32
    $region61: #{encoder_rnn_sequence.1} parent=1 // pred_fallthru
      _
    // Predicated region
    $region62: #{encoder_rnn_sequence.1} parent=1 // pred_check
      _
    $region63: #{encoder_rnn_sequence.1} parent=1 // pred_check_branch
      %6349 = sbr.rel (0) target = $region65
    $region64: #{encoder_rnn_sequence.1} parent=1 // pred_region
      %6350 = dma.done [#allocation15], 32
    $region65: #{encoder_rnn_sequence.1} parent=1 // pred_fallthru
      _
    %6351 = vsyncpa [#allocation10], 1
    %6352 = vsyncpa [#allocation12], 1
    %6353 = vsyncpa [#allocation15], 1

</llo_original>
